<compile_context>
chip_gen: v7x
topology: tpu7x:2x2x1
jax: 0.10.0
libtpu: 0.0.40
codegen_flags: <defaults>
</compile_context>

<pallas_src>
import jax
import jax.numpy as jnp
from jax.experimental import pallas as pl
from jax.experimental.pallas import tpu as pltpu

# Full-f32 matmuls everywhere (reference + kernel trace); avoids bf16 dot rounding
# being amplified by the BatchNorm chain.
jax.config.update("jax_default_matmul_precision", "highest")

EPS = 1e-5
LANE = 128          # TPU lane width; all MLP intermediates kept lane-dense at 128
FEAT = 512          # backbone output dim (hard-coded via .view(-1, 512) in the module)
PROJ_HID = 64       # args.proj_hidden_dim
LATENT = 32         # args.latent_dim
PRE_HID = 64        # args.pre_hidden_dim
TK = 512            # contraction tile for the backbone (fits v5e/v6e/v7x VMEM budgets)

# ---- packed-parameter slab layout (rows, all 128 lanes wide, zero padded) ----
_R_W1 = 0                    # rows [0,512)   : w1  (512, 64)  in [:, :PROJ_HID]
_R_W3 = _R_W1 + FEAT         # rows [512,640) : w3  ( 64, 32)  in [:PROJ_HID, :LATENT]
_R_WP1 = _R_W3 + LANE        # rows [640,768) : wp1 ( 32, 64)  in [:LATENT, :PRE_HID]
_R_WP2 = _R_WP1 + LANE       # rows [768,896) : wp2 ( 64, 32)  in [:PRE_HID, :LATENT]
_R_VEC = _R_WP2 + LANE       # rows [896,904) : b1,g1,be1,b3,bp1,gp1,bep1,bp2 (1 row each)
SLAB_ROWS = _R_VEC + 8       # 904 (multiple of 8 -> sublane aligned)


# ---------------- in-kernel helpers (traced inside the Pallas body) ----------------

def _bn_affine_relu(x, gamma, beta):
    # torch BatchNorm1d train mode: batch mean, biased variance.  Zero-padded lanes
    # stay exactly zero ((0-0)*rsqrt(eps)*0 + 0 = 0), so padding is harmless.
    mu = jnp.mean(x, axis=0, keepdims=True)
    var = jnp.mean((x - mu) ** 2, axis=0, keepdims=True)
    xh = (x - mu) * jax.lax.rsqrt(var + EPS)
    return jnp.maximum(xh * gamma + beta, 0.0)


def _bn_noaffine(x):
    mu = jnp.mean(x, axis=0, keepdims=True)
    var = jnp.mean((x - mu) ** 2, axis=0, keepdims=True)
    return (x - mu) * jax.lax.rsqrt(var + EPS)


# ---------------- fused Pallas kernel ----------------

def simsiam_fused_kernel(x_ref, wc_ref, bbb_ref, slab_ref, out_ref, h_acc):
    # grid axis 0 runs over K = C*H*W tiles of the backbone contraction ("arbitrary").
    k = pl.program_id(0)

    @pl.when(k == 0)
    def _():
        # backbone bias is constant across K tiles -> fold it into the accumulator init.
        h_acc[...] = jnp.broadcast_to(bbb_ref[...], h_acc.shape)

    # TODO(synk): the real backbone is resnet.get_resnet(args.resnet, 4) which is not
    # provided; stand-in = global average pool over spatial dims + Linear(C -> 512),
    # folded into one MXU contraction (the 1/(H*W) scale is folded into wc in the
    # wrapper) and accumulated over K tiles.
    h_acc[...] += jnp.dot(x_ref[...], wc_ref[...], preferred_element_type=jnp.float32)

    @pl.when(k == pl.num_programs(0) - 1)
    def _():
        # static, sublane-aligned views into the packed parameter slab
        w1 = slab_ref[_R_W1:_R_W1 + FEAT, :]          # (512, 128)
        w3 = slab_ref[_R_W3:_R_W3 + LANE, :]          # (128, 128)
        wp1 = slab_ref[_R_WP1:_R_WP1 + LANE, :]       # (128, 128)
        wp2 = slab_ref[_R_WP2:_R_WP2 + LANE, :]       # (128, 128)
        vecs = slab_ref[_R_VEC:_R_VEC + 8, :]         # (8, 128) single aligned load
        b1 = vecs[0:1, :]
        g1 = vecs[1:2, :]
        be1 = vecs[2:3, :]
        b3 = vecs[3:4, :]
        bp1 = vecs[4:5, :]
        gp1 = vecs[5:6, :]
        bep1 = vecs[6:7, :]
        bp2 = vecs[7:8, :]

        h = h_acc[...]                                                      # (B, 512)

        # projector: Linear(512,64)+BN+ReLU -> Linear(64,32)+BN(affine=False)
        a1 = jnp.dot(h, w1, preferred_element_type=jnp.float32) + b1        # (B, 128)
        a1 = _bn_affine_relu(a1, g1, be1)
        a3 = jnp.dot(a1, w3, preferred_element_type=jnp.float32) + b3       # (B, 128)
        z = _bn_noaffine(a3)

        # predictor: Linear(32,64)+BN+ReLU -> Linear(64,32)
        q1 = jnp.dot(z, wp1, preferred_element_type=jnp.float32) + bp1      # (B, 128)
        q1 = _bn_affine_relu(q1, gp1, bep1)
        p = jnp.dot(q1, wp2, preferred_element_type=jnp.float32) + bp2      # (B, 128)

        # lane-dense packed output: z in lanes [0,128), p in lanes [128,256)
        out_ref[:, 0:LANE] = z
        out_ref[:, LANE:2 * LANE] = p


# ---------------- parameter init (deterministic, PyTorch-Linear-like) ----------------

def _init_linear(key, fan_in, fan_out):
    kw, kb = jax.random.split(key)
    bound = 1.0 / (fan_in ** 0.5)
    w = jax.random.uniform(kw, (fan_in, fan_out), jnp.float32, -bound, bound)
    b = jax.random.uniform(kb, (1, fan_out), jnp.float32, -bound, bound)
    return w, b


def init_params(key, in_ch):
    keys = jax.random.split(key, 5)
    w_bb, b_bb = _init_linear(keys[0], in_ch, FEAT)              # stand-in backbone head
    w1, b1 = _init_linear(keys[1], FEAT, PROJ_HID)               # projector layer1
    g1 = jnp.ones((1, PROJ_HID), jnp.float32)
    be1 = jnp.zeros((1, PROJ_HID), jnp.float32)
    w3, b3 = _init_linear(keys[2], PROJ_HID, LATENT)             # projector layer3 (BN affine=False)
    wp1, bp1 = _init_linear(keys[3], LATENT, PRE_HID)            # predictor layer1
    gp1 = jnp.ones((1, PRE_HID), jnp.float32)
    bep1 = jnp.zeros((1, PRE_HID), jnp.float32)
    wp2, bp2 = _init_linear(keys[4], PRE_HID, LATENT)            # predictor layer2
    return dict(w_bb=w_bb, b_bb=b_bb, w1=w1, b1=b1, g1=g1, be1=be1,
                w3=w3, b3=b3, wp1=wp1, bp1=bp1, gp1=gp1, bep1=bep1,
                wp2=wp2, bp2=bp2)


# ---------------- wrapper-side parameter packing (layout plumbing) ----------------

def _pad_w(w, rows):
    out = jnp.zeros((rows, LANE), jnp.float32)
    return out.at[:w.shape[0], :w.shape[1]].set(w)


def _pad_v(v):
    out = jnp.zeros((1, LANE), jnp.float32)
    return out.at[:, :v.shape[1]].set(v)


def pack_params(params):
    """Pack the 12 small MLP params into one lane-padded (SLAB_ROWS, 128) slab."""
    slab = jnp.concatenate([
        _pad_w(params["w1"], FEAT),       # rows [0,512)
        _pad_w(params["w3"], LANE),       # rows [512,640)
        _pad_w(params["wp1"], LANE),      # rows [640,768)
        _pad_w(params["wp2"], LANE),      # rows [768,896)
        _pad_v(params["b1"]), _pad_v(params["g1"]), _pad_v(params["be1"]),
        _pad_v(params["b3"]), _pad_v(params["bp1"]), _pad_v(params["gp1"]),
        _pad_v(params["bep1"]), _pad_v(params["bp2"]),
    ], axis=0)
    assert slab.shape == (SLAB_ROWS, LANE)
    return slab


# ---------------- wrapper ----------------

def simsiam_forward(x, params):
    B, C, H, W = x.shape
    HW = H * W
    K = C * HW

    # flatten NCHW -> (B, C*H*W); fold the 1/(H*W) average pool into the backbone
    # weight so pooling + Linear is one MXU contraction (no XLU spatial reduce).
    x_flat = x.reshape(B, K).astype(jnp.float32)
    w_comb = jnp.repeat(params["w_bb"].astype(jnp.float32) / HW, HW, axis=0)  # (K, 512)

    # pad the contraction dim to a multiple of TK (zeros contribute nothing)
    k_pad = ((K + TK - 1) // TK) * TK
    if k_pad != K:
        x_flat = jnp.pad(x_flat, ((0, 0), (0, k_pad - K)))
        w_comb = jnp.pad(w_comb, ((0, k_pad - K), (0, 0)))
    num_k = k_pad // TK

    slab = pack_params(params)

    out = pl.pallas_call(
        simsiam_fused_kernel,
        out_shape=jax.ShapeDtypeStruct((B, 2 * LANE), jnp.float32),
        grid_spec=pltpu.PrefetchScalarGridSpec(
            num_scalar_prefetch=0,
            grid=(num_k,),
            in_specs=[
                pl.BlockSpec((B, TK), lambda k: (0, k)),            # x tile (pipelined)
                pl.BlockSpec((TK, FEAT), lambda k: (k, 0)),         # folded backbone weight tile
                pl.BlockSpec((1, FEAT), lambda k: (0, 0)),          # backbone bias (resident)
                pl.BlockSpec((SLAB_ROWS, LANE), lambda k: (0, 0)),  # packed MLP params (resident)
            ],
            out_specs=pl.BlockSpec((B, 2 * LANE), lambda k: (0, 0)),
            scratch_shapes=[pltpu.VMEM((B, FEAT), jnp.float32)],    # h accumulator in VMEM
        ),
        compiler_params=pltpu.CompilerParams(
            # K is a reduction axis (accumulator + final write) -> "arbitrary".
            # Batch is NOT gridded: BatchNorm needs full-batch statistics.
            dimension_semantics=("arbitrary",),
            vmem_limit_bytes=32 * 1024 * 1024,   # explicit budget; safe on v5e/v6e/v7x
        ),
    )(x_flat, w_comb, params["b_bb"], slab)

    # trim the lane-dense output slab
    z = out[:, :LATENT]
    p = out[:, LANE:LANE + LATENT]
    return z, p


# ---------------- pure-JAX reference for correctness check ----------------

def _ref_forward(x, params):
    B, C, H, W = x.shape
    pooled = jnp.mean(x.reshape(B, C, H * W), axis=2)
    h = pooled @ params["w_bb"] + params["b_bb"]

    def bn(v, gamma=None, beta=None):
        mu = jnp.mean(v, axis=0, keepdims=True)
        var = jnp.mean((v - mu) ** 2, axis=0, keepdims=True)
        vh = (v - mu) * jax.lax.rsqrt(var + EPS)
        if gamma is not None:
            vh = vh * gamma + beta
        return vh

    a1 = jnp.maximum(bn(h @ params["w1"] + params["b1"], params["g1"], params["be1"]), 0.0)
    z = bn(a1 @ params["w3"] + params["b3"])
    q1 = jnp.maximum(bn(z @ params["wp1"] + params["bp1"], params["gp1"], params["bep1"]), 0.0)
    p = q1 @ params["wp2"] + params["bp2"]
    return z, p


if __name__ == "__main__":
    key = jax.random.PRNGKey(0)
    kx, kp = jax.random.split(key)

    # B=8: sublane-aligned batch, and BatchNorm (train mode) batch statistics are
    # well-conditioned (no eps-dominated variances amplifying float rounding).
    B, C, H, W = 8, 4, 16, 16
    x = jax.random.normal(kx, (B, C, H, W), jnp.float32)     # NCHW, like PyTorch
    params = init_params(kp, C)

    z, p = simsiam_forward(x, params)
    z = jax.block_until_ready(z)
    p = jax.block_until_ready(p)

    z_ref, p_ref = _ref_forward(x, params)
    assert jnp.allclose(z, z_ref, atol=1e-3, rtol=1e-3), "z mismatch vs reference"
    assert jnp.allclose(p, p_ref, atol=1e-3, rtol=1e-3), "p mismatch vs reference"

    print("KERNEL_OK")
</pallas_src>

<mosaic_0001>
module attributes {stable_mosaic.version = 11 : i64} {
  func.func @simsiam_fused_kernel(%arg0: i32, %arg1: memref<8x512xf32, #tpu.memory_space<vmem>>, %arg2: memref<512x512xf32, #tpu.memory_space<vmem>>, %arg3: memref<1x512xf32, #tpu.memory_space<vmem>>, %arg4: memref<904x128xf32, #tpu.memory_space<vmem>>, %arg5: memref<8x256xf32, #tpu.memory_space<vmem>>, %arg6: memref<8x512xf32, #tpu.memory_space<vmem>>) attributes {dimension_semantics = [#tpu.dimension_semantics<arbitrary>], iteration_bounds = array<i64: 2>, scalar_prefetch = 0 : i64, scratch_operands = 1 : i64, tpu.core_type = #tpu.core_type<tc>, window_params = [{transform_indices = @transform_0, window_bounds = array<i64: 8, 512>}, {transform_indices = @transform_1, window_bounds = array<i64: 512, 512>}, {pipeline_mode = #tpu.pipeline_mode<synchronous>, transform_indices = @transform_2, window_bounds = array<i64: 1, 512>}, {pipeline_mode = #tpu.pipeline_mode<synchronous>, transform_indices = @transform_3, window_bounds = array<i64: 904, 128>}, {pipeline_mode = #tpu.pipeline_mode<synchronous>, transform_indices = @transform_4, window_bounds = array<i64: 8, 256>}]} {
    %c0_i32 = arith.constant 0 : i32
    %0 = arith.cmpi eq, %arg0, %c0_i32 : i32
    %1 = arith.extui %0 : i1 to i32
    %c0_i32_0 = arith.constant 0 : i32
    %2 = arith.cmpi ne, %1, %c0_i32_0 : i32
    scf.if %2 {
      %c0_9 = arith.constant 0 : index
      %c0_10 = arith.constant 0 : index
      %12 = vector.load %arg3[%c0_9, %c0_10] : memref<1x512xf32, #tpu.memory_space<vmem>>, vector<1x512xf32>
      %13 = vector.shape_cast %12 : vector<1x512xf32> to vector<1x512xf32>
      %14 = vector.broadcast %13 : vector<1x512xf32> to vector<8x512xf32>
      %c0_11 = arith.constant 0 : index
      %c0_12 = arith.constant 0 : index
      %15 = vector.load %arg6[%c0_11, %c0_12] : memref<8x512xf32, #tpu.memory_space<vmem>>, vector<8x512xf32>
      tpu.vector_store %arg6[%c0_11, %c0_12], %14 {strides = array<i32>} : memref<8x512xf32, #tpu.memory_space<vmem>>, vector<8x512xf32>,
    } else {
    }
    %c0 = arith.constant 0 : index
    %c0_1 = arith.constant 0 : index
    %3 = vector.load %arg6[%c0, %c0_1] : memref<8x512xf32, #tpu.memory_space<vmem>>, vector<8x512xf32>
    %c0_2 = arith.constant 0 : index
    %c0_3 = arith.constant 0 : index
    %4 = vector.load %arg1[%c0_2, %c0_3] : memref<8x512xf32, #tpu.memory_space<vmem>>, vector<8x512xf32>
    %c0_4 = arith.constant 0 : index
    %c0_5 = arith.constant 0 : index
    %5 = vector.load %arg2[%c0_4, %c0_5] : memref<512x512xf32, #tpu.memory_space<vmem>>, vector<512x512xf32>
    %cst = arith.constant dense<0.000000e+00> : vector<8x512xf32>
    %6 = tpu.matmul %4, %5, %cst {dimension_numbers = #tpu.dot_dimension_numbers<[1], [0], [0], [1], [0, 0, 1, 1], [], []>, precision = #tpu.contract_precision<fp32>} : vector<8x512xf32>, vector<512x512xf32>, vector<8x512xf32> -> vector<8x512xf32>
    %7 = arith.addf %3, %6 : vector<8x512xf32>
    %c0_6 = arith.constant 0 : index
    %c0_7 = arith.constant 0 : index
    %8 = vector.load %arg6[%c0_6, %c0_7] : memref<8x512xf32, #tpu.memory_space<vmem>>, vector<8x512xf32>
    tpu.vector_store %arg6[%c0_6, %c0_7], %7 {strides = array<i32>} : memref<8x512xf32, #tpu.memory_space<vmem>>, vector<8x512xf32>,
    %c1_i32 = arith.constant 1 : i32
    %9 = arith.cmpi eq, %arg0, %c1_i32 : i32
    %10 = arith.extui %9 : i1 to i32
    %c0_i32_8 = arith.constant 0 : i32
    %11 = arith.cmpi ne, %10, %c0_i32_8 : i32
    scf.if %11 {
      %c0_9 = arith.constant 0 : index
      %c0_10 = arith.constant 0 : index
      %12 = vector.load %arg4[%c0_9, %c0_10] : memref<904x128xf32, #tpu.memory_space<vmem>>, vector<512x128xf32>
      %c512 = arith.constant 512 : index
      %c0_11 = arith.constant 0 : index
      %13 = vector.load %arg4[%c512, %c0_11] : memref<904x128xf32, #tpu.memory_space<vmem>>, vector<128x128xf32>
      %c640 = arith.constant 640 : index
      %c0_12 = arith.constant 0 : index
      %14 = vector.load %arg4[%c640, %c0_12] : memref<904x128xf32, #tpu.memory_space<vmem>>, vector<128x128xf32>
      %c768 = arith.constant 768 : index
      %c0_13 = arith.constant 0 : index
      %15 = vector.load %arg4[%c768, %c0_13] : memref<904x128xf32, #tpu.memory_space<vmem>>, vector<128x128xf32>
      %c896 = arith.constant 896 : index
      %c0_14 = arith.constant 0 : index
      %16 = vector.load %arg4[%c896, %c0_14] : memref<904x128xf32, #tpu.memory_space<vmem>>, vector<8x128xf32>
      %17 = vector.extract_strided_slice %16 {offsets = [0, 0], sizes = [1, 128], strides = [1, 1]} : vector<8x128xf32> to vector<1x128xf32>
      %18 = vector.extract_strided_slice %16 {offsets = [1, 0], sizes = [1, 128], strides = [1, 1]} : vector<8x128xf32> to vector<1x128xf32>
      %19 = vector.extract_strided_slice %16 {offsets = [2, 0], sizes = [1, 128], strides = [1, 1]} : vector<8x128xf32> to vector<1x128xf32>
      %20 = vector.extract_strided_slice %16 {offsets = [3, 0], sizes = [1, 128], strides = [1, 1]} : vector<8x128xf32> to vector<1x128xf32>
      %21 = vector.extract_strided_slice %16 {offsets = [4, 0], sizes = [1, 128], strides = [1, 1]} : vector<8x128xf32> to vector<1x128xf32>
      %22 = vector.extract_strided_slice %16 {offsets = [5, 0], sizes = [1, 128], strides = [1, 1]} : vector<8x128xf32> to vector<1x128xf32>
      %23 = vector.extract_strided_slice %16 {offsets = [6, 0], sizes = [1, 128], strides = [1, 1]} : vector<8x128xf32> to vector<1x128xf32>
      %24 = vector.extract_strided_slice %16 {offsets = [7, 0], sizes = [1, 128], strides = [1, 1]} : vector<8x128xf32> to vector<1x128xf32>
      %c0_15 = arith.constant 0 : index
      %c0_16 = arith.constant 0 : index
      %25 = vector.load %arg6[%c0_15, %c0_16] : memref<8x512xf32, #tpu.memory_space<vmem>>, vector<8x512xf32>
      %cst_17 = arith.constant dense<0.000000e+00> : vector<8x128xf32>
      %26 = tpu.matmul %25, %12, %cst_17 {dimension_numbers = #tpu.dot_dimension_numbers<[1], [0], [0], [1], [0, 0, 1, 1], [], []>, precision = #tpu.contract_precision<fp32>} : vector<8x512xf32>, vector<512x128xf32>, vector<8x128xf32> -> vector<8x128xf32>
      %27 = vector.broadcast %17 : vector<1x128xf32> to vector<8x128xf32>
      %28 = arith.addf %26, %27 : vector<8x128xf32>
      %cst_18 = arith.constant dense<0.000000e+00> : vector<128xf32>
      %29 = vector.multi_reduction <add>, %28, %cst_18 [0] : vector<8x128xf32> to vector<128xf32>
      %30 = vector.shape_cast %29 : vector<128xf32> to vector<1x128xf32>
      %cst_19 = arith.constant 8.000000e+00 : f32
      %31 = vector.broadcast %cst_19 : f32 to vector<1x128xf32>
      %32 = arith.divf %30, %31 : vector<1x128xf32>
      %33 = vector.broadcast %32 : vector<1x128xf32> to vector<8x128xf32>
      %34 = arith.subf %28, %33 : vector<8x128xf32>
      %35 = arith.mulf %34, %34 : vector<8x128xf32>
      %cst_20 = arith.constant dense<0.000000e+00> : vector<128xf32>
      %36 = vector.multi_reduction <add>, %35, %cst_20 [0] : vector<8x128xf32> to vector<128xf32>
      %37 = vector.shape_cast %36 : vector<128xf32> to vector<1x128xf32>
      %cst_21 = arith.constant 8.000000e+00 : f32
      %38 = vector.broadcast %cst_21 : f32 to vector<1x128xf32>
      %39 = arith.divf %37, %38 : vector<1x128xf32>
      %40 = vector.broadcast %32 : vector<1x128xf32> to vector<8x128xf32>
      %41 = arith.subf %28, %40 : vector<8x128xf32>
      %cst_22 = arith.constant 9.99999974E-6 : f32
      %42 = vector.broadcast %cst_22 : f32 to vector<1x128xf32>
      %43 = arith.addf %39, %42 : vector<1x128xf32>
      %44 = math.rsqrt %43 : vector<1x128xf32>
      %45 = vector.broadcast %44 : vector<1x128xf32> to vector<8x128xf32>
      %46 = arith.mulf %41, %45 : vector<8x128xf32>
      %47 = vector.broadcast %18 : vector<1x128xf32> to vector<8x128xf32>
      %48 = arith.mulf %46, %47 : vector<8x128xf32>
      %49 = vector.broadcast %19 : vector<1x128xf32> to vector<8x128xf32>
      %50 = arith.addf %48, %49 : vector<8x128xf32>
      %cst_23 = arith.constant 0.000000e+00 : f32
      %51 = vector.broadcast %cst_23 : f32 to vector<8x128xf32>
      %52 = arith.maximumf %50, %51 : vector<8x128xf32>
      %cst_24 = arith.constant dense<0.000000e+00> : vector<8x128xf32>
      %53 = tpu.matmul %52, %13, %cst_24 {dimension_numbers = #tpu.dot_dimension_numbers<[1], [0], [0], [1], [0, 0, 1, 1], [], []>, precision = #tpu.contract_precision<fp32>} : vector<8x128xf32>, vector<128x128xf32>, vector<8x128xf32> -> vector<8x128xf32>
      %54 = vector.broadcast %20 : vector<1x128xf32> to vector<8x128xf32>
      %55 = arith.addf %53, %54 : vector<8x128xf32>
      %cst_25 = arith.constant dense<0.000000e+00> : vector<128xf32>
      %56 = vector.multi_reduction <add>, %55, %cst_25 [0] : vector<8x128xf32> to vector<128xf32>
      %57 = vector.shape_cast %56 : vector<128xf32> to vector<1x128xf32>
      %cst_26 = arith.constant 8.000000e+00 : f32
      %58 = vector.broadcast %cst_26 : f32 to vector<1x128xf32>
      %59 = arith.divf %57, %58 : vector<1x128xf32>
      %60 = vector.broadcast %59 : vector<1x128xf32> to vector<8x128xf32>
      %61 = arith.subf %55, %60 : vector<8x128xf32>
      %62 = arith.mulf %61, %61 : vector<8x128xf32>
      %cst_27 = arith.constant dense<0.000000e+00> : vector<128xf32>
      %63 = vector.multi_reduction <add>, %62, %cst_27 [0] : vector<8x128xf32> to vector<128xf32>
      %64 = vector.shape_cast %63 : vector<128xf32> to vector<1x128xf32>
      %cst_28 = arith.constant 8.000000e+00 : f32
      %65 = vector.broadcast %cst_28 : f32 to vector<1x128xf32>
      %66 = arith.divf %64, %65 : vector<1x128xf32>
      %67 = vector.broadcast %59 : vector<1x128xf32> to vector<8x128xf32>
      %68 = arith.subf %55, %67 : vector<8x128xf32>
      %cst_29 = arith.constant 9.99999974E-6 : f32
      %69 = vector.broadcast %cst_29 : f32 to vector<1x128xf32>
      %70 = arith.addf %66, %69 : vector<1x128xf32>
      %71 = math.rsqrt %70 : vector<1x128xf32>
      %72 = vector.broadcast %71 : vector<1x128xf32> to vector<8x128xf32>
      %73 = arith.mulf %68, %72 : vector<8x128xf32>
      %cst_30 = arith.constant dense<0.000000e+00> : vector<8x128xf32>
      %74 = tpu.matmul %73, %14, %cst_30 {dimension_numbers = #tpu.dot_dimension_numbers<[1], [0], [0], [1], [0, 0, 1, 1], [], []>, precision = #tpu.contract_precision<fp32>} : vector<8x128xf32>, vector<128x128xf32>, vector<8x128xf32> -> vector<8x128xf32>
      %75 = vector.broadcast %21 : vector<1x128xf32> to vector<8x128xf32>
      %76 = arith.addf %74, %75 : vector<8x128xf32>
      %cst_31 = arith.constant dense<0.000000e+00> : vector<128xf32>
      %77 = vector.multi_reduction <add>, %76, %cst_31 [0] : vector<8x128xf32> to vector<128xf32>
      %78 = vector.shape_cast %77 : vector<128xf32> to vector<1x128xf32>
      %cst_32 = arith.constant 8.000000e+00 : f32
      %79 = vector.broadcast %cst_32 : f32 to vector<1x128xf32>
      %80 = arith.divf %78, %79 : vector<1x128xf32>
      %81 = vector.broadcast %80 : vector<1x128xf32> to vector<8x128xf32>
      %82 = arith.subf %76, %81 : vector<8x128xf32>
      %83 = arith.mulf %82, %82 : vector<8x128xf32>
      %cst_33 = arith.constant dense<0.000000e+00> : vector<128xf32>
      %84 = vector.multi_reduction <add>, %83, %cst_33 [0] : vector<8x128xf32> to vector<128xf32>
      %85 = vector.shape_cast %84 : vector<128xf32> to vector<1x128xf32>
      %cst_34 = arith.constant 8.000000e+00 : f32
      %86 = vector.broadcast %cst_34 : f32 to vector<1x128xf32>
      %87 = arith.divf %85, %86 : vector<1x128xf32>
      %88 = vector.broadcast %80 : vector<1x128xf32> to vector<8x128xf32>
      %89 = arith.subf %76, %88 : vector<8x128xf32>
      %cst_35 = arith.constant 9.99999974E-6 : f32
      %90 = vector.broadcast %cst_35 : f32 to vector<1x128xf32>
      %91 = arith.addf %87, %90 : vector<1x128xf32>
      %92 = math.rsqrt %91 : vector<1x128xf32>
      %93 = vector.broadcast %92 : vector<1x128xf32> to vector<8x128xf32>
      %94 = arith.mulf %89, %93 : vector<8x128xf32>
      %95 = vector.broadcast %22 : vector<1x128xf32> to vector<8x128xf32>
      %96 = arith.mulf %94, %95 : vector<8x128xf32>
      %97 = vector.broadcast %23 : vector<1x128xf32> to vector<8x128xf32>
      %98 = arith.addf %96, %97 : vector<8x128xf32>
      %cst_36 = arith.constant 0.000000e+00 : f32
      %99 = vector.broadcast %cst_36 : f32 to vector<8x128xf32>
      %100 = arith.maximumf %98, %99 : vector<8x128xf32>
      %cst_37 = arith.constant dense<0.000000e+00> : vector<8x128xf32>
      %101 = tpu.matmul %100, %15, %cst_37 {dimension_numbers = #tpu.dot_dimension_numbers<[1], [0], [0], [1], [0, 0, 1, 1], [], []>, precision = #tpu.contract_precision<fp32>} : vector<8x128xf32>, vector<128x128xf32>, vector<8x128xf32> -> vector<8x128xf32>
      %102 = vector.broadcast %24 : vector<1x128xf32> to vector<8x128xf32>
      %103 = arith.addf %101, %102 : vector<8x128xf32>
      %c0_38 = arith.constant 0 : index
      %c0_39 = arith.constant 0 : index
      %104 = vector.load %arg5[%c0_38, %c0_39] : memref<8x256xf32, #tpu.memory_space<vmem>>, vector<8x128xf32>
      tpu.vector_store %arg5[%c0_38, %c0_39], %73 {strides = array<i32>} : memref<8x256xf32, #tpu.memory_space<vmem>>, vector<8x128xf32>,
      %c0_40 = arith.constant 0 : index
      %c128 = arith.constant 128 : index
      %105 = vector.load %arg5[%c0_40, %c128] : memref<8x256xf32, #tpu.memory_space<vmem>>, vector<8x128xf32>
      tpu.vector_store %arg5[%c0_40, %c128], %103 {strides = array<i32>} : memref<8x256xf32, #tpu.memory_space<vmem>>, vector<8x128xf32>,
    } else {
    }
    return
  }
  func.func @transform_0(%arg0: i32) -> (i32, i32) {
    %c0_i32 = arith.constant 0 : i32
    %c0_i32_0 = arith.constant 0 : i32
    return %c0_i32, %arg0 : i32, i32
  }
  func.func @transform_1(%arg0: i32) -> (i32, i32) {
    %c0_i32 = arith.constant 0 : i32
    %c0_i32_0 = arith.constant 0 : i32
    return %arg0, %c0_i32 : i32, i32
  }
  func.func @transform_2(%arg0: i32) -> (i32, i32) {
    %c0_i32 = arith.constant 0 : i32
    %c0_i32_0 = arith.constant 0 : i32
    %c0_i32_1 = arith.constant 0 : i32
    return %c0_i32, %c0_i32_0 : i32, i32
  }
  func.func @transform_3(%arg0: i32) -> (i32, i32) {
    %c0_i32 = arith.constant 0 : i32
    %c0_i32_0 = arith.constant 0 : i32
    %c0_i32_1 = arith.constant 0 : i32
    return %c0_i32, %c0_i32_0 : i32, i32
  }
  func.func @transform_4(%arg0: i32) -> (i32, i32) {
    %c0_i32 = arith.constant 0 : i32
    %c0_i32_0 = arith.constant 0 : i32
    %c0_i32_1 = arith.constant 0 : i32
    return %c0_i32, %c0_i32_0 : i32, i32
  }
}

</mosaic_0001>

<llo_original>
// kernel: tpu_custom_call.1
$region0: #{tpu_custom_call.1}
  #allocation0 [shape = 'u32[]', space=smem, size = 0x4, offset = 0x4, fixed_abs, tag = 'smem constant byte address 0x4 - core index']
  #allocation1 [shape = 'u32[144,128]{1,0:T(1,128)}', space=vmem, size = 0x12000, scoped, tag = 'internal scratch']
  #allocation2 [shape = 'f32[8,512]{1,0:T(8,128)}', space=vmem, size = 0x4000, scoped, tag = 'scratch operand']
  %s0 = inlined_call_operand.hbm [shape: f32[8,1024], index: 0, kind: input, shape index: {}]
  %s1 = inlined_call_operand.hbm [shape: f32[1024,512], index: 1, kind: input, shape index: {}]
  %s2 = inlined_call_operand.hbm [shape: f32[1,512], index: 2, kind: input, shape index: {}]
  %s3 = inlined_call_operand.hbm [shape: f32[904,128], index: 3, kind: input, shape index: {}]
  %s4 = inlined_call_operand.hbm [shape: f32[8,256], index: 4, kind: output, shape index: {}]
  %s5 = sld [smem:[#allocation0]]
  $region73: #{tpu_custom_call.1} parent=0
    _
  %s7 = ssub.s32 1, %s5
  %s8 = scalar_select 0, %s7, %s5
  $region1: #{tpu_custom_call.1} parent=0
    #allocation3 [shape = 'u8[32768]{0}', space=vmem, size = 0x8000, scoped, tag = 'input window, operand 0']
    #allocation4 [shape = 's32[2]{0}', space=sflag, size = 0x8, scoped, tag = 'scoped memory for tpu_custom_call.1']
    #allocation5 [shape = 's32[2]{0}', space=sflag, size = 0x8, scoped, tag = 'scoped memory for tpu_custom_call.1']
    #allocation6 [shape = 'u8[2097152]{0}', space=vmem, size = 0x200000, scoped, tag = 'input window, operand 1']
    #allocation7 [shape = 's32[2]{0}', space=sflag, size = 0x8, scoped, tag = 'scoped memory for tpu_custom_call.1']
    #allocation8 [shape = 'u8[2048]{0}', space=vmem, size = 0x800, scoped, tag = 'input window, operand 2, single buffered']
    #allocation9 [shape = 'u8[462848]{0}', space=vmem, size = 0x71000, scoped, tag = 'input window, operand 3, single buffered']
    #allocation10 [shape = 's32[1]{0}', space=sflag, size = 0x4, scoped, tag = 'scoped memory for tpu_custom_call.1']
    #allocation11 [shape = 'u8[8192]{0}', space=vmem, size = 0x2000, scoped, tag = 'output window, operand 0, single buffered']
    %9 = vsyncpa [#allocation4], 0
    %s10 = scalar_lea.sflag [#allocation4], 1
    %11 = vsyncpa %s10, 0
    %12 = vsyncpa [#allocation7], 0
    %s13 = scalar_lea.sflag [#allocation7], 1
    %14 = vsyncpa %s13, 0
    %15 = vsyncpa [#allocation10], 0
    %16 = vsyncpa [#allocation5], 0
    loop: start=0, step=1, limit=4
    $region2: #{tpu_custom_call.1} parent=1 // loop_pre_header
      _
    $region3: #{tpu_custom_call.1} parent=1 // loop_header
      %s18 = sphi 0, %s22
      %p19 = scmp.ge.s32.totalorder %s18, 4
      %s28 = sphi 0, %s30
      %s31 = sphi 0, %s28
      %s32 = sphi 0, %s31
      %s48 = sphi 0, %s32
      %s54 = sphi 0, %s56
      %s57 = sphi 0, %s54
      %s58 = sphi 0, %s57
      %s74 = sphi 0, %s58
      %s78 = sphi 0, %s78
      %s80 = sphi 0, %s78
      %s81 = sphi 0, %s80
      %s95 = sphi 0, %s81
      %s99 = sphi 0, %s99
      %s101 = sphi 0, %s99
      %s102 = sphi 0, %s101
      %s116 = sphi 0, %s102
      %s120 = sphi 0, %s120
      %s122 = sphi 0, %s120
      %s123 = sphi 0, %s122
      %s137 = sphi 0, %s123
    $region4: #{tpu_custom_call.1} parent=1 // loop_header_branch
      %21 = sbr.rel (%p19) target = $region8
    $region5: #{tpu_custom_call.1} parent=1 // loop_body
      %s23 = ssub.s32 %s18, 1
      %s24 = ssub.s32 %s18, 2
      %s25 = sadd.s32 %s18, 1
      %s26 = ssub.s32 %s18, %s25
      %p27 = scmp.eq.s32.totalorder %s26, 0
      %s29 = sadd.s32 %s28, 1
      %s30 = scalar_select %p27, %s28, %s29
      %p33 = pneg %p27
      %p34 = scmp.eq.s32.totalorder %s18, 1
      %p35 = por %p33, %p34
      %p36 = scmp.ne.s32.totalorder %s28, %s31
      %p37 = scmp.eq.s32.totalorder %s18, 0
      %p38 = por %p36, %p37
      %p39 = scmp.ne.s32.totalorder %s28, %s31
      %p40 = scmp.eq.s32.totalorder %s23, 1
      %p41 = por %p39, %p40
      %p42 = scmp.ne.s32.totalorder %s31, %s32
      %p43 = scmp.eq.s32.totalorder %s23, 0
      %p44 = por %p42, %p43
      %p45 = scmp.ne.s32.totalorder %s31, %s32
      %p46 = scmp.eq.s32.totalorder %s24, 1
      %p47 = por %p45, %p46
      %p49 = scmp.ne.s32.totalorder %s32, %s48
      %p50 = scmp.eq.s32.totalorder %s24, 0
      %p51 = por %p49, %p50
      %s52 = ssub.s32 %s18, %s25
      %p53 = scmp.eq.s32.totalorder %s52, 0
      %s55 = sadd.s32 %s54, 1
      %s56 = scalar_select %p53, %s54, %s55
      %p59 = pneg %p53
      %p60 = scmp.eq.s32.totalorder %s18, 1
      %p61 = por %p59, %p60
      %p62 = scmp.ne.s32.totalorder %s54, %s57
      %p63 = scmp.eq.s32.totalorder %s18, 0
      %p64 = por %p62, %p63
      %p65 = scmp.ne.s32.totalorder %s54, %s57
      %p66 = scmp.eq.s32.totalorder %s23, 1
      %p67 = por %p65, %p66
      %p68 = scmp.ne.s32.totalorder %s57, %s58
      %p69 = scmp.eq.s32.totalorder %s23, 0
      %p70 = por %p68, %p69
      %p71 = scmp.ne.s32.totalorder %s57, %s58
      %p72 = scmp.eq.s32.totalorder %s24, 1
      %p73 = por %p71, %p72
      %p75 = scmp.ne.s32.totalorder %s58, %s74
      %p76 = scmp.eq.s32.totalorder %s24, 0
      %p77 = por %p75, %p76
      %s79 = sadd.s32 %s78, 1
      %p82 = scmp.eq.s32.totalorder %s18, 1
      %p83 = scmp.ne.s32.totalorder %s78, %s80
      %p84 = scmp.eq.s32.totalorder %s18, 0
      %p85 = por %p83, %p84
      %p86 = scmp.ne.s32.totalorder %s78, %s80
      %p87 = scmp.eq.s32.totalorder %s23, 1
      %p88 = por %p86, %p87
      %p89 = scmp.ne.s32.totalorder %s80, %s81
      %p90 = scmp.eq.s32.totalorder %s23, 0
      %p91 = por %p89, %p90
      %p92 = scmp.ne.s32.totalorder %s80, %s81
      %p93 = scmp.eq.s32.totalorder %s24, 1
      %p94 = por %p92, %p93
      %p96 = scmp.ne.s32.totalorder %s81, %s95
      %p97 = scmp.eq.s32.totalorder %s24, 0
      %p98 = por %p96, %p97
      %s100 = sadd.s32 %s99, 1
      %p103 = scmp.eq.s32.totalorder %s18, 1
      %p104 = scmp.ne.s32.totalorder %s99, %s101
      %p105 = scmp.eq.s32.totalorder %s18, 0
      %p106 = por %p104, %p105
      %p107 = scmp.ne.s32.totalorder %s99, %s101
      %p108 = scmp.eq.s32.totalorder %s23, 1
      %p109 = por %p107, %p108
      %p110 = scmp.ne.s32.totalorder %s101, %s102
      %p111 = scmp.eq.s32.totalorder %s23, 0
      %p112 = por %p110, %p111
      %p113 = scmp.ne.s32.totalorder %s101, %s102
      %p114 = scmp.eq.s32.totalorder %s24, 1
      %p115 = por %p113, %p114
      %p117 = scmp.ne.s32.totalorder %s102, %s116
      %p118 = scmp.eq.s32.totalorder %s24, 0
      %p119 = por %p117, %p118
      %s121 = sadd.s32 %s120, 1
      %p124 = scmp.eq.s32.totalorder %s18, 1
      %p125 = scmp.ne.s32.totalorder %s120, %s122
      %p126 = scmp.eq.s32.totalorder %s18, 0
      %p127 = por %p125, %p126
      %p128 = scmp.ne.s32.totalorder %s120, %s122
      %p129 = scmp.eq.s32.totalorder %s23, 1
      %p130 = por %p128, %p129
      %p131 = scmp.ne.s32.totalorder %s122, %s123
      %p132 = scmp.eq.s32.totalorder %s23, 0
      %p133 = por %p131, %p132
      %p134 = scmp.ne.s32.totalorder %s122, %s123
      %p135 = scmp.eq.s32.totalorder %s24, 1
      %p136 = por %p134, %p135
      %p138 = scmp.ne.s32.totalorder %s123, %s137
      %p139 = scmp.eq.s32.totalorder %s24, 0
      %p140 = por %p138, %p139
      %p141 = scmp.le.s32.totalorder 1, %s18
      %p142 = scmp.lt.s32.totalorder %s18, 3
      %p143 = pnand %p141, %p142
      %p144 = pneg %p143
      // Predicated region
      $region9: #{tpu_custom_call.1} parent=5 // pred_check
        _
      $region10: #{tpu_custom_call.1} parent=5 // pred_check_branch
        %146 = sbr.rel (%p143) target = $region12
      $region11: #{tpu_custom_call.1} parent=5 // pred_region
        %s147 = ssub.s32 %s18, 1
        // Predicated region
        $region13: #{tpu_custom_call.1} parent=11 // pred_check
          %p148 = pneg %p91
        $region14: #{tpu_custom_call.1} parent=11 // pred_check_branch
          %150 = sbr.rel (%p148) target = $region16
        $region15: #{tpu_custom_call.1} parent=11 // pred_region
          %s152 = ssub.s32 64, 64
          %153 = vsyncadd [#allocation7], %s152
          %s155 = sshll.u32 [#allocation8], 4
          %s156 = int_to_ptr.vmem [resolvable:$true] %s155
          %158 = dma.hbm_to_vmem [thread:$0]  %s2, 64, %s156, [#allocation7]
        $region16: #{tpu_custom_call.1} parent=11 // pred_fallthru
          _
        // Predicated region
        $region17: #{tpu_custom_call.1} parent=11 // pred_check
          %p159 = pneg %p112
        $region18: #{tpu_custom_call.1} parent=11 // pred_check_branch
          %161 = sbr.rel (%p159) target = $region20
        $region19: #{tpu_custom_call.1} parent=11 // pred_region
          %s163 = ssub.s32 14464, 14464
          %164 = vsyncadd [#allocation10], %s163
          %s165 = sshll.u32 [#allocation9], 4
          %s166 = int_to_ptr.vmem [resolvable:$true] %s165
          %171 = dma.hbm_to_vmem [thread:$0]  %s3, 14464, %s166, [#allocation10], 128, 128, 8
        $region20: #{tpu_custom_call.1} parent=11 // pred_fallthru
          _
      $region12: #{tpu_custom_call.1} parent=5 // pred_fallthru
        _
      %p172 = scmp.lt.s32.totalorder %s18, 2
      // Predicated region
      $region21: #{tpu_custom_call.1} parent=5 // pred_check
        %p173 = pneg %p172
      $region22: #{tpu_custom_call.1} parent=5 // pred_check_branch
        %175 = sbr.rel (%p173) target = $region24
      $region23: #{tpu_custom_call.1} parent=5 // pred_region
        // Predicated region
        $region25: #{tpu_custom_call.1} parent=23 // pred_check
          %p176 = pneg %p38
        $region26: #{tpu_custom_call.1} parent=23 // pred_check_branch
          %178 = sbr.rel (%p176) target = $region28
        $region27: #{tpu_custom_call.1} parent=23 // pred_region
          %s179 = sand.u32 %s28, 1
          %s180 = scalar_lea.sflag [#allocation4], %s179
          %s181 = sand.u32 %s28, 1
          %s182 = smul.addr %s181, 32
          %s183 = scalar_lea.vmem [#allocation3], %s182
          %s184 = smul.u32 4, %s18
          %s186 = ssub.s32 512, 512
          %187 = vsyncadd %s180, %s186
          %s188 = smul.addr %s184, 128
          %s189 = scalar_lea.hbm %s0, %s188
          %s191 = sshll.u32 %s183, 4
          %s192 = int_to_ptr.vmem [resolvable:$true] %s191
          %194 = dma.hbm_to_vmem [thread:$0]  %s189, 512, %s192, %s180
        $region28: #{tpu_custom_call.1} parent=23 // pred_fallthru
          _
        // Predicated region
        $region29: #{tpu_custom_call.1} parent=23 // pred_check
          %p195 = pneg %p64
        $region30: #{tpu_custom_call.1} parent=23 // pred_check_branch
          %197 = sbr.rel (%p195) target = $region32
        $region31: #{tpu_custom_call.1} parent=23 // pred_region
          %s198 = sand.u32 %s18, 1
          %s199 = scalar_lea.sflag [#allocation7], %s198
          %s200 = sand.u32 %s54, 1
          %s201 = smul.addr %s200, 2048
          %s202 = scalar_lea.vmem [#allocation6], %s201
          %s203 = smul.u32 64, %s18
          %s205 = ssub.s32 32768, 32768
          %206 = vsyncadd %s199, %s205
          %s207 = smul.addr %s203, 4
          %s208 = smul.addr %s207, 128
          %s209 = scalar_lea.hbm %s1, %s208
          %s210 = sshll.u32 %s202, 4
          %s211 = int_to_ptr.vmem [resolvable:$true] %s210
          %216 = dma.hbm_to_vmem [thread:$0]  %s209, 32768, %s211, %s199, 512, 512, 32
        $region32: #{tpu_custom_call.1} parent=23 // pred_fallthru
          _
      $region24: #{tpu_custom_call.1} parent=5 // pred_fallthru
        _
      %p217 = scmp.le.s32.totalorder 1, %s18
      %p218 = scmp.lt.s32.totalorder %s18, 3
      %p219 = pnand %p217, %p218
      %p220 = pneg %p219
      // Predicated region
      $region33: #{tpu_custom_call.1} parent=5 // pred_check
        _
      $region34: #{tpu_custom_call.1} parent=5 // pred_check_branch
        %222 = sbr.rel (%p219) target = $region36
      $region35: #{tpu_custom_call.1} parent=5 // pred_region
        %s223 = ssub.s32 %s18, 1
        %s224 = sand.u32 %s31, 1
        %s225 = scalar_lea.sflag [#allocation4], %s224
        %s226 = sand.u32 %s31, 1
        %s227 = smul.addr %s226, 32
        %s228 = scalar_lea.vmem [#allocation3], %s227
        // Predicated region
        $region37: #{tpu_custom_call.1} parent=35 // pred_check
          %p229 = pneg %p44
        $region38: #{tpu_custom_call.1} parent=35 // pred_check_branch
          %231 = sbr.rel (%p229) target = $region40
        $region39: #{tpu_custom_call.1} parent=35 // pred_region
          %232 = dma.done %s225, 512
        $region40: #{tpu_custom_call.1} parent=35 // pred_fallthru
          _
        %s233 = sand.u32 %s23, 1
        %s234 = scalar_lea.sflag [#allocation7], %s233
        %s235 = sand.u32 %s57, 1
        %s236 = smul.addr %s235, 2048
        %s237 = scalar_lea.vmem [#allocation6], %s236
        // Predicated region
        $region41: #{tpu_custom_call.1} parent=35 // pred_check
          %p238 = pneg %p70
        $region42: #{tpu_custom_call.1} parent=35 // pred_check_branch
          %240 = sbr.rel (%p238) target = $region44
        $region43: #{tpu_custom_call.1} parent=35 // pred_region
          %241 = dma.done %s234, 32768
        $region44: #{tpu_custom_call.1} parent=35 // pred_fallthru
          _
        // Predicated region
        $region45: #{tpu_custom_call.1} parent=35 // pred_check
          %p242 = pneg %p91
        $region46: #{tpu_custom_call.1} parent=35 // pred_check_branch
          %244 = sbr.rel (%p242) target = $region48
        $region47: #{tpu_custom_call.1} parent=35 // pred_region
          %245 = dma.done [#allocation7], 64
        $region48: #{tpu_custom_call.1} parent=35 // pred_fallthru
          _
        // Predicated region
        $region49: #{tpu_custom_call.1} parent=35 // pred_check
          %p246 = pneg %p112
        $region50: #{tpu_custom_call.1} parent=35 // pred_check_branch
          %248 = sbr.rel (%p246) target = $region52
        $region51: #{tpu_custom_call.1} parent=35 // pred_region
          %249 = dma.done [#allocation10], 14464
        $region52: #{tpu_custom_call.1} parent=35 // pred_fallthru
          _
        %s250 = sand.u32 %s31, 1
        %s251 = scalar_lea.sflag [#allocation4], %s250
        %s252 = sand.u32 %s31, 1
        %s253 = smul.addr %s252, 32
        %s254 = scalar_lea.vmem [#allocation3], %s253
        %p255 = pneg %p44
        %p256 = pneg %p41
        %s257 = sand.u32 %s23, 1
        %s258 = scalar_lea.sflag [#allocation7], %s257
        %s259 = sand.u32 %s57, 1
        %s260 = smul.addr %s259, 2048
        %s261 = scalar_lea.vmem [#allocation6], %s260
        %p262 = pneg %p70
        %p263 = pneg %p67
        %p264 = pneg %p91
        %p265 = pneg %p88
        %p266 = pneg %p112
        %p267 = pneg %p109
        %p268 = pneg %p133
        %p269 = pneg %p130
        %s270 = smul.u32 4, %s23
        %s271 = smul.u32 64, %s23
        %p272 = scmp.eq.s32.totalorder %s23, 0
        // Predicated region
        $region53: #{tpu_custom_call.1} parent=35 // pred_check
          %p273 = pneg %p272
        $region54: #{tpu_custom_call.1} parent=35 // pred_check_branch
          %275 = sbr.rel (%p273) target = $region56
        $region55: #{tpu_custom_call.1} parent=35 // pred_region
          %v276 = vld [vmem:[#allocation8] sm:$0xf]
          %v278 = vlaneseq
          %v279 = vshrl.u32 %v278, 7
          %v280 = vsub.s32 0, %v279
          %v281 = vrot.slane %v276, %v280
          %v282 = vlaneseq
          %v283 = vshrl.u32 %v282, 7
          %v284 = vsub.s32 1, %v283
          %v285 = vrot.slane %v276, %v284
          %v286 = vlaneseq
          %v287 = vshrl.u32 %v286, 7
          %v288 = vsub.s32 2, %v287
          %v289 = vrot.slane %v276, %v288
          %v290 = vlaneseq
          %v291 = vshrl.u32 %v290, 7
          %v292 = vsub.s32 3, %v291
          %v293 = vrot.slane %v276, %v292
          %298 = vst [vmem:[#allocation2] sm:$0xff] %v281
          %299 = vst [vmem:[#allocation2 + $0x8] sm:$0xff] %v285
          %300 = vst [vmem:[#allocation2 + $0x10] sm:$0xff] %v289
          %301 = vst [vmem:[#allocation2 + $0x18] sm:$0xff] %v293
        $region56: #{tpu_custom_call.1} parent=35 // pred_fallthru
          _
        %v302 = vld [vmem:[#allocation2] sm:$0xff]
        %v303 = vld [vmem:[#allocation2 + $0x8] sm:$0xff]
        %v304 = vld [vmem:[#allocation2 + $0x10] sm:$0xff]
        %v305 = vld [vmem:[#allocation2 + $0x18] sm:$0xff]
        %v306 = vld [vmem:[%s228] sm:$0xff]
        %v307 = vld [vmem:[%s228 + $0x8] sm:$0xff]
        %v308 = vld [vmem:[%s228 + $0x10] sm:$0xff]
        %v309 = vld [vmem:[%s228 + $0x18] sm:$0xff]
        %v310 = vld [vmem:[%s237] sm:$0xff]
        %v311 = vld [vmem:[%s237 + $0x8] sm:$0xff]
        %v312 = vld [vmem:[%s237 + $0x10] sm:$0xff]
        %v313 = vld [vmem:[%s237 + $0x18] sm:$0xff]
        %v314 = vld [vmem:[%s237 + $0x20] sm:$0xff]
        %v315 = vld [vmem:[%s237 + $0x28] sm:$0xff]
        %v316 = vld [vmem:[%s237 + $0x30] sm:$0xff]
        %v317 = vld [vmem:[%s237 + $0x38] sm:$0xff]
        %v318 = vld [vmem:[%s237 + $0x40] sm:$0xff]
        %v319 = vld [vmem:[%s237 + $0x48] sm:$0xff]
        %v320 = vld [vmem:[%s237 + $0x50] sm:$0xff]
        %v321 = vld [vmem:[%s237 + $0x58] sm:$0xff]
        %v322 = vld [vmem:[%s237 + $0x60] sm:$0xff]
        %v323 = vld [vmem:[%s237 + $0x68] sm:$0xff]
        %v324 = vld [vmem:[%s237 + $0x70] sm:$0xff]
        %v325 = vld [vmem:[%s237 + $0x78] sm:$0xff]
        %v326 = vld [vmem:[%s237 + $0x80] sm:$0xff]
        %v327 = vld [vmem:[%s237 + $0x88] sm:$0xff]
        %v328 = vld [vmem:[%s237 + $0x90] sm:$0xff]
        %v329 = vld [vmem:[%s237 + $0x98] sm:$0xff]
        %v330 = vld [vmem:[%s237 + $0xa0] sm:$0xff]
        %v331 = vld [vmem:[%s237 + $0xa8] sm:$0xff]
        %v332 = vld [vmem:[%s237 + $0xb0] sm:$0xff]
        %v333 = vld [vmem:[%s237 + $0xb8] sm:$0xff]
        %v334 = vld [vmem:[%s237 + $0xc0] sm:$0xff]
        %v335 = vld [vmem:[%s237 + $0xc8] sm:$0xff]
        %v336 = vld [vmem:[%s237 + $0xd0] sm:$0xff]
        %v337 = vld [vmem:[%s237 + $0xd8] sm:$0xff]
        %v338 = vld [vmem:[%s237 + $0xe0] sm:$0xff]
        %v339 = vld [vmem:[%s237 + $0xe8] sm:$0xff]
        %v340 = vld [vmem:[%s237 + $0xf0] sm:$0xff]
        %v341 = vld [vmem:[%s237 + $0xf8] sm:$0xff]
        %v342 = vld [vmem:[%s237 + $0x100] sm:$0xff]
        %v343 = vld [vmem:[%s237 + $0x108] sm:$0xff]
        %v344 = vld [vmem:[%s237 + $0x110] sm:$0xff]
        %v345 = vld [vmem:[%s237 + $0x118] sm:$0xff]
        %v346 = vld [vmem:[%s237 + $0x120] sm:$0xff]
        %v347 = vld [vmem:[%s237 + $0x128] sm:$0xff]
        %v348 = vld [vmem:[%s237 + $0x130] sm:$0xff]
        %v349 = vld [vmem:[%s237 + $0x138] sm:$0xff]
        %v350 = vld [vmem:[%s237 + $0x140] sm:$0xff]
        %v351 = vld [vmem:[%s237 + $0x148] sm:$0xff]
        %v352 = vld [vmem:[%s237 + $0x150] sm:$0xff]
        %v353 = vld [vmem:[%s237 + $0x158] sm:$0xff]
        %v354 = vld [vmem:[%s237 + $0x160] sm:$0xff]
        %v355 = vld [vmem:[%s237 + $0x168] sm:$0xff]
        %v356 = vld [vmem:[%s237 + $0x170] sm:$0xff]
        %v357 = vld [vmem:[%s237 + $0x178] sm:$0xff]
        %v358 = vld [vmem:[%s237 + $0x180] sm:$0xff]
        %v359 = vld [vmem:[%s237 + $0x188] sm:$0xff]
        %v360 = vld [vmem:[%s237 + $0x190] sm:$0xff]
        %v361 = vld [vmem:[%s237 + $0x198] sm:$0xff]
        %v362 = vld [vmem:[%s237 + $0x1a0] sm:$0xff]
        %v363 = vld [vmem:[%s237 + $0x1a8] sm:$0xff]
        %v364 = vld [vmem:[%s237 + $0x1b0] sm:$0xff]
        %v365 = vld [vmem:[%s237 + $0x1b8] sm:$0xff]
        %v366 = vld [vmem:[%s237 + $0x1c0] sm:$0xff]
        %v367 = vld [vmem:[%s237 + $0x1c8] sm:$0xff]
        %v368 = vld [vmem:[%s237 + $0x1d0] sm:$0xff]
        %v369 = vld [vmem:[%s237 + $0x1d8] sm:$0xff]
        %v370 = vld [vmem:[%s237 + $0x1e0] sm:$0xff]
        %v371 = vld [vmem:[%s237 + $0x1e8] sm:$0xff]
        %v372 = vld [vmem:[%s237 + $0x1f0] sm:$0xff]
        %v373 = vld [vmem:[%s237 + $0x1f8] sm:$0xff]
        %v374 = vld [vmem:[%s237 + $0x200] sm:$0xff]
        %v375 = vld [vmem:[%s237 + $0x208] sm:$0xff]
        %v376 = vld [vmem:[%s237 + $0x210] sm:$0xff]
        %v377 = vld [vmem:[%s237 + $0x218] sm:$0xff]
        %v378 = vld [vmem:[%s237 + $0x220] sm:$0xff]
        %v379 = vld [vmem:[%s237 + $0x228] sm:$0xff]
        %v380 = vld [vmem:[%s237 + $0x230] sm:$0xff]
        %v381 = vld [vmem:[%s237 + $0x238] sm:$0xff]
        %v382 = vld [vmem:[%s237 + $0x240] sm:$0xff]
        %v383 = vld [vmem:[%s237 + $0x248] sm:$0xff]
        %v384 = vld [vmem:[%s237 + $0x250] sm:$0xff]
        %v385 = vld [vmem:[%s237 + $0x258] sm:$0xff]
        %v386 = vld [vmem:[%s237 + $0x260] sm:$0xff]
        %v387 = vld [vmem:[%s237 + $0x268] sm:$0xff]
        %v388 = vld [vmem:[%s237 + $0x270] sm:$0xff]
        %v389 = vld [vmem:[%s237 + $0x278] sm:$0xff]
        %v390 = vld [vmem:[%s237 + $0x280] sm:$0xff]
        %v391 = vld [vmem:[%s237 + $0x288] sm:$0xff]
        %v392 = vld [vmem:[%s237 + $0x290] sm:$0xff]
        %v393 = vld [vmem:[%s237 + $0x298] sm:$0xff]
        %v394 = vld [vmem:[%s237 + $0x2a0] sm:$0xff]
        %v395 = vld [vmem:[%s237 + $0x2a8] sm:$0xff]
        %v396 = vld [vmem:[%s237 + $0x2b0] sm:$0xff]
        %v397 = vld [vmem:[%s237 + $0x2b8] sm:$0xff]
        %v398 = vld [vmem:[%s237 + $0x2c0] sm:$0xff]
        %v399 = vld [vmem:[%s237 + $0x2c8] sm:$0xff]
        %v400 = vld [vmem:[%s237 + $0x2d0] sm:$0xff]
        %v401 = vld [vmem:[%s237 + $0x2d8] sm:$0xff]
        %v402 = vld [vmem:[%s237 + $0x2e0] sm:$0xff]
        %v403 = vld [vmem:[%s237 + $0x2e8] sm:$0xff]
        %v404 = vld [vmem:[%s237 + $0x2f0] sm:$0xff]
        %v405 = vld [vmem:[%s237 + $0x2f8] sm:$0xff]
        %v406 = vld [vmem:[%s237 + $0x300] sm:$0xff]
        %v407 = vld [vmem:[%s237 + $0x308] sm:$0xff]
        %v408 = vld [vmem:[%s237 + $0x310] sm:$0xff]
        %v409 = vld [vmem:[%s237 + $0x318] sm:$0xff]
        %v410 = vld [vmem:[%s237 + $0x320] sm:$0xff]
        %v411 = vld [vmem:[%s237 + $0x328] sm:$0xff]
        %v412 = vld [vmem:[%s237 + $0x330] sm:$0xff]
        %v413 = vld [vmem:[%s237 + $0x338] sm:$0xff]
        %v414 = vld [vmem:[%s237 + $0x340] sm:$0xff]
        %v415 = vld [vmem:[%s237 + $0x348] sm:$0xff]
        %v416 = vld [vmem:[%s237 + $0x350] sm:$0xff]
        %v417 = vld [vmem:[%s237 + $0x358] sm:$0xff]
        %v418 = vld [vmem:[%s237 + $0x360] sm:$0xff]
        %v419 = vld [vmem:[%s237 + $0x368] sm:$0xff]
        %v420 = vld [vmem:[%s237 + $0x370] sm:$0xff]
        %v421 = vld [vmem:[%s237 + $0x378] sm:$0xff]
        %v422 = vld [vmem:[%s237 + $0x380] sm:$0xff]
        %v423 = vld [vmem:[%s237 + $0x388] sm:$0xff]
        %v424 = vld [vmem:[%s237 + $0x390] sm:$0xff]
        %v425 = vld [vmem:[%s237 + $0x398] sm:$0xff]
        %v426 = vld [vmem:[%s237 + $0x3a0] sm:$0xff]
        %v427 = vld [vmem:[%s237 + $0x3a8] sm:$0xff]
        %v428 = vld [vmem:[%s237 + $0x3b0] sm:$0xff]
        %v429 = vld [vmem:[%s237 + $0x3b8] sm:$0xff]
        %v430 = vld [vmem:[%s237 + $0x3c0] sm:$0xff]
        %v431 = vld [vmem:[%s237 + $0x3c8] sm:$0xff]
        %v432 = vld [vmem:[%s237 + $0x3d0] sm:$0xff]
        %v433 = vld [vmem:[%s237 + $0x3d8] sm:$0xff]
        %v434 = vld [vmem:[%s237 + $0x3e0] sm:$0xff]
        %v435 = vld [vmem:[%s237 + $0x3e8] sm:$0xff]
        %v436 = vld [vmem:[%s237 + $0x3f0] sm:$0xff]
        %v437 = vld [vmem:[%s237 + $0x3f8] sm:$0xff]
        %v438 = vld [vmem:[%s237 + $0x400] sm:$0xff]
        %v439 = vld [vmem:[%s237 + $0x408] sm:$0xff]
        %v440 = vld [vmem:[%s237 + $0x410] sm:$0xff]
        %v441 = vld [vmem:[%s237 + $0x418] sm:$0xff]
        %v442 = vld [vmem:[%s237 + $0x420] sm:$0xff]
        %v443 = vld [vmem:[%s237 + $0x428] sm:$0xff]
        %v444 = vld [vmem:[%s237 + $0x430] sm:$0xff]
        %v445 = vld [vmem:[%s237 + $0x438] sm:$0xff]
        %v446 = vld [vmem:[%s237 + $0x440] sm:$0xff]
        %v447 = vld [vmem:[%s237 + $0x448] sm:$0xff]
        %v448 = vld [vmem:[%s237 + $0x450] sm:$0xff]
        %v449 = vld [vmem:[%s237 + $0x458] sm:$0xff]
        %v450 = vld [vmem:[%s237 + $0x460] sm:$0xff]
        %v451 = vld [vmem:[%s237 + $0x468] sm:$0xff]
        %v452 = vld [vmem:[%s237 + $0x470] sm:$0xff]
        %v453 = vld [vmem:[%s237 + $0x478] sm:$0xff]
        %v454 = vld [vmem:[%s237 + $0x480] sm:$0xff]
        %v455 = vld [vmem:[%s237 + $0x488] sm:$0xff]
        %v456 = vld [vmem:[%s237 + $0x490] sm:$0xff]
        %v457 = vld [vmem:[%s237 + $0x498] sm:$0xff]
        %v458 = vld [vmem:[%s237 + $0x4a0] sm:$0xff]
        %v459 = vld [vmem:[%s237 + $0x4a8] sm:$0xff]
        %v460 = vld [vmem:[%s237 + $0x4b0] sm:$0xff]
        %v461 = vld [vmem:[%s237 + $0x4b8] sm:$0xff]
        %v462 = vld [vmem:[%s237 + $0x4c0] sm:$0xff]
        %v463 = vld [vmem:[%s237 + $0x4c8] sm:$0xff]
        %v464 = vld [vmem:[%s237 + $0x4d0] sm:$0xff]
        %v465 = vld [vmem:[%s237 + $0x4d8] sm:$0xff]
        %v466 = vld [vmem:[%s237 + $0x4e0] sm:$0xff]
        %v467 = vld [vmem:[%s237 + $0x4e8] sm:$0xff]
        %v468 = vld [vmem:[%s237 + $0x4f0] sm:$0xff]
        %v469 = vld [vmem:[%s237 + $0x4f8] sm:$0xff]
        %v470 = vld [vmem:[%s237 + $0x500] sm:$0xff]
        %v471 = vld [vmem:[%s237 + $0x508] sm:$0xff]
        %v472 = vld [vmem:[%s237 + $0x510] sm:$0xff]
        %v473 = vld [vmem:[%s237 + $0x518] sm:$0xff]
        %v474 = vld [vmem:[%s237 + $0x520] sm:$0xff]
        %v475 = vld [vmem:[%s237 + $0x528] sm:$0xff]
        %v476 = vld [vmem:[%s237 + $0x530] sm:$0xff]
        %v477 = vld [vmem:[%s237 + $0x538] sm:$0xff]
        %v478 = vld [vmem:[%s237 + $0x540] sm:$0xff]
        %v479 = vld [vmem:[%s237 + $0x548] sm:$0xff]
        %v480 = vld [vmem:[%s237 + $0x550] sm:$0xff]
        %v481 = vld [vmem:[%s237 + $0x558] sm:$0xff]
        %v482 = vld [vmem:[%s237 + $0x560] sm:$0xff]
        %v483 = vld [vmem:[%s237 + $0x568] sm:$0xff]
        %v484 = vld [vmem:[%s237 + $0x570] sm:$0xff]
        %v485 = vld [vmem:[%s237 + $0x578] sm:$0xff]
        %v486 = vld [vmem:[%s237 + $0x580] sm:$0xff]
        %v487 = vld [vmem:[%s237 + $0x588] sm:$0xff]
        %v488 = vld [vmem:[%s237 + $0x590] sm:$0xff]
        %v489 = vld [vmem:[%s237 + $0x598] sm:$0xff]
        %v490 = vld [vmem:[%s237 + $0x5a0] sm:$0xff]
        %v491 = vld [vmem:[%s237 + $0x5a8] sm:$0xff]
        %v492 = vld [vmem:[%s237 + $0x5b0] sm:$0xff]
        %v493 = vld [vmem:[%s237 + $0x5b8] sm:$0xff]
        %v494 = vld [vmem:[%s237 + $0x5c0] sm:$0xff]
        %v495 = vld [vmem:[%s237 + $0x5c8] sm:$0xff]
        %v496 = vld [vmem:[%s237 + $0x5d0] sm:$0xff]
        %v497 = vld [vmem:[%s237 + $0x5d8] sm:$0xff]
        %v498 = vld [vmem:[%s237 + $0x5e0] sm:$0xff]
        %v499 = vld [vmem:[%s237 + $0x5e8] sm:$0xff]
        %v500 = vld [vmem:[%s237 + $0x5f0] sm:$0xff]
        %v501 = vld [vmem:[%s237 + $0x5f8] sm:$0xff]
        %v502 = vld [vmem:[%s237 + $0x600] sm:$0xff]
        %v503 = vld [vmem:[%s237 + $0x608] sm:$0xff]
        %v504 = vld [vmem:[%s237 + $0x610] sm:$0xff]
        %v505 = vld [vmem:[%s237 + $0x618] sm:$0xff]
        %v506 = vld [vmem:[%s237 + $0x620] sm:$0xff]
        %v507 = vld [vmem:[%s237 + $0x628] sm:$0xff]
        %v508 = vld [vmem:[%s237 + $0x630] sm:$0xff]
        %v509 = vld [vmem:[%s237 + $0x638] sm:$0xff]
        %v510 = vld [vmem:[%s237 + $0x640] sm:$0xff]
        %v511 = vld [vmem:[%s237 + $0x648] sm:$0xff]
        %v512 = vld [vmem:[%s237 + $0x650] sm:$0xff]
        %v513 = vld [vmem:[%s237 + $0x658] sm:$0xff]
        %v514 = vld [vmem:[%s237 + $0x660] sm:$0xff]
        %v515 = vld [vmem:[%s237 + $0x668] sm:$0xff]
        %v516 = vld [vmem:[%s237 + $0x670] sm:$0xff]
        %v517 = vld [vmem:[%s237 + $0x678] sm:$0xff]
        %v518 = vld [vmem:[%s237 + $0x680] sm:$0xff]
        %v519 = vld [vmem:[%s237 + $0x688] sm:$0xff]
        %v520 = vld [vmem:[%s237 + $0x690] sm:$0xff]
        %v521 = vld [vmem:[%s237 + $0x698] sm:$0xff]
        %v522 = vld [vmem:[%s237 + $0x6a0] sm:$0xff]
        %v523 = vld [vmem:[%s237 + $0x6a8] sm:$0xff]
        %v524 = vld [vmem:[%s237 + $0x6b0] sm:$0xff]
        %v525 = vld [vmem:[%s237 + $0x6b8] sm:$0xff]
        %v526 = vld [vmem:[%s237 + $0x6c0] sm:$0xff]
        %v527 = vld [vmem:[%s237 + $0x6c8] sm:$0xff]
        %v528 = vld [vmem:[%s237 + $0x6d0] sm:$0xff]
        %v529 = vld [vmem:[%s237 + $0x6d8] sm:$0xff]
        %v530 = vld [vmem:[%s237 + $0x6e0] sm:$0xff]
        %v531 = vld [vmem:[%s237 + $0x6e8] sm:$0xff]
        %v532 = vld [vmem:[%s237 + $0x6f0] sm:$0xff]
        %v533 = vld [vmem:[%s237 + $0x6f8] sm:$0xff]
        %v534 = vld [vmem:[%s237 + $0x700] sm:$0xff]
        %v535 = vld [vmem:[%s237 + $0x708] sm:$0xff]
        %v536 = vld [vmem:[%s237 + $0x710] sm:$0xff]
        %v537 = vld [vmem:[%s237 + $0x718] sm:$0xff]
        %v538 = vld [vmem:[%s237 + $0x720] sm:$0xff]
        %v539 = vld [vmem:[%s237 + $0x728] sm:$0xff]
        %v540 = vld [vmem:[%s237 + $0x730] sm:$0xff]
        %v541 = vld [vmem:[%s237 + $0x738] sm:$0xff]
        %v542 = vld [vmem:[%s237 + $0x740] sm:$0xff]
        %v543 = vld [vmem:[%s237 + $0x748] sm:$0xff]
        %v544 = vld [vmem:[%s237 + $0x750] sm:$0xff]
        %v545 = vld [vmem:[%s237 + $0x758] sm:$0xff]
        %v546 = vld [vmem:[%s237 + $0x760] sm:$0xff]
        %v547 = vld [vmem:[%s237 + $0x768] sm:$0xff]
        %v548 = vld [vmem:[%s237 + $0x770] sm:$0xff]
        %v549 = vld [vmem:[%s237 + $0x778] sm:$0xff]
        %v550 = vld [vmem:[%s237 + $0x780] sm:$0xff]
        %v551 = vld [vmem:[%s237 + $0x788] sm:$0xff]
        %v552 = vld [vmem:[%s237 + $0x790] sm:$0xff]
        %v553 = vld [vmem:[%s237 + $0x798] sm:$0xff]
        %v554 = vld [vmem:[%s237 + $0x7a0] sm:$0xff]
        %v555 = vld [vmem:[%s237 + $0x7a8] sm:$0xff]
        %v556 = vld [vmem:[%s237 + $0x7b0] sm:$0xff]
        %v557 = vld [vmem:[%s237 + $0x7b8] sm:$0xff]
        %v558 = vld [vmem:[%s237 + $0x7c0] sm:$0xff]
        %v559 = vld [vmem:[%s237 + $0x7c8] sm:$0xff]
        %v560 = vld [vmem:[%s237 + $0x7d0] sm:$0xff]
        %v561 = vld [vmem:[%s237 + $0x7d8] sm:$0xff]
        %v562 = vld [vmem:[%s237 + $0x7e0] sm:$0xff]
        %v563 = vld [vmem:[%s237 + $0x7e8] sm:$0xff]
        %v564 = vld [vmem:[%s237 + $0x7f0] sm:$0xff]
        %v565 = vld [vmem:[%s237 + $0x7f8] sm:$0xff]
        %v566 = vand.u32 %v311, 4294901760
        %567 = vmatprep.subr.mxu0 %v566
        %v568 = vand.u32 %v310, 4294901760
        %569 = vmatpush1.msra.mxu0 %v568
        %v570 = vand.u32 %v315, 4294901760
        %571 = vmatprep.subr.mxu0 %v570
        %v572 = vand.u32 %v314, 4294901760
        %573 = vmatpush1.msra.mxu0 %v572
        %v574 = vand.u32 %v319, 4294901760
        %575 = vmatprep.subr.mxu0 %v574
        %v576 = vand.u32 %v318, 4294901760
        %577 = vmatpush1.msra.mxu0 %v576
        %v578 = vand.u32 %v323, 4294901760
        %579 = vmatprep.subr.mxu0 %v578
        %v580 = vand.u32 %v322, 4294901760
        %581 = vmatpush1.msra.mxu0 %v580
        %v582 = vand.u32 %v327, 4294901760
        %583 = vmatprep.subr.mxu0 %v582
        %v584 = vand.u32 %v326, 4294901760
        %585 = vmatpush1.msra.mxu0 %v584
        %v586 = vand.u32 %v331, 4294901760
        %587 = vmatprep.subr.mxu0 %v586
        %v588 = vand.u32 %v330, 4294901760
        %589 = vmatpush1.msra.mxu0 %v588
        %v590 = vand.u32 %v335, 4294901760
        %591 = vmatprep.subr.mxu0 %v590
        %v592 = vand.u32 %v334, 4294901760
        %593 = vmatpush1.msra.mxu0 %v592
        %v594 = vand.u32 %v339, 4294901760
        %595 = vmatprep.subr.mxu0 %v594
        %v596 = vand.u32 %v338, 4294901760
        %597 = vmatpush1.msra.mxu0 %v596
        %v598 = vand.u32 %v343, 4294901760
        %599 = vmatprep.subr.mxu0 %v598
        %v600 = vand.u32 %v342, 4294901760
        %601 = vmatpush1.msra.mxu0 %v600
        %v602 = vand.u32 %v347, 4294901760
        %603 = vmatprep.subr.mxu0 %v602
        %v604 = vand.u32 %v346, 4294901760
        %605 = vmatpush1.msra.mxu0 %v604
        %v606 = vand.u32 %v351, 4294901760
        %607 = vmatprep.subr.mxu0 %v606
        %v608 = vand.u32 %v350, 4294901760
        %609 = vmatpush1.msra.mxu0 %v608
        %v610 = vand.u32 %v355, 4294901760
        %611 = vmatprep.subr.mxu0 %v610
        %v612 = vand.u32 %v354, 4294901760
        %613 = vmatpush1.msra.mxu0 %v612
        %v614 = vand.u32 %v359, 4294901760
        %615 = vmatprep.subr.mxu0 %v614
        %v616 = vand.u32 %v358, 4294901760
        %617 = vmatpush1.msra.mxu0 %v616
        %v618 = vand.u32 %v363, 4294901760
        %619 = vmatprep.subr.mxu0 %v618
        %v620 = vand.u32 %v362, 4294901760
        %621 = vmatpush1.msra.mxu0 %v620
        %v622 = vand.u32 %v367, 4294901760
        %623 = vmatprep.subr.mxu0 %v622
        %v624 = vand.u32 %v366, 4294901760
        %625 = vmatpush1.msra.mxu0 %v624
        %v626 = vand.u32 %v371, 4294901760
        %627 = vmatprep.subr.mxu0 %v626
        %v628 = vand.u32 %v370, 4294901760
        %629 = vmatpush1.msra.mxu0 %v628
        %v630 = vand.u32 %v375, 4294901760
        %631 = vmatprep.subr.mxu0 %v630
        %v632 = vand.u32 %v374, 4294901760
        %633 = vmatpush1.msra.mxu0 %v632
        %v634 = vand.u32 %v379, 4294901760
        %635 = vmatprep.subr.mxu0 %v634
        %v636 = vand.u32 %v378, 4294901760
        %637 = vmatpush1.msra.mxu0 %v636
        %v638 = vand.u32 %v383, 4294901760
        %639 = vmatprep.subr.mxu0 %v638
        %v640 = vand.u32 %v382, 4294901760
        %641 = vmatpush1.msra.mxu0 %v640
        %v642 = vand.u32 %v387, 4294901760
        %643 = vmatprep.subr.mxu0 %v642
        %v644 = vand.u32 %v386, 4294901760
        %645 = vmatpush1.msra.mxu0 %v644
        %v646 = vand.u32 %v391, 4294901760
        %647 = vmatprep.subr.mxu0 %v646
        %v648 = vand.u32 %v390, 4294901760
        %649 = vmatpush1.msra.mxu0 %v648
        %v650 = vand.u32 %v395, 4294901760
        %651 = vmatprep.subr.mxu0 %v650
        %v652 = vand.u32 %v394, 4294901760
        %653 = vmatpush1.msra.mxu0 %v652
        %v654 = vand.u32 %v399, 4294901760
        %655 = vmatprep.subr.mxu0 %v654
        %v656 = vand.u32 %v398, 4294901760
        %657 = vmatpush1.msra.mxu0 %v656
        %v658 = vand.u32 %v403, 4294901760
        %659 = vmatprep.subr.mxu0 %v658
        %v660 = vand.u32 %v402, 4294901760
        %661 = vmatpush1.msra.mxu0 %v660
        %v662 = vand.u32 %v407, 4294901760
        %663 = vmatprep.subr.mxu0 %v662
        %v664 = vand.u32 %v406, 4294901760
        %665 = vmatpush1.msra.mxu0 %v664
        %v666 = vand.u32 %v411, 4294901760
        %667 = vmatprep.subr.mxu0 %v666
        %v668 = vand.u32 %v410, 4294901760
        %669 = vmatpush1.msra.mxu0 %v668
        %v670 = vand.u32 %v415, 4294901760
        %671 = vmatprep.subr.mxu0 %v670
        %v672 = vand.u32 %v414, 4294901760
        %673 = vmatpush1.msra.mxu0 %v672
        %v674 = vand.u32 %v419, 4294901760
        %675 = vmatprep.subr.mxu0 %v674
        %v676 = vand.u32 %v418, 4294901760
        %677 = vmatpush1.msra.mxu0 %v676
        %v678 = vand.u32 %v423, 4294901760
        %679 = vmatprep.subr.mxu0 %v678
        %v680 = vand.u32 %v422, 4294901760
        %681 = vmatpush1.msra.mxu0 %v680
        %v682 = vand.u32 %v427, 4294901760
        %683 = vmatprep.subr.mxu0 %v682
        %v684 = vand.u32 %v426, 4294901760
        %685 = vmatpush1.msra.mxu0 %v684
        %v686 = vand.u32 %v431, 4294901760
        %687 = vmatprep.subr.mxu0 %v686
        %v688 = vand.u32 %v430, 4294901760
        %689 = vmatpush1.msra.mxu0 %v688
        %v690 = vand.u32 %v435, 4294901760
        %691 = vmatprep.subr.mxu0 %v690
        %v692 = vand.u32 %v434, 4294901760
        %693 = vmatpush1.msra.mxu0 %v692
        %v694 = vand.u32 %v307, 4294901760
        %v695 = vsub.f32 %v307, %v694
        %v696 = vand.u32 %v695, 4294901760
        %v697 = vsub.f32 %v695, %v696
        %v698 = vand.u32 %v697, 4294901760
        %699 = vmatprep.mubr.f32.mxu0 %v698
        %v700 = vand.u32 %v306, 4294901760
        %v701 = vsub.f32 %v306, %v700
        %v702 = vand.u32 %v701, 4294901760
        %v703 = vsub.f32 %v701, %v702
        %v704 = vand.u32 %v703, 4294901760
        %705 = vmatmul.mubr.f32.gmra.mrb[0].mxu0 %v704
        %v706 = vpop.f32.mrb[0].mxu0
        %v707 = vadd.f32 0.0, %v706
        %v708 = vpop.f32.mrb[0].mxu0
        %v709 = vadd.f32 0.0, %v708
        %710 = vdwg.mxu0
        %v711 = vand.u32 %v311, 4294901760
        %v712 = vsub.f32 %v311, %v711
        %v713 = vand.u32 %v712, 4294901760
        %v714 = vsub.f32 %v712, %v713
        %v715 = vand.u32 %v714, 4294901760
        %716 = vmatprep.subr.mxu0 %v715
        %v717 = vand.u32 %v310, 4294901760
        %v718 = vsub.f32 %v310, %v717
        %v719 = vand.u32 %v718, 4294901760
        %v720 = vsub.f32 %v718, %v719
        %v721 = vand.u32 %v720, 4294901760
        %722 = vmatpush1.msra.mxu0 %v721
        %v723 = vand.u32 %v315, 4294901760
        %v724 = vsub.f32 %v315, %v723
        %v725 = vand.u32 %v724, 4294901760
        %v726 = vsub.f32 %v724, %v725
        %v727 = vand.u32 %v726, 4294901760
        %728 = vmatprep.subr.mxu0 %v727
        %v729 = vand.u32 %v314, 4294901760
        %v730 = vsub.f32 %v314, %v729
        %v731 = vand.u32 %v730, 4294901760
        %v732 = vsub.f32 %v730, %v731
        %v733 = vand.u32 %v732, 4294901760
        %734 = vmatpush1.msra.mxu0 %v733
        %v735 = vand.u32 %v319, 4294901760
        %v736 = vsub.f32 %v319, %v735
        %v737 = vand.u32 %v736, 4294901760
        %v738 = vsub.f32 %v736, %v737
        %v739 = vand.u32 %v738, 4294901760
        %740 = vmatprep.subr.mxu0 %v739
        %v741 = vand.u32 %v318, 4294901760
        %v742 = vsub.f32 %v318, %v741
        %v743 = vand.u32 %v742, 4294901760
        %v744 = vsub.f32 %v742, %v743
        %v745 = vand.u32 %v744, 4294901760
        %746 = vmatpush1.msra.mxu0 %v745
        %v747 = vand.u32 %v323, 4294901760
        %v748 = vsub.f32 %v323, %v747
        %v749 = vand.u32 %v748, 4294901760
        %v750 = vsub.f32 %v748, %v749
        %v751 = vand.u32 %v750, 4294901760
        %752 = vmatprep.subr.mxu0 %v751
        %v753 = vand.u32 %v322, 4294901760
        %v754 = vsub.f32 %v322, %v753
        %v755 = vand.u32 %v754, 4294901760
        %v756 = vsub.f32 %v754, %v755
        %v757 = vand.u32 %v756, 4294901760
        %758 = vmatpush1.msra.mxu0 %v757
        %v759 = vand.u32 %v327, 4294901760
        %v760 = vsub.f32 %v327, %v759
        %v761 = vand.u32 %v760, 4294901760
        %v762 = vsub.f32 %v760, %v761
        %v763 = vand.u32 %v762, 4294901760
        %764 = vmatprep.subr.mxu0 %v763
        %v765 = vand.u32 %v326, 4294901760
        %v766 = vsub.f32 %v326, %v765
        %v767 = vand.u32 %v766, 4294901760
        %v768 = vsub.f32 %v766, %v767
        %v769 = vand.u32 %v768, 4294901760
        %770 = vmatpush1.msra.mxu0 %v769
        %v771 = vand.u32 %v331, 4294901760
        %v772 = vsub.f32 %v331, %v771
        %v773 = vand.u32 %v772, 4294901760
        %v774 = vsub.f32 %v772, %v773
        %v775 = vand.u32 %v774, 4294901760
        %776 = vmatprep.subr.mxu0 %v775
        %v777 = vand.u32 %v330, 4294901760
        %v778 = vsub.f32 %v330, %v777
        %v779 = vand.u32 %v778, 4294901760
        %v780 = vsub.f32 %v778, %v779
        %v781 = vand.u32 %v780, 4294901760
        %782 = vmatpush1.msra.mxu0 %v781
        %v783 = vand.u32 %v335, 4294901760
        %v784 = vsub.f32 %v335, %v783
        %v785 = vand.u32 %v784, 4294901760
        %v786 = vsub.f32 %v784, %v785
        %v787 = vand.u32 %v786, 4294901760
        %788 = vmatprep.subr.mxu0 %v787
        %v789 = vand.u32 %v334, 4294901760
        %v790 = vsub.f32 %v334, %v789
        %v791 = vand.u32 %v790, 4294901760
        %v792 = vsub.f32 %v790, %v791
        %v793 = vand.u32 %v792, 4294901760
        %794 = vmatpush1.msra.mxu0 %v793
        %v795 = vand.u32 %v339, 4294901760
        %v796 = vsub.f32 %v339, %v795
        %v797 = vand.u32 %v796, 4294901760
        %v798 = vsub.f32 %v796, %v797
        %v799 = vand.u32 %v798, 4294901760
        %800 = vmatprep.subr.mxu0 %v799
        %v801 = vand.u32 %v338, 4294901760
        %v802 = vsub.f32 %v338, %v801
        %v803 = vand.u32 %v802, 4294901760
        %v804 = vsub.f32 %v802, %v803
        %v805 = vand.u32 %v804, 4294901760
        %806 = vmatpush1.msra.mxu0 %v805
        %v807 = vand.u32 %v343, 4294901760
        %v808 = vsub.f32 %v343, %v807
        %v809 = vand.u32 %v808, 4294901760
        %v810 = vsub.f32 %v808, %v809
        %v811 = vand.u32 %v810, 4294901760
        %812 = vmatprep.subr.mxu0 %v811
        %v813 = vand.u32 %v342, 4294901760
        %v814 = vsub.f32 %v342, %v813
        %v815 = vand.u32 %v814, 4294901760
        %v816 = vsub.f32 %v814, %v815
        %v817 = vand.u32 %v816, 4294901760
        %818 = vmatpush1.msra.mxu0 %v817
        %v819 = vand.u32 %v347, 4294901760
        %v820 = vsub.f32 %v347, %v819
        %v821 = vand.u32 %v820, 4294901760
        %v822 = vsub.f32 %v820, %v821
        %v823 = vand.u32 %v822, 4294901760
        %824 = vmatprep.subr.mxu0 %v823
        %v825 = vand.u32 %v346, 4294901760
        %v826 = vsub.f32 %v346, %v825
        %v827 = vand.u32 %v826, 4294901760
        %v828 = vsub.f32 %v826, %v827
        %v829 = vand.u32 %v828, 4294901760
        %830 = vmatpush1.msra.mxu0 %v829
        %v831 = vand.u32 %v351, 4294901760
        %v832 = vsub.f32 %v351, %v831
        %v833 = vand.u32 %v832, 4294901760
        %v834 = vsub.f32 %v832, %v833
        %v835 = vand.u32 %v834, 4294901760
        %836 = vmatprep.subr.mxu0 %v835
        %v837 = vand.u32 %v350, 4294901760
        %v838 = vsub.f32 %v350, %v837
        %v839 = vand.u32 %v838, 4294901760
        %v840 = vsub.f32 %v838, %v839
        %v841 = vand.u32 %v840, 4294901760
        %842 = vmatpush1.msra.mxu0 %v841
        %v843 = vand.u32 %v355, 4294901760
        %v844 = vsub.f32 %v355, %v843
        %v845 = vand.u32 %v844, 4294901760
        %v846 = vsub.f32 %v844, %v845
        %v847 = vand.u32 %v846, 4294901760
        %848 = vmatprep.subr.mxu0 %v847
        %v849 = vand.u32 %v354, 4294901760
        %v850 = vsub.f32 %v354, %v849
        %v851 = vand.u32 %v850, 4294901760
        %v852 = vsub.f32 %v850, %v851
        %v853 = vand.u32 %v852, 4294901760
        %854 = vmatpush1.msra.mxu0 %v853
        %v855 = vand.u32 %v359, 4294901760
        %v856 = vsub.f32 %v359, %v855
        %v857 = vand.u32 %v856, 4294901760
        %v858 = vsub.f32 %v856, %v857
        %v859 = vand.u32 %v858, 4294901760
        %860 = vmatprep.subr.mxu0 %v859
        %v861 = vand.u32 %v358, 4294901760
        %v862 = vsub.f32 %v358, %v861
        %v863 = vand.u32 %v862, 4294901760
        %v864 = vsub.f32 %v862, %v863
        %v865 = vand.u32 %v864, 4294901760
        %866 = vmatpush1.msra.mxu0 %v865
        %v867 = vand.u32 %v363, 4294901760
        %v868 = vsub.f32 %v363, %v867
        %v869 = vand.u32 %v868, 4294901760
        %v870 = vsub.f32 %v868, %v869
        %v871 = vand.u32 %v870, 4294901760
        %872 = vmatprep.subr.mxu0 %v871
        %v873 = vand.u32 %v362, 4294901760
        %v874 = vsub.f32 %v362, %v873
        %v875 = vand.u32 %v874, 4294901760
        %v876 = vsub.f32 %v874, %v875
        %v877 = vand.u32 %v876, 4294901760
        %878 = vmatpush1.msra.mxu0 %v877
        %v879 = vand.u32 %v367, 4294901760
        %v880 = vsub.f32 %v367, %v879
        %v881 = vand.u32 %v880, 4294901760
        %v882 = vsub.f32 %v880, %v881
        %v883 = vand.u32 %v882, 4294901760
        %884 = vmatprep.subr.mxu0 %v883
        %v885 = vand.u32 %v366, 4294901760
        %v886 = vsub.f32 %v366, %v885
        %v887 = vand.u32 %v886, 4294901760
        %v888 = vsub.f32 %v886, %v887
        %v889 = vand.u32 %v888, 4294901760
        %890 = vmatpush1.msra.mxu0 %v889
        %v891 = vand.u32 %v371, 4294901760
        %v892 = vsub.f32 %v371, %v891
        %v893 = vand.u32 %v892, 4294901760
        %v894 = vsub.f32 %v892, %v893
        %v895 = vand.u32 %v894, 4294901760
        %896 = vmatprep.subr.mxu0 %v895
        %v897 = vand.u32 %v370, 4294901760
        %v898 = vsub.f32 %v370, %v897
        %v899 = vand.u32 %v898, 4294901760
        %v900 = vsub.f32 %v898, %v899
        %v901 = vand.u32 %v900, 4294901760
        %902 = vmatpush1.msra.mxu0 %v901
        %v903 = vand.u32 %v375, 4294901760
        %v904 = vsub.f32 %v375, %v903
        %v905 = vand.u32 %v904, 4294901760
        %v906 = vsub.f32 %v904, %v905
        %v907 = vand.u32 %v906, 4294901760
        %908 = vmatprep.subr.mxu0 %v907
        %v909 = vand.u32 %v374, 4294901760
        %v910 = vsub.f32 %v374, %v909
        %v911 = vand.u32 %v910, 4294901760
        %v912 = vsub.f32 %v910, %v911
        %v913 = vand.u32 %v912, 4294901760
        %914 = vmatpush1.msra.mxu0 %v913
        %v915 = vand.u32 %v379, 4294901760
        %v916 = vsub.f32 %v379, %v915
        %v917 = vand.u32 %v916, 4294901760
        %v918 = vsub.f32 %v916, %v917
        %v919 = vand.u32 %v918, 4294901760
        %920 = vmatprep.subr.mxu0 %v919
        %v921 = vand.u32 %v378, 4294901760
        %v922 = vsub.f32 %v378, %v921
        %v923 = vand.u32 %v922, 4294901760
        %v924 = vsub.f32 %v922, %v923
        %v925 = vand.u32 %v924, 4294901760
        %926 = vmatpush1.msra.mxu0 %v925
        %v927 = vand.u32 %v383, 4294901760
        %v928 = vsub.f32 %v383, %v927
        %v929 = vand.u32 %v928, 4294901760
        %v930 = vsub.f32 %v928, %v929
        %v931 = vand.u32 %v930, 4294901760
        %932 = vmatprep.subr.mxu0 %v931
        %v933 = vand.u32 %v382, 4294901760
        %v934 = vsub.f32 %v382, %v933
        %v935 = vand.u32 %v934, 4294901760
        %v936 = vsub.f32 %v934, %v935
        %v937 = vand.u32 %v936, 4294901760
        %938 = vmatpush1.msra.mxu0 %v937
        %v939 = vand.u32 %v387, 4294901760
        %v940 = vsub.f32 %v387, %v939
        %v941 = vand.u32 %v940, 4294901760
        %v942 = vsub.f32 %v940, %v941
        %v943 = vand.u32 %v942, 4294901760
        %944 = vmatprep.subr.mxu0 %v943
        %v945 = vand.u32 %v386, 4294901760
        %v946 = vsub.f32 %v386, %v945
        %v947 = vand.u32 %v946, 4294901760
        %v948 = vsub.f32 %v946, %v947
        %v949 = vand.u32 %v948, 4294901760
        %950 = vmatpush1.msra.mxu0 %v949
        %v951 = vand.u32 %v391, 4294901760
        %v952 = vsub.f32 %v391, %v951
        %v953 = vand.u32 %v952, 4294901760
        %v954 = vsub.f32 %v952, %v953
        %v955 = vand.u32 %v954, 4294901760
        %956 = vmatprep.subr.mxu0 %v955
        %v957 = vand.u32 %v390, 4294901760
        %v958 = vsub.f32 %v390, %v957
        %v959 = vand.u32 %v958, 4294901760
        %v960 = vsub.f32 %v958, %v959
        %v961 = vand.u32 %v960, 4294901760
        %962 = vmatpush1.msra.mxu0 %v961
        %v963 = vand.u32 %v395, 4294901760
        %v964 = vsub.f32 %v395, %v963
        %v965 = vand.u32 %v964, 4294901760
        %v966 = vsub.f32 %v964, %v965
        %v967 = vand.u32 %v966, 4294901760
        %968 = vmatprep.subr.mxu0 %v967
        %v969 = vand.u32 %v394, 4294901760
        %v970 = vsub.f32 %v394, %v969
        %v971 = vand.u32 %v970, 4294901760
        %v972 = vsub.f32 %v970, %v971
        %v973 = vand.u32 %v972, 4294901760
        %974 = vmatpush1.msra.mxu0 %v973
        %v975 = vand.u32 %v399, 4294901760
        %v976 = vsub.f32 %v399, %v975
        %v977 = vand.u32 %v976, 4294901760
        %v978 = vsub.f32 %v976, %v977
        %v979 = vand.u32 %v978, 4294901760
        %980 = vmatprep.subr.mxu0 %v979
        %v981 = vand.u32 %v398, 4294901760
        %v982 = vsub.f32 %v398, %v981
        %v983 = vand.u32 %v982, 4294901760
        %v984 = vsub.f32 %v982, %v983
        %v985 = vand.u32 %v984, 4294901760
        %986 = vmatpush1.msra.mxu0 %v985
        %v987 = vand.u32 %v403, 4294901760
        %v988 = vsub.f32 %v403, %v987
        %v989 = vand.u32 %v988, 4294901760
        %v990 = vsub.f32 %v988, %v989
        %v991 = vand.u32 %v990, 4294901760
        %992 = vmatprep.subr.mxu0 %v991
        %v993 = vand.u32 %v402, 4294901760
        %v994 = vsub.f32 %v402, %v993
        %v995 = vand.u32 %v994, 4294901760
        %v996 = vsub.f32 %v994, %v995
        %v997 = vand.u32 %v996, 4294901760
        %998 = vmatpush1.msra.mxu0 %v997
        %v999 = vand.u32 %v407, 4294901760
        %v1000 = vsub.f32 %v407, %v999
        %v1001 = vand.u32 %v1000, 4294901760
        %v1002 = vsub.f32 %v1000, %v1001
        %v1003 = vand.u32 %v1002, 4294901760
        %1004 = vmatprep.subr.mxu0 %v1003
        %v1005 = vand.u32 %v406, 4294901760
        %v1006 = vsub.f32 %v406, %v1005
        %v1007 = vand.u32 %v1006, 4294901760
        %v1008 = vsub.f32 %v1006, %v1007
        %v1009 = vand.u32 %v1008, 4294901760
        %1010 = vmatpush1.msra.mxu0 %v1009
        %v1011 = vand.u32 %v411, 4294901760
        %v1012 = vsub.f32 %v411, %v1011
        %v1013 = vand.u32 %v1012, 4294901760
        %v1014 = vsub.f32 %v1012, %v1013
        %v1015 = vand.u32 %v1014, 4294901760
        %1016 = vmatprep.subr.mxu0 %v1015
        %v1017 = vand.u32 %v410, 4294901760
        %v1018 = vsub.f32 %v410, %v1017
        %v1019 = vand.u32 %v1018, 4294901760
        %v1020 = vsub.f32 %v1018, %v1019
        %v1021 = vand.u32 %v1020, 4294901760
        %1022 = vmatpush1.msra.mxu0 %v1021
        %v1023 = vand.u32 %v415, 4294901760
        %v1024 = vsub.f32 %v415, %v1023
        %v1025 = vand.u32 %v1024, 4294901760
        %v1026 = vsub.f32 %v1024, %v1025
        %v1027 = vand.u32 %v1026, 4294901760
        %1028 = vmatprep.subr.mxu0 %v1027
        %v1029 = vand.u32 %v414, 4294901760
        %v1030 = vsub.f32 %v414, %v1029
        %v1031 = vand.u32 %v1030, 4294901760
        %v1032 = vsub.f32 %v1030, %v1031
        %v1033 = vand.u32 %v1032, 4294901760
        %1034 = vmatpush1.msra.mxu0 %v1033
        %v1035 = vand.u32 %v419, 4294901760
        %v1036 = vsub.f32 %v419, %v1035
        %v1037 = vand.u32 %v1036, 4294901760
        %v1038 = vsub.f32 %v1036, %v1037
        %v1039 = vand.u32 %v1038, 4294901760
        %1040 = vmatprep.subr.mxu0 %v1039
        %v1041 = vand.u32 %v418, 4294901760
        %v1042 = vsub.f32 %v418, %v1041
        %v1043 = vand.u32 %v1042, 4294901760
        %v1044 = vsub.f32 %v1042, %v1043
        %v1045 = vand.u32 %v1044, 4294901760
        %1046 = vmatpush1.msra.mxu0 %v1045
        %v1047 = vand.u32 %v423, 4294901760
        %v1048 = vsub.f32 %v423, %v1047
        %v1049 = vand.u32 %v1048, 4294901760
        %v1050 = vsub.f32 %v1048, %v1049
        %v1051 = vand.u32 %v1050, 4294901760
        %1052 = vmatprep.subr.mxu0 %v1051
        %v1053 = vand.u32 %v422, 4294901760
        %v1054 = vsub.f32 %v422, %v1053
        %v1055 = vand.u32 %v1054, 4294901760
        %v1056 = vsub.f32 %v1054, %v1055
        %v1057 = vand.u32 %v1056, 4294901760
        %1058 = vmatpush1.msra.mxu0 %v1057
        %v1059 = vand.u32 %v427, 4294901760
        %v1060 = vsub.f32 %v427, %v1059
        %v1061 = vand.u32 %v1060, 4294901760
        %v1062 = vsub.f32 %v1060, %v1061
        %v1063 = vand.u32 %v1062, 4294901760
        %1064 = vmatprep.subr.mxu0 %v1063
        %v1065 = vand.u32 %v426, 4294901760
        %v1066 = vsub.f32 %v426, %v1065
        %v1067 = vand.u32 %v1066, 4294901760
        %v1068 = vsub.f32 %v1066, %v1067
        %v1069 = vand.u32 %v1068, 4294901760
        %1070 = vmatpush1.msra.mxu0 %v1069
        %v1071 = vand.u32 %v431, 4294901760
        %v1072 = vsub.f32 %v431, %v1071
        %v1073 = vand.u32 %v1072, 4294901760
        %v1074 = vsub.f32 %v1072, %v1073
        %v1075 = vand.u32 %v1074, 4294901760
        %1076 = vmatprep.subr.mxu0 %v1075
        %v1077 = vand.u32 %v430, 4294901760
        %v1078 = vsub.f32 %v430, %v1077
        %v1079 = vand.u32 %v1078, 4294901760
        %v1080 = vsub.f32 %v1078, %v1079
        %v1081 = vand.u32 %v1080, 4294901760
        %1082 = vmatpush1.msra.mxu0 %v1081
        %v1083 = vand.u32 %v435, 4294901760
        %v1084 = vsub.f32 %v435, %v1083
        %v1085 = vand.u32 %v1084, 4294901760
        %v1086 = vsub.f32 %v1084, %v1085
        %v1087 = vand.u32 %v1086, 4294901760
        %1088 = vmatprep.subr.mxu0 %v1087
        %v1089 = vand.u32 %v434, 4294901760
        %v1090 = vsub.f32 %v434, %v1089
        %v1091 = vand.u32 %v1090, 4294901760
        %v1092 = vsub.f32 %v1090, %v1091
        %v1093 = vand.u32 %v1092, 4294901760
        %1094 = vmatpush1.msra.mxu0 %v1093
        %v1095 = vand.u32 %v307, 4294901760
        %1096 = vmatprep.mubr.f32.mxu0 %v1095
        %v1097 = vand.u32 %v306, 4294901760
        %1098 = vmatmul.mubr.f32.gmra.mrb[0].mxu0 %v1097
        %v1099 = vpop.f32.mrb[0].mxu0
        %v1100 = vadd.f32 %v707, %v1099
        %v1101 = vpop.f32.mrb[0].mxu0
        %v1102 = vadd.f32 %v709, %v1101
        %1103 = vdwg.mxu0
        %v1104 = vand.u32 %v311, 4294901760
        %v1105 = vsub.f32 %v311, %v1104
        %1106 = vmatprep.subr.mxu0 %v1105
        %v1107 = vand.u32 %v310, 4294901760
        %v1108 = vsub.f32 %v310, %v1107
        %1109 = vmatpush1.msra.mxu0 %v1108
        %v1110 = vand.u32 %v315, 4294901760
        %v1111 = vsub.f32 %v315, %v1110
        %1112 = vmatprep.subr.mxu0 %v1111
        %v1113 = vand.u32 %v314, 4294901760
        %v1114 = vsub.f32 %v314, %v1113
        %1115 = vmatpush1.msra.mxu0 %v1114
        %v1116 = vand.u32 %v319, 4294901760
        %v1117 = vsub.f32 %v319, %v1116
        %1118 = vmatprep.subr.mxu0 %v1117
        %v1119 = vand.u32 %v318, 4294901760
        %v1120 = vsub.f32 %v318, %v1119
        %1121 = vmatpush1.msra.mxu0 %v1120
        %v1122 = vand.u32 %v323, 4294901760
        %v1123 = vsub.f32 %v323, %v1122
        %1124 = vmatprep.subr.mxu0 %v1123
        %v1125 = vand.u32 %v322, 4294901760
        %v1126 = vsub.f32 %v322, %v1125
        %1127 = vmatpush1.msra.mxu0 %v1126
        %v1128 = vand.u32 %v327, 4294901760
        %v1129 = vsub.f32 %v327, %v1128
        %1130 = vmatprep.subr.mxu0 %v1129
        %v1131 = vand.u32 %v326, 4294901760
        %v1132 = vsub.f32 %v326, %v1131
        %1133 = vmatpush1.msra.mxu0 %v1132
        %v1134 = vand.u32 %v331, 4294901760
        %v1135 = vsub.f32 %v331, %v1134
        %1136 = vmatprep.subr.mxu0 %v1135
        %v1137 = vand.u32 %v330, 4294901760
        %v1138 = vsub.f32 %v330, %v1137
        %1139 = vmatpush1.msra.mxu0 %v1138
        %v1140 = vand.u32 %v335, 4294901760
        %v1141 = vsub.f32 %v335, %v1140
        %1142 = vmatprep.subr.mxu0 %v1141
        %v1143 = vand.u32 %v334, 4294901760
        %v1144 = vsub.f32 %v334, %v1143
        %1145 = vmatpush1.msra.mxu0 %v1144
        %v1146 = vand.u32 %v339, 4294901760
        %v1147 = vsub.f32 %v339, %v1146
        %1148 = vmatprep.subr.mxu0 %v1147
        %v1149 = vand.u32 %v338, 4294901760
        %v1150 = vsub.f32 %v338, %v1149
        %1151 = vmatpush1.msra.mxu0 %v1150
        %v1152 = vand.u32 %v343, 4294901760
        %v1153 = vsub.f32 %v343, %v1152
        %1154 = vmatprep.subr.mxu0 %v1153
        %v1155 = vand.u32 %v342, 4294901760
        %v1156 = vsub.f32 %v342, %v1155
        %1157 = vmatpush1.msra.mxu0 %v1156
        %v1158 = vand.u32 %v347, 4294901760
        %v1159 = vsub.f32 %v347, %v1158
        %1160 = vmatprep.subr.mxu0 %v1159
        %v1161 = vand.u32 %v346, 4294901760
        %v1162 = vsub.f32 %v346, %v1161
        %1163 = vmatpush1.msra.mxu0 %v1162
        %v1164 = vand.u32 %v351, 4294901760
        %v1165 = vsub.f32 %v351, %v1164
        %1166 = vmatprep.subr.mxu0 %v1165
        %v1167 = vand.u32 %v350, 4294901760
        %v1168 = vsub.f32 %v350, %v1167
        %1169 = vmatpush1.msra.mxu0 %v1168
        %v1170 = vand.u32 %v355, 4294901760
        %v1171 = vsub.f32 %v355, %v1170
        %1172 = vmatprep.subr.mxu0 %v1171
        %v1173 = vand.u32 %v354, 4294901760
        %v1174 = vsub.f32 %v354, %v1173
        %1175 = vmatpush1.msra.mxu0 %v1174
        %v1176 = vand.u32 %v359, 4294901760
        %v1177 = vsub.f32 %v359, %v1176
        %1178 = vmatprep.subr.mxu0 %v1177
        %v1179 = vand.u32 %v358, 4294901760
        %v1180 = vsub.f32 %v358, %v1179
        %1181 = vmatpush1.msra.mxu0 %v1180
        %v1182 = vand.u32 %v363, 4294901760
        %v1183 = vsub.f32 %v363, %v1182
        %1184 = vmatprep.subr.mxu0 %v1183
        %v1185 = vand.u32 %v362, 4294901760
        %v1186 = vsub.f32 %v362, %v1185
        %1187 = vmatpush1.msra.mxu0 %v1186
        %v1188 = vand.u32 %v367, 4294901760
        %v1189 = vsub.f32 %v367, %v1188
        %1190 = vmatprep.subr.mxu0 %v1189
        %v1191 = vand.u32 %v366, 4294901760
        %v1192 = vsub.f32 %v366, %v1191
        %1193 = vmatpush1.msra.mxu0 %v1192
        %v1194 = vand.u32 %v371, 4294901760
        %v1195 = vsub.f32 %v371, %v1194
        %1196 = vmatprep.subr.mxu0 %v1195
        %v1197 = vand.u32 %v370, 4294901760
        %v1198 = vsub.f32 %v370, %v1197
        %1199 = vmatpush1.msra.mxu0 %v1198
        %v1200 = vand.u32 %v375, 4294901760
        %v1201 = vsub.f32 %v375, %v1200
        %1202 = vmatprep.subr.mxu0 %v1201
        %v1203 = vand.u32 %v374, 4294901760
        %v1204 = vsub.f32 %v374, %v1203
        %1205 = vmatpush1.msra.mxu0 %v1204
        %v1206 = vand.u32 %v379, 4294901760
        %v1207 = vsub.f32 %v379, %v1206
        %1208 = vmatprep.subr.mxu0 %v1207
        %v1209 = vand.u32 %v378, 4294901760
        %v1210 = vsub.f32 %v378, %v1209
        %1211 = vmatpush1.msra.mxu0 %v1210
        %v1212 = vand.u32 %v383, 4294901760
        %v1213 = vsub.f32 %v383, %v1212
        %1214 = vmatprep.subr.mxu0 %v1213
        %v1215 = vand.u32 %v382, 4294901760
        %v1216 = vsub.f32 %v382, %v1215
        %1217 = vmatpush1.msra.mxu0 %v1216
        %v1218 = vand.u32 %v387, 4294901760
        %v1219 = vsub.f32 %v387, %v1218
        %1220 = vmatprep.subr.mxu0 %v1219
        %v1221 = vand.u32 %v386, 4294901760
        %v1222 = vsub.f32 %v386, %v1221
        %1223 = vmatpush1.msra.mxu0 %v1222
        %v1224 = vand.u32 %v391, 4294901760
        %v1225 = vsub.f32 %v391, %v1224
        %1226 = vmatprep.subr.mxu0 %v1225
        %v1227 = vand.u32 %v390, 4294901760
        %v1228 = vsub.f32 %v390, %v1227
        %1229 = vmatpush1.msra.mxu0 %v1228
        %v1230 = vand.u32 %v395, 4294901760
        %v1231 = vsub.f32 %v395, %v1230
        %1232 = vmatprep.subr.mxu0 %v1231
        %v1233 = vand.u32 %v394, 4294901760
        %v1234 = vsub.f32 %v394, %v1233
        %1235 = vmatpush1.msra.mxu0 %v1234
        %v1236 = vand.u32 %v399, 4294901760
        %v1237 = vsub.f32 %v399, %v1236
        %1238 = vmatprep.subr.mxu0 %v1237
        %v1239 = vand.u32 %v398, 4294901760
        %v1240 = vsub.f32 %v398, %v1239
        %1241 = vmatpush1.msra.mxu0 %v1240
        %v1242 = vand.u32 %v403, 4294901760
        %v1243 = vsub.f32 %v403, %v1242
        %1244 = vmatprep.subr.mxu0 %v1243
        %v1245 = vand.u32 %v402, 4294901760
        %v1246 = vsub.f32 %v402, %v1245
        %1247 = vmatpush1.msra.mxu0 %v1246
        %v1248 = vand.u32 %v407, 4294901760
        %v1249 = vsub.f32 %v407, %v1248
        %1250 = vmatprep.subr.mxu0 %v1249
        %v1251 = vand.u32 %v406, 4294901760
        %v1252 = vsub.f32 %v406, %v1251
        %1253 = vmatpush1.msra.mxu0 %v1252
        %v1254 = vand.u32 %v411, 4294901760
        %v1255 = vsub.f32 %v411, %v1254
        %1256 = vmatprep.subr.mxu0 %v1255
        %v1257 = vand.u32 %v410, 4294901760
        %v1258 = vsub.f32 %v410, %v1257
        %1259 = vmatpush1.msra.mxu0 %v1258
        %v1260 = vand.u32 %v415, 4294901760
        %v1261 = vsub.f32 %v415, %v1260
        %1262 = vmatprep.subr.mxu0 %v1261
        %v1263 = vand.u32 %v414, 4294901760
        %v1264 = vsub.f32 %v414, %v1263
        %1265 = vmatpush1.msra.mxu0 %v1264
        %v1266 = vand.u32 %v419, 4294901760
        %v1267 = vsub.f32 %v419, %v1266
        %1268 = vmatprep.subr.mxu0 %v1267
        %v1269 = vand.u32 %v418, 4294901760
        %v1270 = vsub.f32 %v418, %v1269
        %1271 = vmatpush1.msra.mxu0 %v1270
        %v1272 = vand.u32 %v423, 4294901760
        %v1273 = vsub.f32 %v423, %v1272
        %1274 = vmatprep.subr.mxu0 %v1273
        %v1275 = vand.u32 %v422, 4294901760
        %v1276 = vsub.f32 %v422, %v1275
        %1277 = vmatpush1.msra.mxu0 %v1276
        %v1278 = vand.u32 %v427, 4294901760
        %v1279 = vsub.f32 %v427, %v1278
        %1280 = vmatprep.subr.mxu0 %v1279
        %v1281 = vand.u32 %v426, 4294901760
        %v1282 = vsub.f32 %v426, %v1281
        %1283 = vmatpush1.msra.mxu0 %v1282
        %v1284 = vand.u32 %v431, 4294901760
        %v1285 = vsub.f32 %v431, %v1284
        %1286 = vmatprep.subr.mxu0 %v1285
        %v1287 = vand.u32 %v430, 4294901760
        %v1288 = vsub.f32 %v430, %v1287
        %1289 = vmatpush1.msra.mxu0 %v1288
        %v1290 = vand.u32 %v435, 4294901760
        %v1291 = vsub.f32 %v435, %v1290
        %1292 = vmatprep.subr.mxu0 %v1291
        %v1293 = vand.u32 %v434, 4294901760
        %v1294 = vsub.f32 %v434, %v1293
        %1295 = vmatpush1.msra.mxu0 %v1294
        %v1296 = vand.u32 %v307, 4294901760
        %v1297 = vsub.f32 %v307, %v1296
        %1298 = vmatprep.mubr.f32.mxu0 %v1297
        %v1299 = vand.u32 %v306, 4294901760
        %v1300 = vsub.f32 %v306, %v1299
        %1301 = vmatmul.mubr.f32.gmra.mrb[0].mxu0 %v1300
        %v1302 = vpop.f32.mrb[0].mxu0
        %v1303 = vadd.f32 %v1100, %v1302
        %v1304 = vpop.f32.mrb[0].mxu0
        %v1305 = vadd.f32 %v1102, %v1304
        %1306 = vdwg.mxu0
        %v1307 = vand.u32 %v311, 4294901760
        %1308 = vmatprep.subr.mxu0 %v1307
        %v1309 = vand.u32 %v310, 4294901760
        %1310 = vmatpush1.msra.mxu0 %v1309
        %v1311 = vand.u32 %v315, 4294901760
        %1312 = vmatprep.subr.mxu0 %v1311
        %v1313 = vand.u32 %v314, 4294901760
        %1314 = vmatpush1.msra.mxu0 %v1313
        %v1315 = vand.u32 %v319, 4294901760
        %1316 = vmatprep.subr.mxu0 %v1315
        %v1317 = vand.u32 %v318, 4294901760
        %1318 = vmatpush1.msra.mxu0 %v1317
        %v1319 = vand.u32 %v323, 4294901760
        %1320 = vmatprep.subr.mxu0 %v1319
        %v1321 = vand.u32 %v322, 4294901760
        %1322 = vmatpush1.msra.mxu0 %v1321
        %v1323 = vand.u32 %v327, 4294901760
        %1324 = vmatprep.subr.mxu0 %v1323
        %v1325 = vand.u32 %v326, 4294901760
        %1326 = vmatpush1.msra.mxu0 %v1325
        %v1327 = vand.u32 %v331, 4294901760
        %1328 = vmatprep.subr.mxu0 %v1327
        %v1329 = vand.u32 %v330, 4294901760
        %1330 = vmatpush1.msra.mxu0 %v1329
        %v1331 = vand.u32 %v335, 4294901760
        %1332 = vmatprep.subr.mxu0 %v1331
        %v1333 = vand.u32 %v334, 4294901760
        %1334 = vmatpush1.msra.mxu0 %v1333
        %v1335 = vand.u32 %v339, 4294901760
        %1336 = vmatprep.subr.mxu0 %v1335
        %v1337 = vand.u32 %v338, 4294901760
        %1338 = vmatpush1.msra.mxu0 %v1337
        %v1339 = vand.u32 %v343, 4294901760
        %1340 = vmatprep.subr.mxu0 %v1339
        %v1341 = vand.u32 %v342, 4294901760
        %1342 = vmatpush1.msra.mxu0 %v1341
        %v1343 = vand.u32 %v347, 4294901760
        %1344 = vmatprep.subr.mxu0 %v1343
        %v1345 = vand.u32 %v346, 4294901760
        %1346 = vmatpush1.msra.mxu0 %v1345
        %v1347 = vand.u32 %v351, 4294901760
        %1348 = vmatprep.subr.mxu0 %v1347
        %v1349 = vand.u32 %v350, 4294901760
        %1350 = vmatpush1.msra.mxu0 %v1349
        %v1351 = vand.u32 %v355, 4294901760
        %1352 = vmatprep.subr.mxu0 %v1351
        %v1353 = vand.u32 %v354, 4294901760
        %1354 = vmatpush1.msra.mxu0 %v1353
        %v1355 = vand.u32 %v359, 4294901760
        %1356 = vmatprep.subr.mxu0 %v1355
        %v1357 = vand.u32 %v358, 4294901760
        %1358 = vmatpush1.msra.mxu0 %v1357
        %v1359 = vand.u32 %v363, 4294901760
        %1360 = vmatprep.subr.mxu0 %v1359
        %v1361 = vand.u32 %v362, 4294901760
        %1362 = vmatpush1.msra.mxu0 %v1361
        %v1363 = vand.u32 %v367, 4294901760
        %1364 = vmatprep.subr.mxu0 %v1363
        %v1365 = vand.u32 %v366, 4294901760
        %1366 = vmatpush1.msra.mxu0 %v1365
        %v1367 = vand.u32 %v371, 4294901760
        %1368 = vmatprep.subr.mxu0 %v1367
        %v1369 = vand.u32 %v370, 4294901760
        %1370 = vmatpush1.msra.mxu0 %v1369
        %v1371 = vand.u32 %v375, 4294901760
        %1372 = vmatprep.subr.mxu0 %v1371
        %v1373 = vand.u32 %v374, 4294901760
        %1374 = vmatpush1.msra.mxu0 %v1373
        %v1375 = vand.u32 %v379, 4294901760
        %1376 = vmatprep.subr.mxu0 %v1375
        %v1377 = vand.u32 %v378, 4294901760
        %1378 = vmatpush1.msra.mxu0 %v1377
        %v1379 = vand.u32 %v383, 4294901760
        %1380 = vmatprep.subr.mxu0 %v1379
        %v1381 = vand.u32 %v382, 4294901760
        %1382 = vmatpush1.msra.mxu0 %v1381
        %v1383 = vand.u32 %v387, 4294901760
        %1384 = vmatprep.subr.mxu0 %v1383
        %v1385 = vand.u32 %v386, 4294901760
        %1386 = vmatpush1.msra.mxu0 %v1385
        %v1387 = vand.u32 %v391, 4294901760
        %1388 = vmatprep.subr.mxu0 %v1387
        %v1389 = vand.u32 %v390, 4294901760
        %1390 = vmatpush1.msra.mxu0 %v1389
        %v1391 = vand.u32 %v395, 4294901760
        %1392 = vmatprep.subr.mxu0 %v1391
        %v1393 = vand.u32 %v394, 4294901760
        %1394 = vmatpush1.msra.mxu0 %v1393
        %v1395 = vand.u32 %v399, 4294901760
        %1396 = vmatprep.subr.mxu0 %v1395
        %v1397 = vand.u32 %v398, 4294901760
        %1398 = vmatpush1.msra.mxu0 %v1397
        %v1399 = vand.u32 %v403, 4294901760
        %1400 = vmatprep.subr.mxu0 %v1399
        %v1401 = vand.u32 %v402, 4294901760
        %1402 = vmatpush1.msra.mxu0 %v1401
        %v1403 = vand.u32 %v407, 4294901760
        %1404 = vmatprep.subr.mxu0 %v1403
        %v1405 = vand.u32 %v406, 4294901760
        %1406 = vmatpush1.msra.mxu0 %v1405
        %v1407 = vand.u32 %v411, 4294901760
        %1408 = vmatprep.subr.mxu0 %v1407
        %v1409 = vand.u32 %v410, 4294901760
        %1410 = vmatpush1.msra.mxu0 %v1409
        %v1411 = vand.u32 %v415, 4294901760
        %1412 = vmatprep.subr.mxu0 %v1411
        %v1413 = vand.u32 %v414, 4294901760
        %1414 = vmatpush1.msra.mxu0 %v1413
        %v1415 = vand.u32 %v419, 4294901760
        %1416 = vmatprep.subr.mxu0 %v1415
        %v1417 = vand.u32 %v418, 4294901760
        %1418 = vmatpush1.msra.mxu0 %v1417
        %v1419 = vand.u32 %v423, 4294901760
        %1420 = vmatprep.subr.mxu0 %v1419
        %v1421 = vand.u32 %v422, 4294901760
        %1422 = vmatpush1.msra.mxu0 %v1421
        %v1423 = vand.u32 %v427, 4294901760
        %1424 = vmatprep.subr.mxu0 %v1423
        %v1425 = vand.u32 %v426, 4294901760
        %1426 = vmatpush1.msra.mxu0 %v1425
        %v1427 = vand.u32 %v431, 4294901760
        %1428 = vmatprep.subr.mxu0 %v1427
        %v1429 = vand.u32 %v430, 4294901760
        %1430 = vmatpush1.msra.mxu0 %v1429
        %v1431 = vand.u32 %v435, 4294901760
        %1432 = vmatprep.subr.mxu0 %v1431
        %v1433 = vand.u32 %v434, 4294901760
        %1434 = vmatpush1.msra.mxu0 %v1433
        %v1435 = vand.u32 %v307, 4294901760
        %v1436 = vsub.f32 %v307, %v1435
        %v1437 = vand.u32 %v1436, 4294901760
        %1438 = vmatprep.mubr.f32.mxu0 %v1437
        %v1439 = vand.u32 %v306, 4294901760
        %v1440 = vsub.f32 %v306, %v1439
        %v1441 = vand.u32 %v1440, 4294901760
        %1442 = vmatmul.mubr.f32.gmra.mrb[0].mxu0 %v1441
        %v1443 = vpop.f32.mrb[0].mxu0
        %v1444 = vadd.f32 %v1303, %v1443
        %v1445 = vpop.f32.mrb[0].mxu0
        %v1446 = vadd.f32 %v1305, %v1445
        %1447 = vdwg.mxu0
        %v1448 = vand.u32 %v311, 4294901760
        %v1449 = vsub.f32 %v311, %v1448
        %v1450 = vand.u32 %v1449, 4294901760
        %1451 = vmatprep.subr.mxu0 %v1450
        %v1452 = vand.u32 %v310, 4294901760
        %v1453 = vsub.f32 %v310, %v1452
        %v1454 = vand.u32 %v1453, 4294901760
        %1455 = vmatpush1.msra.mxu0 %v1454
        %v1456 = vand.u32 %v315, 4294901760
        %v1457 = vsub.f32 %v315, %v1456
        %v1458 = vand.u32 %v1457, 4294901760
        %1459 = vmatprep.subr.mxu0 %v1458
        %v1460 = vand.u32 %v314, 4294901760
        %v1461 = vsub.f32 %v314, %v1460
        %v1462 = vand.u32 %v1461, 4294901760
        %1463 = vmatpush1.msra.mxu0 %v1462
        %v1464 = vand.u32 %v319, 4294901760
        %v1465 = vsub.f32 %v319, %v1464
        %v1466 = vand.u32 %v1465, 4294901760
        %1467 = vmatprep.subr.mxu0 %v1466
        %v1468 = vand.u32 %v318, 4294901760
        %v1469 = vsub.f32 %v318, %v1468
        %v1470 = vand.u32 %v1469, 4294901760
        %1471 = vmatpush1.msra.mxu0 %v1470
        %v1472 = vand.u32 %v323, 4294901760
        %v1473 = vsub.f32 %v323, %v1472
        %v1474 = vand.u32 %v1473, 4294901760
        %1475 = vmatprep.subr.mxu0 %v1474
        %v1476 = vand.u32 %v322, 4294901760
        %v1477 = vsub.f32 %v322, %v1476
        %v1478 = vand.u32 %v1477, 4294901760
        %1479 = vmatpush1.msra.mxu0 %v1478
        %v1480 = vand.u32 %v327, 4294901760
        %v1481 = vsub.f32 %v327, %v1480
        %v1482 = vand.u32 %v1481, 4294901760
        %1483 = vmatprep.subr.mxu0 %v1482
        %v1484 = vand.u32 %v326, 4294901760
        %v1485 = vsub.f32 %v326, %v1484
        %v1486 = vand.u32 %v1485, 4294901760
        %1487 = vmatpush1.msra.mxu0 %v1486
        %v1488 = vand.u32 %v331, 4294901760
        %v1489 = vsub.f32 %v331, %v1488
        %v1490 = vand.u32 %v1489, 4294901760
        %1491 = vmatprep.subr.mxu0 %v1490
        %v1492 = vand.u32 %v330, 4294901760
        %v1493 = vsub.f32 %v330, %v1492
        %v1494 = vand.u32 %v1493, 4294901760
        %1495 = vmatpush1.msra.mxu0 %v1494
        %v1496 = vand.u32 %v335, 4294901760
        %v1497 = vsub.f32 %v335, %v1496
        %v1498 = vand.u32 %v1497, 4294901760
        %1499 = vmatprep.subr.mxu0 %v1498
        %v1500 = vand.u32 %v334, 4294901760
        %v1501 = vsub.f32 %v334, %v1500
        %v1502 = vand.u32 %v1501, 4294901760
        %1503 = vmatpush1.msra.mxu0 %v1502
        %v1504 = vand.u32 %v339, 4294901760
        %v1505 = vsub.f32 %v339, %v1504
        %v1506 = vand.u32 %v1505, 4294901760
        %1507 = vmatprep.subr.mxu0 %v1506
        %v1508 = vand.u32 %v338, 4294901760
        %v1509 = vsub.f32 %v338, %v1508
        %v1510 = vand.u32 %v1509, 4294901760
        %1511 = vmatpush1.msra.mxu0 %v1510
        %v1512 = vand.u32 %v343, 4294901760
        %v1513 = vsub.f32 %v343, %v1512
        %v1514 = vand.u32 %v1513, 4294901760
        %1515 = vmatprep.subr.mxu0 %v1514
        %v1516 = vand.u32 %v342, 4294901760
        %v1517 = vsub.f32 %v342, %v1516
        %v1518 = vand.u32 %v1517, 4294901760
        %1519 = vmatpush1.msra.mxu0 %v1518
        %v1520 = vand.u32 %v347, 4294901760
        %v1521 = vsub.f32 %v347, %v1520
        %v1522 = vand.u32 %v1521, 4294901760
        %1523 = vmatprep.subr.mxu0 %v1522
        %v1524 = vand.u32 %v346, 4294901760
        %v1525 = vsub.f32 %v346, %v1524
        %v1526 = vand.u32 %v1525, 4294901760
        %1527 = vmatpush1.msra.mxu0 %v1526
        %v1528 = vand.u32 %v351, 4294901760
        %v1529 = vsub.f32 %v351, %v1528
        %v1530 = vand.u32 %v1529, 4294901760
        %1531 = vmatprep.subr.mxu0 %v1530
        %v1532 = vand.u32 %v350, 4294901760
        %v1533 = vsub.f32 %v350, %v1532
        %v1534 = vand.u32 %v1533, 4294901760
        %1535 = vmatpush1.msra.mxu0 %v1534
        %v1536 = vand.u32 %v355, 4294901760
        %v1537 = vsub.f32 %v355, %v1536
        %v1538 = vand.u32 %v1537, 4294901760
        %1539 = vmatprep.subr.mxu0 %v1538
        %v1540 = vand.u32 %v354, 4294901760
        %v1541 = vsub.f32 %v354, %v1540
        %v1542 = vand.u32 %v1541, 4294901760
        %1543 = vmatpush1.msra.mxu0 %v1542
        %v1544 = vand.u32 %v359, 4294901760
        %v1545 = vsub.f32 %v359, %v1544
        %v1546 = vand.u32 %v1545, 4294901760
        %1547 = vmatprep.subr.mxu0 %v1546
        %v1548 = vand.u32 %v358, 4294901760
        %v1549 = vsub.f32 %v358, %v1548
        %v1550 = vand.u32 %v1549, 4294901760
        %1551 = vmatpush1.msra.mxu0 %v1550
        %v1552 = vand.u32 %v363, 4294901760
        %v1553 = vsub.f32 %v363, %v1552
        %v1554 = vand.u32 %v1553, 4294901760
        %1555 = vmatprep.subr.mxu0 %v1554
        %v1556 = vand.u32 %v362, 4294901760
        %v1557 = vsub.f32 %v362, %v1556
        %v1558 = vand.u32 %v1557, 4294901760
        %1559 = vmatpush1.msra.mxu0 %v1558
        %v1560 = vand.u32 %v367, 4294901760
        %v1561 = vsub.f32 %v367, %v1560
        %v1562 = vand.u32 %v1561, 4294901760
        %1563 = vmatprep.subr.mxu0 %v1562
        %v1564 = vand.u32 %v366, 4294901760
        %v1565 = vsub.f32 %v366, %v1564
        %v1566 = vand.u32 %v1565, 4294901760
        %1567 = vmatpush1.msra.mxu0 %v1566
        %v1568 = vand.u32 %v371, 4294901760
        %v1569 = vsub.f32 %v371, %v1568
        %v1570 = vand.u32 %v1569, 4294901760
        %1571 = vmatprep.subr.mxu0 %v1570
        %v1572 = vand.u32 %v370, 4294901760
        %v1573 = vsub.f32 %v370, %v1572
        %v1574 = vand.u32 %v1573, 4294901760
        %1575 = vmatpush1.msra.mxu0 %v1574
        %v1576 = vand.u32 %v375, 4294901760
        %v1577 = vsub.f32 %v375, %v1576
        %v1578 = vand.u32 %v1577, 4294901760
        %1579 = vmatprep.subr.mxu0 %v1578
        %v1580 = vand.u32 %v374, 4294901760
        %v1581 = vsub.f32 %v374, %v1580
        %v1582 = vand.u32 %v1581, 4294901760
        %1583 = vmatpush1.msra.mxu0 %v1582
        %v1584 = vand.u32 %v379, 4294901760
        %v1585 = vsub.f32 %v379, %v1584
        %v1586 = vand.u32 %v1585, 4294901760
        %1587 = vmatprep.subr.mxu0 %v1586
        %v1588 = vand.u32 %v378, 4294901760
        %v1589 = vsub.f32 %v378, %v1588
        %v1590 = vand.u32 %v1589, 4294901760
        %1591 = vmatpush1.msra.mxu0 %v1590
        %v1592 = vand.u32 %v383, 4294901760
        %v1593 = vsub.f32 %v383, %v1592
        %v1594 = vand.u32 %v1593, 4294901760
        %1595 = vmatprep.subr.mxu0 %v1594
        %v1596 = vand.u32 %v382, 4294901760
        %v1597 = vsub.f32 %v382, %v1596
        %v1598 = vand.u32 %v1597, 4294901760
        %1599 = vmatpush1.msra.mxu0 %v1598
        %v1600 = vand.u32 %v387, 4294901760
        %v1601 = vsub.f32 %v387, %v1600
        %v1602 = vand.u32 %v1601, 4294901760
        %1603 = vmatprep.subr.mxu0 %v1602
        %v1604 = vand.u32 %v386, 4294901760
        %v1605 = vsub.f32 %v386, %v1604
        %v1606 = vand.u32 %v1605, 4294901760
        %1607 = vmatpush1.msra.mxu0 %v1606
        %v1608 = vand.u32 %v391, 4294901760
        %v1609 = vsub.f32 %v391, %v1608
        %v1610 = vand.u32 %v1609, 4294901760
        %1611 = vmatprep.subr.mxu0 %v1610
        %v1612 = vand.u32 %v390, 4294901760
        %v1613 = vsub.f32 %v390, %v1612
        %v1614 = vand.u32 %v1613, 4294901760
        %1615 = vmatpush1.msra.mxu0 %v1614
        %v1616 = vand.u32 %v395, 4294901760
        %v1617 = vsub.f32 %v395, %v1616
        %v1618 = vand.u32 %v1617, 4294901760
        %1619 = vmatprep.subr.mxu0 %v1618
        %v1620 = vand.u32 %v394, 4294901760
        %v1621 = vsub.f32 %v394, %v1620
        %v1622 = vand.u32 %v1621, 4294901760
        %1623 = vmatpush1.msra.mxu0 %v1622
        %v1624 = vand.u32 %v399, 4294901760
        %v1625 = vsub.f32 %v399, %v1624
        %v1626 = vand.u32 %v1625, 4294901760
        %1627 = vmatprep.subr.mxu0 %v1626
        %v1628 = vand.u32 %v398, 4294901760
        %v1629 = vsub.f32 %v398, %v1628
        %v1630 = vand.u32 %v1629, 4294901760
        %1631 = vmatpush1.msra.mxu0 %v1630
        %v1632 = vand.u32 %v403, 4294901760
        %v1633 = vsub.f32 %v403, %v1632
        %v1634 = vand.u32 %v1633, 4294901760
        %1635 = vmatprep.subr.mxu0 %v1634
        %v1636 = vand.u32 %v402, 4294901760
        %v1637 = vsub.f32 %v402, %v1636
        %v1638 = vand.u32 %v1637, 4294901760
        %1639 = vmatpush1.msra.mxu0 %v1638
        %v1640 = vand.u32 %v407, 4294901760
        %v1641 = vsub.f32 %v407, %v1640
        %v1642 = vand.u32 %v1641, 4294901760
        %1643 = vmatprep.subr.mxu0 %v1642
        %v1644 = vand.u32 %v406, 4294901760
        %v1645 = vsub.f32 %v406, %v1644
        %v1646 = vand.u32 %v1645, 4294901760
        %1647 = vmatpush1.msra.mxu0 %v1646
        %v1648 = vand.u32 %v411, 4294901760
        %v1649 = vsub.f32 %v411, %v1648
        %v1650 = vand.u32 %v1649, 4294901760
        %1651 = vmatprep.subr.mxu0 %v1650
        %v1652 = vand.u32 %v410, 4294901760
        %v1653 = vsub.f32 %v410, %v1652
        %v1654 = vand.u32 %v1653, 4294901760
        %1655 = vmatpush1.msra.mxu0 %v1654
        %v1656 = vand.u32 %v415, 4294901760
        %v1657 = vsub.f32 %v415, %v1656
        %v1658 = vand.u32 %v1657, 4294901760
        %1659 = vmatprep.subr.mxu0 %v1658
        %v1660 = vand.u32 %v414, 4294901760
        %v1661 = vsub.f32 %v414, %v1660
        %v1662 = vand.u32 %v1661, 4294901760
        %1663 = vmatpush1.msra.mxu0 %v1662
        %v1664 = vand.u32 %v419, 4294901760
        %v1665 = vsub.f32 %v419, %v1664
        %v1666 = vand.u32 %v1665, 4294901760
        %1667 = vmatprep.subr.mxu0 %v1666
        %v1668 = vand.u32 %v418, 4294901760
        %v1669 = vsub.f32 %v418, %v1668
        %v1670 = vand.u32 %v1669, 4294901760
        %1671 = vmatpush1.msra.mxu0 %v1670
        %v1672 = vand.u32 %v423, 4294901760
        %v1673 = vsub.f32 %v423, %v1672
        %v1674 = vand.u32 %v1673, 4294901760
        %1675 = vmatprep.subr.mxu0 %v1674
        %v1676 = vand.u32 %v422, 4294901760
        %v1677 = vsub.f32 %v422, %v1676
        %v1678 = vand.u32 %v1677, 4294901760
        %1679 = vmatpush1.msra.mxu0 %v1678
        %v1680 = vand.u32 %v427, 4294901760
        %v1681 = vsub.f32 %v427, %v1680
        %v1682 = vand.u32 %v1681, 4294901760
        %1683 = vmatprep.subr.mxu0 %v1682
        %v1684 = vand.u32 %v426, 4294901760
        %v1685 = vsub.f32 %v426, %v1684
        %v1686 = vand.u32 %v1685, 4294901760
        %1687 = vmatpush1.msra.mxu0 %v1686
        %v1688 = vand.u32 %v431, 4294901760
        %v1689 = vsub.f32 %v431, %v1688
        %v1690 = vand.u32 %v1689, 4294901760
        %1691 = vmatprep.subr.mxu0 %v1690
        %v1692 = vand.u32 %v430, 4294901760
        %v1693 = vsub.f32 %v430, %v1692
        %v1694 = vand.u32 %v1693, 4294901760
        %1695 = vmatpush1.msra.mxu0 %v1694
        %v1696 = vand.u32 %v435, 4294901760
        %v1697 = vsub.f32 %v435, %v1696
        %v1698 = vand.u32 %v1697, 4294901760
        %1699 = vmatprep.subr.mxu0 %v1698
        %v1700 = vand.u32 %v434, 4294901760
        %v1701 = vsub.f32 %v434, %v1700
        %v1702 = vand.u32 %v1701, 4294901760
        %1703 = vmatpush1.msra.mxu0 %v1702
        %v1704 = vand.u32 %v307, 4294901760
        %1705 = vmatprep.mubr.f32.mxu0 %v1704
        %v1706 = vand.u32 %v306, 4294901760
        %1707 = vmatmul.mubr.f32.gmra.mrb[0].mxu0 %v1706
        %v1708 = vpop.f32.mrb[0].mxu0
        %v1709 = vadd.f32 %v1444, %v1708
        %v1710 = vpop.f32.mrb[0].mxu0
        %v1711 = vadd.f32 %v1446, %v1710
        %1712 = vdwg.mxu0
        %v1713 = vand.u32 %v311, 4294901760
        %1714 = vmatprep.subr.mxu0 %v1713
        %v1715 = vand.u32 %v310, 4294901760
        %1716 = vmatpush1.msra.mxu0 %v1715
        %v1717 = vand.u32 %v315, 4294901760
        %1718 = vmatprep.subr.mxu0 %v1717
        %v1719 = vand.u32 %v314, 4294901760
        %1720 = vmatpush1.msra.mxu0 %v1719
        %v1721 = vand.u32 %v319, 4294901760
        %1722 = vmatprep.subr.mxu0 %v1721
        %v1723 = vand.u32 %v318, 4294901760
        %1724 = vmatpush1.msra.mxu0 %v1723
        %v1725 = vand.u32 %v323, 4294901760
        %1726 = vmatprep.subr.mxu0 %v1725
        %v1727 = vand.u32 %v322, 4294901760
        %1728 = vmatpush1.msra.mxu0 %v1727
        %v1729 = vand.u32 %v327, 4294901760
        %1730 = vmatprep.subr.mxu0 %v1729
        %v1731 = vand.u32 %v326, 4294901760
        %1732 = vmatpush1.msra.mxu0 %v1731
        %v1733 = vand.u32 %v331, 4294901760
        %1734 = vmatprep.subr.mxu0 %v1733
        %v1735 = vand.u32 %v330, 4294901760
        %1736 = vmatpush1.msra.mxu0 %v1735
        %v1737 = vand.u32 %v335, 4294901760
        %1738 = vmatprep.subr.mxu0 %v1737
        %v1739 = vand.u32 %v334, 4294901760
        %1740 = vmatpush1.msra.mxu0 %v1739
        %v1741 = vand.u32 %v339, 4294901760
        %1742 = vmatprep.subr.mxu0 %v1741
        %v1743 = vand.u32 %v338, 4294901760
        %1744 = vmatpush1.msra.mxu0 %v1743
        %v1745 = vand.u32 %v343, 4294901760
        %1746 = vmatprep.subr.mxu0 %v1745
        %v1747 = vand.u32 %v342, 4294901760
        %1748 = vmatpush1.msra.mxu0 %v1747
        %v1749 = vand.u32 %v347, 4294901760
        %1750 = vmatprep.subr.mxu0 %v1749
        %v1751 = vand.u32 %v346, 4294901760
        %1752 = vmatpush1.msra.mxu0 %v1751
        %v1753 = vand.u32 %v351, 4294901760
        %1754 = vmatprep.subr.mxu0 %v1753
        %v1755 = vand.u32 %v350, 4294901760
        %1756 = vmatpush1.msra.mxu0 %v1755
        %v1757 = vand.u32 %v355, 4294901760
        %1758 = vmatprep.subr.mxu0 %v1757
        %v1759 = vand.u32 %v354, 4294901760
        %1760 = vmatpush1.msra.mxu0 %v1759
        %v1761 = vand.u32 %v359, 4294901760
        %1762 = vmatprep.subr.mxu0 %v1761
        %v1763 = vand.u32 %v358, 4294901760
        %1764 = vmatpush1.msra.mxu0 %v1763
        %v1765 = vand.u32 %v363, 4294901760
        %1766 = vmatprep.subr.mxu0 %v1765
        %v1767 = vand.u32 %v362, 4294901760
        %1768 = vmatpush1.msra.mxu0 %v1767
        %v1769 = vand.u32 %v367, 4294901760
        %1770 = vmatprep.subr.mxu0 %v1769
        %v1771 = vand.u32 %v366, 4294901760
        %1772 = vmatpush1.msra.mxu0 %v1771
        %v1773 = vand.u32 %v371, 4294901760
        %1774 = vmatprep.subr.mxu0 %v1773
        %v1775 = vand.u32 %v370, 4294901760
        %1776 = vmatpush1.msra.mxu0 %v1775
        %v1777 = vand.u32 %v375, 4294901760
        %1778 = vmatprep.subr.mxu0 %v1777
        %v1779 = vand.u32 %v374, 4294901760
        %1780 = vmatpush1.msra.mxu0 %v1779
        %v1781 = vand.u32 %v379, 4294901760
        %1782 = vmatprep.subr.mxu0 %v1781
        %v1783 = vand.u32 %v378, 4294901760
        %1784 = vmatpush1.msra.mxu0 %v1783
        %v1785 = vand.u32 %v383, 4294901760
        %1786 = vmatprep.subr.mxu0 %v1785
        %v1787 = vand.u32 %v382, 4294901760
        %1788 = vmatpush1.msra.mxu0 %v1787
        %v1789 = vand.u32 %v387, 4294901760
        %1790 = vmatprep.subr.mxu0 %v1789
        %v1791 = vand.u32 %v386, 4294901760
        %1792 = vmatpush1.msra.mxu0 %v1791
        %v1793 = vand.u32 %v391, 4294901760
        %1794 = vmatprep.subr.mxu0 %v1793
        %v1795 = vand.u32 %v390, 4294901760
        %1796 = vmatpush1.msra.mxu0 %v1795
        %v1797 = vand.u32 %v395, 4294901760
        %1798 = vmatprep.subr.mxu0 %v1797
        %v1799 = vand.u32 %v394, 4294901760
        %1800 = vmatpush1.msra.mxu0 %v1799
        %v1801 = vand.u32 %v399, 4294901760
        %1802 = vmatprep.subr.mxu0 %v1801
        %v1803 = vand.u32 %v398, 4294901760
        %1804 = vmatpush1.msra.mxu0 %v1803
        %v1805 = vand.u32 %v403, 4294901760
        %1806 = vmatprep.subr.mxu0 %v1805
        %v1807 = vand.u32 %v402, 4294901760
        %1808 = vmatpush1.msra.mxu0 %v1807
        %v1809 = vand.u32 %v407, 4294901760
        %1810 = vmatprep.subr.mxu0 %v1809
        %v1811 = vand.u32 %v406, 4294901760
        %1812 = vmatpush1.msra.mxu0 %v1811
        %v1813 = vand.u32 %v411, 4294901760
        %1814 = vmatprep.subr.mxu0 %v1813
        %v1815 = vand.u32 %v410, 4294901760
        %1816 = vmatpush1.msra.mxu0 %v1815
        %v1817 = vand.u32 %v415, 4294901760
        %1818 = vmatprep.subr.mxu0 %v1817
        %v1819 = vand.u32 %v414, 4294901760
        %1820 = vmatpush1.msra.mxu0 %v1819
        %v1821 = vand.u32 %v419, 4294901760
        %1822 = vmatprep.subr.mxu0 %v1821
        %v1823 = vand.u32 %v418, 4294901760
        %1824 = vmatpush1.msra.mxu0 %v1823
        %v1825 = vand.u32 %v423, 4294901760
        %1826 = vmatprep.subr.mxu0 %v1825
        %v1827 = vand.u32 %v422, 4294901760
        %1828 = vmatpush1.msra.mxu0 %v1827
        %v1829 = vand.u32 %v427, 4294901760
        %1830 = vmatprep.subr.mxu0 %v1829
        %v1831 = vand.u32 %v426, 4294901760
        %1832 = vmatpush1.msra.mxu0 %v1831
        %v1833 = vand.u32 %v431, 4294901760
        %1834 = vmatprep.subr.mxu0 %v1833
        %v1835 = vand.u32 %v430, 4294901760
        %1836 = vmatpush1.msra.mxu0 %v1835
        %v1837 = vand.u32 %v435, 4294901760
        %1838 = vmatprep.subr.mxu0 %v1837
        %v1839 = vand.u32 %v434, 4294901760
        %1840 = vmatpush1.msra.mxu0 %v1839
        %v1841 = vand.u32 %v307, 4294901760
        %1842 = vmatprep.mubr.f32.mxu0 %v1841
        %v1843 = vand.u32 %v306, 4294901760
        %1844 = vmatmul.mubr.f32.gmra.mrb[0].mxu0 %v1843
        %v1845 = vpop.f32.mrb[0].mxu0
        %v1846 = vadd.f32 %v1709, %v1845
        %v1847 = vpop.f32.mrb[0].mxu0
        %v1848 = vadd.f32 %v1711, %v1847
        %1849 = vdwg.mxu0
        %v1850 = vand.u32 %v439, 4294901760
        %1851 = vmatprep.subr.mxu0 %v1850
        %v1852 = vand.u32 %v438, 4294901760
        %1853 = vmatpush1.msra.mxu0 %v1852
        %v1854 = vand.u32 %v443, 4294901760
        %1855 = vmatprep.subr.mxu0 %v1854
        %v1856 = vand.u32 %v442, 4294901760
        %1857 = vmatpush1.msra.mxu0 %v1856
        %v1858 = vand.u32 %v447, 4294901760
        %1859 = vmatprep.subr.mxu0 %v1858
        %v1860 = vand.u32 %v446, 4294901760
        %1861 = vmatpush1.msra.mxu0 %v1860
        %v1862 = vand.u32 %v451, 4294901760
        %1863 = vmatprep.subr.mxu0 %v1862
        %v1864 = vand.u32 %v450, 4294901760
        %1865 = vmatpush1.msra.mxu0 %v1864
        %v1866 = vand.u32 %v455, 4294901760
        %1867 = vmatprep.subr.mxu0 %v1866
        %v1868 = vand.u32 %v454, 4294901760
        %1869 = vmatpush1.msra.mxu0 %v1868
        %v1870 = vand.u32 %v459, 4294901760
        %1871 = vmatprep.subr.mxu0 %v1870
        %v1872 = vand.u32 %v458, 4294901760
        %1873 = vmatpush1.msra.mxu0 %v1872
        %v1874 = vand.u32 %v463, 4294901760
        %1875 = vmatprep.subr.mxu0 %v1874
        %v1876 = vand.u32 %v462, 4294901760
        %1877 = vmatpush1.msra.mxu0 %v1876
        %v1878 = vand.u32 %v467, 4294901760
        %1879 = vmatprep.subr.mxu0 %v1878
        %v1880 = vand.u32 %v466, 4294901760
        %1881 = vmatpush1.msra.mxu0 %v1880
        %v1882 = vand.u32 %v471, 4294901760
        %1883 = vmatprep.subr.mxu0 %v1882
        %v1884 = vand.u32 %v470, 4294901760
        %1885 = vmatpush1.msra.mxu0 %v1884
        %v1886 = vand.u32 %v475, 4294901760
        %1887 = vmatprep.subr.mxu0 %v1886
        %v1888 = vand.u32 %v474, 4294901760
        %1889 = vmatpush1.msra.mxu0 %v1888
        %v1890 = vand.u32 %v479, 4294901760
        %1891 = vmatprep.subr.mxu0 %v1890
        %v1892 = vand.u32 %v478, 4294901760
        %1893 = vmatpush1.msra.mxu0 %v1892
        %v1894 = vand.u32 %v483, 4294901760
        %1895 = vmatprep.subr.mxu0 %v1894
        %v1896 = vand.u32 %v482, 4294901760
        %1897 = vmatpush1.msra.mxu0 %v1896
        %v1898 = vand.u32 %v487, 4294901760
        %1899 = vmatprep.subr.mxu0 %v1898
        %v1900 = vand.u32 %v486, 4294901760
        %1901 = vmatpush1.msra.mxu0 %v1900
        %v1902 = vand.u32 %v491, 4294901760
        %1903 = vmatprep.subr.mxu0 %v1902
        %v1904 = vand.u32 %v490, 4294901760
        %1905 = vmatpush1.msra.mxu0 %v1904
        %v1906 = vand.u32 %v495, 4294901760
        %1907 = vmatprep.subr.mxu0 %v1906
        %v1908 = vand.u32 %v494, 4294901760
        %1909 = vmatpush1.msra.mxu0 %v1908
        %v1910 = vand.u32 %v499, 4294901760
        %1911 = vmatprep.subr.mxu0 %v1910
        %v1912 = vand.u32 %v498, 4294901760
        %1913 = vmatpush1.msra.mxu0 %v1912
        %v1914 = vand.u32 %v503, 4294901760
        %1915 = vmatprep.subr.mxu0 %v1914
        %v1916 = vand.u32 %v502, 4294901760
        %1917 = vmatpush1.msra.mxu0 %v1916
        %v1918 = vand.u32 %v507, 4294901760
        %1919 = vmatprep.subr.mxu0 %v1918
        %v1920 = vand.u32 %v506, 4294901760
        %1921 = vmatpush1.msra.mxu0 %v1920
        %v1922 = vand.u32 %v511, 4294901760
        %1923 = vmatprep.subr.mxu0 %v1922
        %v1924 = vand.u32 %v510, 4294901760
        %1925 = vmatpush1.msra.mxu0 %v1924
        %v1926 = vand.u32 %v515, 4294901760
        %1927 = vmatprep.subr.mxu0 %v1926
        %v1928 = vand.u32 %v514, 4294901760
        %1929 = vmatpush1.msra.mxu0 %v1928
        %v1930 = vand.u32 %v519, 4294901760
        %1931 = vmatprep.subr.mxu0 %v1930
        %v1932 = vand.u32 %v518, 4294901760
        %1933 = vmatpush1.msra.mxu0 %v1932
        %v1934 = vand.u32 %v523, 4294901760
        %1935 = vmatprep.subr.mxu0 %v1934
        %v1936 = vand.u32 %v522, 4294901760
        %1937 = vmatpush1.msra.mxu0 %v1936
        %v1938 = vand.u32 %v527, 4294901760
        %1939 = vmatprep.subr.mxu0 %v1938
        %v1940 = vand.u32 %v526, 4294901760
        %1941 = vmatpush1.msra.mxu0 %v1940
        %v1942 = vand.u32 %v531, 4294901760
        %1943 = vmatprep.subr.mxu0 %v1942
        %v1944 = vand.u32 %v530, 4294901760
        %1945 = vmatpush1.msra.mxu0 %v1944
        %v1946 = vand.u32 %v535, 4294901760
        %1947 = vmatprep.subr.mxu0 %v1946
        %v1948 = vand.u32 %v534, 4294901760
        %1949 = vmatpush1.msra.mxu0 %v1948
        %v1950 = vand.u32 %v539, 4294901760
        %1951 = vmatprep.subr.mxu0 %v1950
        %v1952 = vand.u32 %v538, 4294901760
        %1953 = vmatpush1.msra.mxu0 %v1952
        %v1954 = vand.u32 %v543, 4294901760
        %1955 = vmatprep.subr.mxu0 %v1954
        %v1956 = vand.u32 %v542, 4294901760
        %1957 = vmatpush1.msra.mxu0 %v1956
        %v1958 = vand.u32 %v547, 4294901760
        %1959 = vmatprep.subr.mxu0 %v1958
        %v1960 = vand.u32 %v546, 4294901760
        %1961 = vmatpush1.msra.mxu0 %v1960
        %v1962 = vand.u32 %v551, 4294901760
        %1963 = vmatprep.subr.mxu0 %v1962
        %v1964 = vand.u32 %v550, 4294901760
        %1965 = vmatpush1.msra.mxu0 %v1964
        %v1966 = vand.u32 %v555, 4294901760
        %1967 = vmatprep.subr.mxu0 %v1966
        %v1968 = vand.u32 %v554, 4294901760
        %1969 = vmatpush1.msra.mxu0 %v1968
        %v1970 = vand.u32 %v559, 4294901760
        %1971 = vmatprep.subr.mxu0 %v1970
        %v1972 = vand.u32 %v558, 4294901760
        %1973 = vmatpush1.msra.mxu0 %v1972
        %v1974 = vand.u32 %v563, 4294901760
        %1975 = vmatprep.subr.mxu0 %v1974
        %v1976 = vand.u32 %v562, 4294901760
        %1977 = vmatpush1.msra.mxu0 %v1976
        %v1978 = vand.u32 %v309, 4294901760
        %v1979 = vsub.f32 %v309, %v1978
        %v1980 = vand.u32 %v1979, 4294901760
        %v1981 = vsub.f32 %v1979, %v1980
        %v1982 = vand.u32 %v1981, 4294901760
        %1983 = vmatprep.mubr.f32.mxu0 %v1982
        %v1984 = vand.u32 %v308, 4294901760
        %v1985 = vsub.f32 %v308, %v1984
        %v1986 = vand.u32 %v1985, 4294901760
        %v1987 = vsub.f32 %v1985, %v1986
        %v1988 = vand.u32 %v1987, 4294901760
        %1989 = vmatmul.mubr.f32.gmra.mrb[0].mxu0 %v1988
        %v1990 = vpop.f32.mrb[0].mxu0
        %v1991 = vadd.f32 %v1846, %v1990
        %v1992 = vpop.f32.mrb[0].mxu0
        %v1993 = vadd.f32 %v1848, %v1992
        %1994 = vdwg.mxu0
        %v1995 = vand.u32 %v439, 4294901760
        %v1996 = vsub.f32 %v439, %v1995
        %v1997 = vand.u32 %v1996, 4294901760
        %v1998 = vsub.f32 %v1996, %v1997
        %v1999 = vand.u32 %v1998, 4294901760
        %2000 = vmatprep.subr.mxu0 %v1999
        %v2001 = vand.u32 %v438, 4294901760
        %v2002 = vsub.f32 %v438, %v2001
        %v2003 = vand.u32 %v2002, 4294901760
        %v2004 = vsub.f32 %v2002, %v2003
        %v2005 = vand.u32 %v2004, 4294901760
        %2006 = vmatpush1.msra.mxu0 %v2005
        %v2007 = vand.u32 %v443, 4294901760
        %v2008 = vsub.f32 %v443, %v2007
        %v2009 = vand.u32 %v2008, 4294901760
        %v2010 = vsub.f32 %v2008, %v2009
        %v2011 = vand.u32 %v2010, 4294901760
        %2012 = vmatprep.subr.mxu0 %v2011
        %v2013 = vand.u32 %v442, 4294901760
        %v2014 = vsub.f32 %v442, %v2013
        %v2015 = vand.u32 %v2014, 4294901760
        %v2016 = vsub.f32 %v2014, %v2015
        %v2017 = vand.u32 %v2016, 4294901760
        %2018 = vmatpush1.msra.mxu0 %v2017
        %v2019 = vand.u32 %v447, 4294901760
        %v2020 = vsub.f32 %v447, %v2019
        %v2021 = vand.u32 %v2020, 4294901760
        %v2022 = vsub.f32 %v2020, %v2021
        %v2023 = vand.u32 %v2022, 4294901760
        %2024 = vmatprep.subr.mxu0 %v2023
        %v2025 = vand.u32 %v446, 4294901760
        %v2026 = vsub.f32 %v446, %v2025
        %v2027 = vand.u32 %v2026, 4294901760
        %v2028 = vsub.f32 %v2026, %v2027
        %v2029 = vand.u32 %v2028, 4294901760
        %2030 = vmatpush1.msra.mxu0 %v2029
        %v2031 = vand.u32 %v451, 4294901760
        %v2032 = vsub.f32 %v451, %v2031
        %v2033 = vand.u32 %v2032, 4294901760
        %v2034 = vsub.f32 %v2032, %v2033
        %v2035 = vand.u32 %v2034, 4294901760
        %2036 = vmatprep.subr.mxu0 %v2035
        %v2037 = vand.u32 %v450, 4294901760
        %v2038 = vsub.f32 %v450, %v2037
        %v2039 = vand.u32 %v2038, 4294901760
        %v2040 = vsub.f32 %v2038, %v2039
        %v2041 = vand.u32 %v2040, 4294901760
        %2042 = vmatpush1.msra.mxu0 %v2041
        %v2043 = vand.u32 %v455, 4294901760
        %v2044 = vsub.f32 %v455, %v2043
        %v2045 = vand.u32 %v2044, 4294901760
        %v2046 = vsub.f32 %v2044, %v2045
        %v2047 = vand.u32 %v2046, 4294901760
        %2048 = vmatprep.subr.mxu0 %v2047
        %v2049 = vand.u32 %v454, 4294901760
        %v2050 = vsub.f32 %v454, %v2049
        %v2051 = vand.u32 %v2050, 4294901760
        %v2052 = vsub.f32 %v2050, %v2051
        %v2053 = vand.u32 %v2052, 4294901760
        %2054 = vmatpush1.msra.mxu0 %v2053
        %v2055 = vand.u32 %v459, 4294901760
        %v2056 = vsub.f32 %v459, %v2055
        %v2057 = vand.u32 %v2056, 4294901760
        %v2058 = vsub.f32 %v2056, %v2057
        %v2059 = vand.u32 %v2058, 4294901760
        %2060 = vmatprep.subr.mxu0 %v2059
        %v2061 = vand.u32 %v458, 4294901760
        %v2062 = vsub.f32 %v458, %v2061
        %v2063 = vand.u32 %v2062, 4294901760
        %v2064 = vsub.f32 %v2062, %v2063
        %v2065 = vand.u32 %v2064, 4294901760
        %2066 = vmatpush1.msra.mxu0 %v2065
        %v2067 = vand.u32 %v463, 4294901760
        %v2068 = vsub.f32 %v463, %v2067
        %v2069 = vand.u32 %v2068, 4294901760
        %v2070 = vsub.f32 %v2068, %v2069
        %v2071 = vand.u32 %v2070, 4294901760
        %2072 = vmatprep.subr.mxu0 %v2071
        %v2073 = vand.u32 %v462, 4294901760
        %v2074 = vsub.f32 %v462, %v2073
        %v2075 = vand.u32 %v2074, 4294901760
        %v2076 = vsub.f32 %v2074, %v2075
        %v2077 = vand.u32 %v2076, 4294901760
        %2078 = vmatpush1.msra.mxu0 %v2077
        %v2079 = vand.u32 %v467, 4294901760
        %v2080 = vsub.f32 %v467, %v2079
        %v2081 = vand.u32 %v2080, 4294901760
        %v2082 = vsub.f32 %v2080, %v2081
        %v2083 = vand.u32 %v2082, 4294901760
        %2084 = vmatprep.subr.mxu0 %v2083
        %v2085 = vand.u32 %v466, 4294901760
        %v2086 = vsub.f32 %v466, %v2085
        %v2087 = vand.u32 %v2086, 4294901760
        %v2088 = vsub.f32 %v2086, %v2087
        %v2089 = vand.u32 %v2088, 4294901760
        %2090 = vmatpush1.msra.mxu0 %v2089
        %v2091 = vand.u32 %v471, 4294901760
        %v2092 = vsub.f32 %v471, %v2091
        %v2093 = vand.u32 %v2092, 4294901760
        %v2094 = vsub.f32 %v2092, %v2093
        %v2095 = vand.u32 %v2094, 4294901760
        %2096 = vmatprep.subr.mxu0 %v2095
        %v2097 = vand.u32 %v470, 4294901760
        %v2098 = vsub.f32 %v470, %v2097
        %v2099 = vand.u32 %v2098, 4294901760
        %v2100 = vsub.f32 %v2098, %v2099
        %v2101 = vand.u32 %v2100, 4294901760
        %2102 = vmatpush1.msra.mxu0 %v2101
        %v2103 = vand.u32 %v475, 4294901760
        %v2104 = vsub.f32 %v475, %v2103
        %v2105 = vand.u32 %v2104, 4294901760
        %v2106 = vsub.f32 %v2104, %v2105
        %v2107 = vand.u32 %v2106, 4294901760
        %2108 = vmatprep.subr.mxu0 %v2107
        %v2109 = vand.u32 %v474, 4294901760
        %v2110 = vsub.f32 %v474, %v2109
        %v2111 = vand.u32 %v2110, 4294901760
        %v2112 = vsub.f32 %v2110, %v2111
        %v2113 = vand.u32 %v2112, 4294901760
        %2114 = vmatpush1.msra.mxu0 %v2113
        %v2115 = vand.u32 %v479, 4294901760
        %v2116 = vsub.f32 %v479, %v2115
        %v2117 = vand.u32 %v2116, 4294901760
        %v2118 = vsub.f32 %v2116, %v2117
        %v2119 = vand.u32 %v2118, 4294901760
        %2120 = vmatprep.subr.mxu0 %v2119
        %v2121 = vand.u32 %v478, 4294901760
        %v2122 = vsub.f32 %v478, %v2121
        %v2123 = vand.u32 %v2122, 4294901760
        %v2124 = vsub.f32 %v2122, %v2123
        %v2125 = vand.u32 %v2124, 4294901760
        %2126 = vmatpush1.msra.mxu0 %v2125
        %v2127 = vand.u32 %v483, 4294901760
        %v2128 = vsub.f32 %v483, %v2127
        %v2129 = vand.u32 %v2128, 4294901760
        %v2130 = vsub.f32 %v2128, %v2129
        %v2131 = vand.u32 %v2130, 4294901760
        %2132 = vmatprep.subr.mxu0 %v2131
        %v2133 = vand.u32 %v482, 4294901760
        %v2134 = vsub.f32 %v482, %v2133
        %v2135 = vand.u32 %v2134, 4294901760
        %v2136 = vsub.f32 %v2134, %v2135
        %v2137 = vand.u32 %v2136, 4294901760
        %2138 = vmatpush1.msra.mxu0 %v2137
        %v2139 = vand.u32 %v487, 4294901760
        %v2140 = vsub.f32 %v487, %v2139
        %v2141 = vand.u32 %v2140, 4294901760
        %v2142 = vsub.f32 %v2140, %v2141
        %v2143 = vand.u32 %v2142, 4294901760
        %2144 = vmatprep.subr.mxu0 %v2143
        %v2145 = vand.u32 %v486, 4294901760
        %v2146 = vsub.f32 %v486, %v2145
        %v2147 = vand.u32 %v2146, 4294901760
        %v2148 = vsub.f32 %v2146, %v2147
        %v2149 = vand.u32 %v2148, 4294901760
        %2150 = vmatpush1.msra.mxu0 %v2149
        %v2151 = vand.u32 %v491, 4294901760
        %v2152 = vsub.f32 %v491, %v2151
        %v2153 = vand.u32 %v2152, 4294901760
        %v2154 = vsub.f32 %v2152, %v2153
        %v2155 = vand.u32 %v2154, 4294901760
        %2156 = vmatprep.subr.mxu0 %v2155
        %v2157 = vand.u32 %v490, 4294901760
        %v2158 = vsub.f32 %v490, %v2157
        %v2159 = vand.u32 %v2158, 4294901760
        %v2160 = vsub.f32 %v2158, %v2159
        %v2161 = vand.u32 %v2160, 4294901760
        %2162 = vmatpush1.msra.mxu0 %v2161
        %v2163 = vand.u32 %v495, 4294901760
        %v2164 = vsub.f32 %v495, %v2163
        %v2165 = vand.u32 %v2164, 4294901760
        %v2166 = vsub.f32 %v2164, %v2165
        %v2167 = vand.u32 %v2166, 4294901760
        %2168 = vmatprep.subr.mxu0 %v2167
        %v2169 = vand.u32 %v494, 4294901760
        %v2170 = vsub.f32 %v494, %v2169
        %v2171 = vand.u32 %v2170, 4294901760
        %v2172 = vsub.f32 %v2170, %v2171
        %v2173 = vand.u32 %v2172, 4294901760
        %2174 = vmatpush1.msra.mxu0 %v2173
        %v2175 = vand.u32 %v499, 4294901760
        %v2176 = vsub.f32 %v499, %v2175
        %v2177 = vand.u32 %v2176, 4294901760
        %v2178 = vsub.f32 %v2176, %v2177
        %v2179 = vand.u32 %v2178, 4294901760
        %2180 = vmatprep.subr.mxu0 %v2179
        %v2181 = vand.u32 %v498, 4294901760
        %v2182 = vsub.f32 %v498, %v2181
        %v2183 = vand.u32 %v2182, 4294901760
        %v2184 = vsub.f32 %v2182, %v2183
        %v2185 = vand.u32 %v2184, 4294901760
        %2186 = vmatpush1.msra.mxu0 %v2185
        %v2187 = vand.u32 %v503, 4294901760
        %v2188 = vsub.f32 %v503, %v2187
        %v2189 = vand.u32 %v2188, 4294901760
        %v2190 = vsub.f32 %v2188, %v2189
        %v2191 = vand.u32 %v2190, 4294901760
        %2192 = vmatprep.subr.mxu0 %v2191
        %v2193 = vand.u32 %v502, 4294901760
        %v2194 = vsub.f32 %v502, %v2193
        %v2195 = vand.u32 %v2194, 4294901760
        %v2196 = vsub.f32 %v2194, %v2195
        %v2197 = vand.u32 %v2196, 4294901760
        %2198 = vmatpush1.msra.mxu0 %v2197
        %v2199 = vand.u32 %v507, 4294901760
        %v2200 = vsub.f32 %v507, %v2199
        %v2201 = vand.u32 %v2200, 4294901760
        %v2202 = vsub.f32 %v2200, %v2201
        %v2203 = vand.u32 %v2202, 4294901760
        %2204 = vmatprep.subr.mxu0 %v2203
        %v2205 = vand.u32 %v506, 4294901760
        %v2206 = vsub.f32 %v506, %v2205
        %v2207 = vand.u32 %v2206, 4294901760
        %v2208 = vsub.f32 %v2206, %v2207
        %v2209 = vand.u32 %v2208, 4294901760
        %2210 = vmatpush1.msra.mxu0 %v2209
        %v2211 = vand.u32 %v511, 4294901760
        %v2212 = vsub.f32 %v511, %v2211
        %v2213 = vand.u32 %v2212, 4294901760
        %v2214 = vsub.f32 %v2212, %v2213
        %v2215 = vand.u32 %v2214, 4294901760
        %2216 = vmatprep.subr.mxu0 %v2215
        %v2217 = vand.u32 %v510, 4294901760
        %v2218 = vsub.f32 %v510, %v2217
        %v2219 = vand.u32 %v2218, 4294901760
        %v2220 = vsub.f32 %v2218, %v2219
        %v2221 = vand.u32 %v2220, 4294901760
        %2222 = vmatpush1.msra.mxu0 %v2221
        %v2223 = vand.u32 %v515, 4294901760
        %v2224 = vsub.f32 %v515, %v2223
        %v2225 = vand.u32 %v2224, 4294901760
        %v2226 = vsub.f32 %v2224, %v2225
        %v2227 = vand.u32 %v2226, 4294901760
        %2228 = vmatprep.subr.mxu0 %v2227
        %v2229 = vand.u32 %v514, 4294901760
        %v2230 = vsub.f32 %v514, %v2229
        %v2231 = vand.u32 %v2230, 4294901760
        %v2232 = vsub.f32 %v2230, %v2231
        %v2233 = vand.u32 %v2232, 4294901760
        %2234 = vmatpush1.msra.mxu0 %v2233
        %v2235 = vand.u32 %v519, 4294901760
        %v2236 = vsub.f32 %v519, %v2235
        %v2237 = vand.u32 %v2236, 4294901760
        %v2238 = vsub.f32 %v2236, %v2237
        %v2239 = vand.u32 %v2238, 4294901760
        %2240 = vmatprep.subr.mxu0 %v2239
        %v2241 = vand.u32 %v518, 4294901760
        %v2242 = vsub.f32 %v518, %v2241
        %v2243 = vand.u32 %v2242, 4294901760
        %v2244 = vsub.f32 %v2242, %v2243
        %v2245 = vand.u32 %v2244, 4294901760
        %2246 = vmatpush1.msra.mxu0 %v2245
        %v2247 = vand.u32 %v523, 4294901760
        %v2248 = vsub.f32 %v523, %v2247
        %v2249 = vand.u32 %v2248, 4294901760
        %v2250 = vsub.f32 %v2248, %v2249
        %v2251 = vand.u32 %v2250, 4294901760
        %2252 = vmatprep.subr.mxu0 %v2251
        %v2253 = vand.u32 %v522, 4294901760
        %v2254 = vsub.f32 %v522, %v2253
        %v2255 = vand.u32 %v2254, 4294901760
        %v2256 = vsub.f32 %v2254, %v2255
        %v2257 = vand.u32 %v2256, 4294901760
        %2258 = vmatpush1.msra.mxu0 %v2257
        %v2259 = vand.u32 %v527, 4294901760
        %v2260 = vsub.f32 %v527, %v2259
        %v2261 = vand.u32 %v2260, 4294901760
        %v2262 = vsub.f32 %v2260, %v2261
        %v2263 = vand.u32 %v2262, 4294901760
        %2264 = vmatprep.subr.mxu0 %v2263
        %v2265 = vand.u32 %v526, 4294901760
        %v2266 = vsub.f32 %v526, %v2265
        %v2267 = vand.u32 %v2266, 4294901760
        %v2268 = vsub.f32 %v2266, %v2267
        %v2269 = vand.u32 %v2268, 4294901760
        %2270 = vmatpush1.msra.mxu0 %v2269
        %v2271 = vand.u32 %v531, 4294901760
        %v2272 = vsub.f32 %v531, %v2271
        %v2273 = vand.u32 %v2272, 4294901760
        %v2274 = vsub.f32 %v2272, %v2273
        %v2275 = vand.u32 %v2274, 4294901760
        %2276 = vmatprep.subr.mxu0 %v2275
        %v2277 = vand.u32 %v530, 4294901760
        %v2278 = vsub.f32 %v530, %v2277
        %v2279 = vand.u32 %v2278, 4294901760
        %v2280 = vsub.f32 %v2278, %v2279
        %v2281 = vand.u32 %v2280, 4294901760
        %2282 = vmatpush1.msra.mxu0 %v2281
        %v2283 = vand.u32 %v535, 4294901760
        %v2284 = vsub.f32 %v535, %v2283
        %v2285 = vand.u32 %v2284, 4294901760
        %v2286 = vsub.f32 %v2284, %v2285
        %v2287 = vand.u32 %v2286, 4294901760
        %2288 = vmatprep.subr.mxu0 %v2287
        %v2289 = vand.u32 %v534, 4294901760
        %v2290 = vsub.f32 %v534, %v2289
        %v2291 = vand.u32 %v2290, 4294901760
        %v2292 = vsub.f32 %v2290, %v2291
        %v2293 = vand.u32 %v2292, 4294901760
        %2294 = vmatpush1.msra.mxu0 %v2293
        %v2295 = vand.u32 %v539, 4294901760
        %v2296 = vsub.f32 %v539, %v2295
        %v2297 = vand.u32 %v2296, 4294901760
        %v2298 = vsub.f32 %v2296, %v2297
        %v2299 = vand.u32 %v2298, 4294901760
        %2300 = vmatprep.subr.mxu0 %v2299
        %v2301 = vand.u32 %v538, 4294901760
        %v2302 = vsub.f32 %v538, %v2301
        %v2303 = vand.u32 %v2302, 4294901760
        %v2304 = vsub.f32 %v2302, %v2303
        %v2305 = vand.u32 %v2304, 4294901760
        %2306 = vmatpush1.msra.mxu0 %v2305
        %v2307 = vand.u32 %v543, 4294901760
        %v2308 = vsub.f32 %v543, %v2307
        %v2309 = vand.u32 %v2308, 4294901760
        %v2310 = vsub.f32 %v2308, %v2309
        %v2311 = vand.u32 %v2310, 4294901760
        %2312 = vmatprep.subr.mxu0 %v2311
        %v2313 = vand.u32 %v542, 4294901760
        %v2314 = vsub.f32 %v542, %v2313
        %v2315 = vand.u32 %v2314, 4294901760
        %v2316 = vsub.f32 %v2314, %v2315
        %v2317 = vand.u32 %v2316, 4294901760
        %2318 = vmatpush1.msra.mxu0 %v2317
        %v2319 = vand.u32 %v547, 4294901760
        %v2320 = vsub.f32 %v547, %v2319
        %v2321 = vand.u32 %v2320, 4294901760
        %v2322 = vsub.f32 %v2320, %v2321
        %v2323 = vand.u32 %v2322, 4294901760
        %2324 = vmatprep.subr.mxu0 %v2323
        %v2325 = vand.u32 %v546, 4294901760
        %v2326 = vsub.f32 %v546, %v2325
        %v2327 = vand.u32 %v2326, 4294901760
        %v2328 = vsub.f32 %v2326, %v2327
        %v2329 = vand.u32 %v2328, 4294901760
        %2330 = vmatpush1.msra.mxu0 %v2329
        %v2331 = vand.u32 %v551, 4294901760
        %v2332 = vsub.f32 %v551, %v2331
        %v2333 = vand.u32 %v2332, 4294901760
        %v2334 = vsub.f32 %v2332, %v2333
        %v2335 = vand.u32 %v2334, 4294901760
        %2336 = vmatprep.subr.mxu0 %v2335
        %v2337 = vand.u32 %v550, 4294901760
        %v2338 = vsub.f32 %v550, %v2337
        %v2339 = vand.u32 %v2338, 4294901760
        %v2340 = vsub.f32 %v2338, %v2339
        %v2341 = vand.u32 %v2340, 4294901760
        %2342 = vmatpush1.msra.mxu0 %v2341
        %v2343 = vand.u32 %v555, 4294901760
        %v2344 = vsub.f32 %v555, %v2343
        %v2345 = vand.u32 %v2344, 4294901760
        %v2346 = vsub.f32 %v2344, %v2345
        %v2347 = vand.u32 %v2346, 4294901760
        %2348 = vmatprep.subr.mxu0 %v2347
        %v2349 = vand.u32 %v554, 4294901760
        %v2350 = vsub.f32 %v554, %v2349
        %v2351 = vand.u32 %v2350, 4294901760
        %v2352 = vsub.f32 %v2350, %v2351
        %v2353 = vand.u32 %v2352, 4294901760
        %2354 = vmatpush1.msra.mxu0 %v2353
        %v2355 = vand.u32 %v559, 4294901760
        %v2356 = vsub.f32 %v559, %v2355
        %v2357 = vand.u32 %v2356, 4294901760
        %v2358 = vsub.f32 %v2356, %v2357
        %v2359 = vand.u32 %v2358, 4294901760
        %2360 = vmatprep.subr.mxu0 %v2359
        %v2361 = vand.u32 %v558, 4294901760
        %v2362 = vsub.f32 %v558, %v2361
        %v2363 = vand.u32 %v2362, 4294901760
        %v2364 = vsub.f32 %v2362, %v2363
        %v2365 = vand.u32 %v2364, 4294901760
        %2366 = vmatpush1.msra.mxu0 %v2365
        %v2367 = vand.u32 %v563, 4294901760
        %v2368 = vsub.f32 %v563, %v2367
        %v2369 = vand.u32 %v2368, 4294901760
        %v2370 = vsub.f32 %v2368, %v2369
        %v2371 = vand.u32 %v2370, 4294901760
        %2372 = vmatprep.subr.mxu0 %v2371
        %v2373 = vand.u32 %v562, 4294901760
        %v2374 = vsub.f32 %v562, %v2373
        %v2375 = vand.u32 %v2374, 4294901760
        %v2376 = vsub.f32 %v2374, %v2375
        %v2377 = vand.u32 %v2376, 4294901760
        %2378 = vmatpush1.msra.mxu0 %v2377
        %v2379 = vand.u32 %v309, 4294901760
        %2380 = vmatprep.mubr.f32.mxu0 %v2379
        %v2381 = vand.u32 %v308, 4294901760
        %2382 = vmatmul.mubr.f32.gmra.mrb[0].mxu0 %v2381
        %v2383 = vpop.f32.mrb[0].mxu0
        %v2384 = vadd.f32 %v1991, %v2383
        %v2385 = vpop.f32.mrb[0].mxu0
        %v2386 = vadd.f32 %v1993, %v2385
        %2387 = vdwg.mxu0
        %v2388 = vand.u32 %v439, 4294901760
        %v2389 = vsub.f32 %v439, %v2388
        %2390 = vmatprep.subr.mxu0 %v2389
        %v2391 = vand.u32 %v438, 4294901760
        %v2392 = vsub.f32 %v438, %v2391
        %2393 = vmatpush1.msra.mxu0 %v2392
        %v2394 = vand.u32 %v443, 4294901760
        %v2395 = vsub.f32 %v443, %v2394
        %2396 = vmatprep.subr.mxu0 %v2395
        %v2397 = vand.u32 %v442, 4294901760
        %v2398 = vsub.f32 %v442, %v2397
        %2399 = vmatpush1.msra.mxu0 %v2398
        %v2400 = vand.u32 %v447, 4294901760
        %v2401 = vsub.f32 %v447, %v2400
        %2402 = vmatprep.subr.mxu0 %v2401
        %v2403 = vand.u32 %v446, 4294901760
        %v2404 = vsub.f32 %v446, %v2403
        %2405 = vmatpush1.msra.mxu0 %v2404
        %v2406 = vand.u32 %v451, 4294901760
        %v2407 = vsub.f32 %v451, %v2406
        %2408 = vmatprep.subr.mxu0 %v2407
        %v2409 = vand.u32 %v450, 4294901760
        %v2410 = vsub.f32 %v450, %v2409
        %2411 = vmatpush1.msra.mxu0 %v2410
        %v2412 = vand.u32 %v455, 4294901760
        %v2413 = vsub.f32 %v455, %v2412
        %2414 = vmatprep.subr.mxu0 %v2413
        %v2415 = vand.u32 %v454, 4294901760
        %v2416 = vsub.f32 %v454, %v2415
        %2417 = vmatpush1.msra.mxu0 %v2416
        %v2418 = vand.u32 %v459, 4294901760
        %v2419 = vsub.f32 %v459, %v2418
        %2420 = vmatprep.subr.mxu0 %v2419
        %v2421 = vand.u32 %v458, 4294901760
        %v2422 = vsub.f32 %v458, %v2421
        %2423 = vmatpush1.msra.mxu0 %v2422
        %v2424 = vand.u32 %v463, 4294901760
        %v2425 = vsub.f32 %v463, %v2424
        %2426 = vmatprep.subr.mxu0 %v2425
        %v2427 = vand.u32 %v462, 4294901760
        %v2428 = vsub.f32 %v462, %v2427
        %2429 = vmatpush1.msra.mxu0 %v2428
        %v2430 = vand.u32 %v467, 4294901760
        %v2431 = vsub.f32 %v467, %v2430
        %2432 = vmatprep.subr.mxu0 %v2431
        %v2433 = vand.u32 %v466, 4294901760
        %v2434 = vsub.f32 %v466, %v2433
        %2435 = vmatpush1.msra.mxu0 %v2434
        %v2436 = vand.u32 %v471, 4294901760
        %v2437 = vsub.f32 %v471, %v2436
        %2438 = vmatprep.subr.mxu0 %v2437
        %v2439 = vand.u32 %v470, 4294901760
        %v2440 = vsub.f32 %v470, %v2439
        %2441 = vmatpush1.msra.mxu0 %v2440
        %v2442 = vand.u32 %v475, 4294901760
        %v2443 = vsub.f32 %v475, %v2442
        %2444 = vmatprep.subr.mxu0 %v2443
        %v2445 = vand.u32 %v474, 4294901760
        %v2446 = vsub.f32 %v474, %v2445
        %2447 = vmatpush1.msra.mxu0 %v2446
        %v2448 = vand.u32 %v479, 4294901760
        %v2449 = vsub.f32 %v479, %v2448
        %2450 = vmatprep.subr.mxu0 %v2449
        %v2451 = vand.u32 %v478, 4294901760
        %v2452 = vsub.f32 %v478, %v2451
        %2453 = vmatpush1.msra.mxu0 %v2452
        %v2454 = vand.u32 %v483, 4294901760
        %v2455 = vsub.f32 %v483, %v2454
        %2456 = vmatprep.subr.mxu0 %v2455
        %v2457 = vand.u32 %v482, 4294901760
        %v2458 = vsub.f32 %v482, %v2457
        %2459 = vmatpush1.msra.mxu0 %v2458
        %v2460 = vand.u32 %v487, 4294901760
        %v2461 = vsub.f32 %v487, %v2460
        %2462 = vmatprep.subr.mxu0 %v2461
        %v2463 = vand.u32 %v486, 4294901760
        %v2464 = vsub.f32 %v486, %v2463
        %2465 = vmatpush1.msra.mxu0 %v2464
        %v2466 = vand.u32 %v491, 4294901760
        %v2467 = vsub.f32 %v491, %v2466
        %2468 = vmatprep.subr.mxu0 %v2467
        %v2469 = vand.u32 %v490, 4294901760
        %v2470 = vsub.f32 %v490, %v2469
        %2471 = vmatpush1.msra.mxu0 %v2470
        %v2472 = vand.u32 %v495, 4294901760
        %v2473 = vsub.f32 %v495, %v2472
        %2474 = vmatprep.subr.mxu0 %v2473
        %v2475 = vand.u32 %v494, 4294901760
        %v2476 = vsub.f32 %v494, %v2475
        %2477 = vmatpush1.msra.mxu0 %v2476
        %v2478 = vand.u32 %v499, 4294901760
        %v2479 = vsub.f32 %v499, %v2478
        %2480 = vmatprep.subr.mxu0 %v2479
        %v2481 = vand.u32 %v498, 4294901760
        %v2482 = vsub.f32 %v498, %v2481
        %2483 = vmatpush1.msra.mxu0 %v2482
        %v2484 = vand.u32 %v503, 4294901760
        %v2485 = vsub.f32 %v503, %v2484
        %2486 = vmatprep.subr.mxu0 %v2485
        %v2487 = vand.u32 %v502, 4294901760
        %v2488 = vsub.f32 %v502, %v2487
        %2489 = vmatpush1.msra.mxu0 %v2488
        %v2490 = vand.u32 %v507, 4294901760
        %v2491 = vsub.f32 %v507, %v2490
        %2492 = vmatprep.subr.mxu0 %v2491
        %v2493 = vand.u32 %v506, 4294901760
        %v2494 = vsub.f32 %v506, %v2493
        %2495 = vmatpush1.msra.mxu0 %v2494
        %v2496 = vand.u32 %v511, 4294901760
        %v2497 = vsub.f32 %v511, %v2496
        %2498 = vmatprep.subr.mxu0 %v2497
        %v2499 = vand.u32 %v510, 4294901760
        %v2500 = vsub.f32 %v510, %v2499
        %2501 = vmatpush1.msra.mxu0 %v2500
        %v2502 = vand.u32 %v515, 4294901760
        %v2503 = vsub.f32 %v515, %v2502
        %2504 = vmatprep.subr.mxu0 %v2503
        %v2505 = vand.u32 %v514, 4294901760
        %v2506 = vsub.f32 %v514, %v2505
        %2507 = vmatpush1.msra.mxu0 %v2506
        %v2508 = vand.u32 %v519, 4294901760
        %v2509 = vsub.f32 %v519, %v2508
        %2510 = vmatprep.subr.mxu0 %v2509
        %v2511 = vand.u32 %v518, 4294901760
        %v2512 = vsub.f32 %v518, %v2511
        %2513 = vmatpush1.msra.mxu0 %v2512
        %v2514 = vand.u32 %v523, 4294901760
        %v2515 = vsub.f32 %v523, %v2514
        %2516 = vmatprep.subr.mxu0 %v2515
        %v2517 = vand.u32 %v522, 4294901760
        %v2518 = vsub.f32 %v522, %v2517
        %2519 = vmatpush1.msra.mxu0 %v2518
        %v2520 = vand.u32 %v527, 4294901760
        %v2521 = vsub.f32 %v527, %v2520
        %2522 = vmatprep.subr.mxu0 %v2521
        %v2523 = vand.u32 %v526, 4294901760
        %v2524 = vsub.f32 %v526, %v2523
        %2525 = vmatpush1.msra.mxu0 %v2524
        %v2526 = vand.u32 %v531, 4294901760
        %v2527 = vsub.f32 %v531, %v2526
        %2528 = vmatprep.subr.mxu0 %v2527
        %v2529 = vand.u32 %v530, 4294901760
        %v2530 = vsub.f32 %v530, %v2529
        %2531 = vmatpush1.msra.mxu0 %v2530
        %v2532 = vand.u32 %v535, 4294901760
        %v2533 = vsub.f32 %v535, %v2532
        %2534 = vmatprep.subr.mxu0 %v2533
        %v2535 = vand.u32 %v534, 4294901760
        %v2536 = vsub.f32 %v534, %v2535
        %2537 = vmatpush1.msra.mxu0 %v2536
        %v2538 = vand.u32 %v539, 4294901760
        %v2539 = vsub.f32 %v539, %v2538
        %2540 = vmatprep.subr.mxu0 %v2539
        %v2541 = vand.u32 %v538, 4294901760
        %v2542 = vsub.f32 %v538, %v2541
        %2543 = vmatpush1.msra.mxu0 %v2542
        %v2544 = vand.u32 %v543, 4294901760
        %v2545 = vsub.f32 %v543, %v2544
        %2546 = vmatprep.subr.mxu0 %v2545
        %v2547 = vand.u32 %v542, 4294901760
        %v2548 = vsub.f32 %v542, %v2547
        %2549 = vmatpush1.msra.mxu0 %v2548
        %v2550 = vand.u32 %v547, 4294901760
        %v2551 = vsub.f32 %v547, %v2550
        %2552 = vmatprep.subr.mxu0 %v2551
        %v2553 = vand.u32 %v546, 4294901760
        %v2554 = vsub.f32 %v546, %v2553
        %2555 = vmatpush1.msra.mxu0 %v2554
        %v2556 = vand.u32 %v551, 4294901760
        %v2557 = vsub.f32 %v551, %v2556
        %2558 = vmatprep.subr.mxu0 %v2557
        %v2559 = vand.u32 %v550, 4294901760
        %v2560 = vsub.f32 %v550, %v2559
        %2561 = vmatpush1.msra.mxu0 %v2560
        %v2562 = vand.u32 %v555, 4294901760
        %v2563 = vsub.f32 %v555, %v2562
        %2564 = vmatprep.subr.mxu0 %v2563
        %v2565 = vand.u32 %v554, 4294901760
        %v2566 = vsub.f32 %v554, %v2565
        %2567 = vmatpush1.msra.mxu0 %v2566
        %v2568 = vand.u32 %v559, 4294901760
        %v2569 = vsub.f32 %v559, %v2568
        %2570 = vmatprep.subr.mxu0 %v2569
        %v2571 = vand.u32 %v558, 4294901760
        %v2572 = vsub.f32 %v558, %v2571
        %2573 = vmatpush1.msra.mxu0 %v2572
        %v2574 = vand.u32 %v563, 4294901760
        %v2575 = vsub.f32 %v563, %v2574
        %2576 = vmatprep.subr.mxu0 %v2575
        %v2577 = vand.u32 %v562, 4294901760
        %v2578 = vsub.f32 %v562, %v2577
        %2579 = vmatpush1.msra.mxu0 %v2578
        %v2580 = vand.u32 %v309, 4294901760
        %v2581 = vsub.f32 %v309, %v2580
        %2582 = vmatprep.mubr.f32.mxu0 %v2581
        %v2583 = vand.u32 %v308, 4294901760
        %v2584 = vsub.f32 %v308, %v2583
        %2585 = vmatmul.mubr.f32.gmra.mrb[0].mxu0 %v2584
        %v2586 = vpop.f32.mrb[0].mxu0
        %v2587 = vadd.f32 %v2384, %v2586
        %v2588 = vpop.f32.mrb[0].mxu0
        %v2589 = vadd.f32 %v2386, %v2588
        %2590 = vdwg.mxu0
        %v2591 = vand.u32 %v439, 4294901760
        %2592 = vmatprep.subr.mxu0 %v2591
        %v2593 = vand.u32 %v438, 4294901760
        %2594 = vmatpush1.msra.mxu0 %v2593
        %v2595 = vand.u32 %v443, 4294901760
        %2596 = vmatprep.subr.mxu0 %v2595
        %v2597 = vand.u32 %v442, 4294901760
        %2598 = vmatpush1.msra.mxu0 %v2597
        %v2599 = vand.u32 %v447, 4294901760
        %2600 = vmatprep.subr.mxu0 %v2599
        %v2601 = vand.u32 %v446, 4294901760
        %2602 = vmatpush1.msra.mxu0 %v2601
        %v2603 = vand.u32 %v451, 4294901760
        %2604 = vmatprep.subr.mxu0 %v2603
        %v2605 = vand.u32 %v450, 4294901760
        %2606 = vmatpush1.msra.mxu0 %v2605
        %v2607 = vand.u32 %v455, 4294901760
        %2608 = vmatprep.subr.mxu0 %v2607
        %v2609 = vand.u32 %v454, 4294901760
        %2610 = vmatpush1.msra.mxu0 %v2609
        %v2611 = vand.u32 %v459, 4294901760
        %2612 = vmatprep.subr.mxu0 %v2611
        %v2613 = vand.u32 %v458, 4294901760
        %2614 = vmatpush1.msra.mxu0 %v2613
        %v2615 = vand.u32 %v463, 4294901760
        %2616 = vmatprep.subr.mxu0 %v2615
        %v2617 = vand.u32 %v462, 4294901760
        %2618 = vmatpush1.msra.mxu0 %v2617
        %v2619 = vand.u32 %v467, 4294901760
        %2620 = vmatprep.subr.mxu0 %v2619
        %v2621 = vand.u32 %v466, 4294901760
        %2622 = vmatpush1.msra.mxu0 %v2621
        %v2623 = vand.u32 %v471, 4294901760
        %2624 = vmatprep.subr.mxu0 %v2623
        %v2625 = vand.u32 %v470, 4294901760
        %2626 = vmatpush1.msra.mxu0 %v2625
        %v2627 = vand.u32 %v475, 4294901760
        %2628 = vmatprep.subr.mxu0 %v2627
        %v2629 = vand.u32 %v474, 4294901760
        %2630 = vmatpush1.msra.mxu0 %v2629
        %v2631 = vand.u32 %v479, 4294901760
        %2632 = vmatprep.subr.mxu0 %v2631
        %v2633 = vand.u32 %v478, 4294901760
        %2634 = vmatpush1.msra.mxu0 %v2633
        %v2635 = vand.u32 %v483, 4294901760
        %2636 = vmatprep.subr.mxu0 %v2635
        %v2637 = vand.u32 %v482, 4294901760
        %2638 = vmatpush1.msra.mxu0 %v2637
        %v2639 = vand.u32 %v487, 4294901760
        %2640 = vmatprep.subr.mxu0 %v2639
        %v2641 = vand.u32 %v486, 4294901760
        %2642 = vmatpush1.msra.mxu0 %v2641
        %v2643 = vand.u32 %v491, 4294901760
        %2644 = vmatprep.subr.mxu0 %v2643
        %v2645 = vand.u32 %v490, 4294901760
        %2646 = vmatpush1.msra.mxu0 %v2645
        %v2647 = vand.u32 %v495, 4294901760
        %2648 = vmatprep.subr.mxu0 %v2647
        %v2649 = vand.u32 %v494, 4294901760
        %2650 = vmatpush1.msra.mxu0 %v2649
        %v2651 = vand.u32 %v499, 4294901760
        %2652 = vmatprep.subr.mxu0 %v2651
        %v2653 = vand.u32 %v498, 4294901760
        %2654 = vmatpush1.msra.mxu0 %v2653
        %v2655 = vand.u32 %v503, 4294901760
        %2656 = vmatprep.subr.mxu0 %v2655
        %v2657 = vand.u32 %v502, 4294901760
        %2658 = vmatpush1.msra.mxu0 %v2657
        %v2659 = vand.u32 %v507, 4294901760
        %2660 = vmatprep.subr.mxu0 %v2659
        %v2661 = vand.u32 %v506, 4294901760
        %2662 = vmatpush1.msra.mxu0 %v2661
        %v2663 = vand.u32 %v511, 4294901760
        %2664 = vmatprep.subr.mxu0 %v2663
        %v2665 = vand.u32 %v510, 4294901760
        %2666 = vmatpush1.msra.mxu0 %v2665
        %v2667 = vand.u32 %v515, 4294901760
        %2668 = vmatprep.subr.mxu0 %v2667
        %v2669 = vand.u32 %v514, 4294901760
        %2670 = vmatpush1.msra.mxu0 %v2669
        %v2671 = vand.u32 %v519, 4294901760
        %2672 = vmatprep.subr.mxu0 %v2671
        %v2673 = vand.u32 %v518, 4294901760
        %2674 = vmatpush1.msra.mxu0 %v2673
        %v2675 = vand.u32 %v523, 4294901760
        %2676 = vmatprep.subr.mxu0 %v2675
        %v2677 = vand.u32 %v522, 4294901760
        %2678 = vmatpush1.msra.mxu0 %v2677
        %v2679 = vand.u32 %v527, 4294901760
        %2680 = vmatprep.subr.mxu0 %v2679
        %v2681 = vand.u32 %v526, 4294901760
        %2682 = vmatpush1.msra.mxu0 %v2681
        %v2683 = vand.u32 %v531, 4294901760
        %2684 = vmatprep.subr.mxu0 %v2683
        %v2685 = vand.u32 %v530, 4294901760
        %2686 = vmatpush1.msra.mxu0 %v2685
        %v2687 = vand.u32 %v535, 4294901760
        %2688 = vmatprep.subr.mxu0 %v2687
        %v2689 = vand.u32 %v534, 4294901760
        %2690 = vmatpush1.msra.mxu0 %v2689
        %v2691 = vand.u32 %v539, 4294901760
        %2692 = vmatprep.subr.mxu0 %v2691
        %v2693 = vand.u32 %v538, 4294901760
        %2694 = vmatpush1.msra.mxu0 %v2693
        %v2695 = vand.u32 %v543, 4294901760
        %2696 = vmatprep.subr.mxu0 %v2695
        %v2697 = vand.u32 %v542, 4294901760
        %2698 = vmatpush1.msra.mxu0 %v2697
        %v2699 = vand.u32 %v547, 4294901760
        %2700 = vmatprep.subr.mxu0 %v2699
        %v2701 = vand.u32 %v546, 4294901760
        %2702 = vmatpush1.msra.mxu0 %v2701
        %v2703 = vand.u32 %v551, 4294901760
        %2704 = vmatprep.subr.mxu0 %v2703
        %v2705 = vand.u32 %v550, 4294901760
        %2706 = vmatpush1.msra.mxu0 %v2705
        %v2707 = vand.u32 %v555, 4294901760
        %2708 = vmatprep.subr.mxu0 %v2707
        %v2709 = vand.u32 %v554, 4294901760
        %2710 = vmatpush1.msra.mxu0 %v2709
        %v2711 = vand.u32 %v559, 4294901760
        %2712 = vmatprep.subr.mxu0 %v2711
        %v2713 = vand.u32 %v558, 4294901760
        %2714 = vmatpush1.msra.mxu0 %v2713
        %v2715 = vand.u32 %v563, 4294901760
        %2716 = vmatprep.subr.mxu0 %v2715
        %v2717 = vand.u32 %v562, 4294901760
        %2718 = vmatpush1.msra.mxu0 %v2717
        %v2719 = vand.u32 %v309, 4294901760
        %v2720 = vsub.f32 %v309, %v2719
        %v2721 = vand.u32 %v2720, 4294901760
        %2722 = vmatprep.mubr.f32.mxu0 %v2721
        %v2723 = vand.u32 %v308, 4294901760
        %v2724 = vsub.f32 %v308, %v2723
        %v2725 = vand.u32 %v2724, 4294901760
        %2726 = vmatmul.mubr.f32.gmra.mrb[0].mxu0 %v2725
        %v2727 = vpop.f32.mrb[0].mxu0
        %v2728 = vadd.f32 %v2587, %v2727
        %v2729 = vpop.f32.mrb[0].mxu0
        %v2730 = vadd.f32 %v2589, %v2729
        %2731 = vdwg.mxu0
        %v2732 = vand.u32 %v439, 4294901760
        %v2733 = vsub.f32 %v439, %v2732
        %v2734 = vand.u32 %v2733, 4294901760
        %2735 = vmatprep.subr.mxu0 %v2734
        %v2736 = vand.u32 %v438, 4294901760
        %v2737 = vsub.f32 %v438, %v2736
        %v2738 = vand.u32 %v2737, 4294901760
        %2739 = vmatpush1.msra.mxu0 %v2738
        %v2740 = vand.u32 %v443, 4294901760
        %v2741 = vsub.f32 %v443, %v2740
        %v2742 = vand.u32 %v2741, 4294901760
        %2743 = vmatprep.subr.mxu0 %v2742
        %v2744 = vand.u32 %v442, 4294901760
        %v2745 = vsub.f32 %v442, %v2744
        %v2746 = vand.u32 %v2745, 4294901760
        %2747 = vmatpush1.msra.mxu0 %v2746
        %v2748 = vand.u32 %v447, 4294901760
        %v2749 = vsub.f32 %v447, %v2748
        %v2750 = vand.u32 %v2749, 4294901760
        %2751 = vmatprep.subr.mxu0 %v2750
        %v2752 = vand.u32 %v446, 4294901760
        %v2753 = vsub.f32 %v446, %v2752
        %v2754 = vand.u32 %v2753, 4294901760
        %2755 = vmatpush1.msra.mxu0 %v2754
        %v2756 = vand.u32 %v451, 4294901760
        %v2757 = vsub.f32 %v451, %v2756
        %v2758 = vand.u32 %v2757, 4294901760
        %2759 = vmatprep.subr.mxu0 %v2758
        %v2760 = vand.u32 %v450, 4294901760
        %v2761 = vsub.f32 %v450, %v2760
        %v2762 = vand.u32 %v2761, 4294901760
        %2763 = vmatpush1.msra.mxu0 %v2762
        %v2764 = vand.u32 %v455, 4294901760
        %v2765 = vsub.f32 %v455, %v2764
        %v2766 = vand.u32 %v2765, 4294901760
        %2767 = vmatprep.subr.mxu0 %v2766
        %v2768 = vand.u32 %v454, 4294901760
        %v2769 = vsub.f32 %v454, %v2768
        %v2770 = vand.u32 %v2769, 4294901760
        %2771 = vmatpush1.msra.mxu0 %v2770
        %v2772 = vand.u32 %v459, 4294901760
        %v2773 = vsub.f32 %v459, %v2772
        %v2774 = vand.u32 %v2773, 4294901760
        %2775 = vmatprep.subr.mxu0 %v2774
        %v2776 = vand.u32 %v458, 4294901760
        %v2777 = vsub.f32 %v458, %v2776
        %v2778 = vand.u32 %v2777, 4294901760
        %2779 = vmatpush1.msra.mxu0 %v2778
        %v2780 = vand.u32 %v463, 4294901760
        %v2781 = vsub.f32 %v463, %v2780
        %v2782 = vand.u32 %v2781, 4294901760
        %2783 = vmatprep.subr.mxu0 %v2782
        %v2784 = vand.u32 %v462, 4294901760
        %v2785 = vsub.f32 %v462, %v2784
        %v2786 = vand.u32 %v2785, 4294901760
        %2787 = vmatpush1.msra.mxu0 %v2786
        %v2788 = vand.u32 %v467, 4294901760
        %v2789 = vsub.f32 %v467, %v2788
        %v2790 = vand.u32 %v2789, 4294901760
        %2791 = vmatprep.subr.mxu0 %v2790
        %v2792 = vand.u32 %v466, 4294901760
        %v2793 = vsub.f32 %v466, %v2792
        %v2794 = vand.u32 %v2793, 4294901760
        %2795 = vmatpush1.msra.mxu0 %v2794
        %v2796 = vand.u32 %v471, 4294901760
        %v2797 = vsub.f32 %v471, %v2796
        %v2798 = vand.u32 %v2797, 4294901760
        %2799 = vmatprep.subr.mxu0 %v2798
        %v2800 = vand.u32 %v470, 4294901760
        %v2801 = vsub.f32 %v470, %v2800
        %v2802 = vand.u32 %v2801, 4294901760
        %2803 = vmatpush1.msra.mxu0 %v2802
        %v2804 = vand.u32 %v475, 4294901760
        %v2805 = vsub.f32 %v475, %v2804
        %v2806 = vand.u32 %v2805, 4294901760
        %2807 = vmatprep.subr.mxu0 %v2806
        %v2808 = vand.u32 %v474, 4294901760
        %v2809 = vsub.f32 %v474, %v2808
        %v2810 = vand.u32 %v2809, 4294901760
        %2811 = vmatpush1.msra.mxu0 %v2810
        %v2812 = vand.u32 %v479, 4294901760
        %v2813 = vsub.f32 %v479, %v2812
        %v2814 = vand.u32 %v2813, 4294901760
        %2815 = vmatprep.subr.mxu0 %v2814
        %v2816 = vand.u32 %v478, 4294901760
        %v2817 = vsub.f32 %v478, %v2816
        %v2818 = vand.u32 %v2817, 4294901760
        %2819 = vmatpush1.msra.mxu0 %v2818
        %v2820 = vand.u32 %v483, 4294901760
        %v2821 = vsub.f32 %v483, %v2820
        %v2822 = vand.u32 %v2821, 4294901760
        %2823 = vmatprep.subr.mxu0 %v2822
        %v2824 = vand.u32 %v482, 4294901760
        %v2825 = vsub.f32 %v482, %v2824
        %v2826 = vand.u32 %v2825, 4294901760
        %2827 = vmatpush1.msra.mxu0 %v2826
        %v2828 = vand.u32 %v487, 4294901760
        %v2829 = vsub.f32 %v487, %v2828
        %v2830 = vand.u32 %v2829, 4294901760
        %2831 = vmatprep.subr.mxu0 %v2830
        %v2832 = vand.u32 %v486, 4294901760
        %v2833 = vsub.f32 %v486, %v2832
        %v2834 = vand.u32 %v2833, 4294901760
        %2835 = vmatpush1.msra.mxu0 %v2834
        %v2836 = vand.u32 %v491, 4294901760
        %v2837 = vsub.f32 %v491, %v2836
        %v2838 = vand.u32 %v2837, 4294901760
        %2839 = vmatprep.subr.mxu0 %v2838
        %v2840 = vand.u32 %v490, 4294901760
        %v2841 = vsub.f32 %v490, %v2840
        %v2842 = vand.u32 %v2841, 4294901760
        %2843 = vmatpush1.msra.mxu0 %v2842
        %v2844 = vand.u32 %v495, 4294901760
        %v2845 = vsub.f32 %v495, %v2844
        %v2846 = vand.u32 %v2845, 4294901760
        %2847 = vmatprep.subr.mxu0 %v2846
        %v2848 = vand.u32 %v494, 4294901760
        %v2849 = vsub.f32 %v494, %v2848
        %v2850 = vand.u32 %v2849, 4294901760
        %2851 = vmatpush1.msra.mxu0 %v2850
        %v2852 = vand.u32 %v499, 4294901760
        %v2853 = vsub.f32 %v499, %v2852
        %v2854 = vand.u32 %v2853, 4294901760
        %2855 = vmatprep.subr.mxu0 %v2854
        %v2856 = vand.u32 %v498, 4294901760
        %v2857 = vsub.f32 %v498, %v2856
        %v2858 = vand.u32 %v2857, 4294901760
        %2859 = vmatpush1.msra.mxu0 %v2858
        %v2860 = vand.u32 %v503, 4294901760
        %v2861 = vsub.f32 %v503, %v2860
        %v2862 = vand.u32 %v2861, 4294901760
        %2863 = vmatprep.subr.mxu0 %v2862
        %v2864 = vand.u32 %v502, 4294901760
        %v2865 = vsub.f32 %v502, %v2864
        %v2866 = vand.u32 %v2865, 4294901760
        %2867 = vmatpush1.msra.mxu0 %v2866
        %v2868 = vand.u32 %v507, 4294901760
        %v2869 = vsub.f32 %v507, %v2868
        %v2870 = vand.u32 %v2869, 4294901760
        %2871 = vmatprep.subr.mxu0 %v2870
        %v2872 = vand.u32 %v506, 4294901760
        %v2873 = vsub.f32 %v506, %v2872
        %v2874 = vand.u32 %v2873, 4294901760
        %2875 = vmatpush1.msra.mxu0 %v2874
        %v2876 = vand.u32 %v511, 4294901760
        %v2877 = vsub.f32 %v511, %v2876
        %v2878 = vand.u32 %v2877, 4294901760
        %2879 = vmatprep.subr.mxu0 %v2878
        %v2880 = vand.u32 %v510, 4294901760
        %v2881 = vsub.f32 %v510, %v2880
        %v2882 = vand.u32 %v2881, 4294901760
        %2883 = vmatpush1.msra.mxu0 %v2882
        %v2884 = vand.u32 %v515, 4294901760
        %v2885 = vsub.f32 %v515, %v2884
        %v2886 = vand.u32 %v2885, 4294901760
        %2887 = vmatprep.subr.mxu0 %v2886
        %v2888 = vand.u32 %v514, 4294901760
        %v2889 = vsub.f32 %v514, %v2888
        %v2890 = vand.u32 %v2889, 4294901760
        %2891 = vmatpush1.msra.mxu0 %v2890
        %v2892 = vand.u32 %v519, 4294901760
        %v2893 = vsub.f32 %v519, %v2892
        %v2894 = vand.u32 %v2893, 4294901760
        %2895 = vmatprep.subr.mxu0 %v2894
        %v2896 = vand.u32 %v518, 4294901760
        %v2897 = vsub.f32 %v518, %v2896
        %v2898 = vand.u32 %v2897, 4294901760
        %2899 = vmatpush1.msra.mxu0 %v2898
        %v2900 = vand.u32 %v523, 4294901760
        %v2901 = vsub.f32 %v523, %v2900
        %v2902 = vand.u32 %v2901, 4294901760
        %2903 = vmatprep.subr.mxu0 %v2902
        %v2904 = vand.u32 %v522, 4294901760
        %v2905 = vsub.f32 %v522, %v2904
        %v2906 = vand.u32 %v2905, 4294901760
        %2907 = vmatpush1.msra.mxu0 %v2906
        %v2908 = vand.u32 %v527, 4294901760
        %v2909 = vsub.f32 %v527, %v2908
        %v2910 = vand.u32 %v2909, 4294901760
        %2911 = vmatprep.subr.mxu0 %v2910
        %v2912 = vand.u32 %v526, 4294901760
        %v2913 = vsub.f32 %v526, %v2912
        %v2914 = vand.u32 %v2913, 4294901760
        %2915 = vmatpush1.msra.mxu0 %v2914
        %v2916 = vand.u32 %v531, 4294901760
        %v2917 = vsub.f32 %v531, %v2916
        %v2918 = vand.u32 %v2917, 4294901760
        %2919 = vmatprep.subr.mxu0 %v2918
        %v2920 = vand.u32 %v530, 4294901760
        %v2921 = vsub.f32 %v530, %v2920
        %v2922 = vand.u32 %v2921, 4294901760
        %2923 = vmatpush1.msra.mxu0 %v2922
        %v2924 = vand.u32 %v535, 4294901760
        %v2925 = vsub.f32 %v535, %v2924
        %v2926 = vand.u32 %v2925, 4294901760
        %2927 = vmatprep.subr.mxu0 %v2926
        %v2928 = vand.u32 %v534, 4294901760
        %v2929 = vsub.f32 %v534, %v2928
        %v2930 = vand.u32 %v2929, 4294901760
        %2931 = vmatpush1.msra.mxu0 %v2930
        %v2932 = vand.u32 %v539, 4294901760
        %v2933 = vsub.f32 %v539, %v2932
        %v2934 = vand.u32 %v2933, 4294901760
        %2935 = vmatprep.subr.mxu0 %v2934
        %v2936 = vand.u32 %v538, 4294901760
        %v2937 = vsub.f32 %v538, %v2936
        %v2938 = vand.u32 %v2937, 4294901760
        %2939 = vmatpush1.msra.mxu0 %v2938
        %v2940 = vand.u32 %v543, 4294901760
        %v2941 = vsub.f32 %v543, %v2940
        %v2942 = vand.u32 %v2941, 4294901760
        %2943 = vmatprep.subr.mxu0 %v2942
        %v2944 = vand.u32 %v542, 4294901760
        %v2945 = vsub.f32 %v542, %v2944
        %v2946 = vand.u32 %v2945, 4294901760
        %2947 = vmatpush1.msra.mxu0 %v2946
        %v2948 = vand.u32 %v547, 4294901760
        %v2949 = vsub.f32 %v547, %v2948
        %v2950 = vand.u32 %v2949, 4294901760
        %2951 = vmatprep.subr.mxu0 %v2950
        %v2952 = vand.u32 %v546, 4294901760
        %v2953 = vsub.f32 %v546, %v2952
        %v2954 = vand.u32 %v2953, 4294901760
        %2955 = vmatpush1.msra.mxu0 %v2954
        %v2956 = vand.u32 %v551, 4294901760
        %v2957 = vsub.f32 %v551, %v2956
        %v2958 = vand.u32 %v2957, 4294901760
        %2959 = vmatprep.subr.mxu0 %v2958
        %v2960 = vand.u32 %v550, 4294901760
        %v2961 = vsub.f32 %v550, %v2960
        %v2962 = vand.u32 %v2961, 4294901760
        %2963 = vmatpush1.msra.mxu0 %v2962
        %v2964 = vand.u32 %v555, 4294901760
        %v2965 = vsub.f32 %v555, %v2964
        %v2966 = vand.u32 %v2965, 4294901760
        %2967 = vmatprep.subr.mxu0 %v2966
        %v2968 = vand.u32 %v554, 4294901760
        %v2969 = vsub.f32 %v554, %v2968
        %v2970 = vand.u32 %v2969, 4294901760
        %2971 = vmatpush1.msra.mxu0 %v2970
        %v2972 = vand.u32 %v559, 4294901760
        %v2973 = vsub.f32 %v559, %v2972
        %v2974 = vand.u32 %v2973, 4294901760
        %2975 = vmatprep.subr.mxu0 %v2974
        %v2976 = vand.u32 %v558, 4294901760
        %v2977 = vsub.f32 %v558, %v2976
        %v2978 = vand.u32 %v2977, 4294901760
        %2979 = vmatpush1.msra.mxu0 %v2978
        %v2980 = vand.u32 %v563, 4294901760
        %v2981 = vsub.f32 %v563, %v2980
        %v2982 = vand.u32 %v2981, 4294901760
        %2983 = vmatprep.subr.mxu0 %v2982
        %v2984 = vand.u32 %v562, 4294901760
        %v2985 = vsub.f32 %v562, %v2984
        %v2986 = vand.u32 %v2985, 4294901760
        %2987 = vmatpush1.msra.mxu0 %v2986
        %v2988 = vand.u32 %v309, 4294901760
        %2989 = vmatprep.mubr.f32.mxu0 %v2988
        %v2990 = vand.u32 %v308, 4294901760
        %2991 = vmatmul.mubr.f32.gmra.mrb[0].mxu0 %v2990
        %v2992 = vpop.f32.mrb[0].mxu0
        %v2993 = vadd.f32 %v2728, %v2992
        %v2994 = vpop.f32.mrb[0].mxu0
        %v2995 = vadd.f32 %v2730, %v2994
        %2996 = vdwg.mxu0
        %v2997 = vand.u32 %v439, 4294901760
        %2998 = vmatprep.subr.mxu0 %v2997
        %v2999 = vand.u32 %v438, 4294901760
        %3000 = vmatpush1.msra.mxu0 %v2999
        %v3001 = vand.u32 %v443, 4294901760
        %3002 = vmatprep.subr.mxu0 %v3001
        %v3003 = vand.u32 %v442, 4294901760
        %3004 = vmatpush1.msra.mxu0 %v3003
        %v3005 = vand.u32 %v447, 4294901760
        %3006 = vmatprep.subr.mxu0 %v3005
        %v3007 = vand.u32 %v446, 4294901760
        %3008 = vmatpush1.msra.mxu0 %v3007
        %v3009 = vand.u32 %v451, 4294901760
        %3010 = vmatprep.subr.mxu0 %v3009
        %v3011 = vand.u32 %v450, 4294901760
        %3012 = vmatpush1.msra.mxu0 %v3011
        %v3013 = vand.u32 %v455, 4294901760
        %3014 = vmatprep.subr.mxu0 %v3013
        %v3015 = vand.u32 %v454, 4294901760
        %3016 = vmatpush1.msra.mxu0 %v3015
        %v3017 = vand.u32 %v459, 4294901760
        %3018 = vmatprep.subr.mxu0 %v3017
        %v3019 = vand.u32 %v458, 4294901760
        %3020 = vmatpush1.msra.mxu0 %v3019
        %v3021 = vand.u32 %v463, 4294901760
        %3022 = vmatprep.subr.mxu0 %v3021
        %v3023 = vand.u32 %v462, 4294901760
        %3024 = vmatpush1.msra.mxu0 %v3023
        %v3025 = vand.u32 %v467, 4294901760
        %3026 = vmatprep.subr.mxu0 %v3025
        %v3027 = vand.u32 %v466, 4294901760
        %3028 = vmatpush1.msra.mxu0 %v3027
        %v3029 = vand.u32 %v471, 4294901760
        %3030 = vmatprep.subr.mxu0 %v3029
        %v3031 = vand.u32 %v470, 4294901760
        %3032 = vmatpush1.msra.mxu0 %v3031
        %v3033 = vand.u32 %v475, 4294901760
        %3034 = vmatprep.subr.mxu0 %v3033
        %v3035 = vand.u32 %v474, 4294901760
        %3036 = vmatpush1.msra.mxu0 %v3035
        %v3037 = vand.u32 %v479, 4294901760
        %3038 = vmatprep.subr.mxu0 %v3037
        %v3039 = vand.u32 %v478, 4294901760
        %3040 = vmatpush1.msra.mxu0 %v3039
        %v3041 = vand.u32 %v483, 4294901760
        %3042 = vmatprep.subr.mxu0 %v3041
        %v3043 = vand.u32 %v482, 4294901760
        %3044 = vmatpush1.msra.mxu0 %v3043
        %v3045 = vand.u32 %v487, 4294901760
        %3046 = vmatprep.subr.mxu0 %v3045
        %v3047 = vand.u32 %v486, 4294901760
        %3048 = vmatpush1.msra.mxu0 %v3047
        %v3049 = vand.u32 %v491, 4294901760
        %3050 = vmatprep.subr.mxu0 %v3049
        %v3051 = vand.u32 %v490, 4294901760
        %3052 = vmatpush1.msra.mxu0 %v3051
        %v3053 = vand.u32 %v495, 4294901760
        %3054 = vmatprep.subr.mxu0 %v3053
        %v3055 = vand.u32 %v494, 4294901760
        %3056 = vmatpush1.msra.mxu0 %v3055
        %v3057 = vand.u32 %v499, 4294901760
        %3058 = vmatprep.subr.mxu0 %v3057
        %v3059 = vand.u32 %v498, 4294901760
        %3060 = vmatpush1.msra.mxu0 %v3059
        %v3061 = vand.u32 %v503, 4294901760
        %3062 = vmatprep.subr.mxu0 %v3061
        %v3063 = vand.u32 %v502, 4294901760
        %3064 = vmatpush1.msra.mxu0 %v3063
        %v3065 = vand.u32 %v507, 4294901760
        %3066 = vmatprep.subr.mxu0 %v3065
        %v3067 = vand.u32 %v506, 4294901760
        %3068 = vmatpush1.msra.mxu0 %v3067
        %v3069 = vand.u32 %v511, 4294901760
        %3070 = vmatprep.subr.mxu0 %v3069
        %v3071 = vand.u32 %v510, 4294901760
        %3072 = vmatpush1.msra.mxu0 %v3071
        %v3073 = vand.u32 %v515, 4294901760
        %3074 = vmatprep.subr.mxu0 %v3073
        %v3075 = vand.u32 %v514, 4294901760
        %3076 = vmatpush1.msra.mxu0 %v3075
        %v3077 = vand.u32 %v519, 4294901760
        %3078 = vmatprep.subr.mxu0 %v3077
        %v3079 = vand.u32 %v518, 4294901760
        %3080 = vmatpush1.msra.mxu0 %v3079
        %v3081 = vand.u32 %v523, 4294901760
        %3082 = vmatprep.subr.mxu0 %v3081
        %v3083 = vand.u32 %v522, 4294901760
        %3084 = vmatpush1.msra.mxu0 %v3083
        %v3085 = vand.u32 %v527, 4294901760
        %3086 = vmatprep.subr.mxu0 %v3085
        %v3087 = vand.u32 %v526, 4294901760
        %3088 = vmatpush1.msra.mxu0 %v3087
        %v3089 = vand.u32 %v531, 4294901760
        %3090 = vmatprep.subr.mxu0 %v3089
        %v3091 = vand.u32 %v530, 4294901760
        %3092 = vmatpush1.msra.mxu0 %v3091
        %v3093 = vand.u32 %v535, 4294901760
        %3094 = vmatprep.subr.mxu0 %v3093
        %v3095 = vand.u32 %v534, 4294901760
        %3096 = vmatpush1.msra.mxu0 %v3095
        %v3097 = vand.u32 %v539, 4294901760
        %3098 = vmatprep.subr.mxu0 %v3097
        %v3099 = vand.u32 %v538, 4294901760
        %3100 = vmatpush1.msra.mxu0 %v3099
        %v3101 = vand.u32 %v543, 4294901760
        %3102 = vmatprep.subr.mxu0 %v3101
        %v3103 = vand.u32 %v542, 4294901760
        %3104 = vmatpush1.msra.mxu0 %v3103
        %v3105 = vand.u32 %v547, 4294901760
        %3106 = vmatprep.subr.mxu0 %v3105
        %v3107 = vand.u32 %v546, 4294901760
        %3108 = vmatpush1.msra.mxu0 %v3107
        %v3109 = vand.u32 %v551, 4294901760
        %3110 = vmatprep.subr.mxu0 %v3109
        %v3111 = vand.u32 %v550, 4294901760
        %3112 = vmatpush1.msra.mxu0 %v3111
        %v3113 = vand.u32 %v555, 4294901760
        %3114 = vmatprep.subr.mxu0 %v3113
        %v3115 = vand.u32 %v554, 4294901760
        %3116 = vmatpush1.msra.mxu0 %v3115
        %v3117 = vand.u32 %v559, 4294901760
        %3118 = vmatprep.subr.mxu0 %v3117
        %v3119 = vand.u32 %v558, 4294901760
        %3120 = vmatpush1.msra.mxu0 %v3119
        %v3121 = vand.u32 %v563, 4294901760
        %3122 = vmatprep.subr.mxu0 %v3121
        %v3123 = vand.u32 %v562, 4294901760
        %3124 = vmatpush1.msra.mxu0 %v3123
        %v3125 = vand.u32 %v309, 4294901760
        %3126 = vmatprep.mubr.f32.mxu0 %v3125
        %v3127 = vand.u32 %v308, 4294901760
        %3128 = vmatmul.mubr.f32.gmra.mrb[0].mxu0 %v3127
        %v3129 = vpop.f32.mrb[0].mxu0
        %v3130 = vadd.f32 %v2993, %v3129
        %v3131 = vpop.f32.mrb[0].mxu0
        %v3132 = vadd.f32 %v2995, %v3131
        %3133 = vdwg.mxu0
        %v3134 = vand.u32 %v313, 4294901760
        %3135 = vmatprep.subr.mxu0 %v3134
        %v3136 = vand.u32 %v312, 4294901760
        %3137 = vmatpush1.msra.mxu0 %v3136
        %v3138 = vand.u32 %v317, 4294901760
        %3139 = vmatprep.subr.mxu0 %v3138
        %v3140 = vand.u32 %v316, 4294901760
        %3141 = vmatpush1.msra.mxu0 %v3140
        %v3142 = vand.u32 %v321, 4294901760
        %3143 = vmatprep.subr.mxu0 %v3142
        %v3144 = vand.u32 %v320, 4294901760
        %3145 = vmatpush1.msra.mxu0 %v3144
        %v3146 = vand.u32 %v325, 4294901760
        %3147 = vmatprep.subr.mxu0 %v3146
        %v3148 = vand.u32 %v324, 4294901760
        %3149 = vmatpush1.msra.mxu0 %v3148
        %v3150 = vand.u32 %v329, 4294901760
        %3151 = vmatprep.subr.mxu0 %v3150
        %v3152 = vand.u32 %v328, 4294901760
        %3153 = vmatpush1.msra.mxu0 %v3152
        %v3154 = vand.u32 %v333, 4294901760
        %3155 = vmatprep.subr.mxu0 %v3154
        %v3156 = vand.u32 %v332, 4294901760
        %3157 = vmatpush1.msra.mxu0 %v3156
        %v3158 = vand.u32 %v337, 4294901760
        %3159 = vmatprep.subr.mxu0 %v3158
        %v3160 = vand.u32 %v336, 4294901760
        %3161 = vmatpush1.msra.mxu0 %v3160
        %v3162 = vand.u32 %v341, 4294901760
        %3163 = vmatprep.subr.mxu0 %v3162
        %v3164 = vand.u32 %v340, 4294901760
        %3165 = vmatpush1.msra.mxu0 %v3164
        %v3166 = vand.u32 %v345, 4294901760
        %3167 = vmatprep.subr.mxu0 %v3166
        %v3168 = vand.u32 %v344, 4294901760
        %3169 = vmatpush1.msra.mxu0 %v3168
        %v3170 = vand.u32 %v349, 4294901760
        %3171 = vmatprep.subr.mxu0 %v3170
        %v3172 = vand.u32 %v348, 4294901760
        %3173 = vmatpush1.msra.mxu0 %v3172
        %v3174 = vand.u32 %v353, 4294901760
        %3175 = vmatprep.subr.mxu0 %v3174
        %v3176 = vand.u32 %v352, 4294901760
        %3177 = vmatpush1.msra.mxu0 %v3176
        %v3178 = vand.u32 %v357, 4294901760
        %3179 = vmatprep.subr.mxu0 %v3178
        %v3180 = vand.u32 %v356, 4294901760
        %3181 = vmatpush1.msra.mxu0 %v3180
        %v3182 = vand.u32 %v361, 4294901760
        %3183 = vmatprep.subr.mxu0 %v3182
        %v3184 = vand.u32 %v360, 4294901760
        %3185 = vmatpush1.msra.mxu0 %v3184
        %v3186 = vand.u32 %v365, 4294901760
        %3187 = vmatprep.subr.mxu0 %v3186
        %v3188 = vand.u32 %v364, 4294901760
        %3189 = vmatpush1.msra.mxu0 %v3188
        %v3190 = vand.u32 %v369, 4294901760
        %3191 = vmatprep.subr.mxu0 %v3190
        %v3192 = vand.u32 %v368, 4294901760
        %3193 = vmatpush1.msra.mxu0 %v3192
        %v3194 = vand.u32 %v373, 4294901760
        %3195 = vmatprep.subr.mxu0 %v3194
        %v3196 = vand.u32 %v372, 4294901760
        %3197 = vmatpush1.msra.mxu0 %v3196
        %v3198 = vand.u32 %v377, 4294901760
        %3199 = vmatprep.subr.mxu0 %v3198
        %v3200 = vand.u32 %v376, 4294901760
        %3201 = vmatpush1.msra.mxu0 %v3200
        %v3202 = vand.u32 %v381, 4294901760
        %3203 = vmatprep.subr.mxu0 %v3202
        %v3204 = vand.u32 %v380, 4294901760
        %3205 = vmatpush1.msra.mxu0 %v3204
        %v3206 = vand.u32 %v385, 4294901760
        %3207 = vmatprep.subr.mxu0 %v3206
        %v3208 = vand.u32 %v384, 4294901760
        %3209 = vmatpush1.msra.mxu0 %v3208
        %v3210 = vand.u32 %v389, 4294901760
        %3211 = vmatprep.subr.mxu0 %v3210
        %v3212 = vand.u32 %v388, 4294901760
        %3213 = vmatpush1.msra.mxu0 %v3212
        %v3214 = vand.u32 %v393, 4294901760
        %3215 = vmatprep.subr.mxu0 %v3214
        %v3216 = vand.u32 %v392, 4294901760
        %3217 = vmatpush1.msra.mxu0 %v3216
        %v3218 = vand.u32 %v397, 4294901760
        %3219 = vmatprep.subr.mxu0 %v3218
        %v3220 = vand.u32 %v396, 4294901760
        %3221 = vmatpush1.msra.mxu0 %v3220
        %v3222 = vand.u32 %v401, 4294901760
        %3223 = vmatprep.subr.mxu0 %v3222
        %v3224 = vand.u32 %v400, 4294901760
        %3225 = vmatpush1.msra.mxu0 %v3224
        %v3226 = vand.u32 %v405, 4294901760
        %3227 = vmatprep.subr.mxu0 %v3226
        %v3228 = vand.u32 %v404, 4294901760
        %3229 = vmatpush1.msra.mxu0 %v3228
        %v3230 = vand.u32 %v409, 4294901760
        %3231 = vmatprep.subr.mxu0 %v3230
        %v3232 = vand.u32 %v408, 4294901760
        %3233 = vmatpush1.msra.mxu0 %v3232
        %v3234 = vand.u32 %v413, 4294901760
        %3235 = vmatprep.subr.mxu0 %v3234
        %v3236 = vand.u32 %v412, 4294901760
        %3237 = vmatpush1.msra.mxu0 %v3236
        %v3238 = vand.u32 %v417, 4294901760
        %3239 = vmatprep.subr.mxu0 %v3238
        %v3240 = vand.u32 %v416, 4294901760
        %3241 = vmatpush1.msra.mxu0 %v3240
        %v3242 = vand.u32 %v421, 4294901760
        %3243 = vmatprep.subr.mxu0 %v3242
        %v3244 = vand.u32 %v420, 4294901760
        %3245 = vmatpush1.msra.mxu0 %v3244
        %v3246 = vand.u32 %v425, 4294901760
        %3247 = vmatprep.subr.mxu0 %v3246
        %v3248 = vand.u32 %v424, 4294901760
        %3249 = vmatpush1.msra.mxu0 %v3248
        %v3250 = vand.u32 %v429, 4294901760
        %3251 = vmatprep.subr.mxu0 %v3250
        %v3252 = vand.u32 %v428, 4294901760
        %3253 = vmatpush1.msra.mxu0 %v3252
        %v3254 = vand.u32 %v433, 4294901760
        %3255 = vmatprep.subr.mxu0 %v3254
        %v3256 = vand.u32 %v432, 4294901760
        %3257 = vmatpush1.msra.mxu0 %v3256
        %v3258 = vand.u32 %v437, 4294901760
        %3259 = vmatprep.subr.mxu0 %v3258
        %v3260 = vand.u32 %v436, 4294901760
        %3261 = vmatpush1.msra.mxu0 %v3260
        %v3262 = vand.u32 %v307, 4294901760
        %v3263 = vsub.f32 %v307, %v3262
        %v3264 = vand.u32 %v3263, 4294901760
        %v3265 = vsub.f32 %v3263, %v3264
        %v3266 = vand.u32 %v3265, 4294901760
        %3267 = vmatprep.mubr.f32.mxu0 %v3266
        %v3268 = vand.u32 %v306, 4294901760
        %v3269 = vsub.f32 %v306, %v3268
        %v3270 = vand.u32 %v3269, 4294901760
        %v3271 = vsub.f32 %v3269, %v3270
        %v3272 = vand.u32 %v3271, 4294901760
        %3273 = vmatmul.mubr.f32.gmra.mrb[0].mxu0 %v3272
        %v3274 = vpop.f32.mrb[0].mxu0
        %v3275 = vadd.f32 0.0, %v3274
        %v3276 = vpop.f32.mrb[0].mxu0
        %v3277 = vadd.f32 0.0, %v3276
        %3278 = vdwg.mxu0
        %v3279 = vand.u32 %v313, 4294901760
        %v3280 = vsub.f32 %v313, %v3279
        %v3281 = vand.u32 %v3280, 4294901760
        %v3282 = vsub.f32 %v3280, %v3281
        %v3283 = vand.u32 %v3282, 4294901760
        %3284 = vmatprep.subr.mxu0 %v3283
        %v3285 = vand.u32 %v312, 4294901760
        %v3286 = vsub.f32 %v312, %v3285
        %v3287 = vand.u32 %v3286, 4294901760
        %v3288 = vsub.f32 %v3286, %v3287
        %v3289 = vand.u32 %v3288, 4294901760
        %3290 = vmatpush1.msra.mxu0 %v3289
        %v3291 = vand.u32 %v317, 4294901760
        %v3292 = vsub.f32 %v317, %v3291
        %v3293 = vand.u32 %v3292, 4294901760
        %v3294 = vsub.f32 %v3292, %v3293
        %v3295 = vand.u32 %v3294, 4294901760
        %3296 = vmatprep.subr.mxu0 %v3295
        %v3297 = vand.u32 %v316, 4294901760
        %v3298 = vsub.f32 %v316, %v3297
        %v3299 = vand.u32 %v3298, 4294901760
        %v3300 = vsub.f32 %v3298, %v3299
        %v3301 = vand.u32 %v3300, 4294901760
        %3302 = vmatpush1.msra.mxu0 %v3301
        %v3303 = vand.u32 %v321, 4294901760
        %v3304 = vsub.f32 %v321, %v3303
        %v3305 = vand.u32 %v3304, 4294901760
        %v3306 = vsub.f32 %v3304, %v3305
        %v3307 = vand.u32 %v3306, 4294901760
        %3308 = vmatprep.subr.mxu0 %v3307
        %v3309 = vand.u32 %v320, 4294901760
        %v3310 = vsub.f32 %v320, %v3309
        %v3311 = vand.u32 %v3310, 4294901760
        %v3312 = vsub.f32 %v3310, %v3311
        %v3313 = vand.u32 %v3312, 4294901760
        %3314 = vmatpush1.msra.mxu0 %v3313
        %v3315 = vand.u32 %v325, 4294901760
        %v3316 = vsub.f32 %v325, %v3315
        %v3317 = vand.u32 %v3316, 4294901760
        %v3318 = vsub.f32 %v3316, %v3317
        %v3319 = vand.u32 %v3318, 4294901760
        %3320 = vmatprep.subr.mxu0 %v3319
        %v3321 = vand.u32 %v324, 4294901760
        %v3322 = vsub.f32 %v324, %v3321
        %v3323 = vand.u32 %v3322, 4294901760
        %v3324 = vsub.f32 %v3322, %v3323
        %v3325 = vand.u32 %v3324, 4294901760
        %3326 = vmatpush1.msra.mxu0 %v3325
        %v3327 = vand.u32 %v329, 4294901760
        %v3328 = vsub.f32 %v329, %v3327
        %v3329 = vand.u32 %v3328, 4294901760
        %v3330 = vsub.f32 %v3328, %v3329
        %v3331 = vand.u32 %v3330, 4294901760
        %3332 = vmatprep.subr.mxu0 %v3331
        %v3333 = vand.u32 %v328, 4294901760
        %v3334 = vsub.f32 %v328, %v3333
        %v3335 = vand.u32 %v3334, 4294901760
        %v3336 = vsub.f32 %v3334, %v3335
        %v3337 = vand.u32 %v3336, 4294901760
        %3338 = vmatpush1.msra.mxu0 %v3337
        %v3339 = vand.u32 %v333, 4294901760
        %v3340 = vsub.f32 %v333, %v3339
        %v3341 = vand.u32 %v3340, 4294901760
        %v3342 = vsub.f32 %v3340, %v3341
        %v3343 = vand.u32 %v3342, 4294901760
        %3344 = vmatprep.subr.mxu0 %v3343
        %v3345 = vand.u32 %v332, 4294901760
        %v3346 = vsub.f32 %v332, %v3345
        %v3347 = vand.u32 %v3346, 4294901760
        %v3348 = vsub.f32 %v3346, %v3347
        %v3349 = vand.u32 %v3348, 4294901760
        %3350 = vmatpush1.msra.mxu0 %v3349
        %v3351 = vand.u32 %v337, 4294901760
        %v3352 = vsub.f32 %v337, %v3351
        %v3353 = vand.u32 %v3352, 4294901760
        %v3354 = vsub.f32 %v3352, %v3353
        %v3355 = vand.u32 %v3354, 4294901760
        %3356 = vmatprep.subr.mxu0 %v3355
        %v3357 = vand.u32 %v336, 4294901760
        %v3358 = vsub.f32 %v336, %v3357
        %v3359 = vand.u32 %v3358, 4294901760
        %v3360 = vsub.f32 %v3358, %v3359
        %v3361 = vand.u32 %v3360, 4294901760
        %3362 = vmatpush1.msra.mxu0 %v3361
        %v3363 = vand.u32 %v341, 4294901760
        %v3364 = vsub.f32 %v341, %v3363
        %v3365 = vand.u32 %v3364, 4294901760
        %v3366 = vsub.f32 %v3364, %v3365
        %v3367 = vand.u32 %v3366, 4294901760
        %3368 = vmatprep.subr.mxu0 %v3367
        %v3369 = vand.u32 %v340, 4294901760
        %v3370 = vsub.f32 %v340, %v3369
        %v3371 = vand.u32 %v3370, 4294901760
        %v3372 = vsub.f32 %v3370, %v3371
        %v3373 = vand.u32 %v3372, 4294901760
        %3374 = vmatpush1.msra.mxu0 %v3373
        %v3375 = vand.u32 %v345, 4294901760
        %v3376 = vsub.f32 %v345, %v3375
        %v3377 = vand.u32 %v3376, 4294901760
        %v3378 = vsub.f32 %v3376, %v3377
        %v3379 = vand.u32 %v3378, 4294901760
        %3380 = vmatprep.subr.mxu0 %v3379
        %v3381 = vand.u32 %v344, 4294901760
        %v3382 = vsub.f32 %v344, %v3381
        %v3383 = vand.u32 %v3382, 4294901760
        %v3384 = vsub.f32 %v3382, %v3383
        %v3385 = vand.u32 %v3384, 4294901760
        %3386 = vmatpush1.msra.mxu0 %v3385
        %v3387 = vand.u32 %v349, 4294901760
        %v3388 = vsub.f32 %v349, %v3387
        %v3389 = vand.u32 %v3388, 4294901760
        %v3390 = vsub.f32 %v3388, %v3389
        %v3391 = vand.u32 %v3390, 4294901760
        %3392 = vmatprep.subr.mxu0 %v3391
        %v3393 = vand.u32 %v348, 4294901760
        %v3394 = vsub.f32 %v348, %v3393
        %v3395 = vand.u32 %v3394, 4294901760
        %v3396 = vsub.f32 %v3394, %v3395
        %v3397 = vand.u32 %v3396, 4294901760
        %3398 = vmatpush1.msra.mxu0 %v3397
        %v3399 = vand.u32 %v353, 4294901760
        %v3400 = vsub.f32 %v353, %v3399
        %v3401 = vand.u32 %v3400, 4294901760
        %v3402 = vsub.f32 %v3400, %v3401
        %v3403 = vand.u32 %v3402, 4294901760
        %3404 = vmatprep.subr.mxu0 %v3403
        %v3405 = vand.u32 %v352, 4294901760
        %v3406 = vsub.f32 %v352, %v3405
        %v3407 = vand.u32 %v3406, 4294901760
        %v3408 = vsub.f32 %v3406, %v3407
        %v3409 = vand.u32 %v3408, 4294901760
        %3410 = vmatpush1.msra.mxu0 %v3409
        %v3411 = vand.u32 %v357, 4294901760
        %v3412 = vsub.f32 %v357, %v3411
        %v3413 = vand.u32 %v3412, 4294901760
        %v3414 = vsub.f32 %v3412, %v3413
        %v3415 = vand.u32 %v3414, 4294901760
        %3416 = vmatprep.subr.mxu0 %v3415
        %v3417 = vand.u32 %v356, 4294901760
        %v3418 = vsub.f32 %v356, %v3417
        %v3419 = vand.u32 %v3418, 4294901760
        %v3420 = vsub.f32 %v3418, %v3419
        %v3421 = vand.u32 %v3420, 4294901760
        %3422 = vmatpush1.msra.mxu0 %v3421
        %v3423 = vand.u32 %v361, 4294901760
        %v3424 = vsub.f32 %v361, %v3423
        %v3425 = vand.u32 %v3424, 4294901760
        %v3426 = vsub.f32 %v3424, %v3425
        %v3427 = vand.u32 %v3426, 4294901760
        %3428 = vmatprep.subr.mxu0 %v3427
        %v3429 = vand.u32 %v360, 4294901760
        %v3430 = vsub.f32 %v360, %v3429
        %v3431 = vand.u32 %v3430, 4294901760
        %v3432 = vsub.f32 %v3430, %v3431
        %v3433 = vand.u32 %v3432, 4294901760
        %3434 = vmatpush1.msra.mxu0 %v3433
        %v3435 = vand.u32 %v365, 4294901760
        %v3436 = vsub.f32 %v365, %v3435
        %v3437 = vand.u32 %v3436, 4294901760
        %v3438 = vsub.f32 %v3436, %v3437
        %v3439 = vand.u32 %v3438, 4294901760
        %3440 = vmatprep.subr.mxu0 %v3439
        %v3441 = vand.u32 %v364, 4294901760
        %v3442 = vsub.f32 %v364, %v3441
        %v3443 = vand.u32 %v3442, 4294901760
        %v3444 = vsub.f32 %v3442, %v3443
        %v3445 = vand.u32 %v3444, 4294901760
        %3446 = vmatpush1.msra.mxu0 %v3445
        %v3447 = vand.u32 %v369, 4294901760
        %v3448 = vsub.f32 %v369, %v3447
        %v3449 = vand.u32 %v3448, 4294901760
        %v3450 = vsub.f32 %v3448, %v3449
        %v3451 = vand.u32 %v3450, 4294901760
        %3452 = vmatprep.subr.mxu0 %v3451
        %v3453 = vand.u32 %v368, 4294901760
        %v3454 = vsub.f32 %v368, %v3453
        %v3455 = vand.u32 %v3454, 4294901760
        %v3456 = vsub.f32 %v3454, %v3455
        %v3457 = vand.u32 %v3456, 4294901760
        %3458 = vmatpush1.msra.mxu0 %v3457
        %v3459 = vand.u32 %v373, 4294901760
        %v3460 = vsub.f32 %v373, %v3459
        %v3461 = vand.u32 %v3460, 4294901760
        %v3462 = vsub.f32 %v3460, %v3461
        %v3463 = vand.u32 %v3462, 4294901760
        %3464 = vmatprep.subr.mxu0 %v3463
        %v3465 = vand.u32 %v372, 4294901760
        %v3466 = vsub.f32 %v372, %v3465
        %v3467 = vand.u32 %v3466, 4294901760
        %v3468 = vsub.f32 %v3466, %v3467
        %v3469 = vand.u32 %v3468, 4294901760
        %3470 = vmatpush1.msra.mxu0 %v3469
        %v3471 = vand.u32 %v377, 4294901760
        %v3472 = vsub.f32 %v377, %v3471
        %v3473 = vand.u32 %v3472, 4294901760
        %v3474 = vsub.f32 %v3472, %v3473
        %v3475 = vand.u32 %v3474, 4294901760
        %3476 = vmatprep.subr.mxu0 %v3475
        %v3477 = vand.u32 %v376, 4294901760
        %v3478 = vsub.f32 %v376, %v3477
        %v3479 = vand.u32 %v3478, 4294901760
        %v3480 = vsub.f32 %v3478, %v3479
        %v3481 = vand.u32 %v3480, 4294901760
        %3482 = vmatpush1.msra.mxu0 %v3481
        %v3483 = vand.u32 %v381, 4294901760
        %v3484 = vsub.f32 %v381, %v3483
        %v3485 = vand.u32 %v3484, 4294901760
        %v3486 = vsub.f32 %v3484, %v3485
        %v3487 = vand.u32 %v3486, 4294901760
        %3488 = vmatprep.subr.mxu0 %v3487
        %v3489 = vand.u32 %v380, 4294901760
        %v3490 = vsub.f32 %v380, %v3489
        %v3491 = vand.u32 %v3490, 4294901760
        %v3492 = vsub.f32 %v3490, %v3491
        %v3493 = vand.u32 %v3492, 4294901760
        %3494 = vmatpush1.msra.mxu0 %v3493
        %v3495 = vand.u32 %v385, 4294901760
        %v3496 = vsub.f32 %v385, %v3495
        %v3497 = vand.u32 %v3496, 4294901760
        %v3498 = vsub.f32 %v3496, %v3497
        %v3499 = vand.u32 %v3498, 4294901760
        %3500 = vmatprep.subr.mxu0 %v3499
        %v3501 = vand.u32 %v384, 4294901760
        %v3502 = vsub.f32 %v384, %v3501
        %v3503 = vand.u32 %v3502, 4294901760
        %v3504 = vsub.f32 %v3502, %v3503
        %v3505 = vand.u32 %v3504, 4294901760
        %3506 = vmatpush1.msra.mxu0 %v3505
        %v3507 = vand.u32 %v389, 4294901760
        %v3508 = vsub.f32 %v389, %v3507
        %v3509 = vand.u32 %v3508, 4294901760
        %v3510 = vsub.f32 %v3508, %v3509
        %v3511 = vand.u32 %v3510, 4294901760
        %3512 = vmatprep.subr.mxu0 %v3511
        %v3513 = vand.u32 %v388, 4294901760
        %v3514 = vsub.f32 %v388, %v3513
        %v3515 = vand.u32 %v3514, 4294901760
        %v3516 = vsub.f32 %v3514, %v3515
        %v3517 = vand.u32 %v3516, 4294901760
        %3518 = vmatpush1.msra.mxu0 %v3517
        %v3519 = vand.u32 %v393, 4294901760
        %v3520 = vsub.f32 %v393, %v3519
        %v3521 = vand.u32 %v3520, 4294901760
        %v3522 = vsub.f32 %v3520, %v3521
        %v3523 = vand.u32 %v3522, 4294901760
        %3524 = vmatprep.subr.mxu0 %v3523
        %v3525 = vand.u32 %v392, 4294901760
        %v3526 = vsub.f32 %v392, %v3525
        %v3527 = vand.u32 %v3526, 4294901760
        %v3528 = vsub.f32 %v3526, %v3527
        %v3529 = vand.u32 %v3528, 4294901760
        %3530 = vmatpush1.msra.mxu0 %v3529
        %v3531 = vand.u32 %v397, 4294901760
        %v3532 = vsub.f32 %v397, %v3531
        %v3533 = vand.u32 %v3532, 4294901760
        %v3534 = vsub.f32 %v3532, %v3533
        %v3535 = vand.u32 %v3534, 4294901760
        %3536 = vmatprep.subr.mxu0 %v3535
        %v3537 = vand.u32 %v396, 4294901760
        %v3538 = vsub.f32 %v396, %v3537
        %v3539 = vand.u32 %v3538, 4294901760
        %v3540 = vsub.f32 %v3538, %v3539
        %v3541 = vand.u32 %v3540, 4294901760
        %3542 = vmatpush1.msra.mxu0 %v3541
        %v3543 = vand.u32 %v401, 4294901760
        %v3544 = vsub.f32 %v401, %v3543
        %v3545 = vand.u32 %v3544, 4294901760
        %v3546 = vsub.f32 %v3544, %v3545
        %v3547 = vand.u32 %v3546, 4294901760
        %3548 = vmatprep.subr.mxu0 %v3547
        %v3549 = vand.u32 %v400, 4294901760
        %v3550 = vsub.f32 %v400, %v3549
        %v3551 = vand.u32 %v3550, 4294901760
        %v3552 = vsub.f32 %v3550, %v3551
        %v3553 = vand.u32 %v3552, 4294901760
        %3554 = vmatpush1.msra.mxu0 %v3553
        %v3555 = vand.u32 %v405, 4294901760
        %v3556 = vsub.f32 %v405, %v3555
        %v3557 = vand.u32 %v3556, 4294901760
        %v3558 = vsub.f32 %v3556, %v3557
        %v3559 = vand.u32 %v3558, 4294901760
        %3560 = vmatprep.subr.mxu0 %v3559
        %v3561 = vand.u32 %v404, 4294901760
        %v3562 = vsub.f32 %v404, %v3561
        %v3563 = vand.u32 %v3562, 4294901760
        %v3564 = vsub.f32 %v3562, %v3563
        %v3565 = vand.u32 %v3564, 4294901760
        %3566 = vmatpush1.msra.mxu0 %v3565
        %v3567 = vand.u32 %v409, 4294901760
        %v3568 = vsub.f32 %v409, %v3567
        %v3569 = vand.u32 %v3568, 4294901760
        %v3570 = vsub.f32 %v3568, %v3569
        %v3571 = vand.u32 %v3570, 4294901760
        %3572 = vmatprep.subr.mxu0 %v3571
        %v3573 = vand.u32 %v408, 4294901760
        %v3574 = vsub.f32 %v408, %v3573
        %v3575 = vand.u32 %v3574, 4294901760
        %v3576 = vsub.f32 %v3574, %v3575
        %v3577 = vand.u32 %v3576, 4294901760
        %3578 = vmatpush1.msra.mxu0 %v3577
        %v3579 = vand.u32 %v413, 4294901760
        %v3580 = vsub.f32 %v413, %v3579
        %v3581 = vand.u32 %v3580, 4294901760
        %v3582 = vsub.f32 %v3580, %v3581
        %v3583 = vand.u32 %v3582, 4294901760
        %3584 = vmatprep.subr.mxu0 %v3583
        %v3585 = vand.u32 %v412, 4294901760
        %v3586 = vsub.f32 %v412, %v3585
        %v3587 = vand.u32 %v3586, 4294901760
        %v3588 = vsub.f32 %v3586, %v3587
        %v3589 = vand.u32 %v3588, 4294901760
        %3590 = vmatpush1.msra.mxu0 %v3589
        %v3591 = vand.u32 %v417, 4294901760
        %v3592 = vsub.f32 %v417, %v3591
        %v3593 = vand.u32 %v3592, 4294901760
        %v3594 = vsub.f32 %v3592, %v3593
        %v3595 = vand.u32 %v3594, 4294901760
        %3596 = vmatprep.subr.mxu0 %v3595
        %v3597 = vand.u32 %v416, 4294901760
        %v3598 = vsub.f32 %v416, %v3597
        %v3599 = vand.u32 %v3598, 4294901760
        %v3600 = vsub.f32 %v3598, %v3599
        %v3601 = vand.u32 %v3600, 4294901760
        %3602 = vmatpush1.msra.mxu0 %v3601
        %v3603 = vand.u32 %v421, 4294901760
        %v3604 = vsub.f32 %v421, %v3603
        %v3605 = vand.u32 %v3604, 4294901760
        %v3606 = vsub.f32 %v3604, %v3605
        %v3607 = vand.u32 %v3606, 4294901760
        %3608 = vmatprep.subr.mxu0 %v3607
        %v3609 = vand.u32 %v420, 4294901760
        %v3610 = vsub.f32 %v420, %v3609
        %v3611 = vand.u32 %v3610, 4294901760
        %v3612 = vsub.f32 %v3610, %v3611
        %v3613 = vand.u32 %v3612, 4294901760
        %3614 = vmatpush1.msra.mxu0 %v3613
        %v3615 = vand.u32 %v425, 4294901760
        %v3616 = vsub.f32 %v425, %v3615
        %v3617 = vand.u32 %v3616, 4294901760
        %v3618 = vsub.f32 %v3616, %v3617
        %v3619 = vand.u32 %v3618, 4294901760
        %3620 = vmatprep.subr.mxu0 %v3619
        %v3621 = vand.u32 %v424, 4294901760
        %v3622 = vsub.f32 %v424, %v3621
        %v3623 = vand.u32 %v3622, 4294901760
        %v3624 = vsub.f32 %v3622, %v3623
        %v3625 = vand.u32 %v3624, 4294901760
        %3626 = vmatpush1.msra.mxu0 %v3625
        %v3627 = vand.u32 %v429, 4294901760
        %v3628 = vsub.f32 %v429, %v3627
        %v3629 = vand.u32 %v3628, 4294901760
        %v3630 = vsub.f32 %v3628, %v3629
        %v3631 = vand.u32 %v3630, 4294901760
        %3632 = vmatprep.subr.mxu0 %v3631
        %v3633 = vand.u32 %v428, 4294901760
        %v3634 = vsub.f32 %v428, %v3633
        %v3635 = vand.u32 %v3634, 4294901760
        %v3636 = vsub.f32 %v3634, %v3635
        %v3637 = vand.u32 %v3636, 4294901760
        %3638 = vmatpush1.msra.mxu0 %v3637
        %v3639 = vand.u32 %v433, 4294901760
        %v3640 = vsub.f32 %v433, %v3639
        %v3641 = vand.u32 %v3640, 4294901760
        %v3642 = vsub.f32 %v3640, %v3641
        %v3643 = vand.u32 %v3642, 4294901760
        %3644 = vmatprep.subr.mxu0 %v3643
        %v3645 = vand.u32 %v432, 4294901760
        %v3646 = vsub.f32 %v432, %v3645
        %v3647 = vand.u32 %v3646, 4294901760
        %v3648 = vsub.f32 %v3646, %v3647
        %v3649 = vand.u32 %v3648, 4294901760
        %3650 = vmatpush1.msra.mxu0 %v3649
        %v3651 = vand.u32 %v437, 4294901760
        %v3652 = vsub.f32 %v437, %v3651
        %v3653 = vand.u32 %v3652, 4294901760
        %v3654 = vsub.f32 %v3652, %v3653
        %v3655 = vand.u32 %v3654, 4294901760
        %3656 = vmatprep.subr.mxu0 %v3655
        %v3657 = vand.u32 %v436, 4294901760
        %v3658 = vsub.f32 %v436, %v3657
        %v3659 = vand.u32 %v3658, 4294901760
        %v3660 = vsub.f32 %v3658, %v3659
        %v3661 = vand.u32 %v3660, 4294901760
        %3662 = vmatpush1.msra.mxu0 %v3661
        %v3663 = vand.u32 %v307, 4294901760
        %3664 = vmatprep.mubr.f32.mxu0 %v3663
        %v3665 = vand.u32 %v306, 4294901760
        %3666 = vmatmul.mubr.f32.gmra.mrb[0].mxu0 %v3665
        %v3667 = vpop.f32.mrb[0].mxu0
        %v3668 = vadd.f32 %v3275, %v3667
        %v3669 = vpop.f32.mrb[0].mxu0
        %v3670 = vadd.f32 %v3277, %v3669
        %3671 = vdwg.mxu0
        %v3672 = vand.u32 %v313, 4294901760
        %v3673 = vsub.f32 %v313, %v3672
        %3674 = vmatprep.subr.mxu0 %v3673
        %v3675 = vand.u32 %v312, 4294901760
        %v3676 = vsub.f32 %v312, %v3675
        %3677 = vmatpush1.msra.mxu0 %v3676
        %v3678 = vand.u32 %v317, 4294901760
        %v3679 = vsub.f32 %v317, %v3678
        %3680 = vmatprep.subr.mxu0 %v3679
        %v3681 = vand.u32 %v316, 4294901760
        %v3682 = vsub.f32 %v316, %v3681
        %3683 = vmatpush1.msra.mxu0 %v3682
        %v3684 = vand.u32 %v321, 4294901760
        %v3685 = vsub.f32 %v321, %v3684
        %3686 = vmatprep.subr.mxu0 %v3685
        %v3687 = vand.u32 %v320, 4294901760
        %v3688 = vsub.f32 %v320, %v3687
        %3689 = vmatpush1.msra.mxu0 %v3688
        %v3690 = vand.u32 %v325, 4294901760
        %v3691 = vsub.f32 %v325, %v3690
        %3692 = vmatprep.subr.mxu0 %v3691
        %v3693 = vand.u32 %v324, 4294901760
        %v3694 = vsub.f32 %v324, %v3693
        %3695 = vmatpush1.msra.mxu0 %v3694
        %v3696 = vand.u32 %v329, 4294901760
        %v3697 = vsub.f32 %v329, %v3696
        %3698 = vmatprep.subr.mxu0 %v3697
        %v3699 = vand.u32 %v328, 4294901760
        %v3700 = vsub.f32 %v328, %v3699
        %3701 = vmatpush1.msra.mxu0 %v3700
        %v3702 = vand.u32 %v333, 4294901760
        %v3703 = vsub.f32 %v333, %v3702
        %3704 = vmatprep.subr.mxu0 %v3703
        %v3705 = vand.u32 %v332, 4294901760
        %v3706 = vsub.f32 %v332, %v3705
        %3707 = vmatpush1.msra.mxu0 %v3706
        %v3708 = vand.u32 %v337, 4294901760
        %v3709 = vsub.f32 %v337, %v3708
        %3710 = vmatprep.subr.mxu0 %v3709
        %v3711 = vand.u32 %v336, 4294901760
        %v3712 = vsub.f32 %v336, %v3711
        %3713 = vmatpush1.msra.mxu0 %v3712
        %v3714 = vand.u32 %v341, 4294901760
        %v3715 = vsub.f32 %v341, %v3714
        %3716 = vmatprep.subr.mxu0 %v3715
        %v3717 = vand.u32 %v340, 4294901760
        %v3718 = vsub.f32 %v340, %v3717
        %3719 = vmatpush1.msra.mxu0 %v3718
        %v3720 = vand.u32 %v345, 4294901760
        %v3721 = vsub.f32 %v345, %v3720
        %3722 = vmatprep.subr.mxu0 %v3721
        %v3723 = vand.u32 %v344, 4294901760
        %v3724 = vsub.f32 %v344, %v3723
        %3725 = vmatpush1.msra.mxu0 %v3724
        %v3726 = vand.u32 %v349, 4294901760
        %v3727 = vsub.f32 %v349, %v3726
        %3728 = vmatprep.subr.mxu0 %v3727
        %v3729 = vand.u32 %v348, 4294901760
        %v3730 = vsub.f32 %v348, %v3729
        %3731 = vmatpush1.msra.mxu0 %v3730
        %v3732 = vand.u32 %v353, 4294901760
        %v3733 = vsub.f32 %v353, %v3732
        %3734 = vmatprep.subr.mxu0 %v3733
        %v3735 = vand.u32 %v352, 4294901760
        %v3736 = vsub.f32 %v352, %v3735
        %3737 = vmatpush1.msra.mxu0 %v3736
        %v3738 = vand.u32 %v357, 4294901760
        %v3739 = vsub.f32 %v357, %v3738
        %3740 = vmatprep.subr.mxu0 %v3739
        %v3741 = vand.u32 %v356, 4294901760
        %v3742 = vsub.f32 %v356, %v3741
        %3743 = vmatpush1.msra.mxu0 %v3742
        %v3744 = vand.u32 %v361, 4294901760
        %v3745 = vsub.f32 %v361, %v3744
        %3746 = vmatprep.subr.mxu0 %v3745
        %v3747 = vand.u32 %v360, 4294901760
        %v3748 = vsub.f32 %v360, %v3747
        %3749 = vmatpush1.msra.mxu0 %v3748
        %v3750 = vand.u32 %v365, 4294901760
        %v3751 = vsub.f32 %v365, %v3750
        %3752 = vmatprep.subr.mxu0 %v3751
        %v3753 = vand.u32 %v364, 4294901760
        %v3754 = vsub.f32 %v364, %v3753
        %3755 = vmatpush1.msra.mxu0 %v3754
        %v3756 = vand.u32 %v369, 4294901760
        %v3757 = vsub.f32 %v369, %v3756
        %3758 = vmatprep.subr.mxu0 %v3757
        %v3759 = vand.u32 %v368, 4294901760
        %v3760 = vsub.f32 %v368, %v3759
        %3761 = vmatpush1.msra.mxu0 %v3760
        %v3762 = vand.u32 %v373, 4294901760
        %v3763 = vsub.f32 %v373, %v3762
        %3764 = vmatprep.subr.mxu0 %v3763
        %v3765 = vand.u32 %v372, 4294901760
        %v3766 = vsub.f32 %v372, %v3765
        %3767 = vmatpush1.msra.mxu0 %v3766
        %v3768 = vand.u32 %v377, 4294901760
        %v3769 = vsub.f32 %v377, %v3768
        %3770 = vmatprep.subr.mxu0 %v3769
        %v3771 = vand.u32 %v376, 4294901760
        %v3772 = vsub.f32 %v376, %v3771
        %3773 = vmatpush1.msra.mxu0 %v3772
        %v3774 = vand.u32 %v381, 4294901760
        %v3775 = vsub.f32 %v381, %v3774
        %3776 = vmatprep.subr.mxu0 %v3775
        %v3777 = vand.u32 %v380, 4294901760
        %v3778 = vsub.f32 %v380, %v3777
        %3779 = vmatpush1.msra.mxu0 %v3778
        %v3780 = vand.u32 %v385, 4294901760
        %v3781 = vsub.f32 %v385, %v3780
        %3782 = vmatprep.subr.mxu0 %v3781
        %v3783 = vand.u32 %v384, 4294901760
        %v3784 = vsub.f32 %v384, %v3783
        %3785 = vmatpush1.msra.mxu0 %v3784
        %v3786 = vand.u32 %v389, 4294901760
        %v3787 = vsub.f32 %v389, %v3786
        %3788 = vmatprep.subr.mxu0 %v3787
        %v3789 = vand.u32 %v388, 4294901760
        %v3790 = vsub.f32 %v388, %v3789
        %3791 = vmatpush1.msra.mxu0 %v3790
        %v3792 = vand.u32 %v393, 4294901760
        %v3793 = vsub.f32 %v393, %v3792
        %3794 = vmatprep.subr.mxu0 %v3793
        %v3795 = vand.u32 %v392, 4294901760
        %v3796 = vsub.f32 %v392, %v3795
        %3797 = vmatpush1.msra.mxu0 %v3796
        %v3798 = vand.u32 %v397, 4294901760
        %v3799 = vsub.f32 %v397, %v3798
        %3800 = vmatprep.subr.mxu0 %v3799
        %v3801 = vand.u32 %v396, 4294901760
        %v3802 = vsub.f32 %v396, %v3801
        %3803 = vmatpush1.msra.mxu0 %v3802
        %v3804 = vand.u32 %v401, 4294901760
        %v3805 = vsub.f32 %v401, %v3804
        %3806 = vmatprep.subr.mxu0 %v3805
        %v3807 = vand.u32 %v400, 4294901760
        %v3808 = vsub.f32 %v400, %v3807
        %3809 = vmatpush1.msra.mxu0 %v3808
        %v3810 = vand.u32 %v405, 4294901760
        %v3811 = vsub.f32 %v405, %v3810
        %3812 = vmatprep.subr.mxu0 %v3811
        %v3813 = vand.u32 %v404, 4294901760
        %v3814 = vsub.f32 %v404, %v3813
        %3815 = vmatpush1.msra.mxu0 %v3814
        %v3816 = vand.u32 %v409, 4294901760
        %v3817 = vsub.f32 %v409, %v3816
        %3818 = vmatprep.subr.mxu0 %v3817
        %v3819 = vand.u32 %v408, 4294901760
        %v3820 = vsub.f32 %v408, %v3819
        %3821 = vmatpush1.msra.mxu0 %v3820
        %v3822 = vand.u32 %v413, 4294901760
        %v3823 = vsub.f32 %v413, %v3822
        %3824 = vmatprep.subr.mxu0 %v3823
        %v3825 = vand.u32 %v412, 4294901760
        %v3826 = vsub.f32 %v412, %v3825
        %3827 = vmatpush1.msra.mxu0 %v3826
        %v3828 = vand.u32 %v417, 4294901760
        %v3829 = vsub.f32 %v417, %v3828
        %3830 = vmatprep.subr.mxu0 %v3829
        %v3831 = vand.u32 %v416, 4294901760
        %v3832 = vsub.f32 %v416, %v3831
        %3833 = vmatpush1.msra.mxu0 %v3832
        %v3834 = vand.u32 %v421, 4294901760
        %v3835 = vsub.f32 %v421, %v3834
        %3836 = vmatprep.subr.mxu0 %v3835
        %v3837 = vand.u32 %v420, 4294901760
        %v3838 = vsub.f32 %v420, %v3837
        %3839 = vmatpush1.msra.mxu0 %v3838
        %v3840 = vand.u32 %v425, 4294901760
        %v3841 = vsub.f32 %v425, %v3840
        %3842 = vmatprep.subr.mxu0 %v3841
        %v3843 = vand.u32 %v424, 4294901760
        %v3844 = vsub.f32 %v424, %v3843
        %3845 = vmatpush1.msra.mxu0 %v3844
        %v3846 = vand.u32 %v429, 4294901760
        %v3847 = vsub.f32 %v429, %v3846
        %3848 = vmatprep.subr.mxu0 %v3847
        %v3849 = vand.u32 %v428, 4294901760
        %v3850 = vsub.f32 %v428, %v3849
        %3851 = vmatpush1.msra.mxu0 %v3850
        %v3852 = vand.u32 %v433, 4294901760
        %v3853 = vsub.f32 %v433, %v3852
        %3854 = vmatprep.subr.mxu0 %v3853
        %v3855 = vand.u32 %v432, 4294901760
        %v3856 = vsub.f32 %v432, %v3855
        %3857 = vmatpush1.msra.mxu0 %v3856
        %v3858 = vand.u32 %v437, 4294901760
        %v3859 = vsub.f32 %v437, %v3858
        %3860 = vmatprep.subr.mxu0 %v3859
        %v3861 = vand.u32 %v436, 4294901760
        %v3862 = vsub.f32 %v436, %v3861
        %3863 = vmatpush1.msra.mxu0 %v3862
        %v3864 = vand.u32 %v307, 4294901760
        %v3865 = vsub.f32 %v307, %v3864
        %3866 = vmatprep.mubr.f32.mxu0 %v3865
        %v3867 = vand.u32 %v306, 4294901760
        %v3868 = vsub.f32 %v306, %v3867
        %3869 = vmatmul.mubr.f32.gmra.mrb[0].mxu0 %v3868
        %v3870 = vpop.f32.mrb[0].mxu0
        %v3871 = vadd.f32 %v3668, %v3870
        %v3872 = vpop.f32.mrb[0].mxu0
        %v3873 = vadd.f32 %v3670, %v3872
        %3874 = vdwg.mxu0
        %v3875 = vand.u32 %v313, 4294901760
        %3876 = vmatprep.subr.mxu0 %v3875
        %v3877 = vand.u32 %v312, 4294901760
        %3878 = vmatpush1.msra.mxu0 %v3877
        %v3879 = vand.u32 %v317, 4294901760
        %3880 = vmatprep.subr.mxu0 %v3879
        %v3881 = vand.u32 %v316, 4294901760
        %3882 = vmatpush1.msra.mxu0 %v3881
        %v3883 = vand.u32 %v321, 4294901760
        %3884 = vmatprep.subr.mxu0 %v3883
        %v3885 = vand.u32 %v320, 4294901760
        %3886 = vmatpush1.msra.mxu0 %v3885
        %v3887 = vand.u32 %v325, 4294901760
        %3888 = vmatprep.subr.mxu0 %v3887
        %v3889 = vand.u32 %v324, 4294901760
        %3890 = vmatpush1.msra.mxu0 %v3889
        %v3891 = vand.u32 %v329, 4294901760
        %3892 = vmatprep.subr.mxu0 %v3891
        %v3893 = vand.u32 %v328, 4294901760
        %3894 = vmatpush1.msra.mxu0 %v3893
        %v3895 = vand.u32 %v333, 4294901760
        %3896 = vmatprep.subr.mxu0 %v3895
        %v3897 = vand.u32 %v332, 4294901760
        %3898 = vmatpush1.msra.mxu0 %v3897
        %v3899 = vand.u32 %v337, 4294901760
        %3900 = vmatprep.subr.mxu0 %v3899
        %v3901 = vand.u32 %v336, 4294901760
        %3902 = vmatpush1.msra.mxu0 %v3901
        %v3903 = vand.u32 %v341, 4294901760
        %3904 = vmatprep.subr.mxu0 %v3903
        %v3905 = vand.u32 %v340, 4294901760
        %3906 = vmatpush1.msra.mxu0 %v3905
        %v3907 = vand.u32 %v345, 4294901760
        %3908 = vmatprep.subr.mxu0 %v3907
        %v3909 = vand.u32 %v344, 4294901760
        %3910 = vmatpush1.msra.mxu0 %v3909
        %v3911 = vand.u32 %v349, 4294901760
        %3912 = vmatprep.subr.mxu0 %v3911
        %v3913 = vand.u32 %v348, 4294901760
        %3914 = vmatpush1.msra.mxu0 %v3913
        %v3915 = vand.u32 %v353, 4294901760
        %3916 = vmatprep.subr.mxu0 %v3915
        %v3917 = vand.u32 %v352, 4294901760
        %3918 = vmatpush1.msra.mxu0 %v3917
        %v3919 = vand.u32 %v357, 4294901760
        %3920 = vmatprep.subr.mxu0 %v3919
        %v3921 = vand.u32 %v356, 4294901760
        %3922 = vmatpush1.msra.mxu0 %v3921
        %v3923 = vand.u32 %v361, 4294901760
        %3924 = vmatprep.subr.mxu0 %v3923
        %v3925 = vand.u32 %v360, 4294901760
        %3926 = vmatpush1.msra.mxu0 %v3925
        %v3927 = vand.u32 %v365, 4294901760
        %3928 = vmatprep.subr.mxu0 %v3927
        %v3929 = vand.u32 %v364, 4294901760
        %3930 = vmatpush1.msra.mxu0 %v3929
        %v3931 = vand.u32 %v369, 4294901760
        %3932 = vmatprep.subr.mxu0 %v3931
        %v3933 = vand.u32 %v368, 4294901760
        %3934 = vmatpush1.msra.mxu0 %v3933
        %v3935 = vand.u32 %v373, 4294901760
        %3936 = vmatprep.subr.mxu0 %v3935
        %v3937 = vand.u32 %v372, 4294901760
        %3938 = vmatpush1.msra.mxu0 %v3937
        %v3939 = vand.u32 %v377, 4294901760
        %3940 = vmatprep.subr.mxu0 %v3939
        %v3941 = vand.u32 %v376, 4294901760
        %3942 = vmatpush1.msra.mxu0 %v3941
        %v3943 = vand.u32 %v381, 4294901760
        %3944 = vmatprep.subr.mxu0 %v3943
        %v3945 = vand.u32 %v380, 4294901760
        %3946 = vmatpush1.msra.mxu0 %v3945
        %v3947 = vand.u32 %v385, 4294901760
        %3948 = vmatprep.subr.mxu0 %v3947
        %v3949 = vand.u32 %v384, 4294901760
        %3950 = vmatpush1.msra.mxu0 %v3949
        %v3951 = vand.u32 %v389, 4294901760
        %3952 = vmatprep.subr.mxu0 %v3951
        %v3953 = vand.u32 %v388, 4294901760
        %3954 = vmatpush1.msra.mxu0 %v3953
        %v3955 = vand.u32 %v393, 4294901760
        %3956 = vmatprep.subr.mxu0 %v3955
        %v3957 = vand.u32 %v392, 4294901760
        %3958 = vmatpush1.msra.mxu0 %v3957
        %v3959 = vand.u32 %v397, 4294901760
        %3960 = vmatprep.subr.mxu0 %v3959
        %v3961 = vand.u32 %v396, 4294901760
        %3962 = vmatpush1.msra.mxu0 %v3961
        %v3963 = vand.u32 %v401, 4294901760
        %3964 = vmatprep.subr.mxu0 %v3963
        %v3965 = vand.u32 %v400, 4294901760
        %3966 = vmatpush1.msra.mxu0 %v3965
        %v3967 = vand.u32 %v405, 4294901760
        %3968 = vmatprep.subr.mxu0 %v3967
        %v3969 = vand.u32 %v404, 4294901760
        %3970 = vmatpush1.msra.mxu0 %v3969
        %v3971 = vand.u32 %v409, 4294901760
        %3972 = vmatprep.subr.mxu0 %v3971
        %v3973 = vand.u32 %v408, 4294901760
        %3974 = vmatpush1.msra.mxu0 %v3973
        %v3975 = vand.u32 %v413, 4294901760
        %3976 = vmatprep.subr.mxu0 %v3975
        %v3977 = vand.u32 %v412, 4294901760
        %3978 = vmatpush1.msra.mxu0 %v3977
        %v3979 = vand.u32 %v417, 4294901760
        %3980 = vmatprep.subr.mxu0 %v3979
        %v3981 = vand.u32 %v416, 4294901760
        %3982 = vmatpush1.msra.mxu0 %v3981
        %v3983 = vand.u32 %v421, 4294901760
        %3984 = vmatprep.subr.mxu0 %v3983
        %v3985 = vand.u32 %v420, 4294901760
        %3986 = vmatpush1.msra.mxu0 %v3985
        %v3987 = vand.u32 %v425, 4294901760
        %3988 = vmatprep.subr.mxu0 %v3987
        %v3989 = vand.u32 %v424, 4294901760
        %3990 = vmatpush1.msra.mxu0 %v3989
        %v3991 = vand.u32 %v429, 4294901760
        %3992 = vmatprep.subr.mxu0 %v3991
        %v3993 = vand.u32 %v428, 4294901760
        %3994 = vmatpush1.msra.mxu0 %v3993
        %v3995 = vand.u32 %v433, 4294901760
        %3996 = vmatprep.subr.mxu0 %v3995
        %v3997 = vand.u32 %v432, 4294901760
        %3998 = vmatpush1.msra.mxu0 %v3997
        %v3999 = vand.u32 %v437, 4294901760
        %4000 = vmatprep.subr.mxu0 %v3999
        %v4001 = vand.u32 %v436, 4294901760
        %4002 = vmatpush1.msra.mxu0 %v4001
        %v4003 = vand.u32 %v307, 4294901760
        %v4004 = vsub.f32 %v307, %v4003
        %v4005 = vand.u32 %v4004, 4294901760
        %4006 = vmatprep.mubr.f32.mxu0 %v4005
        %v4007 = vand.u32 %v306, 4294901760
        %v4008 = vsub.f32 %v306, %v4007
        %v4009 = vand.u32 %v4008, 4294901760
        %4010 = vmatmul.mubr.f32.gmra.mrb[0].mxu0 %v4009
        %v4011 = vpop.f32.mrb[0].mxu0
        %v4012 = vadd.f32 %v3871, %v4011
        %v4013 = vpop.f32.mrb[0].mxu0
        %v4014 = vadd.f32 %v3873, %v4013
        %4015 = vdwg.mxu0
        %v4016 = vand.u32 %v313, 4294901760
        %v4017 = vsub.f32 %v313, %v4016
        %v4018 = vand.u32 %v4017, 4294901760
        %4019 = vmatprep.subr.mxu0 %v4018
        %v4020 = vand.u32 %v312, 4294901760
        %v4021 = vsub.f32 %v312, %v4020
        %v4022 = vand.u32 %v4021, 4294901760
        %4023 = vmatpush1.msra.mxu0 %v4022
        %v4024 = vand.u32 %v317, 4294901760
        %v4025 = vsub.f32 %v317, %v4024
        %v4026 = vand.u32 %v4025, 4294901760
        %4027 = vmatprep.subr.mxu0 %v4026
        %v4028 = vand.u32 %v316, 4294901760
        %v4029 = vsub.f32 %v316, %v4028
        %v4030 = vand.u32 %v4029, 4294901760
        %4031 = vmatpush1.msra.mxu0 %v4030
        %v4032 = vand.u32 %v321, 4294901760
        %v4033 = vsub.f32 %v321, %v4032
        %v4034 = vand.u32 %v4033, 4294901760
        %4035 = vmatprep.subr.mxu0 %v4034
        %v4036 = vand.u32 %v320, 4294901760
        %v4037 = vsub.f32 %v320, %v4036
        %v4038 = vand.u32 %v4037, 4294901760
        %4039 = vmatpush1.msra.mxu0 %v4038
        %v4040 = vand.u32 %v325, 4294901760
        %v4041 = vsub.f32 %v325, %v4040
        %v4042 = vand.u32 %v4041, 4294901760
        %4043 = vmatprep.subr.mxu0 %v4042
        %v4044 = vand.u32 %v324, 4294901760
        %v4045 = vsub.f32 %v324, %v4044
        %v4046 = vand.u32 %v4045, 4294901760
        %4047 = vmatpush1.msra.mxu0 %v4046
        %v4048 = vand.u32 %v329, 4294901760
        %v4049 = vsub.f32 %v329, %v4048
        %v4050 = vand.u32 %v4049, 4294901760
        %4051 = vmatprep.subr.mxu0 %v4050
        %v4052 = vand.u32 %v328, 4294901760
        %v4053 = vsub.f32 %v328, %v4052
        %v4054 = vand.u32 %v4053, 4294901760
        %4055 = vmatpush1.msra.mxu0 %v4054
        %v4056 = vand.u32 %v333, 4294901760
        %v4057 = vsub.f32 %v333, %v4056
        %v4058 = vand.u32 %v4057, 4294901760
        %4059 = vmatprep.subr.mxu0 %v4058
        %v4060 = vand.u32 %v332, 4294901760
        %v4061 = vsub.f32 %v332, %v4060
        %v4062 = vand.u32 %v4061, 4294901760
        %4063 = vmatpush1.msra.mxu0 %v4062
        %v4064 = vand.u32 %v337, 4294901760
        %v4065 = vsub.f32 %v337, %v4064
        %v4066 = vand.u32 %v4065, 4294901760
        %4067 = vmatprep.subr.mxu0 %v4066
        %v4068 = vand.u32 %v336, 4294901760
        %v4069 = vsub.f32 %v336, %v4068
        %v4070 = vand.u32 %v4069, 4294901760
        %4071 = vmatpush1.msra.mxu0 %v4070
        %v4072 = vand.u32 %v341, 4294901760
        %v4073 = vsub.f32 %v341, %v4072
        %v4074 = vand.u32 %v4073, 4294901760
        %4075 = vmatprep.subr.mxu0 %v4074
        %v4076 = vand.u32 %v340, 4294901760
        %v4077 = vsub.f32 %v340, %v4076
        %v4078 = vand.u32 %v4077, 4294901760
        %4079 = vmatpush1.msra.mxu0 %v4078
        %v4080 = vand.u32 %v345, 4294901760
        %v4081 = vsub.f32 %v345, %v4080
        %v4082 = vand.u32 %v4081, 4294901760
        %4083 = vmatprep.subr.mxu0 %v4082
        %v4084 = vand.u32 %v344, 4294901760
        %v4085 = vsub.f32 %v344, %v4084
        %v4086 = vand.u32 %v4085, 4294901760
        %4087 = vmatpush1.msra.mxu0 %v4086
        %v4088 = vand.u32 %v349, 4294901760
        %v4089 = vsub.f32 %v349, %v4088
        %v4090 = vand.u32 %v4089, 4294901760
        %4091 = vmatprep.subr.mxu0 %v4090
        %v4092 = vand.u32 %v348, 4294901760
        %v4093 = vsub.f32 %v348, %v4092
        %v4094 = vand.u32 %v4093, 4294901760
        %4095 = vmatpush1.msra.mxu0 %v4094
        %v4096 = vand.u32 %v353, 4294901760
        %v4097 = vsub.f32 %v353, %v4096
        %v4098 = vand.u32 %v4097, 4294901760
        %4099 = vmatprep.subr.mxu0 %v4098
        %v4100 = vand.u32 %v352, 4294901760
        %v4101 = vsub.f32 %v352, %v4100
        %v4102 = vand.u32 %v4101, 4294901760
        %4103 = vmatpush1.msra.mxu0 %v4102
        %v4104 = vand.u32 %v357, 4294901760
        %v4105 = vsub.f32 %v357, %v4104
        %v4106 = vand.u32 %v4105, 4294901760
        %4107 = vmatprep.subr.mxu0 %v4106
        %v4108 = vand.u32 %v356, 4294901760
        %v4109 = vsub.f32 %v356, %v4108
        %v4110 = vand.u32 %v4109, 4294901760
        %4111 = vmatpush1.msra.mxu0 %v4110
        %v4112 = vand.u32 %v361, 4294901760
        %v4113 = vsub.f32 %v361, %v4112
        %v4114 = vand.u32 %v4113, 4294901760
        %4115 = vmatprep.subr.mxu0 %v4114
        %v4116 = vand.u32 %v360, 4294901760
        %v4117 = vsub.f32 %v360, %v4116
        %v4118 = vand.u32 %v4117, 4294901760
        %4119 = vmatpush1.msra.mxu0 %v4118
        %v4120 = vand.u32 %v365, 4294901760
        %v4121 = vsub.f32 %v365, %v4120
        %v4122 = vand.u32 %v4121, 4294901760
        %4123 = vmatprep.subr.mxu0 %v4122
        %v4124 = vand.u32 %v364, 4294901760
        %v4125 = vsub.f32 %v364, %v4124
        %v4126 = vand.u32 %v4125, 4294901760
        %4127 = vmatpush1.msra.mxu0 %v4126
        %v4128 = vand.u32 %v369, 4294901760
        %v4129 = vsub.f32 %v369, %v4128
        %v4130 = vand.u32 %v4129, 4294901760
        %4131 = vmatprep.subr.mxu0 %v4130
        %v4132 = vand.u32 %v368, 4294901760
        %v4133 = vsub.f32 %v368, %v4132
        %v4134 = vand.u32 %v4133, 4294901760
        %4135 = vmatpush1.msra.mxu0 %v4134
        %v4136 = vand.u32 %v373, 4294901760
        %v4137 = vsub.f32 %v373, %v4136
        %v4138 = vand.u32 %v4137, 4294901760
        %4139 = vmatprep.subr.mxu0 %v4138
        %v4140 = vand.u32 %v372, 4294901760
        %v4141 = vsub.f32 %v372, %v4140
        %v4142 = vand.u32 %v4141, 4294901760
        %4143 = vmatpush1.msra.mxu0 %v4142
        %v4144 = vand.u32 %v377, 4294901760
        %v4145 = vsub.f32 %v377, %v4144
        %v4146 = vand.u32 %v4145, 4294901760
        %4147 = vmatprep.subr.mxu0 %v4146
        %v4148 = vand.u32 %v376, 4294901760
        %v4149 = vsub.f32 %v376, %v4148
        %v4150 = vand.u32 %v4149, 4294901760
        %4151 = vmatpush1.msra.mxu0 %v4150
        %v4152 = vand.u32 %v381, 4294901760
        %v4153 = vsub.f32 %v381, %v4152
        %v4154 = vand.u32 %v4153, 4294901760
        %4155 = vmatprep.subr.mxu0 %v4154
        %v4156 = vand.u32 %v380, 4294901760
        %v4157 = vsub.f32 %v380, %v4156
        %v4158 = vand.u32 %v4157, 4294901760
        %4159 = vmatpush1.msra.mxu0 %v4158
        %v4160 = vand.u32 %v385, 4294901760
        %v4161 = vsub.f32 %v385, %v4160
        %v4162 = vand.u32 %v4161, 4294901760
        %4163 = vmatprep.subr.mxu0 %v4162
        %v4164 = vand.u32 %v384, 4294901760
        %v4165 = vsub.f32 %v384, %v4164
        %v4166 = vand.u32 %v4165, 4294901760
        %4167 = vmatpush1.msra.mxu0 %v4166
        %v4168 = vand.u32 %v389, 4294901760
        %v4169 = vsub.f32 %v389, %v4168
        %v4170 = vand.u32 %v4169, 4294901760
        %4171 = vmatprep.subr.mxu0 %v4170
        %v4172 = vand.u32 %v388, 4294901760
        %v4173 = vsub.f32 %v388, %v4172
        %v4174 = vand.u32 %v4173, 4294901760
        %4175 = vmatpush1.msra.mxu0 %v4174
        %v4176 = vand.u32 %v393, 4294901760
        %v4177 = vsub.f32 %v393, %v4176
        %v4178 = vand.u32 %v4177, 4294901760
        %4179 = vmatprep.subr.mxu0 %v4178
        %v4180 = vand.u32 %v392, 4294901760
        %v4181 = vsub.f32 %v392, %v4180
        %v4182 = vand.u32 %v4181, 4294901760
        %4183 = vmatpush1.msra.mxu0 %v4182
        %v4184 = vand.u32 %v397, 4294901760
        %v4185 = vsub.f32 %v397, %v4184
        %v4186 = vand.u32 %v4185, 4294901760
        %4187 = vmatprep.subr.mxu0 %v4186
        %v4188 = vand.u32 %v396, 4294901760
        %v4189 = vsub.f32 %v396, %v4188
        %v4190 = vand.u32 %v4189, 4294901760
        %4191 = vmatpush1.msra.mxu0 %v4190
        %v4192 = vand.u32 %v401, 4294901760
        %v4193 = vsub.f32 %v401, %v4192
        %v4194 = vand.u32 %v4193, 4294901760
        %4195 = vmatprep.subr.mxu0 %v4194
        %v4196 = vand.u32 %v400, 4294901760
        %v4197 = vsub.f32 %v400, %v4196
        %v4198 = vand.u32 %v4197, 4294901760
        %4199 = vmatpush1.msra.mxu0 %v4198
        %v4200 = vand.u32 %v405, 4294901760
        %v4201 = vsub.f32 %v405, %v4200
        %v4202 = vand.u32 %v4201, 4294901760
        %4203 = vmatprep.subr.mxu0 %v4202
        %v4204 = vand.u32 %v404, 4294901760
        %v4205 = vsub.f32 %v404, %v4204
        %v4206 = vand.u32 %v4205, 4294901760
        %4207 = vmatpush1.msra.mxu0 %v4206
        %v4208 = vand.u32 %v409, 4294901760
        %v4209 = vsub.f32 %v409, %v4208
        %v4210 = vand.u32 %v4209, 4294901760
        %4211 = vmatprep.subr.mxu0 %v4210
        %v4212 = vand.u32 %v408, 4294901760
        %v4213 = vsub.f32 %v408, %v4212
        %v4214 = vand.u32 %v4213, 4294901760
        %4215 = vmatpush1.msra.mxu0 %v4214
        %v4216 = vand.u32 %v413, 4294901760
        %v4217 = vsub.f32 %v413, %v4216
        %v4218 = vand.u32 %v4217, 4294901760
        %4219 = vmatprep.subr.mxu0 %v4218
        %v4220 = vand.u32 %v412, 4294901760
        %v4221 = vsub.f32 %v412, %v4220
        %v4222 = vand.u32 %v4221, 4294901760
        %4223 = vmatpush1.msra.mxu0 %v4222
        %v4224 = vand.u32 %v417, 4294901760
        %v4225 = vsub.f32 %v417, %v4224
        %v4226 = vand.u32 %v4225, 4294901760
        %4227 = vmatprep.subr.mxu0 %v4226
        %v4228 = vand.u32 %v416, 4294901760
        %v4229 = vsub.f32 %v416, %v4228
        %v4230 = vand.u32 %v4229, 4294901760
        %4231 = vmatpush1.msra.mxu0 %v4230
        %v4232 = vand.u32 %v421, 4294901760
        %v4233 = vsub.f32 %v421, %v4232
        %v4234 = vand.u32 %v4233, 4294901760
        %4235 = vmatprep.subr.mxu0 %v4234
        %v4236 = vand.u32 %v420, 4294901760
        %v4237 = vsub.f32 %v420, %v4236
        %v4238 = vand.u32 %v4237, 4294901760
        %4239 = vmatpush1.msra.mxu0 %v4238
        %v4240 = vand.u32 %v425, 4294901760
        %v4241 = vsub.f32 %v425, %v4240
        %v4242 = vand.u32 %v4241, 4294901760
        %4243 = vmatprep.subr.mxu0 %v4242
        %v4244 = vand.u32 %v424, 4294901760
        %v4245 = vsub.f32 %v424, %v4244
        %v4246 = vand.u32 %v4245, 4294901760
        %4247 = vmatpush1.msra.mxu0 %v4246
        %v4248 = vand.u32 %v429, 4294901760
        %v4249 = vsub.f32 %v429, %v4248
        %v4250 = vand.u32 %v4249, 4294901760
        %4251 = vmatprep.subr.mxu0 %v4250
        %v4252 = vand.u32 %v428, 4294901760
        %v4253 = vsub.f32 %v428, %v4252
        %v4254 = vand.u32 %v4253, 4294901760
        %4255 = vmatpush1.msra.mxu0 %v4254
        %v4256 = vand.u32 %v433, 4294901760
        %v4257 = vsub.f32 %v433, %v4256
        %v4258 = vand.u32 %v4257, 4294901760
        %4259 = vmatprep.subr.mxu0 %v4258
        %v4260 = vand.u32 %v432, 4294901760
        %v4261 = vsub.f32 %v432, %v4260
        %v4262 = vand.u32 %v4261, 4294901760
        %4263 = vmatpush1.msra.mxu0 %v4262
        %v4264 = vand.u32 %v437, 4294901760
        %v4265 = vsub.f32 %v437, %v4264
        %v4266 = vand.u32 %v4265, 4294901760
        %4267 = vmatprep.subr.mxu0 %v4266
        %v4268 = vand.u32 %v436, 4294901760
        %v4269 = vsub.f32 %v436, %v4268
        %v4270 = vand.u32 %v4269, 4294901760
        %4271 = vmatpush1.msra.mxu0 %v4270
        %v4272 = vand.u32 %v307, 4294901760
        %4273 = vmatprep.mubr.f32.mxu0 %v4272
        %v4274 = vand.u32 %v306, 4294901760
        %4275 = vmatmul.mubr.f32.gmra.mrb[0].mxu0 %v4274
        %v4276 = vpop.f32.mrb[0].mxu0
        %v4277 = vadd.f32 %v4012, %v4276
        %v4278 = vpop.f32.mrb[0].mxu0
        %v4279 = vadd.f32 %v4014, %v4278
        %4280 = vdwg.mxu0
        %v4281 = vand.u32 %v313, 4294901760
        %4282 = vmatprep.subr.mxu0 %v4281
        %v4283 = vand.u32 %v312, 4294901760
        %4284 = vmatpush1.msra.mxu0 %v4283
        %v4285 = vand.u32 %v317, 4294901760
        %4286 = vmatprep.subr.mxu0 %v4285
        %v4287 = vand.u32 %v316, 4294901760
        %4288 = vmatpush1.msra.mxu0 %v4287
        %v4289 = vand.u32 %v321, 4294901760
        %4290 = vmatprep.subr.mxu0 %v4289
        %v4291 = vand.u32 %v320, 4294901760
        %4292 = vmatpush1.msra.mxu0 %v4291
        %v4293 = vand.u32 %v325, 4294901760
        %4294 = vmatprep.subr.mxu0 %v4293
        %v4295 = vand.u32 %v324, 4294901760
        %4296 = vmatpush1.msra.mxu0 %v4295
        %v4297 = vand.u32 %v329, 4294901760
        %4298 = vmatprep.subr.mxu0 %v4297
        %v4299 = vand.u32 %v328, 4294901760
        %4300 = vmatpush1.msra.mxu0 %v4299
        %v4301 = vand.u32 %v333, 4294901760
        %4302 = vmatprep.subr.mxu0 %v4301
        %v4303 = vand.u32 %v332, 4294901760
        %4304 = vmatpush1.msra.mxu0 %v4303
        %v4305 = vand.u32 %v337, 4294901760
        %4306 = vmatprep.subr.mxu0 %v4305
        %v4307 = vand.u32 %v336, 4294901760
        %4308 = vmatpush1.msra.mxu0 %v4307
        %v4309 = vand.u32 %v341, 4294901760
        %4310 = vmatprep.subr.mxu0 %v4309
        %v4311 = vand.u32 %v340, 4294901760
        %4312 = vmatpush1.msra.mxu0 %v4311
        %v4313 = vand.u32 %v345, 4294901760
        %4314 = vmatprep.subr.mxu0 %v4313
        %v4315 = vand.u32 %v344, 4294901760
        %4316 = vmatpush1.msra.mxu0 %v4315
        %v4317 = vand.u32 %v349, 4294901760
        %4318 = vmatprep.subr.mxu0 %v4317
        %v4319 = vand.u32 %v348, 4294901760
        %4320 = vmatpush1.msra.mxu0 %v4319
        %v4321 = vand.u32 %v353, 4294901760
        %4322 = vmatprep.subr.mxu0 %v4321
        %v4323 = vand.u32 %v352, 4294901760
        %4324 = vmatpush1.msra.mxu0 %v4323
        %v4325 = vand.u32 %v357, 4294901760
        %4326 = vmatprep.subr.mxu0 %v4325
        %v4327 = vand.u32 %v356, 4294901760
        %4328 = vmatpush1.msra.mxu0 %v4327
        %v4329 = vand.u32 %v361, 4294901760
        %4330 = vmatprep.subr.mxu0 %v4329
        %v4331 = vand.u32 %v360, 4294901760
        %4332 = vmatpush1.msra.mxu0 %v4331
        %v4333 = vand.u32 %v365, 4294901760
        %4334 = vmatprep.subr.mxu0 %v4333
        %v4335 = vand.u32 %v364, 4294901760
        %4336 = vmatpush1.msra.mxu0 %v4335
        %v4337 = vand.u32 %v369, 4294901760
        %4338 = vmatprep.subr.mxu0 %v4337
        %v4339 = vand.u32 %v368, 4294901760
        %4340 = vmatpush1.msra.mxu0 %v4339
        %v4341 = vand.u32 %v373, 4294901760
        %4342 = vmatprep.subr.mxu0 %v4341
        %v4343 = vand.u32 %v372, 4294901760
        %4344 = vmatpush1.msra.mxu0 %v4343
        %v4345 = vand.u32 %v377, 4294901760
        %4346 = vmatprep.subr.mxu0 %v4345
        %v4347 = vand.u32 %v376, 4294901760
        %4348 = vmatpush1.msra.mxu0 %v4347
        %v4349 = vand.u32 %v381, 4294901760
        %4350 = vmatprep.subr.mxu0 %v4349
        %v4351 = vand.u32 %v380, 4294901760
        %4352 = vmatpush1.msra.mxu0 %v4351
        %v4353 = vand.u32 %v385, 4294901760
        %4354 = vmatprep.subr.mxu0 %v4353
        %v4355 = vand.u32 %v384, 4294901760
        %4356 = vmatpush1.msra.mxu0 %v4355
        %v4357 = vand.u32 %v389, 4294901760
        %4358 = vmatprep.subr.mxu0 %v4357
        %v4359 = vand.u32 %v388, 4294901760
        %4360 = vmatpush1.msra.mxu0 %v4359
        %v4361 = vand.u32 %v393, 4294901760
        %4362 = vmatprep.subr.mxu0 %v4361
        %v4363 = vand.u32 %v392, 4294901760
        %4364 = vmatpush1.msra.mxu0 %v4363
        %v4365 = vand.u32 %v397, 4294901760
        %4366 = vmatprep.subr.mxu0 %v4365
        %v4367 = vand.u32 %v396, 4294901760
        %4368 = vmatpush1.msra.mxu0 %v4367
        %v4369 = vand.u32 %v401, 4294901760
        %4370 = vmatprep.subr.mxu0 %v4369
        %v4371 = vand.u32 %v400, 4294901760
        %4372 = vmatpush1.msra.mxu0 %v4371
        %v4373 = vand.u32 %v405, 4294901760
        %4374 = vmatprep.subr.mxu0 %v4373
        %v4375 = vand.u32 %v404, 4294901760
        %4376 = vmatpush1.msra.mxu0 %v4375
        %v4377 = vand.u32 %v409, 4294901760
        %4378 = vmatprep.subr.mxu0 %v4377
        %v4379 = vand.u32 %v408, 4294901760
        %4380 = vmatpush1.msra.mxu0 %v4379
        %v4381 = vand.u32 %v413, 4294901760
        %4382 = vmatprep.subr.mxu0 %v4381
        %v4383 = vand.u32 %v412, 4294901760
        %4384 = vmatpush1.msra.mxu0 %v4383
        %v4385 = vand.u32 %v417, 4294901760
        %4386 = vmatprep.subr.mxu0 %v4385
        %v4387 = vand.u32 %v416, 4294901760
        %4388 = vmatpush1.msra.mxu0 %v4387
        %v4389 = vand.u32 %v421, 4294901760
        %4390 = vmatprep.subr.mxu0 %v4389
        %v4391 = vand.u32 %v420, 4294901760
        %4392 = vmatpush1.msra.mxu0 %v4391
        %v4393 = vand.u32 %v425, 4294901760
        %4394 = vmatprep.subr.mxu0 %v4393
        %v4395 = vand.u32 %v424, 4294901760
        %4396 = vmatpush1.msra.mxu0 %v4395
        %v4397 = vand.u32 %v429, 4294901760
        %4398 = vmatprep.subr.mxu0 %v4397
        %v4399 = vand.u32 %v428, 4294901760
        %4400 = vmatpush1.msra.mxu0 %v4399
        %v4401 = vand.u32 %v433, 4294901760
        %4402 = vmatprep.subr.mxu0 %v4401
        %v4403 = vand.u32 %v432, 4294901760
        %4404 = vmatpush1.msra.mxu0 %v4403
        %v4405 = vand.u32 %v437, 4294901760
        %4406 = vmatprep.subr.mxu0 %v4405
        %v4407 = vand.u32 %v436, 4294901760
        %4408 = vmatpush1.msra.mxu0 %v4407
        %v4409 = vand.u32 %v307, 4294901760
        %4410 = vmatprep.mubr.f32.mxu0 %v4409
        %v4411 = vand.u32 %v306, 4294901760
        %4412 = vmatmul.mubr.f32.gmra.mrb[0].mxu0 %v4411
        %v4413 = vpop.f32.mrb[0].mxu0
        %v4414 = vadd.f32 %v4277, %v4413
        %v4415 = vpop.f32.mrb[0].mxu0
        %v4416 = vadd.f32 %v4279, %v4415
        %4417 = vdwg.mxu0
        %v4418 = vand.u32 %v441, 4294901760
        %4419 = vmatprep.subr.mxu0 %v4418
        %v4420 = vand.u32 %v440, 4294901760
        %4421 = vmatpush1.msra.mxu0 %v4420
        %v4422 = vand.u32 %v445, 4294901760
        %4423 = vmatprep.subr.mxu0 %v4422
        %v4424 = vand.u32 %v444, 4294901760
        %4425 = vmatpush1.msra.mxu0 %v4424
        %v4426 = vand.u32 %v449, 4294901760
        %4427 = vmatprep.subr.mxu0 %v4426
        %v4428 = vand.u32 %v448, 4294901760
        %4429 = vmatpush1.msra.mxu0 %v4428
        %v4430 = vand.u32 %v453, 4294901760
        %4431 = vmatprep.subr.mxu0 %v4430
        %v4432 = vand.u32 %v452, 4294901760
        %4433 = vmatpush1.msra.mxu0 %v4432
        %v4434 = vand.u32 %v457, 4294901760
        %4435 = vmatprep.subr.mxu0 %v4434
        %v4436 = vand.u32 %v456, 4294901760
        %4437 = vmatpush1.msra.mxu0 %v4436
        %v4438 = vand.u32 %v461, 4294901760
        %4439 = vmatprep.subr.mxu0 %v4438
        %v4440 = vand.u32 %v460, 4294901760
        %4441 = vmatpush1.msra.mxu0 %v4440
        %v4442 = vand.u32 %v465, 4294901760
        %4443 = vmatprep.subr.mxu0 %v4442
        %v4444 = vand.u32 %v464, 4294901760
        %4445 = vmatpush1.msra.mxu0 %v4444
        %v4446 = vand.u32 %v469, 4294901760
        %4447 = vmatprep.subr.mxu0 %v4446
        %v4448 = vand.u32 %v468, 4294901760
        %4449 = vmatpush1.msra.mxu0 %v4448
        %v4450 = vand.u32 %v473, 4294901760
        %4451 = vmatprep.subr.mxu0 %v4450
        %v4452 = vand.u32 %v472, 4294901760
        %4453 = vmatpush1.msra.mxu0 %v4452
        %v4454 = vand.u32 %v477, 4294901760
        %4455 = vmatprep.subr.mxu0 %v4454
        %v4456 = vand.u32 %v476, 4294901760
        %4457 = vmatpush1.msra.mxu0 %v4456
        %v4458 = vand.u32 %v481, 4294901760
        %4459 = vmatprep.subr.mxu0 %v4458
        %v4460 = vand.u32 %v480, 4294901760
        %4461 = vmatpush1.msra.mxu0 %v4460
        %v4462 = vand.u32 %v485, 4294901760
        %4463 = vmatprep.subr.mxu0 %v4462
        %v4464 = vand.u32 %v484, 4294901760
        %4465 = vmatpush1.msra.mxu0 %v4464
        %v4466 = vand.u32 %v489, 4294901760
        %4467 = vmatprep.subr.mxu0 %v4466
        %v4468 = vand.u32 %v488, 4294901760
        %4469 = vmatpush1.msra.mxu0 %v4468
        %v4470 = vand.u32 %v493, 4294901760
        %4471 = vmatprep.subr.mxu0 %v4470
        %v4472 = vand.u32 %v492, 4294901760
        %4473 = vmatpush1.msra.mxu0 %v4472
        %v4474 = vand.u32 %v497, 4294901760
        %4475 = vmatprep.subr.mxu0 %v4474
        %v4476 = vand.u32 %v496, 4294901760
        %4477 = vmatpush1.msra.mxu0 %v4476
        %v4478 = vand.u32 %v501, 4294901760
        %4479 = vmatprep.subr.mxu0 %v4478
        %v4480 = vand.u32 %v500, 4294901760
        %4481 = vmatpush1.msra.mxu0 %v4480
        %v4482 = vand.u32 %v505, 4294901760
        %4483 = vmatprep.subr.mxu0 %v4482
        %v4484 = vand.u32 %v504, 4294901760
        %4485 = vmatpush1.msra.mxu0 %v4484
        %v4486 = vand.u32 %v509, 4294901760
        %4487 = vmatprep.subr.mxu0 %v4486
        %v4488 = vand.u32 %v508, 4294901760
        %4489 = vmatpush1.msra.mxu0 %v4488
        %v4490 = vand.u32 %v513, 4294901760
        %4491 = vmatprep.subr.mxu0 %v4490
        %v4492 = vand.u32 %v512, 4294901760
        %4493 = vmatpush1.msra.mxu0 %v4492
        %v4494 = vand.u32 %v517, 4294901760
        %4495 = vmatprep.subr.mxu0 %v4494
        %v4496 = vand.u32 %v516, 4294901760
        %4497 = vmatpush1.msra.mxu0 %v4496
        %v4498 = vand.u32 %v521, 4294901760
        %4499 = vmatprep.subr.mxu0 %v4498
        %v4500 = vand.u32 %v520, 4294901760
        %4501 = vmatpush1.msra.mxu0 %v4500
        %v4502 = vand.u32 %v525, 4294901760
        %4503 = vmatprep.subr.mxu0 %v4502
        %v4504 = vand.u32 %v524, 4294901760
        %4505 = vmatpush1.msra.mxu0 %v4504
        %v4506 = vand.u32 %v529, 4294901760
        %4507 = vmatprep.subr.mxu0 %v4506
        %v4508 = vand.u32 %v528, 4294901760
        %4509 = vmatpush1.msra.mxu0 %v4508
        %v4510 = vand.u32 %v533, 4294901760
        %4511 = vmatprep.subr.mxu0 %v4510
        %v4512 = vand.u32 %v532, 4294901760
        %4513 = vmatpush1.msra.mxu0 %v4512
        %v4514 = vand.u32 %v537, 4294901760
        %4515 = vmatprep.subr.mxu0 %v4514
        %v4516 = vand.u32 %v536, 4294901760
        %4517 = vmatpush1.msra.mxu0 %v4516
        %v4518 = vand.u32 %v541, 4294901760
        %4519 = vmatprep.subr.mxu0 %v4518
        %v4520 = vand.u32 %v540, 4294901760
        %4521 = vmatpush1.msra.mxu0 %v4520
        %v4522 = vand.u32 %v545, 4294901760
        %4523 = vmatprep.subr.mxu0 %v4522
        %v4524 = vand.u32 %v544, 4294901760
        %4525 = vmatpush1.msra.mxu0 %v4524
        %v4526 = vand.u32 %v549, 4294901760
        %4527 = vmatprep.subr.mxu0 %v4526
        %v4528 = vand.u32 %v548, 4294901760
        %4529 = vmatpush1.msra.mxu0 %v4528
        %v4530 = vand.u32 %v553, 4294901760
        %4531 = vmatprep.subr.mxu0 %v4530
        %v4532 = vand.u32 %v552, 4294901760
        %4533 = vmatpush1.msra.mxu0 %v4532
        %v4534 = vand.u32 %v557, 4294901760
        %4535 = vmatprep.subr.mxu0 %v4534
        %v4536 = vand.u32 %v556, 4294901760
        %4537 = vmatpush1.msra.mxu0 %v4536
        %v4538 = vand.u32 %v561, 4294901760
        %4539 = vmatprep.subr.mxu0 %v4538
        %v4540 = vand.u32 %v560, 4294901760
        %4541 = vmatpush1.msra.mxu0 %v4540
        %v4542 = vand.u32 %v565, 4294901760
        %4543 = vmatprep.subr.mxu0 %v4542
        %v4544 = vand.u32 %v564, 4294901760
        %4545 = vmatpush1.msra.mxu0 %v4544
        %v4546 = vand.u32 %v309, 4294901760
        %v4547 = vsub.f32 %v309, %v4546
        %v4548 = vand.u32 %v4547, 4294901760
        %v4549 = vsub.f32 %v4547, %v4548
        %v4550 = vand.u32 %v4549, 4294901760
        %4551 = vmatprep.mubr.f32.mxu0 %v4550
        %v4552 = vand.u32 %v308, 4294901760
        %v4553 = vsub.f32 %v308, %v4552
        %v4554 = vand.u32 %v4553, 4294901760
        %v4555 = vsub.f32 %v4553, %v4554
        %v4556 = vand.u32 %v4555, 4294901760
        %4557 = vmatmul.mubr.f32.gmra.mrb[0].mxu0 %v4556
        %v4558 = vpop.f32.mrb[0].mxu0
        %v4559 = vadd.f32 %v4414, %v4558
        %v4560 = vpop.f32.mrb[0].mxu0
        %v4561 = vadd.f32 %v4416, %v4560
        %4562 = vdwg.mxu0
        %v4563 = vand.u32 %v441, 4294901760
        %v4564 = vsub.f32 %v441, %v4563
        %v4565 = vand.u32 %v4564, 4294901760
        %v4566 = vsub.f32 %v4564, %v4565
        %v4567 = vand.u32 %v4566, 4294901760
        %4568 = vmatprep.subr.mxu0 %v4567
        %v4569 = vand.u32 %v440, 4294901760
        %v4570 = vsub.f32 %v440, %v4569
        %v4571 = vand.u32 %v4570, 4294901760
        %v4572 = vsub.f32 %v4570, %v4571
        %v4573 = vand.u32 %v4572, 4294901760
        %4574 = vmatpush1.msra.mxu0 %v4573
        %v4575 = vand.u32 %v445, 4294901760
        %v4576 = vsub.f32 %v445, %v4575
        %v4577 = vand.u32 %v4576, 4294901760
        %v4578 = vsub.f32 %v4576, %v4577
        %v4579 = vand.u32 %v4578, 4294901760
        %4580 = vmatprep.subr.mxu0 %v4579
        %v4581 = vand.u32 %v444, 4294901760
        %v4582 = vsub.f32 %v444, %v4581
        %v4583 = vand.u32 %v4582, 4294901760
        %v4584 = vsub.f32 %v4582, %v4583
        %v4585 = vand.u32 %v4584, 4294901760
        %4586 = vmatpush1.msra.mxu0 %v4585
        %v4587 = vand.u32 %v449, 4294901760
        %v4588 = vsub.f32 %v449, %v4587
        %v4589 = vand.u32 %v4588, 4294901760
        %v4590 = vsub.f32 %v4588, %v4589
        %v4591 = vand.u32 %v4590, 4294901760
        %4592 = vmatprep.subr.mxu0 %v4591
        %v4593 = vand.u32 %v448, 4294901760
        %v4594 = vsub.f32 %v448, %v4593
        %v4595 = vand.u32 %v4594, 4294901760
        %v4596 = vsub.f32 %v4594, %v4595
        %v4597 = vand.u32 %v4596, 4294901760
        %4598 = vmatpush1.msra.mxu0 %v4597
        %v4599 = vand.u32 %v453, 4294901760
        %v4600 = vsub.f32 %v453, %v4599
        %v4601 = vand.u32 %v4600, 4294901760
        %v4602 = vsub.f32 %v4600, %v4601
        %v4603 = vand.u32 %v4602, 4294901760
        %4604 = vmatprep.subr.mxu0 %v4603
        %v4605 = vand.u32 %v452, 4294901760
        %v4606 = vsub.f32 %v452, %v4605
        %v4607 = vand.u32 %v4606, 4294901760
        %v4608 = vsub.f32 %v4606, %v4607
        %v4609 = vand.u32 %v4608, 4294901760
        %4610 = vmatpush1.msra.mxu0 %v4609
        %v4611 = vand.u32 %v457, 4294901760
        %v4612 = vsub.f32 %v457, %v4611
        %v4613 = vand.u32 %v4612, 4294901760
        %v4614 = vsub.f32 %v4612, %v4613
        %v4615 = vand.u32 %v4614, 4294901760
        %4616 = vmatprep.subr.mxu0 %v4615
        %v4617 = vand.u32 %v456, 4294901760
        %v4618 = vsub.f32 %v456, %v4617
        %v4619 = vand.u32 %v4618, 4294901760
        %v4620 = vsub.f32 %v4618, %v4619
        %v4621 = vand.u32 %v4620, 4294901760
        %4622 = vmatpush1.msra.mxu0 %v4621
        %v4623 = vand.u32 %v461, 4294901760
        %v4624 = vsub.f32 %v461, %v4623
        %v4625 = vand.u32 %v4624, 4294901760
        %v4626 = vsub.f32 %v4624, %v4625
        %v4627 = vand.u32 %v4626, 4294901760
        %4628 = vmatprep.subr.mxu0 %v4627
        %v4629 = vand.u32 %v460, 4294901760
        %v4630 = vsub.f32 %v460, %v4629
        %v4631 = vand.u32 %v4630, 4294901760
        %v4632 = vsub.f32 %v4630, %v4631
        %v4633 = vand.u32 %v4632, 4294901760
        %4634 = vmatpush1.msra.mxu0 %v4633
        %v4635 = vand.u32 %v465, 4294901760
        %v4636 = vsub.f32 %v465, %v4635
        %v4637 = vand.u32 %v4636, 4294901760
        %v4638 = vsub.f32 %v4636, %v4637
        %v4639 = vand.u32 %v4638, 4294901760
        %4640 = vmatprep.subr.mxu0 %v4639
        %v4641 = vand.u32 %v464, 4294901760
        %v4642 = vsub.f32 %v464, %v4641
        %v4643 = vand.u32 %v4642, 4294901760
        %v4644 = vsub.f32 %v4642, %v4643
        %v4645 = vand.u32 %v4644, 4294901760
        %4646 = vmatpush1.msra.mxu0 %v4645
        %v4647 = vand.u32 %v469, 4294901760
        %v4648 = vsub.f32 %v469, %v4647
        %v4649 = vand.u32 %v4648, 4294901760
        %v4650 = vsub.f32 %v4648, %v4649
        %v4651 = vand.u32 %v4650, 4294901760
        %4652 = vmatprep.subr.mxu0 %v4651
        %v4653 = vand.u32 %v468, 4294901760
        %v4654 = vsub.f32 %v468, %v4653
        %v4655 = vand.u32 %v4654, 4294901760
        %v4656 = vsub.f32 %v4654, %v4655
        %v4657 = vand.u32 %v4656, 4294901760
        %4658 = vmatpush1.msra.mxu0 %v4657
        %v4659 = vand.u32 %v473, 4294901760
        %v4660 = vsub.f32 %v473, %v4659
        %v4661 = vand.u32 %v4660, 4294901760
        %v4662 = vsub.f32 %v4660, %v4661
        %v4663 = vand.u32 %v4662, 4294901760
        %4664 = vmatprep.subr.mxu0 %v4663
        %v4665 = vand.u32 %v472, 4294901760
        %v4666 = vsub.f32 %v472, %v4665
        %v4667 = vand.u32 %v4666, 4294901760
        %v4668 = vsub.f32 %v4666, %v4667
        %v4669 = vand.u32 %v4668, 4294901760
        %4670 = vmatpush1.msra.mxu0 %v4669
        %v4671 = vand.u32 %v477, 4294901760
        %v4672 = vsub.f32 %v477, %v4671
        %v4673 = vand.u32 %v4672, 4294901760
        %v4674 = vsub.f32 %v4672, %v4673
        %v4675 = vand.u32 %v4674, 4294901760
        %4676 = vmatprep.subr.mxu0 %v4675
        %v4677 = vand.u32 %v476, 4294901760
        %v4678 = vsub.f32 %v476, %v4677
        %v4679 = vand.u32 %v4678, 4294901760
        %v4680 = vsub.f32 %v4678, %v4679
        %v4681 = vand.u32 %v4680, 4294901760
        %4682 = vmatpush1.msra.mxu0 %v4681
        %v4683 = vand.u32 %v481, 4294901760
        %v4684 = vsub.f32 %v481, %v4683
        %v4685 = vand.u32 %v4684, 4294901760
        %v4686 = vsub.f32 %v4684, %v4685
        %v4687 = vand.u32 %v4686, 4294901760
        %4688 = vmatprep.subr.mxu0 %v4687
        %v4689 = vand.u32 %v480, 4294901760
        %v4690 = vsub.f32 %v480, %v4689
        %v4691 = vand.u32 %v4690, 4294901760
        %v4692 = vsub.f32 %v4690, %v4691
        %v4693 = vand.u32 %v4692, 4294901760
        %4694 = vmatpush1.msra.mxu0 %v4693
        %v4695 = vand.u32 %v485, 4294901760
        %v4696 = vsub.f32 %v485, %v4695
        %v4697 = vand.u32 %v4696, 4294901760
        %v4698 = vsub.f32 %v4696, %v4697
        %v4699 = vand.u32 %v4698, 4294901760
        %4700 = vmatprep.subr.mxu0 %v4699
        %v4701 = vand.u32 %v484, 4294901760
        %v4702 = vsub.f32 %v484, %v4701
        %v4703 = vand.u32 %v4702, 4294901760
        %v4704 = vsub.f32 %v4702, %v4703
        %v4705 = vand.u32 %v4704, 4294901760
        %4706 = vmatpush1.msra.mxu0 %v4705
        %v4707 = vand.u32 %v489, 4294901760
        %v4708 = vsub.f32 %v489, %v4707
        %v4709 = vand.u32 %v4708, 4294901760
        %v4710 = vsub.f32 %v4708, %v4709
        %v4711 = vand.u32 %v4710, 4294901760
        %4712 = vmatprep.subr.mxu0 %v4711
        %v4713 = vand.u32 %v488, 4294901760
        %v4714 = vsub.f32 %v488, %v4713
        %v4715 = vand.u32 %v4714, 4294901760
        %v4716 = vsub.f32 %v4714, %v4715
        %v4717 = vand.u32 %v4716, 4294901760
        %4718 = vmatpush1.msra.mxu0 %v4717
        %v4719 = vand.u32 %v493, 4294901760
        %v4720 = vsub.f32 %v493, %v4719
        %v4721 = vand.u32 %v4720, 4294901760
        %v4722 = vsub.f32 %v4720, %v4721
        %v4723 = vand.u32 %v4722, 4294901760
        %4724 = vmatprep.subr.mxu0 %v4723
        %v4725 = vand.u32 %v492, 4294901760
        %v4726 = vsub.f32 %v492, %v4725
        %v4727 = vand.u32 %v4726, 4294901760
        %v4728 = vsub.f32 %v4726, %v4727
        %v4729 = vand.u32 %v4728, 4294901760
        %4730 = vmatpush1.msra.mxu0 %v4729
        %v4731 = vand.u32 %v497, 4294901760
        %v4732 = vsub.f32 %v497, %v4731
        %v4733 = vand.u32 %v4732, 4294901760
        %v4734 = vsub.f32 %v4732, %v4733
        %v4735 = vand.u32 %v4734, 4294901760
        %4736 = vmatprep.subr.mxu0 %v4735
        %v4737 = vand.u32 %v496, 4294901760
        %v4738 = vsub.f32 %v496, %v4737
        %v4739 = vand.u32 %v4738, 4294901760
        %v4740 = vsub.f32 %v4738, %v4739
        %v4741 = vand.u32 %v4740, 4294901760
        %4742 = vmatpush1.msra.mxu0 %v4741
        %v4743 = vand.u32 %v501, 4294901760
        %v4744 = vsub.f32 %v501, %v4743
        %v4745 = vand.u32 %v4744, 4294901760
        %v4746 = vsub.f32 %v4744, %v4745
        %v4747 = vand.u32 %v4746, 4294901760
        %4748 = vmatprep.subr.mxu0 %v4747
        %v4749 = vand.u32 %v500, 4294901760
        %v4750 = vsub.f32 %v500, %v4749
        %v4751 = vand.u32 %v4750, 4294901760
        %v4752 = vsub.f32 %v4750, %v4751
        %v4753 = vand.u32 %v4752, 4294901760
        %4754 = vmatpush1.msra.mxu0 %v4753
        %v4755 = vand.u32 %v505, 4294901760
        %v4756 = vsub.f32 %v505, %v4755
        %v4757 = vand.u32 %v4756, 4294901760
        %v4758 = vsub.f32 %v4756, %v4757
        %v4759 = vand.u32 %v4758, 4294901760
        %4760 = vmatprep.subr.mxu0 %v4759
        %v4761 = vand.u32 %v504, 4294901760
        %v4762 = vsub.f32 %v504, %v4761
        %v4763 = vand.u32 %v4762, 4294901760
        %v4764 = vsub.f32 %v4762, %v4763
        %v4765 = vand.u32 %v4764, 4294901760
        %4766 = vmatpush1.msra.mxu0 %v4765
        %v4767 = vand.u32 %v509, 4294901760
        %v4768 = vsub.f32 %v509, %v4767
        %v4769 = vand.u32 %v4768, 4294901760
        %v4770 = vsub.f32 %v4768, %v4769
        %v4771 = vand.u32 %v4770, 4294901760
        %4772 = vmatprep.subr.mxu0 %v4771
        %v4773 = vand.u32 %v508, 4294901760
        %v4774 = vsub.f32 %v508, %v4773
        %v4775 = vand.u32 %v4774, 4294901760
        %v4776 = vsub.f32 %v4774, %v4775
        %v4777 = vand.u32 %v4776, 4294901760
        %4778 = vmatpush1.msra.mxu0 %v4777
        %v4779 = vand.u32 %v513, 4294901760
        %v4780 = vsub.f32 %v513, %v4779
        %v4781 = vand.u32 %v4780, 4294901760
        %v4782 = vsub.f32 %v4780, %v4781
        %v4783 = vand.u32 %v4782, 4294901760
        %4784 = vmatprep.subr.mxu0 %v4783
        %v4785 = vand.u32 %v512, 4294901760
        %v4786 = vsub.f32 %v512, %v4785
        %v4787 = vand.u32 %v4786, 4294901760
        %v4788 = vsub.f32 %v4786, %v4787
        %v4789 = vand.u32 %v4788, 4294901760
        %4790 = vmatpush1.msra.mxu0 %v4789
        %v4791 = vand.u32 %v517, 4294901760
        %v4792 = vsub.f32 %v517, %v4791
        %v4793 = vand.u32 %v4792, 4294901760
        %v4794 = vsub.f32 %v4792, %v4793
        %v4795 = vand.u32 %v4794, 4294901760
        %4796 = vmatprep.subr.mxu0 %v4795
        %v4797 = vand.u32 %v516, 4294901760
        %v4798 = vsub.f32 %v516, %v4797
        %v4799 = vand.u32 %v4798, 4294901760
        %v4800 = vsub.f32 %v4798, %v4799
        %v4801 = vand.u32 %v4800, 4294901760
        %4802 = vmatpush1.msra.mxu0 %v4801
        %v4803 = vand.u32 %v521, 4294901760
        %v4804 = vsub.f32 %v521, %v4803
        %v4805 = vand.u32 %v4804, 4294901760
        %v4806 = vsub.f32 %v4804, %v4805
        %v4807 = vand.u32 %v4806, 4294901760
        %4808 = vmatprep.subr.mxu0 %v4807
        %v4809 = vand.u32 %v520, 4294901760
        %v4810 = vsub.f32 %v520, %v4809
        %v4811 = vand.u32 %v4810, 4294901760
        %v4812 = vsub.f32 %v4810, %v4811
        %v4813 = vand.u32 %v4812, 4294901760
        %4814 = vmatpush1.msra.mxu0 %v4813
        %v4815 = vand.u32 %v525, 4294901760
        %v4816 = vsub.f32 %v525, %v4815
        %v4817 = vand.u32 %v4816, 4294901760
        %v4818 = vsub.f32 %v4816, %v4817
        %v4819 = vand.u32 %v4818, 4294901760
        %4820 = vmatprep.subr.mxu0 %v4819
        %v4821 = vand.u32 %v524, 4294901760
        %v4822 = vsub.f32 %v524, %v4821
        %v4823 = vand.u32 %v4822, 4294901760
        %v4824 = vsub.f32 %v4822, %v4823
        %v4825 = vand.u32 %v4824, 4294901760
        %4826 = vmatpush1.msra.mxu0 %v4825
        %v4827 = vand.u32 %v529, 4294901760
        %v4828 = vsub.f32 %v529, %v4827
        %v4829 = vand.u32 %v4828, 4294901760
        %v4830 = vsub.f32 %v4828, %v4829
        %v4831 = vand.u32 %v4830, 4294901760
        %4832 = vmatprep.subr.mxu0 %v4831
        %v4833 = vand.u32 %v528, 4294901760
        %v4834 = vsub.f32 %v528, %v4833
        %v4835 = vand.u32 %v4834, 4294901760
        %v4836 = vsub.f32 %v4834, %v4835
        %v4837 = vand.u32 %v4836, 4294901760
        %4838 = vmatpush1.msra.mxu0 %v4837
        %v4839 = vand.u32 %v533, 4294901760
        %v4840 = vsub.f32 %v533, %v4839
        %v4841 = vand.u32 %v4840, 4294901760
        %v4842 = vsub.f32 %v4840, %v4841
        %v4843 = vand.u32 %v4842, 4294901760
        %4844 = vmatprep.subr.mxu0 %v4843
        %v4845 = vand.u32 %v532, 4294901760
        %v4846 = vsub.f32 %v532, %v4845
        %v4847 = vand.u32 %v4846, 4294901760
        %v4848 = vsub.f32 %v4846, %v4847
        %v4849 = vand.u32 %v4848, 4294901760
        %4850 = vmatpush1.msra.mxu0 %v4849
        %v4851 = vand.u32 %v537, 4294901760
        %v4852 = vsub.f32 %v537, %v4851
        %v4853 = vand.u32 %v4852, 4294901760
        %v4854 = vsub.f32 %v4852, %v4853
        %v4855 = vand.u32 %v4854, 4294901760
        %4856 = vmatprep.subr.mxu0 %v4855
        %v4857 = vand.u32 %v536, 4294901760
        %v4858 = vsub.f32 %v536, %v4857
        %v4859 = vand.u32 %v4858, 4294901760
        %v4860 = vsub.f32 %v4858, %v4859
        %v4861 = vand.u32 %v4860, 4294901760
        %4862 = vmatpush1.msra.mxu0 %v4861
        %v4863 = vand.u32 %v541, 4294901760
        %v4864 = vsub.f32 %v541, %v4863
        %v4865 = vand.u32 %v4864, 4294901760
        %v4866 = vsub.f32 %v4864, %v4865
        %v4867 = vand.u32 %v4866, 4294901760
        %4868 = vmatprep.subr.mxu0 %v4867
        %v4869 = vand.u32 %v540, 4294901760
        %v4870 = vsub.f32 %v540, %v4869
        %v4871 = vand.u32 %v4870, 4294901760
        %v4872 = vsub.f32 %v4870, %v4871
        %v4873 = vand.u32 %v4872, 4294901760
        %4874 = vmatpush1.msra.mxu0 %v4873
        %v4875 = vand.u32 %v545, 4294901760
        %v4876 = vsub.f32 %v545, %v4875
        %v4877 = vand.u32 %v4876, 4294901760
        %v4878 = vsub.f32 %v4876, %v4877
        %v4879 = vand.u32 %v4878, 4294901760
        %4880 = vmatprep.subr.mxu0 %v4879
        %v4881 = vand.u32 %v544, 4294901760
        %v4882 = vsub.f32 %v544, %v4881
        %v4883 = vand.u32 %v4882, 4294901760
        %v4884 = vsub.f32 %v4882, %v4883
        %v4885 = vand.u32 %v4884, 4294901760
        %4886 = vmatpush1.msra.mxu0 %v4885
        %v4887 = vand.u32 %v549, 4294901760
        %v4888 = vsub.f32 %v549, %v4887
        %v4889 = vand.u32 %v4888, 4294901760
        %v4890 = vsub.f32 %v4888, %v4889
        %v4891 = vand.u32 %v4890, 4294901760
        %4892 = vmatprep.subr.mxu0 %v4891
        %v4893 = vand.u32 %v548, 4294901760
        %v4894 = vsub.f32 %v548, %v4893
        %v4895 = vand.u32 %v4894, 4294901760
        %v4896 = vsub.f32 %v4894, %v4895
        %v4897 = vand.u32 %v4896, 4294901760
        %4898 = vmatpush1.msra.mxu0 %v4897
        %v4899 = vand.u32 %v553, 4294901760
        %v4900 = vsub.f32 %v553, %v4899
        %v4901 = vand.u32 %v4900, 4294901760
        %v4902 = vsub.f32 %v4900, %v4901
        %v4903 = vand.u32 %v4902, 4294901760
        %4904 = vmatprep.subr.mxu0 %v4903
        %v4905 = vand.u32 %v552, 4294901760
        %v4906 = vsub.f32 %v552, %v4905
        %v4907 = vand.u32 %v4906, 4294901760
        %v4908 = vsub.f32 %v4906, %v4907
        %v4909 = vand.u32 %v4908, 4294901760
        %4910 = vmatpush1.msra.mxu0 %v4909
        %v4911 = vand.u32 %v557, 4294901760
        %v4912 = vsub.f32 %v557, %v4911
        %v4913 = vand.u32 %v4912, 4294901760
        %v4914 = vsub.f32 %v4912, %v4913
        %v4915 = vand.u32 %v4914, 4294901760
        %4916 = vmatprep.subr.mxu0 %v4915
        %v4917 = vand.u32 %v556, 4294901760
        %v4918 = vsub.f32 %v556, %v4917
        %v4919 = vand.u32 %v4918, 4294901760
        %v4920 = vsub.f32 %v4918, %v4919
        %v4921 = vand.u32 %v4920, 4294901760
        %4922 = vmatpush1.msra.mxu0 %v4921
        %v4923 = vand.u32 %v561, 4294901760
        %v4924 = vsub.f32 %v561, %v4923
        %v4925 = vand.u32 %v4924, 4294901760
        %v4926 = vsub.f32 %v4924, %v4925
        %v4927 = vand.u32 %v4926, 4294901760
        %4928 = vmatprep.subr.mxu0 %v4927
        %v4929 = vand.u32 %v560, 4294901760
        %v4930 = vsub.f32 %v560, %v4929
        %v4931 = vand.u32 %v4930, 4294901760
        %v4932 = vsub.f32 %v4930, %v4931
        %v4933 = vand.u32 %v4932, 4294901760
        %4934 = vmatpush1.msra.mxu0 %v4933
        %v4935 = vand.u32 %v565, 4294901760
        %v4936 = vsub.f32 %v565, %v4935
        %v4937 = vand.u32 %v4936, 4294901760
        %v4938 = vsub.f32 %v4936, %v4937
        %v4939 = vand.u32 %v4938, 4294901760
        %4940 = vmatprep.subr.mxu0 %v4939
        %v4941 = vand.u32 %v564, 4294901760
        %v4942 = vsub.f32 %v564, %v4941
        %v4943 = vand.u32 %v4942, 4294901760
        %v4944 = vsub.f32 %v4942, %v4943
        %v4945 = vand.u32 %v4944, 4294901760
        %4946 = vmatpush1.msra.mxu0 %v4945
        %v4947 = vand.u32 %v309, 4294901760
        %4948 = vmatprep.mubr.f32.mxu0 %v4947
        %v4949 = vand.u32 %v308, 4294901760
        %4950 = vmatmul.mubr.f32.gmra.mrb[0].mxu0 %v4949
        %v4951 = vpop.f32.mrb[0].mxu0
        %v4952 = vadd.f32 %v4559, %v4951
        %v4953 = vpop.f32.mrb[0].mxu0
        %v4954 = vadd.f32 %v4561, %v4953
        %4955 = vdwg.mxu0
        %v4956 = vand.u32 %v441, 4294901760
        %v4957 = vsub.f32 %v441, %v4956
        %4958 = vmatprep.subr.mxu0 %v4957
        %v4959 = vand.u32 %v440, 4294901760
        %v4960 = vsub.f32 %v440, %v4959
        %4961 = vmatpush1.msra.mxu0 %v4960
        %v4962 = vand.u32 %v445, 4294901760
        %v4963 = vsub.f32 %v445, %v4962
        %4964 = vmatprep.subr.mxu0 %v4963
        %v4965 = vand.u32 %v444, 4294901760
        %v4966 = vsub.f32 %v444, %v4965
        %4967 = vmatpush1.msra.mxu0 %v4966
        %v4968 = vand.u32 %v449, 4294901760
        %v4969 = vsub.f32 %v449, %v4968
        %4970 = vmatprep.subr.mxu0 %v4969
        %v4971 = vand.u32 %v448, 4294901760
        %v4972 = vsub.f32 %v448, %v4971
        %4973 = vmatpush1.msra.mxu0 %v4972
        %v4974 = vand.u32 %v453, 4294901760
        %v4975 = vsub.f32 %v453, %v4974
        %4976 = vmatprep.subr.mxu0 %v4975
        %v4977 = vand.u32 %v452, 4294901760
        %v4978 = vsub.f32 %v452, %v4977
        %4979 = vmatpush1.msra.mxu0 %v4978
        %v4980 = vand.u32 %v457, 4294901760
        %v4981 = vsub.f32 %v457, %v4980
        %4982 = vmatprep.subr.mxu0 %v4981
        %v4983 = vand.u32 %v456, 4294901760
        %v4984 = vsub.f32 %v456, %v4983
        %4985 = vmatpush1.msra.mxu0 %v4984
        %v4986 = vand.u32 %v461, 4294901760
        %v4987 = vsub.f32 %v461, %v4986
        %4988 = vmatprep.subr.mxu0 %v4987
        %v4989 = vand.u32 %v460, 4294901760
        %v4990 = vsub.f32 %v460, %v4989
        %4991 = vmatpush1.msra.mxu0 %v4990
        %v4992 = vand.u32 %v465, 4294901760
        %v4993 = vsub.f32 %v465, %v4992
        %4994 = vmatprep.subr.mxu0 %v4993
        %v4995 = vand.u32 %v464, 4294901760
        %v4996 = vsub.f32 %v464, %v4995
        %4997 = vmatpush1.msra.mxu0 %v4996
        %v4998 = vand.u32 %v469, 4294901760
        %v4999 = vsub.f32 %v469, %v4998
        %5000 = vmatprep.subr.mxu0 %v4999
        %v5001 = vand.u32 %v468, 4294901760
        %v5002 = vsub.f32 %v468, %v5001
        %5003 = vmatpush1.msra.mxu0 %v5002
        %v5004 = vand.u32 %v473, 4294901760
        %v5005 = vsub.f32 %v473, %v5004
        %5006 = vmatprep.subr.mxu0 %v5005
        %v5007 = vand.u32 %v472, 4294901760
        %v5008 = vsub.f32 %v472, %v5007
        %5009 = vmatpush1.msra.mxu0 %v5008
        %v5010 = vand.u32 %v477, 4294901760
        %v5011 = vsub.f32 %v477, %v5010
        %5012 = vmatprep.subr.mxu0 %v5011
        %v5013 = vand.u32 %v476, 4294901760
        %v5014 = vsub.f32 %v476, %v5013
        %5015 = vmatpush1.msra.mxu0 %v5014
        %v5016 = vand.u32 %v481, 4294901760
        %v5017 = vsub.f32 %v481, %v5016
        %5018 = vmatprep.subr.mxu0 %v5017
        %v5019 = vand.u32 %v480, 4294901760
        %v5020 = vsub.f32 %v480, %v5019
        %5021 = vmatpush1.msra.mxu0 %v5020
        %v5022 = vand.u32 %v485, 4294901760
        %v5023 = vsub.f32 %v485, %v5022
        %5024 = vmatprep.subr.mxu0 %v5023
        %v5025 = vand.u32 %v484, 4294901760
        %v5026 = vsub.f32 %v484, %v5025
        %5027 = vmatpush1.msra.mxu0 %v5026
        %v5028 = vand.u32 %v489, 4294901760
        %v5029 = vsub.f32 %v489, %v5028
        %5030 = vmatprep.subr.mxu0 %v5029
        %v5031 = vand.u32 %v488, 4294901760
        %v5032 = vsub.f32 %v488, %v5031
        %5033 = vmatpush1.msra.mxu0 %v5032
        %v5034 = vand.u32 %v493, 4294901760
        %v5035 = vsub.f32 %v493, %v5034
        %5036 = vmatprep.subr.mxu0 %v5035
        %v5037 = vand.u32 %v492, 4294901760
        %v5038 = vsub.f32 %v492, %v5037
        %5039 = vmatpush1.msra.mxu0 %v5038
        %v5040 = vand.u32 %v497, 4294901760
        %v5041 = vsub.f32 %v497, %v5040
        %5042 = vmatprep.subr.mxu0 %v5041
        %v5043 = vand.u32 %v496, 4294901760
        %v5044 = vsub.f32 %v496, %v5043
        %5045 = vmatpush1.msra.mxu0 %v5044
        %v5046 = vand.u32 %v501, 4294901760
        %v5047 = vsub.f32 %v501, %v5046
        %5048 = vmatprep.subr.mxu0 %v5047
        %v5049 = vand.u32 %v500, 4294901760
        %v5050 = vsub.f32 %v500, %v5049
        %5051 = vmatpush1.msra.mxu0 %v5050
        %v5052 = vand.u32 %v505, 4294901760
        %v5053 = vsub.f32 %v505, %v5052
        %5054 = vmatprep.subr.mxu0 %v5053
        %v5055 = vand.u32 %v504, 4294901760
        %v5056 = vsub.f32 %v504, %v5055
        %5057 = vmatpush1.msra.mxu0 %v5056
        %v5058 = vand.u32 %v509, 4294901760
        %v5059 = vsub.f32 %v509, %v5058
        %5060 = vmatprep.subr.mxu0 %v5059
        %v5061 = vand.u32 %v508, 4294901760
        %v5062 = vsub.f32 %v508, %v5061
        %5063 = vmatpush1.msra.mxu0 %v5062
        %v5064 = vand.u32 %v513, 4294901760
        %v5065 = vsub.f32 %v513, %v5064
        %5066 = vmatprep.subr.mxu0 %v5065
        %v5067 = vand.u32 %v512, 4294901760
        %v5068 = vsub.f32 %v512, %v5067
        %5069 = vmatpush1.msra.mxu0 %v5068
        %v5070 = vand.u32 %v517, 4294901760
        %v5071 = vsub.f32 %v517, %v5070
        %5072 = vmatprep.subr.mxu0 %v5071
        %v5073 = vand.u32 %v516, 4294901760
        %v5074 = vsub.f32 %v516, %v5073
        %5075 = vmatpush1.msra.mxu0 %v5074
        %v5076 = vand.u32 %v521, 4294901760
        %v5077 = vsub.f32 %v521, %v5076
        %5078 = vmatprep.subr.mxu0 %v5077
        %v5079 = vand.u32 %v520, 4294901760
        %v5080 = vsub.f32 %v520, %v5079
        %5081 = vmatpush1.msra.mxu0 %v5080
        %v5082 = vand.u32 %v525, 4294901760
        %v5083 = vsub.f32 %v525, %v5082
        %5084 = vmatprep.subr.mxu0 %v5083
        %v5085 = vand.u32 %v524, 4294901760
        %v5086 = vsub.f32 %v524, %v5085
        %5087 = vmatpush1.msra.mxu0 %v5086
        %v5088 = vand.u32 %v529, 4294901760
        %v5089 = vsub.f32 %v529, %v5088
        %5090 = vmatprep.subr.mxu0 %v5089
        %v5091 = vand.u32 %v528, 4294901760
        %v5092 = vsub.f32 %v528, %v5091
        %5093 = vmatpush1.msra.mxu0 %v5092
        %v5094 = vand.u32 %v533, 4294901760
        %v5095 = vsub.f32 %v533, %v5094
        %5096 = vmatprep.subr.mxu0 %v5095
        %v5097 = vand.u32 %v532, 4294901760
        %v5098 = vsub.f32 %v532, %v5097
        %5099 = vmatpush1.msra.mxu0 %v5098
        %v5100 = vand.u32 %v537, 4294901760
        %v5101 = vsub.f32 %v537, %v5100
        %5102 = vmatprep.subr.mxu0 %v5101
        %v5103 = vand.u32 %v536, 4294901760
        %v5104 = vsub.f32 %v536, %v5103
        %5105 = vmatpush1.msra.mxu0 %v5104
        %v5106 = vand.u32 %v541, 4294901760
        %v5107 = vsub.f32 %v541, %v5106
        %5108 = vmatprep.subr.mxu0 %v5107
        %v5109 = vand.u32 %v540, 4294901760
        %v5110 = vsub.f32 %v540, %v5109
        %5111 = vmatpush1.msra.mxu0 %v5110
        %v5112 = vand.u32 %v545, 4294901760
        %v5113 = vsub.f32 %v545, %v5112
        %5114 = vmatprep.subr.mxu0 %v5113
        %v5115 = vand.u32 %v544, 4294901760
        %v5116 = vsub.f32 %v544, %v5115
        %5117 = vmatpush1.msra.mxu0 %v5116
        %v5118 = vand.u32 %v549, 4294901760
        %v5119 = vsub.f32 %v549, %v5118
        %5120 = vmatprep.subr.mxu0 %v5119
        %v5121 = vand.u32 %v548, 4294901760
        %v5122 = vsub.f32 %v548, %v5121
        %5123 = vmatpush1.msra.mxu0 %v5122
        %v5124 = vand.u32 %v553, 4294901760
        %v5125 = vsub.f32 %v553, %v5124
        %5126 = vmatprep.subr.mxu0 %v5125
        %v5127 = vand.u32 %v552, 4294901760
        %v5128 = vsub.f32 %v552, %v5127
        %5129 = vmatpush1.msra.mxu0 %v5128
        %v5130 = vand.u32 %v557, 4294901760
        %v5131 = vsub.f32 %v557, %v5130
        %5132 = vmatprep.subr.mxu0 %v5131
        %v5133 = vand.u32 %v556, 4294901760
        %v5134 = vsub.f32 %v556, %v5133
        %5135 = vmatpush1.msra.mxu0 %v5134
        %v5136 = vand.u32 %v561, 4294901760
        %v5137 = vsub.f32 %v561, %v5136
        %5138 = vmatprep.subr.mxu0 %v5137
        %v5139 = vand.u32 %v560, 4294901760
        %v5140 = vsub.f32 %v560, %v5139
        %5141 = vmatpush1.msra.mxu0 %v5140
        %v5142 = vand.u32 %v565, 4294901760
        %v5143 = vsub.f32 %v565, %v5142
        %5144 = vmatprep.subr.mxu0 %v5143
        %v5145 = vand.u32 %v564, 4294901760
        %v5146 = vsub.f32 %v564, %v5145
        %5147 = vmatpush1.msra.mxu0 %v5146
        %v5148 = vand.u32 %v309, 4294901760
        %v5149 = vsub.f32 %v309, %v5148
        %5150 = vmatprep.mubr.f32.mxu0 %v5149
        %v5151 = vand.u32 %v308, 4294901760
        %v5152 = vsub.f32 %v308, %v5151
        %5153 = vmatmul.mubr.f32.gmra.mrb[0].mxu0 %v5152
        %v5154 = vpop.f32.mrb[0].mxu0
        %v5155 = vadd.f32 %v4952, %v5154
        %v5156 = vpop.f32.mrb[0].mxu0
        %v5157 = vadd.f32 %v4954, %v5156
        %5158 = vdwg.mxu0
        %v5159 = vand.u32 %v441, 4294901760
        %5160 = vmatprep.subr.mxu0 %v5159
        %v5161 = vand.u32 %v440, 4294901760
        %5162 = vmatpush1.msra.mxu0 %v5161
        %v5163 = vand.u32 %v445, 4294901760
        %5164 = vmatprep.subr.mxu0 %v5163
        %v5165 = vand.u32 %v444, 4294901760
        %5166 = vmatpush1.msra.mxu0 %v5165
        %v5167 = vand.u32 %v449, 4294901760
        %5168 = vmatprep.subr.mxu0 %v5167
        %v5169 = vand.u32 %v448, 4294901760
        %5170 = vmatpush1.msra.mxu0 %v5169
        %v5171 = vand.u32 %v453, 4294901760
        %5172 = vmatprep.subr.mxu0 %v5171
        %v5173 = vand.u32 %v452, 4294901760
        %5174 = vmatpush1.msra.mxu0 %v5173
        %v5175 = vand.u32 %v457, 4294901760
        %5176 = vmatprep.subr.mxu0 %v5175
        %v5177 = vand.u32 %v456, 4294901760
        %5178 = vmatpush1.msra.mxu0 %v5177
        %v5179 = vand.u32 %v461, 4294901760
        %5180 = vmatprep.subr.mxu0 %v5179
        %v5181 = vand.u32 %v460, 4294901760
        %5182 = vmatpush1.msra.mxu0 %v5181
        %v5183 = vand.u32 %v465, 4294901760
        %5184 = vmatprep.subr.mxu0 %v5183
        %v5185 = vand.u32 %v464, 4294901760
        %5186 = vmatpush1.msra.mxu0 %v5185
        %v5187 = vand.u32 %v469, 4294901760
        %5188 = vmatprep.subr.mxu0 %v5187
        %v5189 = vand.u32 %v468, 4294901760
        %5190 = vmatpush1.msra.mxu0 %v5189
        %v5191 = vand.u32 %v473, 4294901760
        %5192 = vmatprep.subr.mxu0 %v5191
        %v5193 = vand.u32 %v472, 4294901760
        %5194 = vmatpush1.msra.mxu0 %v5193
        %v5195 = vand.u32 %v477, 4294901760
        %5196 = vmatprep.subr.mxu0 %v5195
        %v5197 = vand.u32 %v476, 4294901760
        %5198 = vmatpush1.msra.mxu0 %v5197
        %v5199 = vand.u32 %v481, 4294901760
        %5200 = vmatprep.subr.mxu0 %v5199
        %v5201 = vand.u32 %v480, 4294901760
        %5202 = vmatpush1.msra.mxu0 %v5201
        %v5203 = vand.u32 %v485, 4294901760
        %5204 = vmatprep.subr.mxu0 %v5203
        %v5205 = vand.u32 %v484, 4294901760
        %5206 = vmatpush1.msra.mxu0 %v5205
        %v5207 = vand.u32 %v489, 4294901760
        %5208 = vmatprep.subr.mxu0 %v5207
        %v5209 = vand.u32 %v488, 4294901760
        %5210 = vmatpush1.msra.mxu0 %v5209
        %v5211 = vand.u32 %v493, 4294901760
        %5212 = vmatprep.subr.mxu0 %v5211
        %v5213 = vand.u32 %v492, 4294901760
        %5214 = vmatpush1.msra.mxu0 %v5213
        %v5215 = vand.u32 %v497, 4294901760
        %5216 = vmatprep.subr.mxu0 %v5215
        %v5217 = vand.u32 %v496, 4294901760
        %5218 = vmatpush1.msra.mxu0 %v5217
        %v5219 = vand.u32 %v501, 4294901760
        %5220 = vmatprep.subr.mxu0 %v5219
        %v5221 = vand.u32 %v500, 4294901760
        %5222 = vmatpush1.msra.mxu0 %v5221
        %v5223 = vand.u32 %v505, 4294901760
        %5224 = vmatprep.subr.mxu0 %v5223
        %v5225 = vand.u32 %v504, 4294901760
        %5226 = vmatpush1.msra.mxu0 %v5225
        %v5227 = vand.u32 %v509, 4294901760
        %5228 = vmatprep.subr.mxu0 %v5227
        %v5229 = vand.u32 %v508, 4294901760
        %5230 = vmatpush1.msra.mxu0 %v5229
        %v5231 = vand.u32 %v513, 4294901760
        %5232 = vmatprep.subr.mxu0 %v5231
        %v5233 = vand.u32 %v512, 4294901760
        %5234 = vmatpush1.msra.mxu0 %v5233
        %v5235 = vand.u32 %v517, 4294901760
        %5236 = vmatprep.subr.mxu0 %v5235
        %v5237 = vand.u32 %v516, 4294901760
        %5238 = vmatpush1.msra.mxu0 %v5237
        %v5239 = vand.u32 %v521, 4294901760
        %5240 = vmatprep.subr.mxu0 %v5239
        %v5241 = vand.u32 %v520, 4294901760
        %5242 = vmatpush1.msra.mxu0 %v5241
        %v5243 = vand.u32 %v525, 4294901760
        %5244 = vmatprep.subr.mxu0 %v5243
        %v5245 = vand.u32 %v524, 4294901760
        %5246 = vmatpush1.msra.mxu0 %v5245
        %v5247 = vand.u32 %v529, 4294901760
        %5248 = vmatprep.subr.mxu0 %v5247
        %v5249 = vand.u32 %v528, 4294901760
        %5250 = vmatpush1.msra.mxu0 %v5249
        %v5251 = vand.u32 %v533, 4294901760
        %5252 = vmatprep.subr.mxu0 %v5251
        %v5253 = vand.u32 %v532, 4294901760
        %5254 = vmatpush1.msra.mxu0 %v5253
        %v5255 = vand.u32 %v537, 4294901760
        %5256 = vmatprep.subr.mxu0 %v5255
        %v5257 = vand.u32 %v536, 4294901760
        %5258 = vmatpush1.msra.mxu0 %v5257
        %v5259 = vand.u32 %v541, 4294901760
        %5260 = vmatprep.subr.mxu0 %v5259
        %v5261 = vand.u32 %v540, 4294901760
        %5262 = vmatpush1.msra.mxu0 %v5261
        %v5263 = vand.u32 %v545, 4294901760
        %5264 = vmatprep.subr.mxu0 %v5263
        %v5265 = vand.u32 %v544, 4294901760
        %5266 = vmatpush1.msra.mxu0 %v5265
        %v5267 = vand.u32 %v549, 4294901760
        %5268 = vmatprep.subr.mxu0 %v5267
        %v5269 = vand.u32 %v548, 4294901760
        %5270 = vmatpush1.msra.mxu0 %v5269
        %v5271 = vand.u32 %v553, 4294901760
        %5272 = vmatprep.subr.mxu0 %v5271
        %v5273 = vand.u32 %v552, 4294901760
        %5274 = vmatpush1.msra.mxu0 %v5273
        %v5275 = vand.u32 %v557, 4294901760
        %5276 = vmatprep.subr.mxu0 %v5275
        %v5277 = vand.u32 %v556, 4294901760
        %5278 = vmatpush1.msra.mxu0 %v5277
        %v5279 = vand.u32 %v561, 4294901760
        %5280 = vmatprep.subr.mxu0 %v5279
        %v5281 = vand.u32 %v560, 4294901760
        %5282 = vmatpush1.msra.mxu0 %v5281
        %v5283 = vand.u32 %v565, 4294901760
        %5284 = vmatprep.subr.mxu0 %v5283
        %v5285 = vand.u32 %v564, 4294901760
        %5286 = vmatpush1.msra.mxu0 %v5285
        %v5287 = vand.u32 %v309, 4294901760
        %v5288 = vsub.f32 %v309, %v5287
        %v5289 = vand.u32 %v5288, 4294901760
        %5290 = vmatprep.mubr.f32.mxu0 %v5289
        %v5291 = vand.u32 %v308, 4294901760
        %v5292 = vsub.f32 %v308, %v5291
        %v5293 = vand.u32 %v5292, 4294901760
        %5294 = vmatmul.mubr.f32.gmra.mrb[0].mxu0 %v5293
        %v5295 = vpop.f32.mrb[0].mxu0
        %v5296 = vadd.f32 %v5155, %v5295
        %v5297 = vpop.f32.mrb[0].mxu0
        %v5298 = vadd.f32 %v5157, %v5297
        %5299 = vdwg.mxu0
        %v5300 = vand.u32 %v441, 4294901760
        %v5301 = vsub.f32 %v441, %v5300
        %v5302 = vand.u32 %v5301, 4294901760
        %5303 = vmatprep.subr.mxu0 %v5302
        %v5304 = vand.u32 %v440, 4294901760
        %v5305 = vsub.f32 %v440, %v5304
        %v5306 = vand.u32 %v5305, 4294901760
        %5307 = vmatpush1.msra.mxu0 %v5306
        %v5308 = vand.u32 %v445, 4294901760
        %v5309 = vsub.f32 %v445, %v5308
        %v5310 = vand.u32 %v5309, 4294901760
        %5311 = vmatprep.subr.mxu0 %v5310
        %v5312 = vand.u32 %v444, 4294901760
        %v5313 = vsub.f32 %v444, %v5312
        %v5314 = vand.u32 %v5313, 4294901760
        %5315 = vmatpush1.msra.mxu0 %v5314
        %v5316 = vand.u32 %v449, 4294901760
        %v5317 = vsub.f32 %v449, %v5316
        %v5318 = vand.u32 %v5317, 4294901760
        %5319 = vmatprep.subr.mxu0 %v5318
        %v5320 = vand.u32 %v448, 4294901760
        %v5321 = vsub.f32 %v448, %v5320
        %v5322 = vand.u32 %v5321, 4294901760
        %5323 = vmatpush1.msra.mxu0 %v5322
        %v5324 = vand.u32 %v453, 4294901760
        %v5325 = vsub.f32 %v453, %v5324
        %v5326 = vand.u32 %v5325, 4294901760
        %5327 = vmatprep.subr.mxu0 %v5326
        %v5328 = vand.u32 %v452, 4294901760
        %v5329 = vsub.f32 %v452, %v5328
        %v5330 = vand.u32 %v5329, 4294901760
        %5331 = vmatpush1.msra.mxu0 %v5330
        %v5332 = vand.u32 %v457, 4294901760
        %v5333 = vsub.f32 %v457, %v5332
        %v5334 = vand.u32 %v5333, 4294901760
        %5335 = vmatprep.subr.mxu0 %v5334
        %v5336 = vand.u32 %v456, 4294901760
        %v5337 = vsub.f32 %v456, %v5336
        %v5338 = vand.u32 %v5337, 4294901760
        %5339 = vmatpush1.msra.mxu0 %v5338
        %v5340 = vand.u32 %v461, 4294901760
        %v5341 = vsub.f32 %v461, %v5340
        %v5342 = vand.u32 %v5341, 4294901760
        %5343 = vmatprep.subr.mxu0 %v5342
        %v5344 = vand.u32 %v460, 4294901760
        %v5345 = vsub.f32 %v460, %v5344
        %v5346 = vand.u32 %v5345, 4294901760
        %5347 = vmatpush1.msra.mxu0 %v5346
        %v5348 = vand.u32 %v465, 4294901760
        %v5349 = vsub.f32 %v465, %v5348
        %v5350 = vand.u32 %v5349, 4294901760
        %5351 = vmatprep.subr.mxu0 %v5350
        %v5352 = vand.u32 %v464, 4294901760
        %v5353 = vsub.f32 %v464, %v5352
        %v5354 = vand.u32 %v5353, 4294901760
        %5355 = vmatpush1.msra.mxu0 %v5354
        %v5356 = vand.u32 %v469, 4294901760
        %v5357 = vsub.f32 %v469, %v5356
        %v5358 = vand.u32 %v5357, 4294901760
        %5359 = vmatprep.subr.mxu0 %v5358
        %v5360 = vand.u32 %v468, 4294901760
        %v5361 = vsub.f32 %v468, %v5360
        %v5362 = vand.u32 %v5361, 4294901760
        %5363 = vmatpush1.msra.mxu0 %v5362
        %v5364 = vand.u32 %v473, 4294901760
        %v5365 = vsub.f32 %v473, %v5364
        %v5366 = vand.u32 %v5365, 4294901760
        %5367 = vmatprep.subr.mxu0 %v5366
        %v5368 = vand.u32 %v472, 4294901760
        %v5369 = vsub.f32 %v472, %v5368
        %v5370 = vand.u32 %v5369, 4294901760
        %5371 = vmatpush1.msra.mxu0 %v5370
        %v5372 = vand.u32 %v477, 4294901760
        %v5373 = vsub.f32 %v477, %v5372
        %v5374 = vand.u32 %v5373, 4294901760
        %5375 = vmatprep.subr.mxu0 %v5374
        %v5376 = vand.u32 %v476, 4294901760
        %v5377 = vsub.f32 %v476, %v5376
        %v5378 = vand.u32 %v5377, 4294901760
        %5379 = vmatpush1.msra.mxu0 %v5378
        %v5380 = vand.u32 %v481, 4294901760
        %v5381 = vsub.f32 %v481, %v5380
        %v5382 = vand.u32 %v5381, 4294901760
        %5383 = vmatprep.subr.mxu0 %v5382
        %v5384 = vand.u32 %v480, 4294901760
        %v5385 = vsub.f32 %v480, %v5384
        %v5386 = vand.u32 %v5385, 4294901760
        %5387 = vmatpush1.msra.mxu0 %v5386
        %v5388 = vand.u32 %v485, 4294901760
        %v5389 = vsub.f32 %v485, %v5388
        %v5390 = vand.u32 %v5389, 4294901760
        %5391 = vmatprep.subr.mxu0 %v5390
        %v5392 = vand.u32 %v484, 4294901760
        %v5393 = vsub.f32 %v484, %v5392
        %v5394 = vand.u32 %v5393, 4294901760
        %5395 = vmatpush1.msra.mxu0 %v5394
        %v5396 = vand.u32 %v489, 4294901760
        %v5397 = vsub.f32 %v489, %v5396
        %v5398 = vand.u32 %v5397, 4294901760
        %5399 = vmatprep.subr.mxu0 %v5398
        %v5400 = vand.u32 %v488, 4294901760
        %v5401 = vsub.f32 %v488, %v5400
        %v5402 = vand.u32 %v5401, 4294901760
        %5403 = vmatpush1.msra.mxu0 %v5402
        %v5404 = vand.u32 %v493, 4294901760
        %v5405 = vsub.f32 %v493, %v5404
        %v5406 = vand.u32 %v5405, 4294901760
        %5407 = vmatprep.subr.mxu0 %v5406
        %v5408 = vand.u32 %v492, 4294901760
        %v5409 = vsub.f32 %v492, %v5408
        %v5410 = vand.u32 %v5409, 4294901760
        %5411 = vmatpush1.msra.mxu0 %v5410
        %v5412 = vand.u32 %v497, 4294901760
        %v5413 = vsub.f32 %v497, %v5412
        %v5414 = vand.u32 %v5413, 4294901760
        %5415 = vmatprep.subr.mxu0 %v5414
        %v5416 = vand.u32 %v496, 4294901760
        %v5417 = vsub.f32 %v496, %v5416
        %v5418 = vand.u32 %v5417, 4294901760
        %5419 = vmatpush1.msra.mxu0 %v5418
        %v5420 = vand.u32 %v501, 4294901760
        %v5421 = vsub.f32 %v501, %v5420
        %v5422 = vand.u32 %v5421, 4294901760
        %5423 = vmatprep.subr.mxu0 %v5422
        %v5424 = vand.u32 %v500, 4294901760
        %v5425 = vsub.f32 %v500, %v5424
        %v5426 = vand.u32 %v5425, 4294901760
        %5427 = vmatpush1.msra.mxu0 %v5426
        %v5428 = vand.u32 %v505, 4294901760
        %v5429 = vsub.f32 %v505, %v5428
        %v5430 = vand.u32 %v5429, 4294901760
        %5431 = vmatprep.subr.mxu0 %v5430
        %v5432 = vand.u32 %v504, 4294901760
        %v5433 = vsub.f32 %v504, %v5432
        %v5434 = vand.u32 %v5433, 4294901760
        %5435 = vmatpush1.msra.mxu0 %v5434
        %v5436 = vand.u32 %v509, 4294901760
        %v5437 = vsub.f32 %v509, %v5436
        %v5438 = vand.u32 %v5437, 4294901760
        %5439 = vmatprep.subr.mxu0 %v5438
        %v5440 = vand.u32 %v508, 4294901760
        %v5441 = vsub.f32 %v508, %v5440
        %v5442 = vand.u32 %v5441, 4294901760
        %5443 = vmatpush1.msra.mxu0 %v5442
        %v5444 = vand.u32 %v513, 4294901760
        %v5445 = vsub.f32 %v513, %v5444
        %v5446 = vand.u32 %v5445, 4294901760
        %5447 = vmatprep.subr.mxu0 %v5446
        %v5448 = vand.u32 %v512, 4294901760
        %v5449 = vsub.f32 %v512, %v5448
        %v5450 = vand.u32 %v5449, 4294901760
        %5451 = vmatpush1.msra.mxu0 %v5450
        %v5452 = vand.u32 %v517, 4294901760
        %v5453 = vsub.f32 %v517, %v5452
        %v5454 = vand.u32 %v5453, 4294901760
        %5455 = vmatprep.subr.mxu0 %v5454
        %v5456 = vand.u32 %v516, 4294901760
        %v5457 = vsub.f32 %v516, %v5456
        %v5458 = vand.u32 %v5457, 4294901760
        %5459 = vmatpush1.msra.mxu0 %v5458
        %v5460 = vand.u32 %v521, 4294901760
        %v5461 = vsub.f32 %v521, %v5460
        %v5462 = vand.u32 %v5461, 4294901760
        %5463 = vmatprep.subr.mxu0 %v5462
        %v5464 = vand.u32 %v520, 4294901760
        %v5465 = vsub.f32 %v520, %v5464
        %v5466 = vand.u32 %v5465, 4294901760
        %5467 = vmatpush1.msra.mxu0 %v5466
        %v5468 = vand.u32 %v525, 4294901760
        %v5469 = vsub.f32 %v525, %v5468
        %v5470 = vand.u32 %v5469, 4294901760
        %5471 = vmatprep.subr.mxu0 %v5470
        %v5472 = vand.u32 %v524, 4294901760
        %v5473 = vsub.f32 %v524, %v5472
        %v5474 = vand.u32 %v5473, 4294901760
        %5475 = vmatpush1.msra.mxu0 %v5474
        %v5476 = vand.u32 %v529, 4294901760
        %v5477 = vsub.f32 %v529, %v5476
        %v5478 = vand.u32 %v5477, 4294901760
        %5479 = vmatprep.subr.mxu0 %v5478
        %v5480 = vand.u32 %v528, 4294901760
        %v5481 = vsub.f32 %v528, %v5480
        %v5482 = vand.u32 %v5481, 4294901760
        %5483 = vmatpush1.msra.mxu0 %v5482
        %v5484 = vand.u32 %v533, 4294901760
        %v5485 = vsub.f32 %v533, %v5484
        %v5486 = vand.u32 %v5485, 4294901760
        %5487 = vmatprep.subr.mxu0 %v5486
        %v5488 = vand.u32 %v532, 4294901760
        %v5489 = vsub.f32 %v532, %v5488
        %v5490 = vand.u32 %v5489, 4294901760
        %5491 = vmatpush1.msra.mxu0 %v5490
        %v5492 = vand.u32 %v537, 4294901760
        %v5493 = vsub.f32 %v537, %v5492
        %v5494 = vand.u32 %v5493, 4294901760
        %5495 = vmatprep.subr.mxu0 %v5494
        %v5496 = vand.u32 %v536, 4294901760
        %v5497 = vsub.f32 %v536, %v5496
        %v5498 = vand.u32 %v5497, 4294901760
        %5499 = vmatpush1.msra.mxu0 %v5498
        %v5500 = vand.u32 %v541, 4294901760
        %v5501 = vsub.f32 %v541, %v5500
        %v5502 = vand.u32 %v5501, 4294901760
        %5503 = vmatprep.subr.mxu0 %v5502
        %v5504 = vand.u32 %v540, 4294901760
        %v5505 = vsub.f32 %v540, %v5504
        %v5506 = vand.u32 %v5505, 4294901760
        %5507 = vmatpush1.msra.mxu0 %v5506
        %v5508 = vand.u32 %v545, 4294901760
        %v5509 = vsub.f32 %v545, %v5508
        %v5510 = vand.u32 %v5509, 4294901760
        %5511 = vmatprep.subr.mxu0 %v5510
        %v5512 = vand.u32 %v544, 4294901760
        %v5513 = vsub.f32 %v544, %v5512
        %v5514 = vand.u32 %v5513, 4294901760
        %5515 = vmatpush1.msra.mxu0 %v5514
        %v5516 = vand.u32 %v549, 4294901760
        %v5517 = vsub.f32 %v549, %v5516
        %v5518 = vand.u32 %v5517, 4294901760
        %5519 = vmatprep.subr.mxu0 %v5518
        %v5520 = vand.u32 %v548, 4294901760
        %v5521 = vsub.f32 %v548, %v5520
        %v5522 = vand.u32 %v5521, 4294901760
        %5523 = vmatpush1.msra.mxu0 %v5522
        %v5524 = vand.u32 %v553, 4294901760
        %v5525 = vsub.f32 %v553, %v5524
        %v5526 = vand.u32 %v5525, 4294901760
        %5527 = vmatprep.subr.mxu0 %v5526
        %v5528 = vand.u32 %v552, 4294901760
        %v5529 = vsub.f32 %v552, %v5528
        %v5530 = vand.u32 %v5529, 4294901760
        %5531 = vmatpush1.msra.mxu0 %v5530
        %v5532 = vand.u32 %v557, 4294901760
        %v5533 = vsub.f32 %v557, %v5532
        %v5534 = vand.u32 %v5533, 4294901760
        %5535 = vmatprep.subr.mxu0 %v5534
        %v5536 = vand.u32 %v556, 4294901760
        %v5537 = vsub.f32 %v556, %v5536
        %v5538 = vand.u32 %v5537, 4294901760
        %5539 = vmatpush1.msra.mxu0 %v5538
        %v5540 = vand.u32 %v561, 4294901760
        %v5541 = vsub.f32 %v561, %v5540
        %v5542 = vand.u32 %v5541, 4294901760
        %5543 = vmatprep.subr.mxu0 %v5542
        %v5544 = vand.u32 %v560, 4294901760
        %v5545 = vsub.f32 %v560, %v5544
        %v5546 = vand.u32 %v5545, 4294901760
        %5547 = vmatpush1.msra.mxu0 %v5546
        %v5548 = vand.u32 %v565, 4294901760
        %v5549 = vsub.f32 %v565, %v5548
        %v5550 = vand.u32 %v5549, 4294901760
        %5551 = vmatprep.subr.mxu0 %v5550
        %v5552 = vand.u32 %v564, 4294901760
        %v5553 = vsub.f32 %v564, %v5552
        %v5554 = vand.u32 %v5553, 4294901760
        %5555 = vmatpush1.msra.mxu0 %v5554
        %v5556 = vand.u32 %v309, 4294901760
        %5557 = vmatprep.mubr.f32.mxu0 %v5556
        %v5558 = vand.u32 %v308, 4294901760
        %5559 = vmatmul.mubr.f32.gmra.mrb[0].mxu0 %v5558
        %v5560 = vpop.f32.mrb[0].mxu0
        %v5561 = vadd.f32 %v5296, %v5560
        %v5562 = vpop.f32.mrb[0].mxu0
        %v5563 = vadd.f32 %v5298, %v5562
        %5564 = vdwg.mxu0
        %v5565 = vand.u32 %v441, 4294901760
        %5566 = vmatprep.subr.mxu0 %v5565
        %v5567 = vand.u32 %v440, 4294901760
        %5568 = vmatpush1.msra.mxu0 %v5567
        %v5569 = vand.u32 %v445, 4294901760
        %5570 = vmatprep.subr.mxu0 %v5569
        %v5571 = vand.u32 %v444, 4294901760
        %5572 = vmatpush1.msra.mxu0 %v5571
        %v5573 = vand.u32 %v449, 4294901760
        %5574 = vmatprep.subr.mxu0 %v5573
        %v5575 = vand.u32 %v448, 4294901760
        %5576 = vmatpush1.msra.mxu0 %v5575
        %v5577 = vand.u32 %v453, 4294901760
        %5578 = vmatprep.subr.mxu0 %v5577
        %v5579 = vand.u32 %v452, 4294901760
        %5580 = vmatpush1.msra.mxu0 %v5579
        %v5581 = vand.u32 %v457, 4294901760
        %5582 = vmatprep.subr.mxu0 %v5581
        %v5583 = vand.u32 %v456, 4294901760
        %5584 = vmatpush1.msra.mxu0 %v5583
        %v5585 = vand.u32 %v461, 4294901760
        %5586 = vmatprep.subr.mxu0 %v5585
        %v5587 = vand.u32 %v460, 4294901760
        %5588 = vmatpush1.msra.mxu0 %v5587
        %v5589 = vand.u32 %v465, 4294901760
        %5590 = vmatprep.subr.mxu0 %v5589
        %v5591 = vand.u32 %v464, 4294901760
        %5592 = vmatpush1.msra.mxu0 %v5591
        %v5593 = vand.u32 %v469, 4294901760
        %5594 = vmatprep.subr.mxu0 %v5593
        %v5595 = vand.u32 %v468, 4294901760
        %5596 = vmatpush1.msra.mxu0 %v5595
        %v5597 = vand.u32 %v473, 4294901760
        %5598 = vmatprep.subr.mxu0 %v5597
        %v5599 = vand.u32 %v472, 4294901760
        %5600 = vmatpush1.msra.mxu0 %v5599
        %v5601 = vand.u32 %v477, 4294901760
        %5602 = vmatprep.subr.mxu0 %v5601
        %v5603 = vand.u32 %v476, 4294901760
        %5604 = vmatpush1.msra.mxu0 %v5603
        %v5605 = vand.u32 %v481, 4294901760
        %5606 = vmatprep.subr.mxu0 %v5605
        %v5607 = vand.u32 %v480, 4294901760
        %5608 = vmatpush1.msra.mxu0 %v5607
        %v5609 = vand.u32 %v485, 4294901760
        %5610 = vmatprep.subr.mxu0 %v5609
        %v5611 = vand.u32 %v484, 4294901760
        %5612 = vmatpush1.msra.mxu0 %v5611
        %v5613 = vand.u32 %v489, 4294901760
        %5614 = vmatprep.subr.mxu0 %v5613
        %v5615 = vand.u32 %v488, 4294901760
        %5616 = vmatpush1.msra.mxu0 %v5615
        %v5617 = vand.u32 %v493, 4294901760
        %5618 = vmatprep.subr.mxu0 %v5617
        %v5619 = vand.u32 %v492, 4294901760
        %5620 = vmatpush1.msra.mxu0 %v5619
        %v5621 = vand.u32 %v497, 4294901760
        %5622 = vmatprep.subr.mxu0 %v5621
        %v5623 = vand.u32 %v496, 4294901760
        %5624 = vmatpush1.msra.mxu0 %v5623
        %v5625 = vand.u32 %v501, 4294901760
        %5626 = vmatprep.subr.mxu0 %v5625
        %v5627 = vand.u32 %v500, 4294901760
        %5628 = vmatpush1.msra.mxu0 %v5627
        %v5629 = vand.u32 %v505, 4294901760
        %5630 = vmatprep.subr.mxu0 %v5629
        %v5631 = vand.u32 %v504, 4294901760
        %5632 = vmatpush1.msra.mxu0 %v5631
        %v5633 = vand.u32 %v509, 4294901760
        %5634 = vmatprep.subr.mxu0 %v5633
        %v5635 = vand.u32 %v508, 4294901760
        %5636 = vmatpush1.msra.mxu0 %v5635
        %v5637 = vand.u32 %v513, 4294901760
        %5638 = vmatprep.subr.mxu0 %v5637
        %v5639 = vand.u32 %v512, 4294901760
        %5640 = vmatpush1.msra.mxu0 %v5639
        %v5641 = vand.u32 %v517, 4294901760
        %5642 = vmatprep.subr.mxu0 %v5641
        %v5643 = vand.u32 %v516, 4294901760
        %5644 = vmatpush1.msra.mxu0 %v5643
        %v5645 = vand.u32 %v521, 4294901760
        %5646 = vmatprep.subr.mxu0 %v5645
        %v5647 = vand.u32 %v520, 4294901760
        %5648 = vmatpush1.msra.mxu0 %v5647
        %v5649 = vand.u32 %v525, 4294901760
        %5650 = vmatprep.subr.mxu0 %v5649
        %v5651 = vand.u32 %v524, 4294901760
        %5652 = vmatpush1.msra.mxu0 %v5651
        %v5653 = vand.u32 %v529, 4294901760
        %5654 = vmatprep.subr.mxu0 %v5653
        %v5655 = vand.u32 %v528, 4294901760
        %5656 = vmatpush1.msra.mxu0 %v5655
        %v5657 = vand.u32 %v533, 4294901760
        %5658 = vmatprep.subr.mxu0 %v5657
        %v5659 = vand.u32 %v532, 4294901760
        %5660 = vmatpush1.msra.mxu0 %v5659
        %v5661 = vand.u32 %v537, 4294901760
        %5662 = vmatprep.subr.mxu0 %v5661
        %v5663 = vand.u32 %v536, 4294901760
        %5664 = vmatpush1.msra.mxu0 %v5663
        %v5665 = vand.u32 %v541, 4294901760
        %5666 = vmatprep.subr.mxu0 %v5665
        %v5667 = vand.u32 %v540, 4294901760
        %5668 = vmatpush1.msra.mxu0 %v5667
        %v5669 = vand.u32 %v545, 4294901760
        %5670 = vmatprep.subr.mxu0 %v5669
        %v5671 = vand.u32 %v544, 4294901760
        %5672 = vmatpush1.msra.mxu0 %v5671
        %v5673 = vand.u32 %v549, 4294901760
        %5674 = vmatprep.subr.mxu0 %v5673
        %v5675 = vand.u32 %v548, 4294901760
        %5676 = vmatpush1.msra.mxu0 %v5675
        %v5677 = vand.u32 %v553, 4294901760
        %5678 = vmatprep.subr.mxu0 %v5677
        %v5679 = vand.u32 %v552, 4294901760
        %5680 = vmatpush1.msra.mxu0 %v5679
        %v5681 = vand.u32 %v557, 4294901760
        %5682 = vmatprep.subr.mxu0 %v5681
        %v5683 = vand.u32 %v556, 4294901760
        %5684 = vmatpush1.msra.mxu0 %v5683
        %v5685 = vand.u32 %v561, 4294901760
        %5686 = vmatprep.subr.mxu0 %v5685
        %v5687 = vand.u32 %v560, 4294901760
        %5688 = vmatpush1.msra.mxu0 %v5687
        %v5689 = vand.u32 %v565, 4294901760
        %5690 = vmatprep.subr.mxu0 %v5689
        %v5691 = vand.u32 %v564, 4294901760
        %5692 = vmatpush1.msra.mxu0 %v5691
        %v5693 = vand.u32 %v309, 4294901760
        %5694 = vmatprep.mubr.f32.mxu0 %v5693
        %v5695 = vand.u32 %v308, 4294901760
        %5696 = vmatmul.mubr.f32.gmra.mrb[0].mxu0 %v5695
        %v5697 = vpop.f32.mrb[0].mxu0
        %v5698 = vadd.f32 %v5561, %v5697
        %v5699 = vpop.f32.mrb[0].mxu0
        %v5700 = vadd.f32 %v5563, %v5699
        %5701 = vdwg.mxu0
        %v5702 = vadd.f32 %v302, %v3130
        %v5703 = vadd.f32 %v303, %v3132
        %v5704 = vadd.f32 %v304, %v5698
        %v5705 = vadd.f32 %v305, %v5700
        %5706 = vst [vmem:[#allocation2] sm:$0xff] %v5702
        %5707 = vst [vmem:[#allocation2 + $0x8] sm:$0xff] %v5703
        %5708 = vst [vmem:[#allocation2 + $0x10] sm:$0xff] %v5704
        %5709 = vst [vmem:[#allocation2 + $0x18] sm:$0xff] %v5705
        %p5710 = scmp.eq.s32.totalorder %s23, 1
        // Predicated region
        $region57: #{tpu_custom_call.1} parent=35 // pred_check
          %p5711 = pneg %p5710
        $region58: #{tpu_custom_call.1} parent=35 // pred_check_branch
          %5713 = sbr.rel (%p5711) target = $region60
        $region59: #{tpu_custom_call.1} parent=35 // pred_region
          %v5714 = vld [vmem:[#allocation9] sm:$0xff]
          %v5715 = vld [vmem:[#allocation9 + $0x8] sm:$0xff]
          %v5716 = vld [vmem:[#allocation9 + $0x10] sm:$0xff]
          %v5717 = vld [vmem:[#allocation9 + $0x18] sm:$0xff]
          %v5718 = vld [vmem:[#allocation9 + $0x20] sm:$0xff]
          %v5719 = vld [vmem:[#allocation9 + $0x28] sm:$0xff]
          %v5720 = vld [vmem:[#allocation9 + $0x30] sm:$0xff]
          %v5721 = vld [vmem:[#allocation9 + $0x38] sm:$0xff]
          %v5722 = vld [vmem:[#allocation9 + $0x40] sm:$0xff]
          %v5723 = vld [vmem:[#allocation9 + $0x48] sm:$0xff]
          %v5724 = vld [vmem:[#allocation9 + $0x50] sm:$0xff]
          %v5725 = vld [vmem:[#allocation9 + $0x58] sm:$0xff]
          %v5726 = vld [vmem:[#allocation9 + $0x60] sm:$0xff]
          %v5727 = vld [vmem:[#allocation9 + $0x68] sm:$0xff]
          %v5728 = vld [vmem:[#allocation9 + $0x70] sm:$0xff]
          %v5729 = vld [vmem:[#allocation9 + $0x78] sm:$0xff]
          %v5730 = vld [vmem:[#allocation9 + $0x80] sm:$0xff]
          %v5731 = vld [vmem:[#allocation9 + $0x88] sm:$0xff]
          %v5732 = vld [vmem:[#allocation9 + $0x90] sm:$0xff]
          %v5733 = vld [vmem:[#allocation9 + $0x98] sm:$0xff]
          %v5734 = vld [vmem:[#allocation9 + $0xa0] sm:$0xff]
          %v5735 = vld [vmem:[#allocation9 + $0xa8] sm:$0xff]
          %v5736 = vld [vmem:[#allocation9 + $0xb0] sm:$0xff]
          %v5737 = vld [vmem:[#allocation9 + $0xb8] sm:$0xff]
          %v5738 = vld [vmem:[#allocation9 + $0xc0] sm:$0xff]
          %v5739 = vld [vmem:[#allocation9 + $0xc8] sm:$0xff]
          %v5740 = vld [vmem:[#allocation9 + $0xd0] sm:$0xff]
          %v5741 = vld [vmem:[#allocation9 + $0xd8] sm:$0xff]
          %v5742 = vld [vmem:[#allocation9 + $0xe0] sm:$0xff]
          %v5743 = vld [vmem:[#allocation9 + $0xe8] sm:$0xff]
          %v5744 = vld [vmem:[#allocation9 + $0xf0] sm:$0xff]
          %v5745 = vld [vmem:[#allocation9 + $0xf8] sm:$0xff]
          %v5746 = vld [vmem:[#allocation9 + $0x100] sm:$0xff]
          %v5747 = vld [vmem:[#allocation9 + $0x108] sm:$0xff]
          %v5748 = vld [vmem:[#allocation9 + $0x110] sm:$0xff]
          %v5749 = vld [vmem:[#allocation9 + $0x118] sm:$0xff]
          %v5750 = vld [vmem:[#allocation9 + $0x120] sm:$0xff]
          %v5751 = vld [vmem:[#allocation9 + $0x128] sm:$0xff]
          %v5752 = vld [vmem:[#allocation9 + $0x130] sm:$0xff]
          %v5753 = vld [vmem:[#allocation9 + $0x138] sm:$0xff]
          %v5754 = vld [vmem:[#allocation9 + $0x140] sm:$0xff]
          %v5755 = vld [vmem:[#allocation9 + $0x148] sm:$0xff]
          %v5756 = vld [vmem:[#allocation9 + $0x150] sm:$0xff]
          %v5757 = vld [vmem:[#allocation9 + $0x158] sm:$0xff]
          %v5758 = vld [vmem:[#allocation9 + $0x160] sm:$0xff]
          %v5759 = vld [vmem:[#allocation9 + $0x168] sm:$0xff]
          %v5760 = vld [vmem:[#allocation9 + $0x170] sm:$0xff]
          %v5761 = vld [vmem:[#allocation9 + $0x178] sm:$0xff]
          %v5762 = vld [vmem:[#allocation9 + $0x180] sm:$0xff]
          %v5763 = vld [vmem:[#allocation9 + $0x188] sm:$0xff]
          %v5764 = vld [vmem:[#allocation9 + $0x190] sm:$0xff]
          %v5765 = vld [vmem:[#allocation9 + $0x198] sm:$0xff]
          %v5766 = vld [vmem:[#allocation9 + $0x1a0] sm:$0xff]
          %v5767 = vld [vmem:[#allocation9 + $0x1a8] sm:$0xff]
          %v5768 = vld [vmem:[#allocation9 + $0x1b0] sm:$0xff]
          %v5769 = vld [vmem:[#allocation9 + $0x1b8] sm:$0xff]
          %v5770 = vld [vmem:[#allocation9 + $0x1c0] sm:$0xff]
          %v5771 = vld [vmem:[#allocation9 + $0x1c8] sm:$0xff]
          %v5772 = vld [vmem:[#allocation9 + $0x1d0] sm:$0xff]
          %v5773 = vld [vmem:[#allocation9 + $0x1d8] sm:$0xff]
          %v5774 = vld [vmem:[#allocation9 + $0x1e0] sm:$0xff]
          %v5775 = vld [vmem:[#allocation9 + $0x1e8] sm:$0xff]
          %v5776 = vld [vmem:[#allocation9 + $0x1f0] sm:$0xff]
          %v5777 = vld [vmem:[#allocation9 + $0x1f8] sm:$0xff]
          %v5778 = vld [vmem:[#allocation9 + $0x200] sm:$0xff]
          %v5779 = vld [vmem:[#allocation9 + $0x208] sm:$0xff]
          %v5780 = vld [vmem:[#allocation9 + $0x210] sm:$0xff]
          %v5781 = vld [vmem:[#allocation9 + $0x218] sm:$0xff]
          %v5782 = vld [vmem:[#allocation9 + $0x220] sm:$0xff]
          %v5783 = vld [vmem:[#allocation9 + $0x228] sm:$0xff]
          %v5784 = vld [vmem:[#allocation9 + $0x230] sm:$0xff]
          %v5785 = vld [vmem:[#allocation9 + $0x238] sm:$0xff]
          %v5786 = vld [vmem:[#allocation9 + $0x240] sm:$0xff]
          %v5787 = vld [vmem:[#allocation9 + $0x248] sm:$0xff]
          %v5788 = vld [vmem:[#allocation9 + $0x250] sm:$0xff]
          %v5789 = vld [vmem:[#allocation9 + $0x258] sm:$0xff]
          %v5790 = vld [vmem:[#allocation9 + $0x260] sm:$0xff]
          %v5791 = vld [vmem:[#allocation9 + $0x268] sm:$0xff]
          %v5792 = vld [vmem:[#allocation9 + $0x270] sm:$0xff]
          %v5793 = vld [vmem:[#allocation9 + $0x278] sm:$0xff]
          %v5794 = vld [vmem:[#allocation9 + $0x280] sm:$0xff]
          %v5795 = vld [vmem:[#allocation9 + $0x288] sm:$0xff]
          %v5796 = vld [vmem:[#allocation9 + $0x290] sm:$0xff]
          %v5797 = vld [vmem:[#allocation9 + $0x298] sm:$0xff]
          %v5798 = vld [vmem:[#allocation9 + $0x2a0] sm:$0xff]
          %v5799 = vld [vmem:[#allocation9 + $0x2a8] sm:$0xff]
          %v5800 = vld [vmem:[#allocation9 + $0x2b0] sm:$0xff]
          %v5801 = vld [vmem:[#allocation9 + $0x2b8] sm:$0xff]
          %v5802 = vld [vmem:[#allocation9 + $0x2c0] sm:$0xff]
          %v5803 = vld [vmem:[#allocation9 + $0x2c8] sm:$0xff]
          %v5804 = vld [vmem:[#allocation9 + $0x2d0] sm:$0xff]
          %v5805 = vld [vmem:[#allocation9 + $0x2d8] sm:$0xff]
          %v5806 = vld [vmem:[#allocation9 + $0x2e0] sm:$0xff]
          %v5807 = vld [vmem:[#allocation9 + $0x2e8] sm:$0xff]
          %v5808 = vld [vmem:[#allocation9 + $0x2f0] sm:$0xff]
          %v5809 = vld [vmem:[#allocation9 + $0x2f8] sm:$0xff]
          %v5810 = vld [vmem:[#allocation9 + $0x300] sm:$0xff]
          %v5811 = vld [vmem:[#allocation9 + $0x308] sm:$0xff]
          %v5812 = vld [vmem:[#allocation9 + $0x310] sm:$0xff]
          %v5813 = vld [vmem:[#allocation9 + $0x318] sm:$0xff]
          %v5814 = vld [vmem:[#allocation9 + $0x320] sm:$0xff]
          %v5815 = vld [vmem:[#allocation9 + $0x328] sm:$0xff]
          %v5816 = vld [vmem:[#allocation9 + $0x330] sm:$0xff]
          %v5817 = vld [vmem:[#allocation9 + $0x338] sm:$0xff]
          %v5818 = vld [vmem:[#allocation9 + $0x340] sm:$0xff]
          %v5819 = vld [vmem:[#allocation9 + $0x348] sm:$0xff]
          %v5820 = vld [vmem:[#allocation9 + $0x350] sm:$0xff]
          %v5821 = vld [vmem:[#allocation9 + $0x358] sm:$0xff]
          %v5822 = vld [vmem:[#allocation9 + $0x360] sm:$0xff]
          %v5823 = vld [vmem:[#allocation9 + $0x368] sm:$0xff]
          %v5824 = vld [vmem:[#allocation9 + $0x370] sm:$0xff]
          %v5825 = vld [vmem:[#allocation9 + $0x378] sm:$0xff]
          %v5826 = vld [vmem:[#allocation9 + $0x380] sm:$0xff]
          %v5827 = vld [vmem:[#allocation2] sm:$0xff]
          %v5828 = vld [vmem:[#allocation2 + $0x8] sm:$0xff]
          %v5829 = vld [vmem:[#allocation2 + $0x10] sm:$0xff]
          %v5830 = vld [vmem:[#allocation2 + $0x18] sm:$0xff]
          %v5831 = vlaneseq
          %v5832 = vshrl.u32 %v5831, 7
          %v5833 = vsub.s32 0, %v5832
          %v5834 = vrot.slane %v5826, %v5833
          %5835 = vmatprep.subr.mxu0 0.0
          %v5836 = vand.u32 %v5714, 4294901760
          %5837 = vmatpush1.msra.mxu0 %v5836
          %5838 = vmatprep.subr.mxu0 0.0
          %v5839 = vand.u32 %v5715, 4294901760
          %5840 = vmatpush1.msra.mxu0 %v5839
          %5841 = vmatprep.subr.mxu0 0.0
          %v5842 = vand.u32 %v5716, 4294901760
          %5843 = vmatpush1.msra.mxu0 %v5842
          %5844 = vmatprep.subr.mxu0 0.0
          %v5845 = vand.u32 %v5717, 4294901760
          %5846 = vmatpush1.msra.mxu0 %v5845
          %5847 = vmatprep.subr.mxu0 0.0
          %v5848 = vand.u32 %v5718, 4294901760
          %5849 = vmatpush1.msra.mxu0 %v5848
          %5850 = vmatprep.subr.mxu0 0.0
          %v5851 = vand.u32 %v5719, 4294901760
          %5852 = vmatpush1.msra.mxu0 %v5851
          %5853 = vmatprep.subr.mxu0 0.0
          %v5854 = vand.u32 %v5720, 4294901760
          %5855 = vmatpush1.msra.mxu0 %v5854
          %5856 = vmatprep.subr.mxu0 0.0
          %v5857 = vand.u32 %v5721, 4294901760
          %5858 = vmatpush1.msra.mxu0 %v5857
          %5859 = vmatprep.subr.mxu0 0.0
          %v5860 = vand.u32 %v5722, 4294901760
          %5861 = vmatpush1.msra.mxu0 %v5860
          %5862 = vmatprep.subr.mxu0 0.0
          %v5863 = vand.u32 %v5723, 4294901760
          %5864 = vmatpush1.msra.mxu0 %v5863
          %5865 = vmatprep.subr.mxu0 0.0
          %v5866 = vand.u32 %v5724, 4294901760
          %5867 = vmatpush1.msra.mxu0 %v5866
          %5868 = vmatprep.subr.mxu0 0.0
          %v5869 = vand.u32 %v5725, 4294901760
          %5870 = vmatpush1.msra.mxu0 %v5869
          %5871 = vmatprep.subr.mxu0 0.0
          %v5872 = vand.u32 %v5726, 4294901760
          %5873 = vmatpush1.msra.mxu0 %v5872
          %5874 = vmatprep.subr.mxu0 0.0
          %v5875 = vand.u32 %v5727, 4294901760
          %5876 = vmatpush1.msra.mxu0 %v5875
          %5877 = vmatprep.subr.mxu0 0.0
          %v5878 = vand.u32 %v5728, 4294901760
          %5879 = vmatpush1.msra.mxu0 %v5878
          %5880 = vmatprep.subr.mxu0 0.0
          %v5881 = vand.u32 %v5729, 4294901760
          %5882 = vmatpush1.msra.mxu0 %v5881
          %5883 = vmatprep.subr.mxu0 0.0
          %v5884 = vand.u32 %v5730, 4294901760
          %5885 = vmatpush1.msra.mxu0 %v5884
          %5886 = vmatprep.subr.mxu0 0.0
          %v5887 = vand.u32 %v5731, 4294901760
          %5888 = vmatpush1.msra.mxu0 %v5887
          %5889 = vmatprep.subr.mxu0 0.0
          %v5890 = vand.u32 %v5732, 4294901760
          %5891 = vmatpush1.msra.mxu0 %v5890
          %5892 = vmatprep.subr.mxu0 0.0
          %v5893 = vand.u32 %v5733, 4294901760
          %5894 = vmatpush1.msra.mxu0 %v5893
          %5895 = vmatprep.subr.mxu0 0.0
          %v5896 = vand.u32 %v5734, 4294901760
          %5897 = vmatpush1.msra.mxu0 %v5896
          %5898 = vmatprep.subr.mxu0 0.0
          %v5899 = vand.u32 %v5735, 4294901760
          %5900 = vmatpush1.msra.mxu0 %v5899
          %5901 = vmatprep.subr.mxu0 0.0
          %v5902 = vand.u32 %v5736, 4294901760
          %5903 = vmatpush1.msra.mxu0 %v5902
          %5904 = vmatprep.subr.mxu0 0.0
          %v5905 = vand.u32 %v5737, 4294901760
          %5906 = vmatpush1.msra.mxu0 %v5905
          %5907 = vmatprep.subr.mxu0 0.0
          %v5908 = vand.u32 %v5738, 4294901760
          %5909 = vmatpush1.msra.mxu0 %v5908
          %5910 = vmatprep.subr.mxu0 0.0
          %v5911 = vand.u32 %v5739, 4294901760
          %5912 = vmatpush1.msra.mxu0 %v5911
          %5913 = vmatprep.subr.mxu0 0.0
          %v5914 = vand.u32 %v5740, 4294901760
          %5915 = vmatpush1.msra.mxu0 %v5914
          %5916 = vmatprep.subr.mxu0 0.0
          %v5917 = vand.u32 %v5741, 4294901760
          %5918 = vmatpush1.msra.mxu0 %v5917
          %5919 = vmatprep.subr.mxu0 0.0
          %v5920 = vand.u32 %v5742, 4294901760
          %5921 = vmatpush1.msra.mxu0 %v5920
          %5922 = vmatprep.subr.mxu0 0.0
          %v5923 = vand.u32 %v5743, 4294901760
          %5924 = vmatpush1.msra.mxu0 %v5923
          %5925 = vmatprep.subr.mxu0 0.0
          %v5926 = vand.u32 %v5744, 4294901760
          %5927 = vmatpush1.msra.mxu0 %v5926
          %5928 = vmatprep.subr.mxu0 0.0
          %v5929 = vand.u32 %v5745, 4294901760
          %5930 = vmatpush1.msra.mxu0 %v5929
          %v5931 = vand.u32 %v5828, 4294901760
          %v5932 = vsub.f32 %v5828, %v5931
          %v5933 = vand.u32 %v5932, 4294901760
          %v5934 = vsub.f32 %v5932, %v5933
          %v5935 = vand.u32 %v5934, 4294901760
          %5936 = vmatprep.mubr.f32.mxu0 %v5935
          %v5937 = vand.u32 %v5827, 4294901760
          %v5938 = vsub.f32 %v5827, %v5937
          %v5939 = vand.u32 %v5938, 4294901760
          %v5940 = vsub.f32 %v5938, %v5939
          %v5941 = vand.u32 %v5940, 4294901760
          %5942 = vmatmul.mubr.f32.gmra.mrb[0].mxu0 %v5941
          %v5943 = vpop.f32.mrb[0].mxu0
          %v5944 = vadd.f32 %v5834, %v5943
          %v5945 = vpop.f32.mrb[0].mxu0
          %5946 = vdwg.mxu0
          %5947 = vmatprep.subr.mxu0 0.0
          %v5948 = vand.u32 %v5714, 4294901760
          %v5949 = vsub.f32 %v5714, %v5948
          %v5950 = vand.u32 %v5949, 4294901760
          %v5951 = vsub.f32 %v5949, %v5950
          %v5952 = vand.u32 %v5951, 4294901760
          %5953 = vmatpush1.msra.mxu0 %v5952
          %5954 = vmatprep.subr.mxu0 0.0
          %v5955 = vand.u32 %v5715, 4294901760
          %v5956 = vsub.f32 %v5715, %v5955
          %v5957 = vand.u32 %v5956, 4294901760
          %v5958 = vsub.f32 %v5956, %v5957
          %v5959 = vand.u32 %v5958, 4294901760
          %5960 = vmatpush1.msra.mxu0 %v5959
          %5961 = vmatprep.subr.mxu0 0.0
          %v5962 = vand.u32 %v5716, 4294901760
          %v5963 = vsub.f32 %v5716, %v5962
          %v5964 = vand.u32 %v5963, 4294901760
          %v5965 = vsub.f32 %v5963, %v5964
          %v5966 = vand.u32 %v5965, 4294901760
          %5967 = vmatpush1.msra.mxu0 %v5966
          %5968 = vmatprep.subr.mxu0 0.0
          %v5969 = vand.u32 %v5717, 4294901760
          %v5970 = vsub.f32 %v5717, %v5969
          %v5971 = vand.u32 %v5970, 4294901760
          %v5972 = vsub.f32 %v5970, %v5971
          %v5973 = vand.u32 %v5972, 4294901760
          %5974 = vmatpush1.msra.mxu0 %v5973
          %5975 = vmatprep.subr.mxu0 0.0
          %v5976 = vand.u32 %v5718, 4294901760
          %v5977 = vsub.f32 %v5718, %v5976
          %v5978 = vand.u32 %v5977, 4294901760
          %v5979 = vsub.f32 %v5977, %v5978
          %v5980 = vand.u32 %v5979, 4294901760
          %5981 = vmatpush1.msra.mxu0 %v5980
          %5982 = vmatprep.subr.mxu0 0.0
          %v5983 = vand.u32 %v5719, 4294901760
          %v5984 = vsub.f32 %v5719, %v5983
          %v5985 = vand.u32 %v5984, 4294901760
          %v5986 = vsub.f32 %v5984, %v5985
          %v5987 = vand.u32 %v5986, 4294901760
          %5988 = vmatpush1.msra.mxu0 %v5987
          %5989 = vmatprep.subr.mxu0 0.0
          %v5990 = vand.u32 %v5720, 4294901760
          %v5991 = vsub.f32 %v5720, %v5990
          %v5992 = vand.u32 %v5991, 4294901760
          %v5993 = vsub.f32 %v5991, %v5992
          %v5994 = vand.u32 %v5993, 4294901760
          %5995 = vmatpush1.msra.mxu0 %v5994
          %5996 = vmatprep.subr.mxu0 0.0
          %v5997 = vand.u32 %v5721, 4294901760
          %v5998 = vsub.f32 %v5721, %v5997
          %v5999 = vand.u32 %v5998, 4294901760
          %v6000 = vsub.f32 %v5998, %v5999
          %v6001 = vand.u32 %v6000, 4294901760
          %6002 = vmatpush1.msra.mxu0 %v6001
          %6003 = vmatprep.subr.mxu0 0.0
          %v6004 = vand.u32 %v5722, 4294901760
          %v6005 = vsub.f32 %v5722, %v6004
          %v6006 = vand.u32 %v6005, 4294901760
          %v6007 = vsub.f32 %v6005, %v6006
          %v6008 = vand.u32 %v6007, 4294901760
          %6009 = vmatpush1.msra.mxu0 %v6008
          %6010 = vmatprep.subr.mxu0 0.0
          %v6011 = vand.u32 %v5723, 4294901760
          %v6012 = vsub.f32 %v5723, %v6011
          %v6013 = vand.u32 %v6012, 4294901760
          %v6014 = vsub.f32 %v6012, %v6013
          %v6015 = vand.u32 %v6014, 4294901760
          %6016 = vmatpush1.msra.mxu0 %v6015
          %6017 = vmatprep.subr.mxu0 0.0
          %v6018 = vand.u32 %v5724, 4294901760
          %v6019 = vsub.f32 %v5724, %v6018
          %v6020 = vand.u32 %v6019, 4294901760
          %v6021 = vsub.f32 %v6019, %v6020
          %v6022 = vand.u32 %v6021, 4294901760
          %6023 = vmatpush1.msra.mxu0 %v6022
          %6024 = vmatprep.subr.mxu0 0.0
          %v6025 = vand.u32 %v5725, 4294901760
          %v6026 = vsub.f32 %v5725, %v6025
          %v6027 = vand.u32 %v6026, 4294901760
          %v6028 = vsub.f32 %v6026, %v6027
          %v6029 = vand.u32 %v6028, 4294901760
          %6030 = vmatpush1.msra.mxu0 %v6029
          %6031 = vmatprep.subr.mxu0 0.0
          %v6032 = vand.u32 %v5726, 4294901760
          %v6033 = vsub.f32 %v5726, %v6032
          %v6034 = vand.u32 %v6033, 4294901760
          %v6035 = vsub.f32 %v6033, %v6034
          %v6036 = vand.u32 %v6035, 4294901760
          %6037 = vmatpush1.msra.mxu0 %v6036
          %6038 = vmatprep.subr.mxu0 0.0
          %v6039 = vand.u32 %v5727, 4294901760
          %v6040 = vsub.f32 %v5727, %v6039
          %v6041 = vand.u32 %v6040, 4294901760
          %v6042 = vsub.f32 %v6040, %v6041
          %v6043 = vand.u32 %v6042, 4294901760
          %6044 = vmatpush1.msra.mxu0 %v6043
          %6045 = vmatprep.subr.mxu0 0.0
          %v6046 = vand.u32 %v5728, 4294901760
          %v6047 = vsub.f32 %v5728, %v6046
          %v6048 = vand.u32 %v6047, 4294901760
          %v6049 = vsub.f32 %v6047, %v6048
          %v6050 = vand.u32 %v6049, 4294901760
          %6051 = vmatpush1.msra.mxu0 %v6050
          %6052 = vmatprep.subr.mxu0 0.0
          %v6053 = vand.u32 %v5729, 4294901760
          %v6054 = vsub.f32 %v5729, %v6053
          %v6055 = vand.u32 %v6054, 4294901760
          %v6056 = vsub.f32 %v6054, %v6055
          %v6057 = vand.u32 %v6056, 4294901760
          %6058 = vmatpush1.msra.mxu0 %v6057
          %6059 = vmatprep.subr.mxu0 0.0
          %v6060 = vand.u32 %v5730, 4294901760
          %v6061 = vsub.f32 %v5730, %v6060
          %v6062 = vand.u32 %v6061, 4294901760
          %v6063 = vsub.f32 %v6061, %v6062
          %v6064 = vand.u32 %v6063, 4294901760
          %6065 = vmatpush1.msra.mxu0 %v6064
          %6066 = vmatprep.subr.mxu0 0.0
          %v6067 = vand.u32 %v5731, 4294901760
          %v6068 = vsub.f32 %v5731, %v6067
          %v6069 = vand.u32 %v6068, 4294901760
          %v6070 = vsub.f32 %v6068, %v6069
          %v6071 = vand.u32 %v6070, 4294901760
          %6072 = vmatpush1.msra.mxu0 %v6071
          %6073 = vmatprep.subr.mxu0 0.0
          %v6074 = vand.u32 %v5732, 4294901760
          %v6075 = vsub.f32 %v5732, %v6074
          %v6076 = vand.u32 %v6075, 4294901760
          %v6077 = vsub.f32 %v6075, %v6076
          %v6078 = vand.u32 %v6077, 4294901760
          %6079 = vmatpush1.msra.mxu0 %v6078
          %6080 = vmatprep.subr.mxu0 0.0
          %v6081 = vand.u32 %v5733, 4294901760
          %v6082 = vsub.f32 %v5733, %v6081
          %v6083 = vand.u32 %v6082, 4294901760
          %v6084 = vsub.f32 %v6082, %v6083
          %v6085 = vand.u32 %v6084, 4294901760
          %6086 = vmatpush1.msra.mxu0 %v6085
          %6087 = vmatprep.subr.mxu0 0.0
          %v6088 = vand.u32 %v5734, 4294901760
          %v6089 = vsub.f32 %v5734, %v6088
          %v6090 = vand.u32 %v6089, 4294901760
          %v6091 = vsub.f32 %v6089, %v6090
          %v6092 = vand.u32 %v6091, 4294901760
          %6093 = vmatpush1.msra.mxu0 %v6092
          %6094 = vmatprep.subr.mxu0 0.0
          %v6095 = vand.u32 %v5735, 4294901760
          %v6096 = vsub.f32 %v5735, %v6095
          %v6097 = vand.u32 %v6096, 4294901760
          %v6098 = vsub.f32 %v6096, %v6097
          %v6099 = vand.u32 %v6098, 4294901760
          %6100 = vmatpush1.msra.mxu0 %v6099
          %6101 = vmatprep.subr.mxu0 0.0
          %v6102 = vand.u32 %v5736, 4294901760
          %v6103 = vsub.f32 %v5736, %v6102
          %v6104 = vand.u32 %v6103, 4294901760
          %v6105 = vsub.f32 %v6103, %v6104
          %v6106 = vand.u32 %v6105, 4294901760
          %6107 = vmatpush1.msra.mxu0 %v6106
          %6108 = vmatprep.subr.mxu0 0.0
          %v6109 = vand.u32 %v5737, 4294901760
          %v6110 = vsub.f32 %v5737, %v6109
          %v6111 = vand.u32 %v6110, 4294901760
          %v6112 = vsub.f32 %v6110, %v6111
          %v6113 = vand.u32 %v6112, 4294901760
          %6114 = vmatpush1.msra.mxu0 %v6113
          %6115 = vmatprep.subr.mxu0 0.0
          %v6116 = vand.u32 %v5738, 4294901760
          %v6117 = vsub.f32 %v5738, %v6116
          %v6118 = vand.u32 %v6117, 4294901760
          %v6119 = vsub.f32 %v6117, %v6118
          %v6120 = vand.u32 %v6119, 4294901760
          %6121 = vmatpush1.msra.mxu0 %v6120
          %6122 = vmatprep.subr.mxu0 0.0
          %v6123 = vand.u32 %v5739, 4294901760
          %v6124 = vsub.f32 %v5739, %v6123
          %v6125 = vand.u32 %v6124, 4294901760
          %v6126 = vsub.f32 %v6124, %v6125
          %v6127 = vand.u32 %v6126, 4294901760
          %6128 = vmatpush1.msra.mxu0 %v6127
          %6129 = vmatprep.subr.mxu0 0.0
          %v6130 = vand.u32 %v5740, 4294901760
          %v6131 = vsub.f32 %v5740, %v6130
          %v6132 = vand.u32 %v6131, 4294901760
          %v6133 = vsub.f32 %v6131, %v6132
          %v6134 = vand.u32 %v6133, 4294901760
          %6135 = vmatpush1.msra.mxu0 %v6134
          %6136 = vmatprep.subr.mxu0 0.0
          %v6137 = vand.u32 %v5741, 4294901760
          %v6138 = vsub.f32 %v5741, %v6137
          %v6139 = vand.u32 %v6138, 4294901760
          %v6140 = vsub.f32 %v6138, %v6139
          %v6141 = vand.u32 %v6140, 4294901760
          %6142 = vmatpush1.msra.mxu0 %v6141
          %6143 = vmatprep.subr.mxu0 0.0
          %v6144 = vand.u32 %v5742, 4294901760
          %v6145 = vsub.f32 %v5742, %v6144
          %v6146 = vand.u32 %v6145, 4294901760
          %v6147 = vsub.f32 %v6145, %v6146
          %v6148 = vand.u32 %v6147, 4294901760
          %6149 = vmatpush1.msra.mxu0 %v6148
          %6150 = vmatprep.subr.mxu0 0.0
          %v6151 = vand.u32 %v5743, 4294901760
          %v6152 = vsub.f32 %v5743, %v6151
          %v6153 = vand.u32 %v6152, 4294901760
          %v6154 = vsub.f32 %v6152, %v6153
          %v6155 = vand.u32 %v6154, 4294901760
          %6156 = vmatpush1.msra.mxu0 %v6155
          %6157 = vmatprep.subr.mxu0 0.0
          %v6158 = vand.u32 %v5744, 4294901760
          %v6159 = vsub.f32 %v5744, %v6158
          %v6160 = vand.u32 %v6159, 4294901760
          %v6161 = vsub.f32 %v6159, %v6160
          %v6162 = vand.u32 %v6161, 4294901760
          %6163 = vmatpush1.msra.mxu0 %v6162
          %6164 = vmatprep.subr.mxu0 0.0
          %v6165 = vand.u32 %v5745, 4294901760
          %v6166 = vsub.f32 %v5745, %v6165
          %v6167 = vand.u32 %v6166, 4294901760
          %v6168 = vsub.f32 %v6166, %v6167
          %v6169 = vand.u32 %v6168, 4294901760
          %6170 = vmatpush1.msra.mxu0 %v6169
          %v6171 = vand.u32 %v5828, 4294901760
          %6172 = vmatprep.mubr.f32.mxu0 %v6171
          %v6173 = vand.u32 %v5827, 4294901760
          %6174 = vmatmul.mubr.f32.gmra.mrb[0].mxu0 %v6173
          %v6175 = vpop.f32.mrb[0].mxu0
          %v6176 = vadd.f32 %v5944, %v6175
          %v6177 = vpop.f32.mrb[0].mxu0
          %6178 = vdwg.mxu0
          %6179 = vmatprep.subr.mxu0 0.0
          %v6180 = vand.u32 %v5714, 4294901760
          %v6181 = vsub.f32 %v5714, %v6180
          %6182 = vmatpush1.msra.mxu0 %v6181
          %6183 = vmatprep.subr.mxu0 0.0
          %v6184 = vand.u32 %v5715, 4294901760
          %v6185 = vsub.f32 %v5715, %v6184
          %6186 = vmatpush1.msra.mxu0 %v6185
          %6187 = vmatprep.subr.mxu0 0.0
          %v6188 = vand.u32 %v5716, 4294901760
          %v6189 = vsub.f32 %v5716, %v6188
          %6190 = vmatpush1.msra.mxu0 %v6189
          %6191 = vmatprep.subr.mxu0 0.0
          %v6192 = vand.u32 %v5717, 4294901760
          %v6193 = vsub.f32 %v5717, %v6192
          %6194 = vmatpush1.msra.mxu0 %v6193
          %6195 = vmatprep.subr.mxu0 0.0
          %v6196 = vand.u32 %v5718, 4294901760
          %v6197 = vsub.f32 %v5718, %v6196
          %6198 = vmatpush1.msra.mxu0 %v6197
          %6199 = vmatprep.subr.mxu0 0.0
          %v6200 = vand.u32 %v5719, 4294901760
          %v6201 = vsub.f32 %v5719, %v6200
          %6202 = vmatpush1.msra.mxu0 %v6201
          %6203 = vmatprep.subr.mxu0 0.0
          %v6204 = vand.u32 %v5720, 4294901760
          %v6205 = vsub.f32 %v5720, %v6204
          %6206 = vmatpush1.msra.mxu0 %v6205
          %6207 = vmatprep.subr.mxu0 0.0
          %v6208 = vand.u32 %v5721, 4294901760
          %v6209 = vsub.f32 %v5721, %v6208
          %6210 = vmatpush1.msra.mxu0 %v6209
          %6211 = vmatprep.subr.mxu0 0.0
          %v6212 = vand.u32 %v5722, 4294901760
          %v6213 = vsub.f32 %v5722, %v6212
          %6214 = vmatpush1.msra.mxu0 %v6213
          %6215 = vmatprep.subr.mxu0 0.0
          %v6216 = vand.u32 %v5723, 4294901760
          %v6217 = vsub.f32 %v5723, %v6216
          %6218 = vmatpush1.msra.mxu0 %v6217
          %6219 = vmatprep.subr.mxu0 0.0
          %v6220 = vand.u32 %v5724, 4294901760
          %v6221 = vsub.f32 %v5724, %v6220
          %6222 = vmatpush1.msra.mxu0 %v6221
          %6223 = vmatprep.subr.mxu0 0.0
          %v6224 = vand.u32 %v5725, 4294901760
          %v6225 = vsub.f32 %v5725, %v6224
          %6226 = vmatpush1.msra.mxu0 %v6225
          %6227 = vmatprep.subr.mxu0 0.0
          %v6228 = vand.u32 %v5726, 4294901760
          %v6229 = vsub.f32 %v5726, %v6228
          %6230 = vmatpush1.msra.mxu0 %v6229
          %6231 = vmatprep.subr.mxu0 0.0
          %v6232 = vand.u32 %v5727, 4294901760
          %v6233 = vsub.f32 %v5727, %v6232
          %6234 = vmatpush1.msra.mxu0 %v6233
          %6235 = vmatprep.subr.mxu0 0.0
          %v6236 = vand.u32 %v5728, 4294901760
          %v6237 = vsub.f32 %v5728, %v6236
          %6238 = vmatpush1.msra.mxu0 %v6237
          %6239 = vmatprep.subr.mxu0 0.0
          %v6240 = vand.u32 %v5729, 4294901760
          %v6241 = vsub.f32 %v5729, %v6240
          %6242 = vmatpush1.msra.mxu0 %v6241
          %6243 = vmatprep.subr.mxu0 0.0
          %v6244 = vand.u32 %v5730, 4294901760
          %v6245 = vsub.f32 %v5730, %v6244
          %6246 = vmatpush1.msra.mxu0 %v6245
          %6247 = vmatprep.subr.mxu0 0.0
          %v6248 = vand.u32 %v5731, 4294901760
          %v6249 = vsub.f32 %v5731, %v6248
          %6250 = vmatpush1.msra.mxu0 %v6249
          %6251 = vmatprep.subr.mxu0 0.0
          %v6252 = vand.u32 %v5732, 4294901760
          %v6253 = vsub.f32 %v5732, %v6252
          %6254 = vmatpush1.msra.mxu0 %v6253
          %6255 = vmatprep.subr.mxu0 0.0
          %v6256 = vand.u32 %v5733, 4294901760
          %v6257 = vsub.f32 %v5733, %v6256
          %6258 = vmatpush1.msra.mxu0 %v6257
          %6259 = vmatprep.subr.mxu0 0.0
          %v6260 = vand.u32 %v5734, 4294901760
          %v6261 = vsub.f32 %v5734, %v6260
          %6262 = vmatpush1.msra.mxu0 %v6261
          %6263 = vmatprep.subr.mxu0 0.0
          %v6264 = vand.u32 %v5735, 4294901760
          %v6265 = vsub.f32 %v5735, %v6264
          %6266 = vmatpush1.msra.mxu0 %v6265
          %6267 = vmatprep.subr.mxu0 0.0
          %v6268 = vand.u32 %v5736, 4294901760
          %v6269 = vsub.f32 %v5736, %v6268
          %6270 = vmatpush1.msra.mxu0 %v6269
          %6271 = vmatprep.subr.mxu0 0.0
          %v6272 = vand.u32 %v5737, 4294901760
          %v6273 = vsub.f32 %v5737, %v6272
          %6274 = vmatpush1.msra.mxu0 %v6273
          %6275 = vmatprep.subr.mxu0 0.0
          %v6276 = vand.u32 %v5738, 4294901760
          %v6277 = vsub.f32 %v5738, %v6276
          %6278 = vmatpush1.msra.mxu0 %v6277
          %6279 = vmatprep.subr.mxu0 0.0
          %v6280 = vand.u32 %v5739, 4294901760
          %v6281 = vsub.f32 %v5739, %v6280
          %6282 = vmatpush1.msra.mxu0 %v6281
          %6283 = vmatprep.subr.mxu0 0.0
          %v6284 = vand.u32 %v5740, 4294901760
          %v6285 = vsub.f32 %v5740, %v6284
          %6286 = vmatpush1.msra.mxu0 %v6285
          %6287 = vmatprep.subr.mxu0 0.0
          %v6288 = vand.u32 %v5741, 4294901760
          %v6289 = vsub.f32 %v5741, %v6288
          %6290 = vmatpush1.msra.mxu0 %v6289
          %6291 = vmatprep.subr.mxu0 0.0
          %v6292 = vand.u32 %v5742, 4294901760
          %v6293 = vsub.f32 %v5742, %v6292
          %6294 = vmatpush1.msra.mxu0 %v6293
          %6295 = vmatprep.subr.mxu0 0.0
          %v6296 = vand.u32 %v5743, 4294901760
          %v6297 = vsub.f32 %v5743, %v6296
          %6298 = vmatpush1.msra.mxu0 %v6297
          %6299 = vmatprep.subr.mxu0 0.0
          %v6300 = vand.u32 %v5744, 4294901760
          %v6301 = vsub.f32 %v5744, %v6300
          %6302 = vmatpush1.msra.mxu0 %v6301
          %6303 = vmatprep.subr.mxu0 0.0
          %v6304 = vand.u32 %v5745, 4294901760
          %v6305 = vsub.f32 %v5745, %v6304
          %6306 = vmatpush1.msra.mxu0 %v6305
          %v6307 = vand.u32 %v5828, 4294901760
          %v6308 = vsub.f32 %v5828, %v6307
          %6309 = vmatprep.mubr.f32.mxu0 %v6308
          %v6310 = vand.u32 %v5827, 4294901760
          %v6311 = vsub.f32 %v5827, %v6310
          %6312 = vmatmul.mubr.f32.gmra.mrb[0].mxu0 %v6311
          %v6313 = vpop.f32.mrb[0].mxu0
          %v6314 = vadd.f32 %v6176, %v6313
          %v6315 = vpop.f32.mrb[0].mxu0
          %6316 = vdwg.mxu0
          %6317 = vmatprep.subr.mxu0 0.0
          %v6318 = vand.u32 %v5714, 4294901760
          %6319 = vmatpush1.msra.mxu0 %v6318
          %6320 = vmatprep.subr.mxu0 0.0
          %v6321 = vand.u32 %v5715, 4294901760
          %6322 = vmatpush1.msra.mxu0 %v6321
          %6323 = vmatprep.subr.mxu0 0.0
          %v6324 = vand.u32 %v5716, 4294901760
          %6325 = vmatpush1.msra.mxu0 %v6324
          %6326 = vmatprep.subr.mxu0 0.0
          %v6327 = vand.u32 %v5717, 4294901760
          %6328 = vmatpush1.msra.mxu0 %v6327
          %6329 = vmatprep.subr.mxu0 0.0
          %v6330 = vand.u32 %v5718, 4294901760
          %6331 = vmatpush1.msra.mxu0 %v6330
          %6332 = vmatprep.subr.mxu0 0.0
          %v6333 = vand.u32 %v5719, 4294901760
          %6334 = vmatpush1.msra.mxu0 %v6333
          %6335 = vmatprep.subr.mxu0 0.0
          %v6336 = vand.u32 %v5720, 4294901760
          %6337 = vmatpush1.msra.mxu0 %v6336
          %6338 = vmatprep.subr.mxu0 0.0
          %v6339 = vand.u32 %v5721, 4294901760
          %6340 = vmatpush1.msra.mxu0 %v6339
          %6341 = vmatprep.subr.mxu0 0.0
          %v6342 = vand.u32 %v5722, 4294901760
          %6343 = vmatpush1.msra.mxu0 %v6342
          %6344 = vmatprep.subr.mxu0 0.0
          %v6345 = vand.u32 %v5723, 4294901760
          %6346 = vmatpush1.msra.mxu0 %v6345
          %6347 = vmatprep.subr.mxu0 0.0
          %v6348 = vand.u32 %v5724, 4294901760
          %6349 = vmatpush1.msra.mxu0 %v6348
          %6350 = vmatprep.subr.mxu0 0.0
          %v6351 = vand.u32 %v5725, 4294901760
          %6352 = vmatpush1.msra.mxu0 %v6351
          %6353 = vmatprep.subr.mxu0 0.0
          %v6354 = vand.u32 %v5726, 4294901760
          %6355 = vmatpush1.msra.mxu0 %v6354
          %6356 = vmatprep.subr.mxu0 0.0
          %v6357 = vand.u32 %v5727, 4294901760
          %6358 = vmatpush1.msra.mxu0 %v6357
          %6359 = vmatprep.subr.mxu0 0.0
          %v6360 = vand.u32 %v5728, 4294901760
          %6361 = vmatpush1.msra.mxu0 %v6360
          %6362 = vmatprep.subr.mxu0 0.0
          %v6363 = vand.u32 %v5729, 4294901760
          %6364 = vmatpush1.msra.mxu0 %v6363
          %6365 = vmatprep.subr.mxu0 0.0
          %v6366 = vand.u32 %v5730, 4294901760
          %6367 = vmatpush1.msra.mxu0 %v6366
          %6368 = vmatprep.subr.mxu0 0.0
          %v6369 = vand.u32 %v5731, 4294901760
          %6370 = vmatpush1.msra.mxu0 %v6369
          %6371 = vmatprep.subr.mxu0 0.0
          %v6372 = vand.u32 %v5732, 4294901760
          %6373 = vmatpush1.msra.mxu0 %v6372
          %6374 = vmatprep.subr.mxu0 0.0
          %v6375 = vand.u32 %v5733, 4294901760
          %6376 = vmatpush1.msra.mxu0 %v6375
          %6377 = vmatprep.subr.mxu0 0.0
          %v6378 = vand.u32 %v5734, 4294901760
          %6379 = vmatpush1.msra.mxu0 %v6378
          %6380 = vmatprep.subr.mxu0 0.0
          %v6381 = vand.u32 %v5735, 4294901760
          %6382 = vmatpush1.msra.mxu0 %v6381
          %6383 = vmatprep.subr.mxu0 0.0
          %v6384 = vand.u32 %v5736, 4294901760
          %6385 = vmatpush1.msra.mxu0 %v6384
          %6386 = vmatprep.subr.mxu0 0.0
          %v6387 = vand.u32 %v5737, 4294901760
          %6388 = vmatpush1.msra.mxu0 %v6387
          %6389 = vmatprep.subr.mxu0 0.0
          %v6390 = vand.u32 %v5738, 4294901760
          %6391 = vmatpush1.msra.mxu0 %v6390
          %6392 = vmatprep.subr.mxu0 0.0
          %v6393 = vand.u32 %v5739, 4294901760
          %6394 = vmatpush1.msra.mxu0 %v6393
          %6395 = vmatprep.subr.mxu0 0.0
          %v6396 = vand.u32 %v5740, 4294901760
          %6397 = vmatpush1.msra.mxu0 %v6396
          %6398 = vmatprep.subr.mxu0 0.0
          %v6399 = vand.u32 %v5741, 4294901760
          %6400 = vmatpush1.msra.mxu0 %v6399
          %6401 = vmatprep.subr.mxu0 0.0
          %v6402 = vand.u32 %v5742, 4294901760
          %6403 = vmatpush1.msra.mxu0 %v6402
          %6404 = vmatprep.subr.mxu0 0.0
          %v6405 = vand.u32 %v5743, 4294901760
          %6406 = vmatpush1.msra.mxu0 %v6405
          %6407 = vmatprep.subr.mxu0 0.0
          %v6408 = vand.u32 %v5744, 4294901760
          %6409 = vmatpush1.msra.mxu0 %v6408
          %6410 = vmatprep.subr.mxu0 0.0
          %v6411 = vand.u32 %v5745, 4294901760
          %6412 = vmatpush1.msra.mxu0 %v6411
          %v6413 = vand.u32 %v5828, 4294901760
          %v6414 = vsub.f32 %v5828, %v6413
          %v6415 = vand.u32 %v6414, 4294901760
          %6416 = vmatprep.mubr.f32.mxu0 %v6415
          %v6417 = vand.u32 %v5827, 4294901760
          %v6418 = vsub.f32 %v5827, %v6417
          %v6419 = vand.u32 %v6418, 4294901760
          %6420 = vmatmul.mubr.f32.gmra.mrb[0].mxu0 %v6419
          %v6421 = vpop.f32.mrb[0].mxu0
          %v6422 = vadd.f32 %v6314, %v6421
          %v6423 = vpop.f32.mrb[0].mxu0
          %6424 = vdwg.mxu0
          %6425 = vmatprep.subr.mxu0 0.0
          %v6426 = vand.u32 %v5714, 4294901760
          %v6427 = vsub.f32 %v5714, %v6426
          %v6428 = vand.u32 %v6427, 4294901760
          %6429 = vmatpush1.msra.mxu0 %v6428
          %6430 = vmatprep.subr.mxu0 0.0
          %v6431 = vand.u32 %v5715, 4294901760
          %v6432 = vsub.f32 %v5715, %v6431
          %v6433 = vand.u32 %v6432, 4294901760
          %6434 = vmatpush1.msra.mxu0 %v6433
          %6435 = vmatprep.subr.mxu0 0.0
          %v6436 = vand.u32 %v5716, 4294901760
          %v6437 = vsub.f32 %v5716, %v6436
          %v6438 = vand.u32 %v6437, 4294901760
          %6439 = vmatpush1.msra.mxu0 %v6438
          %6440 = vmatprep.subr.mxu0 0.0
          %v6441 = vand.u32 %v5717, 4294901760
          %v6442 = vsub.f32 %v5717, %v6441
          %v6443 = vand.u32 %v6442, 4294901760
          %6444 = vmatpush1.msra.mxu0 %v6443
          %6445 = vmatprep.subr.mxu0 0.0
          %v6446 = vand.u32 %v5718, 4294901760
          %v6447 = vsub.f32 %v5718, %v6446
          %v6448 = vand.u32 %v6447, 4294901760
          %6449 = vmatpush1.msra.mxu0 %v6448
          %6450 = vmatprep.subr.mxu0 0.0
          %v6451 = vand.u32 %v5719, 4294901760
          %v6452 = vsub.f32 %v5719, %v6451
          %v6453 = vand.u32 %v6452, 4294901760
          %6454 = vmatpush1.msra.mxu0 %v6453
          %6455 = vmatprep.subr.mxu0 0.0
          %v6456 = vand.u32 %v5720, 4294901760
          %v6457 = vsub.f32 %v5720, %v6456
          %v6458 = vand.u32 %v6457, 4294901760
          %6459 = vmatpush1.msra.mxu0 %v6458
          %6460 = vmatprep.subr.mxu0 0.0
          %v6461 = vand.u32 %v5721, 4294901760
          %v6462 = vsub.f32 %v5721, %v6461
          %v6463 = vand.u32 %v6462, 4294901760
          %6464 = vmatpush1.msra.mxu0 %v6463
          %6465 = vmatprep.subr.mxu0 0.0
          %v6466 = vand.u32 %v5722, 4294901760
          %v6467 = vsub.f32 %v5722, %v6466
          %v6468 = vand.u32 %v6467, 4294901760
          %6469 = vmatpush1.msra.mxu0 %v6468
          %6470 = vmatprep.subr.mxu0 0.0
          %v6471 = vand.u32 %v5723, 4294901760
          %v6472 = vsub.f32 %v5723, %v6471
          %v6473 = vand.u32 %v6472, 4294901760
          %6474 = vmatpush1.msra.mxu0 %v6473
          %6475 = vmatprep.subr.mxu0 0.0
          %v6476 = vand.u32 %v5724, 4294901760
          %v6477 = vsub.f32 %v5724, %v6476
          %v6478 = vand.u32 %v6477, 4294901760
          %6479 = vmatpush1.msra.mxu0 %v6478
          %6480 = vmatprep.subr.mxu0 0.0
          %v6481 = vand.u32 %v5725, 4294901760
          %v6482 = vsub.f32 %v5725, %v6481
          %v6483 = vand.u32 %v6482, 4294901760
          %6484 = vmatpush1.msra.mxu0 %v6483
          %6485 = vmatprep.subr.mxu0 0.0
          %v6486 = vand.u32 %v5726, 4294901760
          %v6487 = vsub.f32 %v5726, %v6486
          %v6488 = vand.u32 %v6487, 4294901760
          %6489 = vmatpush1.msra.mxu0 %v6488
          %6490 = vmatprep.subr.mxu0 0.0
          %v6491 = vand.u32 %v5727, 4294901760
          %v6492 = vsub.f32 %v5727, %v6491
          %v6493 = vand.u32 %v6492, 4294901760
          %6494 = vmatpush1.msra.mxu0 %v6493
          %6495 = vmatprep.subr.mxu0 0.0
          %v6496 = vand.u32 %v5728, 4294901760
          %v6497 = vsub.f32 %v5728, %v6496
          %v6498 = vand.u32 %v6497, 4294901760
          %6499 = vmatpush1.msra.mxu0 %v6498
          %6500 = vmatprep.subr.mxu0 0.0
          %v6501 = vand.u32 %v5729, 4294901760
          %v6502 = vsub.f32 %v5729, %v6501
          %v6503 = vand.u32 %v6502, 4294901760
          %6504 = vmatpush1.msra.mxu0 %v6503
          %6505 = vmatprep.subr.mxu0 0.0
          %v6506 = vand.u32 %v5730, 4294901760
          %v6507 = vsub.f32 %v5730, %v6506
          %v6508 = vand.u32 %v6507, 4294901760
          %6509 = vmatpush1.msra.mxu0 %v6508
          %6510 = vmatprep.subr.mxu0 0.0
          %v6511 = vand.u32 %v5731, 4294901760
          %v6512 = vsub.f32 %v5731, %v6511
          %v6513 = vand.u32 %v6512, 4294901760
          %6514 = vmatpush1.msra.mxu0 %v6513
          %6515 = vmatprep.subr.mxu0 0.0
          %v6516 = vand.u32 %v5732, 4294901760
          %v6517 = vsub.f32 %v5732, %v6516
          %v6518 = vand.u32 %v6517, 4294901760
          %6519 = vmatpush1.msra.mxu0 %v6518
          %6520 = vmatprep.subr.mxu0 0.0
          %v6521 = vand.u32 %v5733, 4294901760
          %v6522 = vsub.f32 %v5733, %v6521
          %v6523 = vand.u32 %v6522, 4294901760
          %6524 = vmatpush1.msra.mxu0 %v6523
          %6525 = vmatprep.subr.mxu0 0.0
          %v6526 = vand.u32 %v5734, 4294901760
          %v6527 = vsub.f32 %v5734, %v6526
          %v6528 = vand.u32 %v6527, 4294901760
          %6529 = vmatpush1.msra.mxu0 %v6528
          %6530 = vmatprep.subr.mxu0 0.0
          %v6531 = vand.u32 %v5735, 4294901760
          %v6532 = vsub.f32 %v5735, %v6531
          %v6533 = vand.u32 %v6532, 4294901760
          %6534 = vmatpush1.msra.mxu0 %v6533
          %6535 = vmatprep.subr.mxu0 0.0
          %v6536 = vand.u32 %v5736, 4294901760
          %v6537 = vsub.f32 %v5736, %v6536
          %v6538 = vand.u32 %v6537, 4294901760
          %6539 = vmatpush1.msra.mxu0 %v6538
          %6540 = vmatprep.subr.mxu0 0.0
          %v6541 = vand.u32 %v5737, 4294901760
          %v6542 = vsub.f32 %v5737, %v6541
          %v6543 = vand.u32 %v6542, 4294901760
          %6544 = vmatpush1.msra.mxu0 %v6543
          %6545 = vmatprep.subr.mxu0 0.0
          %v6546 = vand.u32 %v5738, 4294901760
          %v6547 = vsub.f32 %v5738, %v6546
          %v6548 = vand.u32 %v6547, 4294901760
          %6549 = vmatpush1.msra.mxu0 %v6548
          %6550 = vmatprep.subr.mxu0 0.0
          %v6551 = vand.u32 %v5739, 4294901760
          %v6552 = vsub.f32 %v5739, %v6551
          %v6553 = vand.u32 %v6552, 4294901760
          %6554 = vmatpush1.msra.mxu0 %v6553
          %6555 = vmatprep.subr.mxu0 0.0
          %v6556 = vand.u32 %v5740, 4294901760
          %v6557 = vsub.f32 %v5740, %v6556
          %v6558 = vand.u32 %v6557, 4294901760
          %6559 = vmatpush1.msra.mxu0 %v6558
          %6560 = vmatprep.subr.mxu0 0.0
          %v6561 = vand.u32 %v5741, 4294901760
          %v6562 = vsub.f32 %v5741, %v6561
          %v6563 = vand.u32 %v6562, 4294901760
          %6564 = vmatpush1.msra.mxu0 %v6563
          %6565 = vmatprep.subr.mxu0 0.0
          %v6566 = vand.u32 %v5742, 4294901760
          %v6567 = vsub.f32 %v5742, %v6566
          %v6568 = vand.u32 %v6567, 4294901760
          %6569 = vmatpush1.msra.mxu0 %v6568
          %6570 = vmatprep.subr.mxu0 0.0
          %v6571 = vand.u32 %v5743, 4294901760
          %v6572 = vsub.f32 %v5743, %v6571
          %v6573 = vand.u32 %v6572, 4294901760
          %6574 = vmatpush1.msra.mxu0 %v6573
          %6575 = vmatprep.subr.mxu0 0.0
          %v6576 = vand.u32 %v5744, 4294901760
          %v6577 = vsub.f32 %v5744, %v6576
          %v6578 = vand.u32 %v6577, 4294901760
          %6579 = vmatpush1.msra.mxu0 %v6578
          %6580 = vmatprep.subr.mxu0 0.0
          %v6581 = vand.u32 %v5745, 4294901760
          %v6582 = vsub.f32 %v5745, %v6581
          %v6583 = vand.u32 %v6582, 4294901760
          %6584 = vmatpush1.msra.mxu0 %v6583
          %v6585 = vand.u32 %v5828, 4294901760
          %6586 = vmatprep.mubr.f32.mxu0 %v6585
          %v6587 = vand.u32 %v5827, 4294901760
          %6588 = vmatmul.mubr.f32.gmra.mrb[0].mxu0 %v6587
          %v6589 = vpop.f32.mrb[0].mxu0
          %v6590 = vadd.f32 %v6422, %v6589
          %v6591 = vpop.f32.mrb[0].mxu0
          %6592 = vdwg.mxu0
          %6593 = vmatprep.subr.mxu0 0.0
          %v6594 = vand.u32 %v5714, 4294901760
          %6595 = vmatpush1.msra.mxu0 %v6594
          %6596 = vmatprep.subr.mxu0 0.0
          %v6597 = vand.u32 %v5715, 4294901760
          %6598 = vmatpush1.msra.mxu0 %v6597
          %6599 = vmatprep.subr.mxu0 0.0
          %v6600 = vand.u32 %v5716, 4294901760
          %6601 = vmatpush1.msra.mxu0 %v6600
          %6602 = vmatprep.subr.mxu0 0.0
          %v6603 = vand.u32 %v5717, 4294901760
          %6604 = vmatpush1.msra.mxu0 %v6603
          %6605 = vmatprep.subr.mxu0 0.0
          %v6606 = vand.u32 %v5718, 4294901760
          %6607 = vmatpush1.msra.mxu0 %v6606
          %6608 = vmatprep.subr.mxu0 0.0
          %v6609 = vand.u32 %v5719, 4294901760
          %6610 = vmatpush1.msra.mxu0 %v6609
          %6611 = vmatprep.subr.mxu0 0.0
          %v6612 = vand.u32 %v5720, 4294901760
          %6613 = vmatpush1.msra.mxu0 %v6612
          %6614 = vmatprep.subr.mxu0 0.0
          %v6615 = vand.u32 %v5721, 4294901760
          %6616 = vmatpush1.msra.mxu0 %v6615
          %6617 = vmatprep.subr.mxu0 0.0
          %v6618 = vand.u32 %v5722, 4294901760
          %6619 = vmatpush1.msra.mxu0 %v6618
          %6620 = vmatprep.subr.mxu0 0.0
          %v6621 = vand.u32 %v5723, 4294901760
          %6622 = vmatpush1.msra.mxu0 %v6621
          %6623 = vmatprep.subr.mxu0 0.0
          %v6624 = vand.u32 %v5724, 4294901760
          %6625 = vmatpush1.msra.mxu0 %v6624
          %6626 = vmatprep.subr.mxu0 0.0
          %v6627 = vand.u32 %v5725, 4294901760
          %6628 = vmatpush1.msra.mxu0 %v6627
          %6629 = vmatprep.subr.mxu0 0.0
          %v6630 = vand.u32 %v5726, 4294901760
          %6631 = vmatpush1.msra.mxu0 %v6630
          %6632 = vmatprep.subr.mxu0 0.0
          %v6633 = vand.u32 %v5727, 4294901760
          %6634 = vmatpush1.msra.mxu0 %v6633
          %6635 = vmatprep.subr.mxu0 0.0
          %v6636 = vand.u32 %v5728, 4294901760
          %6637 = vmatpush1.msra.mxu0 %v6636
          %6638 = vmatprep.subr.mxu0 0.0
          %v6639 = vand.u32 %v5729, 4294901760
          %6640 = vmatpush1.msra.mxu0 %v6639
          %6641 = vmatprep.subr.mxu0 0.0
          %v6642 = vand.u32 %v5730, 4294901760
          %6643 = vmatpush1.msra.mxu0 %v6642
          %6644 = vmatprep.subr.mxu0 0.0
          %v6645 = vand.u32 %v5731, 4294901760
          %6646 = vmatpush1.msra.mxu0 %v6645
          %6647 = vmatprep.subr.mxu0 0.0
          %v6648 = vand.u32 %v5732, 4294901760
          %6649 = vmatpush1.msra.mxu0 %v6648
          %6650 = vmatprep.subr.mxu0 0.0
          %v6651 = vand.u32 %v5733, 4294901760
          %6652 = vmatpush1.msra.mxu0 %v6651
          %6653 = vmatprep.subr.mxu0 0.0
          %v6654 = vand.u32 %v5734, 4294901760
          %6655 = vmatpush1.msra.mxu0 %v6654
          %6656 = vmatprep.subr.mxu0 0.0
          %v6657 = vand.u32 %v5735, 4294901760
          %6658 = vmatpush1.msra.mxu0 %v6657
          %6659 = vmatprep.subr.mxu0 0.0
          %v6660 = vand.u32 %v5736, 4294901760
          %6661 = vmatpush1.msra.mxu0 %v6660
          %6662 = vmatprep.subr.mxu0 0.0
          %v6663 = vand.u32 %v5737, 4294901760
          %6664 = vmatpush1.msra.mxu0 %v6663
          %6665 = vmatprep.subr.mxu0 0.0
          %v6666 = vand.u32 %v5738, 4294901760
          %6667 = vmatpush1.msra.mxu0 %v6666
          %6668 = vmatprep.subr.mxu0 0.0
          %v6669 = vand.u32 %v5739, 4294901760
          %6670 = vmatpush1.msra.mxu0 %v6669
          %6671 = vmatprep.subr.mxu0 0.0
          %v6672 = vand.u32 %v5740, 4294901760
          %6673 = vmatpush1.msra.mxu0 %v6672
          %6674 = vmatprep.subr.mxu0 0.0
          %v6675 = vand.u32 %v5741, 4294901760
          %6676 = vmatpush1.msra.mxu0 %v6675
          %6677 = vmatprep.subr.mxu0 0.0
          %v6678 = vand.u32 %v5742, 4294901760
          %6679 = vmatpush1.msra.mxu0 %v6678
          %6680 = vmatprep.subr.mxu0 0.0
          %v6681 = vand.u32 %v5743, 4294901760
          %6682 = vmatpush1.msra.mxu0 %v6681
          %6683 = vmatprep.subr.mxu0 0.0
          %v6684 = vand.u32 %v5744, 4294901760
          %6685 = vmatpush1.msra.mxu0 %v6684
          %6686 = vmatprep.subr.mxu0 0.0
          %v6687 = vand.u32 %v5745, 4294901760
          %6688 = vmatpush1.msra.mxu0 %v6687
          %v6689 = vand.u32 %v5828, 4294901760
          %6690 = vmatprep.mubr.f32.mxu0 %v6689
          %v6691 = vand.u32 %v5827, 4294901760
          %6692 = vmatmul.mubr.f32.gmra.mrb[0].mxu0 %v6691
          %v6693 = vpop.f32.mrb[0].mxu0
          %v6694 = vadd.f32 %v6590, %v6693
          %v6695 = vpop.f32.mrb[0].mxu0
          %6696 = vdwg.mxu0
          %6697 = vmatprep.subr.mxu0 0.0
          %v6698 = vand.u32 %v5746, 4294901760
          %6699 = vmatpush1.msra.mxu0 %v6698
          %6700 = vmatprep.subr.mxu0 0.0
          %v6701 = vand.u32 %v5747, 4294901760
          %6702 = vmatpush1.msra.mxu0 %v6701
          %6703 = vmatprep.subr.mxu0 0.0
          %v6704 = vand.u32 %v5748, 4294901760
          %6705 = vmatpush1.msra.mxu0 %v6704
          %6706 = vmatprep.subr.mxu0 0.0
          %v6707 = vand.u32 %v5749, 4294901760
          %6708 = vmatpush1.msra.mxu0 %v6707
          %6709 = vmatprep.subr.mxu0 0.0
          %v6710 = vand.u32 %v5750, 4294901760
          %6711 = vmatpush1.msra.mxu0 %v6710
          %6712 = vmatprep.subr.mxu0 0.0
          %v6713 = vand.u32 %v5751, 4294901760
          %6714 = vmatpush1.msra.mxu0 %v6713
          %6715 = vmatprep.subr.mxu0 0.0
          %v6716 = vand.u32 %v5752, 4294901760
          %6717 = vmatpush1.msra.mxu0 %v6716
          %6718 = vmatprep.subr.mxu0 0.0
          %v6719 = vand.u32 %v5753, 4294901760
          %6720 = vmatpush1.msra.mxu0 %v6719
          %6721 = vmatprep.subr.mxu0 0.0
          %v6722 = vand.u32 %v5754, 4294901760
          %6723 = vmatpush1.msra.mxu0 %v6722
          %6724 = vmatprep.subr.mxu0 0.0
          %v6725 = vand.u32 %v5755, 4294901760
          %6726 = vmatpush1.msra.mxu0 %v6725
          %6727 = vmatprep.subr.mxu0 0.0
          %v6728 = vand.u32 %v5756, 4294901760
          %6729 = vmatpush1.msra.mxu0 %v6728
          %6730 = vmatprep.subr.mxu0 0.0
          %v6731 = vand.u32 %v5757, 4294901760
          %6732 = vmatpush1.msra.mxu0 %v6731
          %6733 = vmatprep.subr.mxu0 0.0
          %v6734 = vand.u32 %v5758, 4294901760
          %6735 = vmatpush1.msra.mxu0 %v6734
          %6736 = vmatprep.subr.mxu0 0.0
          %v6737 = vand.u32 %v5759, 4294901760
          %6738 = vmatpush1.msra.mxu0 %v6737
          %6739 = vmatprep.subr.mxu0 0.0
          %v6740 = vand.u32 %v5760, 4294901760
          %6741 = vmatpush1.msra.mxu0 %v6740
          %6742 = vmatprep.subr.mxu0 0.0
          %v6743 = vand.u32 %v5761, 4294901760
          %6744 = vmatpush1.msra.mxu0 %v6743
          %6745 = vmatprep.subr.mxu0 0.0
          %v6746 = vand.u32 %v5762, 4294901760
          %6747 = vmatpush1.msra.mxu0 %v6746
          %6748 = vmatprep.subr.mxu0 0.0
          %v6749 = vand.u32 %v5763, 4294901760
          %6750 = vmatpush1.msra.mxu0 %v6749
          %6751 = vmatprep.subr.mxu0 0.0
          %v6752 = vand.u32 %v5764, 4294901760
          %6753 = vmatpush1.msra.mxu0 %v6752
          %6754 = vmatprep.subr.mxu0 0.0
          %v6755 = vand.u32 %v5765, 4294901760
          %6756 = vmatpush1.msra.mxu0 %v6755
          %6757 = vmatprep.subr.mxu0 0.0
          %v6758 = vand.u32 %v5766, 4294901760
          %6759 = vmatpush1.msra.mxu0 %v6758
          %6760 = vmatprep.subr.mxu0 0.0
          %v6761 = vand.u32 %v5767, 4294901760
          %6762 = vmatpush1.msra.mxu0 %v6761
          %6763 = vmatprep.subr.mxu0 0.0
          %v6764 = vand.u32 %v5768, 4294901760
          %6765 = vmatpush1.msra.mxu0 %v6764
          %6766 = vmatprep.subr.mxu0 0.0
          %v6767 = vand.u32 %v5769, 4294901760
          %6768 = vmatpush1.msra.mxu0 %v6767
          %6769 = vmatprep.subr.mxu0 0.0
          %v6770 = vand.u32 %v5770, 4294901760
          %6771 = vmatpush1.msra.mxu0 %v6770
          %6772 = vmatprep.subr.mxu0 0.0
          %v6773 = vand.u32 %v5771, 4294901760
          %6774 = vmatpush1.msra.mxu0 %v6773
          %6775 = vmatprep.subr.mxu0 0.0
          %v6776 = vand.u32 %v5772, 4294901760
          %6777 = vmatpush1.msra.mxu0 %v6776
          %6778 = vmatprep.subr.mxu0 0.0
          %v6779 = vand.u32 %v5773, 4294901760
          %6780 = vmatpush1.msra.mxu0 %v6779
          %6781 = vmatprep.subr.mxu0 0.0
          %v6782 = vand.u32 %v5774, 4294901760
          %6783 = vmatpush1.msra.mxu0 %v6782
          %6784 = vmatprep.subr.mxu0 0.0
          %v6785 = vand.u32 %v5775, 4294901760
          %6786 = vmatpush1.msra.mxu0 %v6785
          %6787 = vmatprep.subr.mxu0 0.0
          %v6788 = vand.u32 %v5776, 4294901760
          %6789 = vmatpush1.msra.mxu0 %v6788
          %6790 = vmatprep.subr.mxu0 0.0
          %v6791 = vand.u32 %v5777, 4294901760
          %6792 = vmatpush1.msra.mxu0 %v6791
          %v6793 = vand.u32 %v5830, 4294901760
          %v6794 = vsub.f32 %v5830, %v6793
          %v6795 = vand.u32 %v6794, 4294901760
          %v6796 = vsub.f32 %v6794, %v6795
          %v6797 = vand.u32 %v6796, 4294901760
          %6798 = vmatprep.mubr.f32.mxu0 %v6797
          %v6799 = vand.u32 %v5829, 4294901760
          %v6800 = vsub.f32 %v5829, %v6799
          %v6801 = vand.u32 %v6800, 4294901760
          %v6802 = vsub.f32 %v6800, %v6801
          %v6803 = vand.u32 %v6802, 4294901760
          %6804 = vmatmul.mubr.f32.gmra.mrb[0].mxu0 %v6803
          %v6805 = vpop.f32.mrb[0].mxu0
          %v6806 = vadd.f32 %v6694, %v6805
          %v6807 = vpop.f32.mrb[0].mxu0
          %6808 = vdwg.mxu0
          %6809 = vmatprep.subr.mxu0 0.0
          %v6810 = vand.u32 %v5746, 4294901760
          %v6811 = vsub.f32 %v5746, %v6810
          %v6812 = vand.u32 %v6811, 4294901760
          %v6813 = vsub.f32 %v6811, %v6812
          %v6814 = vand.u32 %v6813, 4294901760
          %6815 = vmatpush1.msra.mxu0 %v6814
          %6816 = vmatprep.subr.mxu0 0.0
          %v6817 = vand.u32 %v5747, 4294901760
          %v6818 = vsub.f32 %v5747, %v6817
          %v6819 = vand.u32 %v6818, 4294901760
          %v6820 = vsub.f32 %v6818, %v6819
          %v6821 = vand.u32 %v6820, 4294901760
          %6822 = vmatpush1.msra.mxu0 %v6821
          %6823 = vmatprep.subr.mxu0 0.0
          %v6824 = vand.u32 %v5748, 4294901760
          %v6825 = vsub.f32 %v5748, %v6824
          %v6826 = vand.u32 %v6825, 4294901760
          %v6827 = vsub.f32 %v6825, %v6826
          %v6828 = vand.u32 %v6827, 4294901760
          %6829 = vmatpush1.msra.mxu0 %v6828
          %6830 = vmatprep.subr.mxu0 0.0
          %v6831 = vand.u32 %v5749, 4294901760
          %v6832 = vsub.f32 %v5749, %v6831
          %v6833 = vand.u32 %v6832, 4294901760
          %v6834 = vsub.f32 %v6832, %v6833
          %v6835 = vand.u32 %v6834, 4294901760
          %6836 = vmatpush1.msra.mxu0 %v6835
          %6837 = vmatprep.subr.mxu0 0.0
          %v6838 = vand.u32 %v5750, 4294901760
          %v6839 = vsub.f32 %v5750, %v6838
          %v6840 = vand.u32 %v6839, 4294901760
          %v6841 = vsub.f32 %v6839, %v6840
          %v6842 = vand.u32 %v6841, 4294901760
          %6843 = vmatpush1.msra.mxu0 %v6842
          %6844 = vmatprep.subr.mxu0 0.0
          %v6845 = vand.u32 %v5751, 4294901760
          %v6846 = vsub.f32 %v5751, %v6845
          %v6847 = vand.u32 %v6846, 4294901760
          %v6848 = vsub.f32 %v6846, %v6847
          %v6849 = vand.u32 %v6848, 4294901760
          %6850 = vmatpush1.msra.mxu0 %v6849
          %6851 = vmatprep.subr.mxu0 0.0
          %v6852 = vand.u32 %v5752, 4294901760
          %v6853 = vsub.f32 %v5752, %v6852
          %v6854 = vand.u32 %v6853, 4294901760
          %v6855 = vsub.f32 %v6853, %v6854
          %v6856 = vand.u32 %v6855, 4294901760
          %6857 = vmatpush1.msra.mxu0 %v6856
          %6858 = vmatprep.subr.mxu0 0.0
          %v6859 = vand.u32 %v5753, 4294901760
          %v6860 = vsub.f32 %v5753, %v6859
          %v6861 = vand.u32 %v6860, 4294901760
          %v6862 = vsub.f32 %v6860, %v6861
          %v6863 = vand.u32 %v6862, 4294901760
          %6864 = vmatpush1.msra.mxu0 %v6863
          %6865 = vmatprep.subr.mxu0 0.0
          %v6866 = vand.u32 %v5754, 4294901760
          %v6867 = vsub.f32 %v5754, %v6866
          %v6868 = vand.u32 %v6867, 4294901760
          %v6869 = vsub.f32 %v6867, %v6868
          %v6870 = vand.u32 %v6869, 4294901760
          %6871 = vmatpush1.msra.mxu0 %v6870
          %6872 = vmatprep.subr.mxu0 0.0
          %v6873 = vand.u32 %v5755, 4294901760
          %v6874 = vsub.f32 %v5755, %v6873
          %v6875 = vand.u32 %v6874, 4294901760
          %v6876 = vsub.f32 %v6874, %v6875
          %v6877 = vand.u32 %v6876, 4294901760
          %6878 = vmatpush1.msra.mxu0 %v6877
          %6879 = vmatprep.subr.mxu0 0.0
          %v6880 = vand.u32 %v5756, 4294901760
          %v6881 = vsub.f32 %v5756, %v6880
          %v6882 = vand.u32 %v6881, 4294901760
          %v6883 = vsub.f32 %v6881, %v6882
          %v6884 = vand.u32 %v6883, 4294901760
          %6885 = vmatpush1.msra.mxu0 %v6884
          %6886 = vmatprep.subr.mxu0 0.0
          %v6887 = vand.u32 %v5757, 4294901760
          %v6888 = vsub.f32 %v5757, %v6887
          %v6889 = vand.u32 %v6888, 4294901760
          %v6890 = vsub.f32 %v6888, %v6889
          %v6891 = vand.u32 %v6890, 4294901760
          %6892 = vmatpush1.msra.mxu0 %v6891
          %6893 = vmatprep.subr.mxu0 0.0
          %v6894 = vand.u32 %v5758, 4294901760
          %v6895 = vsub.f32 %v5758, %v6894
          %v6896 = vand.u32 %v6895, 4294901760
          %v6897 = vsub.f32 %v6895, %v6896
          %v6898 = vand.u32 %v6897, 4294901760
          %6899 = vmatpush1.msra.mxu0 %v6898
          %6900 = vmatprep.subr.mxu0 0.0
          %v6901 = vand.u32 %v5759, 4294901760
          %v6902 = vsub.f32 %v5759, %v6901
          %v6903 = vand.u32 %v6902, 4294901760
          %v6904 = vsub.f32 %v6902, %v6903
          %v6905 = vand.u32 %v6904, 4294901760
          %6906 = vmatpush1.msra.mxu0 %v6905
          %6907 = vmatprep.subr.mxu0 0.0
          %v6908 = vand.u32 %v5760, 4294901760
          %v6909 = vsub.f32 %v5760, %v6908
          %v6910 = vand.u32 %v6909, 4294901760
          %v6911 = vsub.f32 %v6909, %v6910
          %v6912 = vand.u32 %v6911, 4294901760
          %6913 = vmatpush1.msra.mxu0 %v6912
          %6914 = vmatprep.subr.mxu0 0.0
          %v6915 = vand.u32 %v5761, 4294901760
          %v6916 = vsub.f32 %v5761, %v6915
          %v6917 = vand.u32 %v6916, 4294901760
          %v6918 = vsub.f32 %v6916, %v6917
          %v6919 = vand.u32 %v6918, 4294901760
          %6920 = vmatpush1.msra.mxu0 %v6919
          %6921 = vmatprep.subr.mxu0 0.0
          %v6922 = vand.u32 %v5762, 4294901760
          %v6923 = vsub.f32 %v5762, %v6922
          %v6924 = vand.u32 %v6923, 4294901760
          %v6925 = vsub.f32 %v6923, %v6924
          %v6926 = vand.u32 %v6925, 4294901760
          %6927 = vmatpush1.msra.mxu0 %v6926
          %6928 = vmatprep.subr.mxu0 0.0
          %v6929 = vand.u32 %v5763, 4294901760
          %v6930 = vsub.f32 %v5763, %v6929
          %v6931 = vand.u32 %v6930, 4294901760
          %v6932 = vsub.f32 %v6930, %v6931
          %v6933 = vand.u32 %v6932, 4294901760
          %6934 = vmatpush1.msra.mxu0 %v6933
          %6935 = vmatprep.subr.mxu0 0.0
          %v6936 = vand.u32 %v5764, 4294901760
          %v6937 = vsub.f32 %v5764, %v6936
          %v6938 = vand.u32 %v6937, 4294901760
          %v6939 = vsub.f32 %v6937, %v6938
          %v6940 = vand.u32 %v6939, 4294901760
          %6941 = vmatpush1.msra.mxu0 %v6940
          %6942 = vmatprep.subr.mxu0 0.0
          %v6943 = vand.u32 %v5765, 4294901760
          %v6944 = vsub.f32 %v5765, %v6943
          %v6945 = vand.u32 %v6944, 4294901760
          %v6946 = vsub.f32 %v6944, %v6945
          %v6947 = vand.u32 %v6946, 4294901760
          %6948 = vmatpush1.msra.mxu0 %v6947
          %6949 = vmatprep.subr.mxu0 0.0
          %v6950 = vand.u32 %v5766, 4294901760
          %v6951 = vsub.f32 %v5766, %v6950
          %v6952 = vand.u32 %v6951, 4294901760
          %v6953 = vsub.f32 %v6951, %v6952
          %v6954 = vand.u32 %v6953, 4294901760
          %6955 = vmatpush1.msra.mxu0 %v6954
          %6956 = vmatprep.subr.mxu0 0.0
          %v6957 = vand.u32 %v5767, 4294901760
          %v6958 = vsub.f32 %v5767, %v6957
          %v6959 = vand.u32 %v6958, 4294901760
          %v6960 = vsub.f32 %v6958, %v6959
          %v6961 = vand.u32 %v6960, 4294901760
          %6962 = vmatpush1.msra.mxu0 %v6961
          %6963 = vmatprep.subr.mxu0 0.0
          %v6964 = vand.u32 %v5768, 4294901760
          %v6965 = vsub.f32 %v5768, %v6964
          %v6966 = vand.u32 %v6965, 4294901760
          %v6967 = vsub.f32 %v6965, %v6966
          %v6968 = vand.u32 %v6967, 4294901760
          %6969 = vmatpush1.msra.mxu0 %v6968
          %6970 = vmatprep.subr.mxu0 0.0
          %v6971 = vand.u32 %v5769, 4294901760
          %v6972 = vsub.f32 %v5769, %v6971
          %v6973 = vand.u32 %v6972, 4294901760
          %v6974 = vsub.f32 %v6972, %v6973
          %v6975 = vand.u32 %v6974, 4294901760
          %6976 = vmatpush1.msra.mxu0 %v6975
          %6977 = vmatprep.subr.mxu0 0.0
          %v6978 = vand.u32 %v5770, 4294901760
          %v6979 = vsub.f32 %v5770, %v6978
          %v6980 = vand.u32 %v6979, 4294901760
          %v6981 = vsub.f32 %v6979, %v6980
          %v6982 = vand.u32 %v6981, 4294901760
          %6983 = vmatpush1.msra.mxu0 %v6982
          %6984 = vmatprep.subr.mxu0 0.0
          %v6985 = vand.u32 %v5771, 4294901760
          %v6986 = vsub.f32 %v5771, %v6985
          %v6987 = vand.u32 %v6986, 4294901760
          %v6988 = vsub.f32 %v6986, %v6987
          %v6989 = vand.u32 %v6988, 4294901760
          %6990 = vmatpush1.msra.mxu0 %v6989
          %6991 = vmatprep.subr.mxu0 0.0
          %v6992 = vand.u32 %v5772, 4294901760
          %v6993 = vsub.f32 %v5772, %v6992
          %v6994 = vand.u32 %v6993, 4294901760
          %v6995 = vsub.f32 %v6993, %v6994
          %v6996 = vand.u32 %v6995, 4294901760
          %6997 = vmatpush1.msra.mxu0 %v6996
          %6998 = vmatprep.subr.mxu0 0.0
          %v6999 = vand.u32 %v5773, 4294901760
          %v7000 = vsub.f32 %v5773, %v6999
          %v7001 = vand.u32 %v7000, 4294901760
          %v7002 = vsub.f32 %v7000, %v7001
          %v7003 = vand.u32 %v7002, 4294901760
          %7004 = vmatpush1.msra.mxu0 %v7003
          %7005 = vmatprep.subr.mxu0 0.0
          %v7006 = vand.u32 %v5774, 4294901760
          %v7007 = vsub.f32 %v5774, %v7006
          %v7008 = vand.u32 %v7007, 4294901760
          %v7009 = vsub.f32 %v7007, %v7008
          %v7010 = vand.u32 %v7009, 4294901760
          %7011 = vmatpush1.msra.mxu0 %v7010
          %7012 = vmatprep.subr.mxu0 0.0
          %v7013 = vand.u32 %v5775, 4294901760
          %v7014 = vsub.f32 %v5775, %v7013
          %v7015 = vand.u32 %v7014, 4294901760
          %v7016 = vsub.f32 %v7014, %v7015
          %v7017 = vand.u32 %v7016, 4294901760
          %7018 = vmatpush1.msra.mxu0 %v7017
          %7019 = vmatprep.subr.mxu0 0.0
          %v7020 = vand.u32 %v5776, 4294901760
          %v7021 = vsub.f32 %v5776, %v7020
          %v7022 = vand.u32 %v7021, 4294901760
          %v7023 = vsub.f32 %v7021, %v7022
          %v7024 = vand.u32 %v7023, 4294901760
          %7025 = vmatpush1.msra.mxu0 %v7024
          %7026 = vmatprep.subr.mxu0 0.0
          %v7027 = vand.u32 %v5777, 4294901760
          %v7028 = vsub.f32 %v5777, %v7027
          %v7029 = vand.u32 %v7028, 4294901760
          %v7030 = vsub.f32 %v7028, %v7029
          %v7031 = vand.u32 %v7030, 4294901760
          %7032 = vmatpush1.msra.mxu0 %v7031
          %v7033 = vand.u32 %v5830, 4294901760
          %7034 = vmatprep.mubr.f32.mxu0 %v7033
          %v7035 = vand.u32 %v5829, 4294901760
          %7036 = vmatmul.mubr.f32.gmra.mrb[0].mxu0 %v7035
          %v7037 = vpop.f32.mrb[0].mxu0
          %v7038 = vadd.f32 %v6806, %v7037
          %v7039 = vpop.f32.mrb[0].mxu0
          %7040 = vdwg.mxu0
          %7041 = vmatprep.subr.mxu0 0.0
          %v7042 = vand.u32 %v5746, 4294901760
          %v7043 = vsub.f32 %v5746, %v7042
          %7044 = vmatpush1.msra.mxu0 %v7043
          %7045 = vmatprep.subr.mxu0 0.0
          %v7046 = vand.u32 %v5747, 4294901760
          %v7047 = vsub.f32 %v5747, %v7046
          %7048 = vmatpush1.msra.mxu0 %v7047
          %7049 = vmatprep.subr.mxu0 0.0
          %v7050 = vand.u32 %v5748, 4294901760
          %v7051 = vsub.f32 %v5748, %v7050
          %7052 = vmatpush1.msra.mxu0 %v7051
          %7053 = vmatprep.subr.mxu0 0.0
          %v7054 = vand.u32 %v5749, 4294901760
          %v7055 = vsub.f32 %v5749, %v7054
          %7056 = vmatpush1.msra.mxu0 %v7055
          %7057 = vmatprep.subr.mxu0 0.0
          %v7058 = vand.u32 %v5750, 4294901760
          %v7059 = vsub.f32 %v5750, %v7058
          %7060 = vmatpush1.msra.mxu0 %v7059
          %7061 = vmatprep.subr.mxu0 0.0
          %v7062 = vand.u32 %v5751, 4294901760
          %v7063 = vsub.f32 %v5751, %v7062
          %7064 = vmatpush1.msra.mxu0 %v7063
          %7065 = vmatprep.subr.mxu0 0.0
          %v7066 = vand.u32 %v5752, 4294901760
          %v7067 = vsub.f32 %v5752, %v7066
          %7068 = vmatpush1.msra.mxu0 %v7067
          %7069 = vmatprep.subr.mxu0 0.0
          %v7070 = vand.u32 %v5753, 4294901760
          %v7071 = vsub.f32 %v5753, %v7070
          %7072 = vmatpush1.msra.mxu0 %v7071
          %7073 = vmatprep.subr.mxu0 0.0
          %v7074 = vand.u32 %v5754, 4294901760
          %v7075 = vsub.f32 %v5754, %v7074
          %7076 = vmatpush1.msra.mxu0 %v7075
          %7077 = vmatprep.subr.mxu0 0.0
          %v7078 = vand.u32 %v5755, 4294901760
          %v7079 = vsub.f32 %v5755, %v7078
          %7080 = vmatpush1.msra.mxu0 %v7079
          %7081 = vmatprep.subr.mxu0 0.0
          %v7082 = vand.u32 %v5756, 4294901760
          %v7083 = vsub.f32 %v5756, %v7082
          %7084 = vmatpush1.msra.mxu0 %v7083
          %7085 = vmatprep.subr.mxu0 0.0
          %v7086 = vand.u32 %v5757, 4294901760
          %v7087 = vsub.f32 %v5757, %v7086
          %7088 = vmatpush1.msra.mxu0 %v7087
          %7089 = vmatprep.subr.mxu0 0.0
          %v7090 = vand.u32 %v5758, 4294901760
          %v7091 = vsub.f32 %v5758, %v7090
          %7092 = vmatpush1.msra.mxu0 %v7091
          %7093 = vmatprep.subr.mxu0 0.0
          %v7094 = vand.u32 %v5759, 4294901760
          %v7095 = vsub.f32 %v5759, %v7094
          %7096 = vmatpush1.msra.mxu0 %v7095
          %7097 = vmatprep.subr.mxu0 0.0
          %v7098 = vand.u32 %v5760, 4294901760
          %v7099 = vsub.f32 %v5760, %v7098
          %7100 = vmatpush1.msra.mxu0 %v7099
          %7101 = vmatprep.subr.mxu0 0.0
          %v7102 = vand.u32 %v5761, 4294901760
          %v7103 = vsub.f32 %v5761, %v7102
          %7104 = vmatpush1.msra.mxu0 %v7103
          %7105 = vmatprep.subr.mxu0 0.0
          %v7106 = vand.u32 %v5762, 4294901760
          %v7107 = vsub.f32 %v5762, %v7106
          %7108 = vmatpush1.msra.mxu0 %v7107
          %7109 = vmatprep.subr.mxu0 0.0
          %v7110 = vand.u32 %v5763, 4294901760
          %v7111 = vsub.f32 %v5763, %v7110
          %7112 = vmatpush1.msra.mxu0 %v7111
          %7113 = vmatprep.subr.mxu0 0.0
          %v7114 = vand.u32 %v5764, 4294901760
          %v7115 = vsub.f32 %v5764, %v7114
          %7116 = vmatpush1.msra.mxu0 %v7115
          %7117 = vmatprep.subr.mxu0 0.0
          %v7118 = vand.u32 %v5765, 4294901760
          %v7119 = vsub.f32 %v5765, %v7118
          %7120 = vmatpush1.msra.mxu0 %v7119
          %7121 = vmatprep.subr.mxu0 0.0
          %v7122 = vand.u32 %v5766, 4294901760
          %v7123 = vsub.f32 %v5766, %v7122
          %7124 = vmatpush1.msra.mxu0 %v7123
          %7125 = vmatprep.subr.mxu0 0.0
          %v7126 = vand.u32 %v5767, 4294901760
          %v7127 = vsub.f32 %v5767, %v7126
          %7128 = vmatpush1.msra.mxu0 %v7127
          %7129 = vmatprep.subr.mxu0 0.0
          %v7130 = vand.u32 %v5768, 4294901760
          %v7131 = vsub.f32 %v5768, %v7130
          %7132 = vmatpush1.msra.mxu0 %v7131
          %7133 = vmatprep.subr.mxu0 0.0
          %v7134 = vand.u32 %v5769, 4294901760
          %v7135 = vsub.f32 %v5769, %v7134
          %7136 = vmatpush1.msra.mxu0 %v7135
          %7137 = vmatprep.subr.mxu0 0.0
          %v7138 = vand.u32 %v5770, 4294901760
          %v7139 = vsub.f32 %v5770, %v7138
          %7140 = vmatpush1.msra.mxu0 %v7139
          %7141 = vmatprep.subr.mxu0 0.0
          %v7142 = vand.u32 %v5771, 4294901760
          %v7143 = vsub.f32 %v5771, %v7142
          %7144 = vmatpush1.msra.mxu0 %v7143
          %7145 = vmatprep.subr.mxu0 0.0
          %v7146 = vand.u32 %v5772, 4294901760
          %v7147 = vsub.f32 %v5772, %v7146
          %7148 = vmatpush1.msra.mxu0 %v7147
          %7149 = vmatprep.subr.mxu0 0.0
          %v7150 = vand.u32 %v5773, 4294901760
          %v7151 = vsub.f32 %v5773, %v7150
          %7152 = vmatpush1.msra.mxu0 %v7151
          %7153 = vmatprep.subr.mxu0 0.0
          %v7154 = vand.u32 %v5774, 4294901760
          %v7155 = vsub.f32 %v5774, %v7154
          %7156 = vmatpush1.msra.mxu0 %v7155
          %7157 = vmatprep.subr.mxu0 0.0
          %v7158 = vand.u32 %v5775, 4294901760
          %v7159 = vsub.f32 %v5775, %v7158
          %7160 = vmatpush1.msra.mxu0 %v7159
          %7161 = vmatprep.subr.mxu0 0.0
          %v7162 = vand.u32 %v5776, 4294901760
          %v7163 = vsub.f32 %v5776, %v7162
          %7164 = vmatpush1.msra.mxu0 %v7163
          %7165 = vmatprep.subr.mxu0 0.0
          %v7166 = vand.u32 %v5777, 4294901760
          %v7167 = vsub.f32 %v5777, %v7166
          %7168 = vmatpush1.msra.mxu0 %v7167
          %v7169 = vand.u32 %v5830, 4294901760
          %v7170 = vsub.f32 %v5830, %v7169
          %7171 = vmatprep.mubr.f32.mxu0 %v7170
          %v7172 = vand.u32 %v5829, 4294901760
          %v7173 = vsub.f32 %v5829, %v7172
          %7174 = vmatmul.mubr.f32.gmra.mrb[0].mxu0 %v7173
          %v7175 = vpop.f32.mrb[0].mxu0
          %v7176 = vadd.f32 %v7038, %v7175
          %v7177 = vpop.f32.mrb[0].mxu0
          %7178 = vdwg.mxu0
          %7179 = vmatprep.subr.mxu0 0.0
          %v7180 = vand.u32 %v5746, 4294901760
          %7181 = vmatpush1.msra.mxu0 %v7180
          %7182 = vmatprep.subr.mxu0 0.0
          %v7183 = vand.u32 %v5747, 4294901760
          %7184 = vmatpush1.msra.mxu0 %v7183
          %7185 = vmatprep.subr.mxu0 0.0
          %v7186 = vand.u32 %v5748, 4294901760
          %7187 = vmatpush1.msra.mxu0 %v7186
          %7188 = vmatprep.subr.mxu0 0.0
          %v7189 = vand.u32 %v5749, 4294901760
          %7190 = vmatpush1.msra.mxu0 %v7189
          %7191 = vmatprep.subr.mxu0 0.0
          %v7192 = vand.u32 %v5750, 4294901760
          %7193 = vmatpush1.msra.mxu0 %v7192
          %7194 = vmatprep.subr.mxu0 0.0
          %v7195 = vand.u32 %v5751, 4294901760
          %7196 = vmatpush1.msra.mxu0 %v7195
          %7197 = vmatprep.subr.mxu0 0.0
          %v7198 = vand.u32 %v5752, 4294901760
          %7199 = vmatpush1.msra.mxu0 %v7198
          %7200 = vmatprep.subr.mxu0 0.0
          %v7201 = vand.u32 %v5753, 4294901760
          %7202 = vmatpush1.msra.mxu0 %v7201
          %7203 = vmatprep.subr.mxu0 0.0
          %v7204 = vand.u32 %v5754, 4294901760
          %7205 = vmatpush1.msra.mxu0 %v7204
          %7206 = vmatprep.subr.mxu0 0.0
          %v7207 = vand.u32 %v5755, 4294901760
          %7208 = vmatpush1.msra.mxu0 %v7207
          %7209 = vmatprep.subr.mxu0 0.0
          %v7210 = vand.u32 %v5756, 4294901760
          %7211 = vmatpush1.msra.mxu0 %v7210
          %7212 = vmatprep.subr.mxu0 0.0
          %v7213 = vand.u32 %v5757, 4294901760
          %7214 = vmatpush1.msra.mxu0 %v7213
          %7215 = vmatprep.subr.mxu0 0.0
          %v7216 = vand.u32 %v5758, 4294901760
          %7217 = vmatpush1.msra.mxu0 %v7216
          %7218 = vmatprep.subr.mxu0 0.0
          %v7219 = vand.u32 %v5759, 4294901760
          %7220 = vmatpush1.msra.mxu0 %v7219
          %7221 = vmatprep.subr.mxu0 0.0
          %v7222 = vand.u32 %v5760, 4294901760
          %7223 = vmatpush1.msra.mxu0 %v7222
          %7224 = vmatprep.subr.mxu0 0.0
          %v7225 = vand.u32 %v5761, 4294901760
          %7226 = vmatpush1.msra.mxu0 %v7225
          %7227 = vmatprep.subr.mxu0 0.0
          %v7228 = vand.u32 %v5762, 4294901760
          %7229 = vmatpush1.msra.mxu0 %v7228
          %7230 = vmatprep.subr.mxu0 0.0
          %v7231 = vand.u32 %v5763, 4294901760
          %7232 = vmatpush1.msra.mxu0 %v7231
          %7233 = vmatprep.subr.mxu0 0.0
          %v7234 = vand.u32 %v5764, 4294901760
          %7235 = vmatpush1.msra.mxu0 %v7234
          %7236 = vmatprep.subr.mxu0 0.0
          %v7237 = vand.u32 %v5765, 4294901760
          %7238 = vmatpush1.msra.mxu0 %v7237
          %7239 = vmatprep.subr.mxu0 0.0
          %v7240 = vand.u32 %v5766, 4294901760
          %7241 = vmatpush1.msra.mxu0 %v7240
          %7242 = vmatprep.subr.mxu0 0.0
          %v7243 = vand.u32 %v5767, 4294901760
          %7244 = vmatpush1.msra.mxu0 %v7243
          %7245 = vmatprep.subr.mxu0 0.0
          %v7246 = vand.u32 %v5768, 4294901760
          %7247 = vmatpush1.msra.mxu0 %v7246
          %7248 = vmatprep.subr.mxu0 0.0
          %v7249 = vand.u32 %v5769, 4294901760
          %7250 = vmatpush1.msra.mxu0 %v7249
          %7251 = vmatprep.subr.mxu0 0.0
          %v7252 = vand.u32 %v5770, 4294901760
          %7253 = vmatpush1.msra.mxu0 %v7252
          %7254 = vmatprep.subr.mxu0 0.0
          %v7255 = vand.u32 %v5771, 4294901760
          %7256 = vmatpush1.msra.mxu0 %v7255
          %7257 = vmatprep.subr.mxu0 0.0
          %v7258 = vand.u32 %v5772, 4294901760
          %7259 = vmatpush1.msra.mxu0 %v7258
          %7260 = vmatprep.subr.mxu0 0.0
          %v7261 = vand.u32 %v5773, 4294901760
          %7262 = vmatpush1.msra.mxu0 %v7261
          %7263 = vmatprep.subr.mxu0 0.0
          %v7264 = vand.u32 %v5774, 4294901760
          %7265 = vmatpush1.msra.mxu0 %v7264
          %7266 = vmatprep.subr.mxu0 0.0
          %v7267 = vand.u32 %v5775, 4294901760
          %7268 = vmatpush1.msra.mxu0 %v7267
          %7269 = vmatprep.subr.mxu0 0.0
          %v7270 = vand.u32 %v5776, 4294901760
          %7271 = vmatpush1.msra.mxu0 %v7270
          %7272 = vmatprep.subr.mxu0 0.0
          %v7273 = vand.u32 %v5777, 4294901760
          %7274 = vmatpush1.msra.mxu0 %v7273
          %v7275 = vand.u32 %v5830, 4294901760
          %v7276 = vsub.f32 %v5830, %v7275
          %v7277 = vand.u32 %v7276, 4294901760
          %7278 = vmatprep.mubr.f32.mxu0 %v7277
          %v7279 = vand.u32 %v5829, 4294901760
          %v7280 = vsub.f32 %v5829, %v7279
          %v7281 = vand.u32 %v7280, 4294901760
          %7282 = vmatmul.mubr.f32.gmra.mrb[0].mxu0 %v7281
          %v7283 = vpop.f32.mrb[0].mxu0
          %v7284 = vadd.f32 %v7176, %v7283
          %v7285 = vpop.f32.mrb[0].mxu0
          %7286 = vdwg.mxu0
          %7287 = vmatprep.subr.mxu0 0.0
          %v7288 = vand.u32 %v5746, 4294901760
          %v7289 = vsub.f32 %v5746, %v7288
          %v7290 = vand.u32 %v7289, 4294901760
          %7291 = vmatpush1.msra.mxu0 %v7290
          %7292 = vmatprep.subr.mxu0 0.0
          %v7293 = vand.u32 %v5747, 4294901760
          %v7294 = vsub.f32 %v5747, %v7293
          %v7295 = vand.u32 %v7294, 4294901760
          %7296 = vmatpush1.msra.mxu0 %v7295
          %7297 = vmatprep.subr.mxu0 0.0
          %v7298 = vand.u32 %v5748, 4294901760
          %v7299 = vsub.f32 %v5748, %v7298
          %v7300 = vand.u32 %v7299, 4294901760
          %7301 = vmatpush1.msra.mxu0 %v7300
          %7302 = vmatprep.subr.mxu0 0.0
          %v7303 = vand.u32 %v5749, 4294901760
          %v7304 = vsub.f32 %v5749, %v7303
          %v7305 = vand.u32 %v7304, 4294901760
          %7306 = vmatpush1.msra.mxu0 %v7305
          %7307 = vmatprep.subr.mxu0 0.0
          %v7308 = vand.u32 %v5750, 4294901760
          %v7309 = vsub.f32 %v5750, %v7308
          %v7310 = vand.u32 %v7309, 4294901760
          %7311 = vmatpush1.msra.mxu0 %v7310
          %7312 = vmatprep.subr.mxu0 0.0
          %v7313 = vand.u32 %v5751, 4294901760
          %v7314 = vsub.f32 %v5751, %v7313
          %v7315 = vand.u32 %v7314, 4294901760
          %7316 = vmatpush1.msra.mxu0 %v7315
          %7317 = vmatprep.subr.mxu0 0.0
          %v7318 = vand.u32 %v5752, 4294901760
          %v7319 = vsub.f32 %v5752, %v7318
          %v7320 = vand.u32 %v7319, 4294901760
          %7321 = vmatpush1.msra.mxu0 %v7320
          %7322 = vmatprep.subr.mxu0 0.0
          %v7323 = vand.u32 %v5753, 4294901760
          %v7324 = vsub.f32 %v5753, %v7323
          %v7325 = vand.u32 %v7324, 4294901760
          %7326 = vmatpush1.msra.mxu0 %v7325
          %7327 = vmatprep.subr.mxu0 0.0
          %v7328 = vand.u32 %v5754, 4294901760
          %v7329 = vsub.f32 %v5754, %v7328
          %v7330 = vand.u32 %v7329, 4294901760
          %7331 = vmatpush1.msra.mxu0 %v7330
          %7332 = vmatprep.subr.mxu0 0.0
          %v7333 = vand.u32 %v5755, 4294901760
          %v7334 = vsub.f32 %v5755, %v7333
          %v7335 = vand.u32 %v7334, 4294901760
          %7336 = vmatpush1.msra.mxu0 %v7335
          %7337 = vmatprep.subr.mxu0 0.0
          %v7338 = vand.u32 %v5756, 4294901760
          %v7339 = vsub.f32 %v5756, %v7338
          %v7340 = vand.u32 %v7339, 4294901760
          %7341 = vmatpush1.msra.mxu0 %v7340
          %7342 = vmatprep.subr.mxu0 0.0
          %v7343 = vand.u32 %v5757, 4294901760
          %v7344 = vsub.f32 %v5757, %v7343
          %v7345 = vand.u32 %v7344, 4294901760
          %7346 = vmatpush1.msra.mxu0 %v7345
          %7347 = vmatprep.subr.mxu0 0.0
          %v7348 = vand.u32 %v5758, 4294901760
          %v7349 = vsub.f32 %v5758, %v7348
          %v7350 = vand.u32 %v7349, 4294901760
          %7351 = vmatpush1.msra.mxu0 %v7350
          %7352 = vmatprep.subr.mxu0 0.0
          %v7353 = vand.u32 %v5759, 4294901760
          %v7354 = vsub.f32 %v5759, %v7353
          %v7355 = vand.u32 %v7354, 4294901760
          %7356 = vmatpush1.msra.mxu0 %v7355
          %7357 = vmatprep.subr.mxu0 0.0
          %v7358 = vand.u32 %v5760, 4294901760
          %v7359 = vsub.f32 %v5760, %v7358
          %v7360 = vand.u32 %v7359, 4294901760
          %7361 = vmatpush1.msra.mxu0 %v7360
          %7362 = vmatprep.subr.mxu0 0.0
          %v7363 = vand.u32 %v5761, 4294901760
          %v7364 = vsub.f32 %v5761, %v7363
          %v7365 = vand.u32 %v7364, 4294901760
          %7366 = vmatpush1.msra.mxu0 %v7365
          %7367 = vmatprep.subr.mxu0 0.0
          %v7368 = vand.u32 %v5762, 4294901760
          %v7369 = vsub.f32 %v5762, %v7368
          %v7370 = vand.u32 %v7369, 4294901760
          %7371 = vmatpush1.msra.mxu0 %v7370
          %7372 = vmatprep.subr.mxu0 0.0
          %v7373 = vand.u32 %v5763, 4294901760
          %v7374 = vsub.f32 %v5763, %v7373
          %v7375 = vand.u32 %v7374, 4294901760
          %7376 = vmatpush1.msra.mxu0 %v7375
          %7377 = vmatprep.subr.mxu0 0.0
          %v7378 = vand.u32 %v5764, 4294901760
          %v7379 = vsub.f32 %v5764, %v7378
          %v7380 = vand.u32 %v7379, 4294901760
          %7381 = vmatpush1.msra.mxu0 %v7380
          %7382 = vmatprep.subr.mxu0 0.0
          %v7383 = vand.u32 %v5765, 4294901760
          %v7384 = vsub.f32 %v5765, %v7383
          %v7385 = vand.u32 %v7384, 4294901760
          %7386 = vmatpush1.msra.mxu0 %v7385
          %7387 = vmatprep.subr.mxu0 0.0
          %v7388 = vand.u32 %v5766, 4294901760
          %v7389 = vsub.f32 %v5766, %v7388
          %v7390 = vand.u32 %v7389, 4294901760
          %7391 = vmatpush1.msra.mxu0 %v7390
          %7392 = vmatprep.subr.mxu0 0.0
          %v7393 = vand.u32 %v5767, 4294901760
          %v7394 = vsub.f32 %v5767, %v7393
          %v7395 = vand.u32 %v7394, 4294901760
          %7396 = vmatpush1.msra.mxu0 %v7395
          %7397 = vmatprep.subr.mxu0 0.0
          %v7398 = vand.u32 %v5768, 4294901760
          %v7399 = vsub.f32 %v5768, %v7398
          %v7400 = vand.u32 %v7399, 4294901760
          %7401 = vmatpush1.msra.mxu0 %v7400
          %7402 = vmatprep.subr.mxu0 0.0
          %v7403 = vand.u32 %v5769, 4294901760
          %v7404 = vsub.f32 %v5769, %v7403
          %v7405 = vand.u32 %v7404, 4294901760
          %7406 = vmatpush1.msra.mxu0 %v7405
          %7407 = vmatprep.subr.mxu0 0.0
          %v7408 = vand.u32 %v5770, 4294901760
          %v7409 = vsub.f32 %v5770, %v7408
          %v7410 = vand.u32 %v7409, 4294901760
          %7411 = vmatpush1.msra.mxu0 %v7410
          %7412 = vmatprep.subr.mxu0 0.0
          %v7413 = vand.u32 %v5771, 4294901760
          %v7414 = vsub.f32 %v5771, %v7413
          %v7415 = vand.u32 %v7414, 4294901760
          %7416 = vmatpush1.msra.mxu0 %v7415
          %7417 = vmatprep.subr.mxu0 0.0
          %v7418 = vand.u32 %v5772, 4294901760
          %v7419 = vsub.f32 %v5772, %v7418
          %v7420 = vand.u32 %v7419, 4294901760
          %7421 = vmatpush1.msra.mxu0 %v7420
          %7422 = vmatprep.subr.mxu0 0.0
          %v7423 = vand.u32 %v5773, 4294901760
          %v7424 = vsub.f32 %v5773, %v7423
          %v7425 = vand.u32 %v7424, 4294901760
          %7426 = vmatpush1.msra.mxu0 %v7425
          %7427 = vmatprep.subr.mxu0 0.0
          %v7428 = vand.u32 %v5774, 4294901760
          %v7429 = vsub.f32 %v5774, %v7428
          %v7430 = vand.u32 %v7429, 4294901760
          %7431 = vmatpush1.msra.mxu0 %v7430
          %7432 = vmatprep.subr.mxu0 0.0
          %v7433 = vand.u32 %v5775, 4294901760
          %v7434 = vsub.f32 %v5775, %v7433
          %v7435 = vand.u32 %v7434, 4294901760
          %7436 = vmatpush1.msra.mxu0 %v7435
          %7437 = vmatprep.subr.mxu0 0.0
          %v7438 = vand.u32 %v5776, 4294901760
          %v7439 = vsub.f32 %v5776, %v7438
          %v7440 = vand.u32 %v7439, 4294901760
          %7441 = vmatpush1.msra.mxu0 %v7440
          %7442 = vmatprep.subr.mxu0 0.0
          %v7443 = vand.u32 %v5777, 4294901760
          %v7444 = vsub.f32 %v5777, %v7443
          %v7445 = vand.u32 %v7444, 4294901760
          %7446 = vmatpush1.msra.mxu0 %v7445
          %v7447 = vand.u32 %v5830, 4294901760
          %7448 = vmatprep.mubr.f32.mxu0 %v7447
          %v7449 = vand.u32 %v5829, 4294901760
          %7450 = vmatmul.mubr.f32.gmra.mrb[0].mxu0 %v7449
          %v7451 = vpop.f32.mrb[0].mxu0
          %v7452 = vadd.f32 %v7284, %v7451
          %v7453 = vpop.f32.mrb[0].mxu0
          %7454 = vdwg.mxu0
          %7455 = vmatprep.subr.mxu0 0.0
          %v7456 = vand.u32 %v5746, 4294901760
          %7457 = vmatpush1.msra.mxu0 %v7456
          %7458 = vmatprep.subr.mxu0 0.0
          %v7459 = vand.u32 %v5747, 4294901760
          %7460 = vmatpush1.msra.mxu0 %v7459
          %7461 = vmatprep.subr.mxu0 0.0
          %v7462 = vand.u32 %v5748, 4294901760
          %7463 = vmatpush1.msra.mxu0 %v7462
          %7464 = vmatprep.subr.mxu0 0.0
          %v7465 = vand.u32 %v5749, 4294901760
          %7466 = vmatpush1.msra.mxu0 %v7465
          %7467 = vmatprep.subr.mxu0 0.0
          %v7468 = vand.u32 %v5750, 4294901760
          %7469 = vmatpush1.msra.mxu0 %v7468
          %7470 = vmatprep.subr.mxu0 0.0
          %v7471 = vand.u32 %v5751, 4294901760
          %7472 = vmatpush1.msra.mxu0 %v7471
          %7473 = vmatprep.subr.mxu0 0.0
          %v7474 = vand.u32 %v5752, 4294901760
          %7475 = vmatpush1.msra.mxu0 %v7474
          %7476 = vmatprep.subr.mxu0 0.0
          %v7477 = vand.u32 %v5753, 4294901760
          %7478 = vmatpush1.msra.mxu0 %v7477
          %7479 = vmatprep.subr.mxu0 0.0
          %v7480 = vand.u32 %v5754, 4294901760
          %7481 = vmatpush1.msra.mxu0 %v7480
          %7482 = vmatprep.subr.mxu0 0.0
          %v7483 = vand.u32 %v5755, 4294901760
          %7484 = vmatpush1.msra.mxu0 %v7483
          %7485 = vmatprep.subr.mxu0 0.0
          %v7486 = vand.u32 %v5756, 4294901760
          %7487 = vmatpush1.msra.mxu0 %v7486
          %7488 = vmatprep.subr.mxu0 0.0
          %v7489 = vand.u32 %v5757, 4294901760
          %7490 = vmatpush1.msra.mxu0 %v7489
          %7491 = vmatprep.subr.mxu0 0.0
          %v7492 = vand.u32 %v5758, 4294901760
          %7493 = vmatpush1.msra.mxu0 %v7492
          %7494 = vmatprep.subr.mxu0 0.0
          %v7495 = vand.u32 %v5759, 4294901760
          %7496 = vmatpush1.msra.mxu0 %v7495
          %7497 = vmatprep.subr.mxu0 0.0
          %v7498 = vand.u32 %v5760, 4294901760
          %7499 = vmatpush1.msra.mxu0 %v7498
          %7500 = vmatprep.subr.mxu0 0.0
          %v7501 = vand.u32 %v5761, 4294901760
          %7502 = vmatpush1.msra.mxu0 %v7501
          %7503 = vmatprep.subr.mxu0 0.0
          %v7504 = vand.u32 %v5762, 4294901760
          %7505 = vmatpush1.msra.mxu0 %v7504
          %7506 = vmatprep.subr.mxu0 0.0
          %v7507 = vand.u32 %v5763, 4294901760
          %7508 = vmatpush1.msra.mxu0 %v7507
          %7509 = vmatprep.subr.mxu0 0.0
          %v7510 = vand.u32 %v5764, 4294901760
          %7511 = vmatpush1.msra.mxu0 %v7510
          %7512 = vmatprep.subr.mxu0 0.0
          %v7513 = vand.u32 %v5765, 4294901760
          %7514 = vmatpush1.msra.mxu0 %v7513
          %7515 = vmatprep.subr.mxu0 0.0
          %v7516 = vand.u32 %v5766, 4294901760
          %7517 = vmatpush1.msra.mxu0 %v7516
          %7518 = vmatprep.subr.mxu0 0.0
          %v7519 = vand.u32 %v5767, 4294901760
          %7520 = vmatpush1.msra.mxu0 %v7519
          %7521 = vmatprep.subr.mxu0 0.0
          %v7522 = vand.u32 %v5768, 4294901760
          %7523 = vmatpush1.msra.mxu0 %v7522
          %7524 = vmatprep.subr.mxu0 0.0
          %v7525 = vand.u32 %v5769, 4294901760
          %7526 = vmatpush1.msra.mxu0 %v7525
          %7527 = vmatprep.subr.mxu0 0.0
          %v7528 = vand.u32 %v5770, 4294901760
          %7529 = vmatpush1.msra.mxu0 %v7528
          %7530 = vmatprep.subr.mxu0 0.0
          %v7531 = vand.u32 %v5771, 4294901760
          %7532 = vmatpush1.msra.mxu0 %v7531
          %7533 = vmatprep.subr.mxu0 0.0
          %v7534 = vand.u32 %v5772, 4294901760
          %7535 = vmatpush1.msra.mxu0 %v7534
          %7536 = vmatprep.subr.mxu0 0.0
          %v7537 = vand.u32 %v5773, 4294901760
          %7538 = vmatpush1.msra.mxu0 %v7537
          %7539 = vmatprep.subr.mxu0 0.0
          %v7540 = vand.u32 %v5774, 4294901760
          %7541 = vmatpush1.msra.mxu0 %v7540
          %7542 = vmatprep.subr.mxu0 0.0
          %v7543 = vand.u32 %v5775, 4294901760
          %7544 = vmatpush1.msra.mxu0 %v7543
          %7545 = vmatprep.subr.mxu0 0.0
          %v7546 = vand.u32 %v5776, 4294901760
          %7547 = vmatpush1.msra.mxu0 %v7546
          %7548 = vmatprep.subr.mxu0 0.0
          %v7549 = vand.u32 %v5777, 4294901760
          %7550 = vmatpush1.msra.mxu0 %v7549
          %v7551 = vand.u32 %v5830, 4294901760
          %7552 = vmatprep.mubr.f32.mxu0 %v7551
          %v7553 = vand.u32 %v5829, 4294901760
          %7554 = vmatmul.mubr.f32.gmra.mrb[0].mxu0 %v7553
          %v7555 = vpop.f32.mrb[0].mxu0
          %v7556 = vadd.f32 %v7452, %v7555
          %v7557 = vpop.f32.mrb[0].mxu0
          %7558 = vdwg.mxu0
          %v7559 = vrot.slane %v7556, 4
          %v7560 = vadd.f32 %v7556, %v7559
          %v7561 = vrot.slane %v7560, 2
          %v7562 = vadd.f32 %v7560, %v7561
          %v7563 = vrot.slane %v7562, 1
          %v7564 = vadd.f32 %v7562, %v7563
          %v7565 = vrcp.pop 8.0
          %v7566 = vmul.f32 %v7564, %v7565
          %v7567 = vsub.f32 %v7556, %v7566
          %v7568 = vmul.f32 %v7567, %v7567
          %v7569 = vrot.slane %v7568, 4
          %v7570 = vadd.f32 %v7568, %v7569
          %v7571 = vrot.slane %v7570, 2
          %v7572 = vadd.f32 %v7570, %v7571
          %v7573 = vrot.slane %v7572, 1
          %v7574 = vadd.f32 %v7572, %v7573
          %v7575 = vmul.f32 %v7574, %v7565
          %v7576 = vadd.f32 %v7575, 1e-05
          %v7577 = vrsqrt.pop %v7576
          %v7578 = vmul.f32 %v7567, %v7577
          %v7579 = vlaneseq
          %v7580 = vshrl.u32 %v7579, 7
          %v7581 = vsub.s32 1, %v7580
          %v7582 = vrot.slane %v5826, %v7581
          %v7583 = vmul.f32 %v7578, %v7582
          %v7584 = vlaneseq
          %v7585 = vshrl.u32 %v7584, 7
          %v7586 = vsub.s32 2, %v7585
          %v7587 = vrot.slane %v5826, %v7586
          %v7588 = vadd.f32 %v7583, %v7587
          %v7589 = vmax.f32 %v7588, 0.0
          %v7590 = vlaneseq
          %v7591 = vshrl.u32 %v7590, 7
          %v7592 = vsub.s32 3, %v7591
          %v7593 = vrot.slane %v5826, %v7592
          %7594 = vmatprep.subr.mxu0 0.0
          %v7595 = vand.u32 %v5778, 4294901760
          %7596 = vmatpush1.msra.mxu0 %v7595
          %7597 = vmatprep.subr.mxu0 0.0
          %v7598 = vand.u32 %v5779, 4294901760
          %7599 = vmatpush1.msra.mxu0 %v7598
          %7600 = vmatprep.subr.mxu0 0.0
          %v7601 = vand.u32 %v5780, 4294901760
          %7602 = vmatpush1.msra.mxu0 %v7601
          %7603 = vmatprep.subr.mxu0 0.0
          %v7604 = vand.u32 %v5781, 4294901760
          %7605 = vmatpush1.msra.mxu0 %v7604
          %7606 = vmatprep.subr.mxu0 0.0
          %v7607 = vand.u32 %v5782, 4294901760
          %7608 = vmatpush1.msra.mxu0 %v7607
          %7609 = vmatprep.subr.mxu0 0.0
          %v7610 = vand.u32 %v5783, 4294901760
          %7611 = vmatpush1.msra.mxu0 %v7610
          %7612 = vmatprep.subr.mxu0 0.0
          %v7613 = vand.u32 %v5784, 4294901760
          %7614 = vmatpush1.msra.mxu0 %v7613
          %7615 = vmatprep.subr.mxu0 0.0
          %v7616 = vand.u32 %v5785, 4294901760
          %7617 = vmatpush1.msra.mxu0 %v7616
          %7618 = vmatprep.subr.mxu0 0.0
          %v7619 = vand.u32 %v5786, 4294901760
          %7620 = vmatpush1.msra.mxu0 %v7619
          %7621 = vmatprep.subr.mxu0 0.0
          %v7622 = vand.u32 %v5787, 4294901760
          %7623 = vmatpush1.msra.mxu0 %v7622
          %7624 = vmatprep.subr.mxu0 0.0
          %v7625 = vand.u32 %v5788, 4294901760
          %7626 = vmatpush1.msra.mxu0 %v7625
          %7627 = vmatprep.subr.mxu0 0.0
          %v7628 = vand.u32 %v5789, 4294901760
          %7629 = vmatpush1.msra.mxu0 %v7628
          %7630 = vmatprep.subr.mxu0 0.0
          %v7631 = vand.u32 %v5790, 4294901760
          %7632 = vmatpush1.msra.mxu0 %v7631
          %7633 = vmatprep.subr.mxu0 0.0
          %v7634 = vand.u32 %v5791, 4294901760
          %7635 = vmatpush1.msra.mxu0 %v7634
          %7636 = vmatprep.subr.mxu0 0.0
          %v7637 = vand.u32 %v5792, 4294901760
          %7638 = vmatpush1.msra.mxu0 %v7637
          %7639 = vmatprep.subr.mxu0 0.0
          %v7640 = vand.u32 %v5793, 4294901760
          %7641 = vmatpush1.msra.mxu0 %v7640
          %7642 = vmatprep.subr.mxu0 0.0
          %7643 = vmatpush1.msra.mxu0 0.0
          %7644 = vmatprep.subr.mxu0 0.0
          %7645 = vmatpush1.msra.mxu0 0.0
          %7646 = vmatprep.subr.mxu0 0.0
          %7647 = vmatpush1.msra.mxu0 0.0
          %7648 = vmatprep.subr.mxu0 0.0
          %7649 = vmatpush1.msra.mxu0 0.0
          %7650 = vmatprep.subr.mxu0 0.0
          %7651 = vmatpush1.msra.mxu0 0.0
          %7652 = vmatprep.subr.mxu0 0.0
          %7653 = vmatpush1.msra.mxu0 0.0
          %7654 = vmatprep.subr.mxu0 0.0
          %7655 = vmatpush1.msra.mxu0 0.0
          %7656 = vmatprep.subr.mxu0 0.0
          %7657 = vmatpush1.msra.mxu0 0.0
          %7658 = vmatprep.subr.mxu0 0.0
          %7659 = vmatpush1.msra.mxu0 0.0
          %7660 = vmatprep.subr.mxu0 0.0
          %7661 = vmatpush1.msra.mxu0 0.0
          %7662 = vmatprep.subr.mxu0 0.0
          %7663 = vmatpush1.msra.mxu0 0.0
          %7664 = vmatprep.subr.mxu0 0.0
          %7665 = vmatpush1.msra.mxu0 0.0
          %7666 = vmatprep.subr.mxu0 0.0
          %7667 = vmatpush1.msra.mxu0 0.0
          %7668 = vmatprep.subr.mxu0 0.0
          %7669 = vmatpush1.msra.mxu0 0.0
          %7670 = vmatprep.subr.mxu0 0.0
          %7671 = vmatpush1.msra.mxu0 0.0
          %7672 = vmatprep.subr.mxu0 0.0
          %7673 = vmatpush1.msra.mxu0 0.0
          %7674 = vmatprep.mubr.f32.mxu0 0.0
          %v7675 = vand.u32 %v7589, 4294901760
          %v7676 = vsub.f32 %v7589, %v7675
          %v7677 = vand.u32 %v7676, 4294901760
          %v7678 = vsub.f32 %v7676, %v7677
          %v7679 = vand.u32 %v7678, 4294901760
          %7680 = vmatmul.mubr.f32.gmra.mrb[0].mxu0 %v7679
          %v7681 = vpop.f32.mrb[0].mxu0
          %v7682 = vadd.f32 %v7593, %v7681
          %v7683 = vpop.f32.mrb[0].mxu0
          %7684 = vdwg.mxu0
          %7685 = vmatprep.subr.mxu0 0.0
          %v7686 = vand.u32 %v5778, 4294901760
          %v7687 = vsub.f32 %v5778, %v7686
          %v7688 = vand.u32 %v7687, 4294901760
          %v7689 = vsub.f32 %v7687, %v7688
          %v7690 = vand.u32 %v7689, 4294901760
          %7691 = vmatpush1.msra.mxu0 %v7690
          %7692 = vmatprep.subr.mxu0 0.0
          %v7693 = vand.u32 %v5779, 4294901760
          %v7694 = vsub.f32 %v5779, %v7693
          %v7695 = vand.u32 %v7694, 4294901760
          %v7696 = vsub.f32 %v7694, %v7695
          %v7697 = vand.u32 %v7696, 4294901760
          %7698 = vmatpush1.msra.mxu0 %v7697
          %7699 = vmatprep.subr.mxu0 0.0
          %v7700 = vand.u32 %v5780, 4294901760
          %v7701 = vsub.f32 %v5780, %v7700
          %v7702 = vand.u32 %v7701, 4294901760
          %v7703 = vsub.f32 %v7701, %v7702
          %v7704 = vand.u32 %v7703, 4294901760
          %7705 = vmatpush1.msra.mxu0 %v7704
          %7706 = vmatprep.subr.mxu0 0.0
          %v7707 = vand.u32 %v5781, 4294901760
          %v7708 = vsub.f32 %v5781, %v7707
          %v7709 = vand.u32 %v7708, 4294901760
          %v7710 = vsub.f32 %v7708, %v7709
          %v7711 = vand.u32 %v7710, 4294901760
          %7712 = vmatpush1.msra.mxu0 %v7711
          %7713 = vmatprep.subr.mxu0 0.0
          %v7714 = vand.u32 %v5782, 4294901760
          %v7715 = vsub.f32 %v5782, %v7714
          %v7716 = vand.u32 %v7715, 4294901760
          %v7717 = vsub.f32 %v7715, %v7716
          %v7718 = vand.u32 %v7717, 4294901760
          %7719 = vmatpush1.msra.mxu0 %v7718
          %7720 = vmatprep.subr.mxu0 0.0
          %v7721 = vand.u32 %v5783, 4294901760
          %v7722 = vsub.f32 %v5783, %v7721
          %v7723 = vand.u32 %v7722, 4294901760
          %v7724 = vsub.f32 %v7722, %v7723
          %v7725 = vand.u32 %v7724, 4294901760
          %7726 = vmatpush1.msra.mxu0 %v7725
          %7727 = vmatprep.subr.mxu0 0.0
          %v7728 = vand.u32 %v5784, 4294901760
          %v7729 = vsub.f32 %v5784, %v7728
          %v7730 = vand.u32 %v7729, 4294901760
          %v7731 = vsub.f32 %v7729, %v7730
          %v7732 = vand.u32 %v7731, 4294901760
          %7733 = vmatpush1.msra.mxu0 %v7732
          %7734 = vmatprep.subr.mxu0 0.0
          %v7735 = vand.u32 %v5785, 4294901760
          %v7736 = vsub.f32 %v5785, %v7735
          %v7737 = vand.u32 %v7736, 4294901760
          %v7738 = vsub.f32 %v7736, %v7737
          %v7739 = vand.u32 %v7738, 4294901760
          %7740 = vmatpush1.msra.mxu0 %v7739
          %7741 = vmatprep.subr.mxu0 0.0
          %v7742 = vand.u32 %v5786, 4294901760
          %v7743 = vsub.f32 %v5786, %v7742
          %v7744 = vand.u32 %v7743, 4294901760
          %v7745 = vsub.f32 %v7743, %v7744
          %v7746 = vand.u32 %v7745, 4294901760
          %7747 = vmatpush1.msra.mxu0 %v7746
          %7748 = vmatprep.subr.mxu0 0.0
          %v7749 = vand.u32 %v5787, 4294901760
          %v7750 = vsub.f32 %v5787, %v7749
          %v7751 = vand.u32 %v7750, 4294901760
          %v7752 = vsub.f32 %v7750, %v7751
          %v7753 = vand.u32 %v7752, 4294901760
          %7754 = vmatpush1.msra.mxu0 %v7753
          %7755 = vmatprep.subr.mxu0 0.0
          %v7756 = vand.u32 %v5788, 4294901760
          %v7757 = vsub.f32 %v5788, %v7756
          %v7758 = vand.u32 %v7757, 4294901760
          %v7759 = vsub.f32 %v7757, %v7758
          %v7760 = vand.u32 %v7759, 4294901760
          %7761 = vmatpush1.msra.mxu0 %v7760
          %7762 = vmatprep.subr.mxu0 0.0
          %v7763 = vand.u32 %v5789, 4294901760
          %v7764 = vsub.f32 %v5789, %v7763
          %v7765 = vand.u32 %v7764, 4294901760
          %v7766 = vsub.f32 %v7764, %v7765
          %v7767 = vand.u32 %v7766, 4294901760
          %7768 = vmatpush1.msra.mxu0 %v7767
          %7769 = vmatprep.subr.mxu0 0.0
          %v7770 = vand.u32 %v5790, 4294901760
          %v7771 = vsub.f32 %v5790, %v7770
          %v7772 = vand.u32 %v7771, 4294901760
          %v7773 = vsub.f32 %v7771, %v7772
          %v7774 = vand.u32 %v7773, 4294901760
          %7775 = vmatpush1.msra.mxu0 %v7774
          %7776 = vmatprep.subr.mxu0 0.0
          %v7777 = vand.u32 %v5791, 4294901760
          %v7778 = vsub.f32 %v5791, %v7777
          %v7779 = vand.u32 %v7778, 4294901760
          %v7780 = vsub.f32 %v7778, %v7779
          %v7781 = vand.u32 %v7780, 4294901760
          %7782 = vmatpush1.msra.mxu0 %v7781
          %7783 = vmatprep.subr.mxu0 0.0
          %v7784 = vand.u32 %v5792, 4294901760
          %v7785 = vsub.f32 %v5792, %v7784
          %v7786 = vand.u32 %v7785, 4294901760
          %v7787 = vsub.f32 %v7785, %v7786
          %v7788 = vand.u32 %v7787, 4294901760
          %7789 = vmatpush1.msra.mxu0 %v7788
          %7790 = vmatprep.subr.mxu0 0.0
          %v7791 = vand.u32 %v5793, 4294901760
          %v7792 = vsub.f32 %v5793, %v7791
          %v7793 = vand.u32 %v7792, 4294901760
          %v7794 = vsub.f32 %v7792, %v7793
          %v7795 = vand.u32 %v7794, 4294901760
          %7796 = vmatpush1.msra.mxu0 %v7795
          %7797 = vmatprep.subr.mxu0 0.0
          %7798 = vmatpush1.msra.mxu0 0.0
          %7799 = vmatprep.subr.mxu0 0.0
          %7800 = vmatpush1.msra.mxu0 0.0
          %7801 = vmatprep.subr.mxu0 0.0
          %7802 = vmatpush1.msra.mxu0 0.0
          %7803 = vmatprep.subr.mxu0 0.0
          %7804 = vmatpush1.msra.mxu0 0.0
          %7805 = vmatprep.subr.mxu0 0.0
          %7806 = vmatpush1.msra.mxu0 0.0
          %7807 = vmatprep.subr.mxu0 0.0
          %7808 = vmatpush1.msra.mxu0 0.0
          %7809 = vmatprep.subr.mxu0 0.0
          %7810 = vmatpush1.msra.mxu0 0.0
          %7811 = vmatprep.subr.mxu0 0.0
          %7812 = vmatpush1.msra.mxu0 0.0
          %7813 = vmatprep.subr.mxu0 0.0
          %7814 = vmatpush1.msra.mxu0 0.0
          %7815 = vmatprep.subr.mxu0 0.0
          %7816 = vmatpush1.msra.mxu0 0.0
          %7817 = vmatprep.subr.mxu0 0.0
          %7818 = vmatpush1.msra.mxu0 0.0
          %7819 = vmatprep.subr.mxu0 0.0
          %7820 = vmatpush1.msra.mxu0 0.0
          %7821 = vmatprep.subr.mxu0 0.0
          %7822 = vmatpush1.msra.mxu0 0.0
          %7823 = vmatprep.subr.mxu0 0.0
          %7824 = vmatpush1.msra.mxu0 0.0
          %7825 = vmatprep.subr.mxu0 0.0
          %7826 = vmatpush1.msra.mxu0 0.0
          %7827 = vmatprep.subr.mxu0 0.0
          %7828 = vmatpush1.msra.mxu0 0.0
          %7829 = vmatprep.mubr.f32.mxu0 0.0
          %v7830 = vand.u32 %v7589, 4294901760
          %7831 = vmatmul.mubr.f32.gmra.mrb[0].mxu0 %v7830
          %v7832 = vpop.f32.mrb[0].mxu0
          %v7833 = vadd.f32 %v7682, %v7832
          %v7834 = vpop.f32.mrb[0].mxu0
          %7835 = vdwg.mxu0
          %7836 = vmatprep.subr.mxu0 0.0
          %v7837 = vand.u32 %v5778, 4294901760
          %v7838 = vsub.f32 %v5778, %v7837
          %7839 = vmatpush1.msra.mxu0 %v7838
          %7840 = vmatprep.subr.mxu0 0.0
          %v7841 = vand.u32 %v5779, 4294901760
          %v7842 = vsub.f32 %v5779, %v7841
          %7843 = vmatpush1.msra.mxu0 %v7842
          %7844 = vmatprep.subr.mxu0 0.0
          %v7845 = vand.u32 %v5780, 4294901760
          %v7846 = vsub.f32 %v5780, %v7845
          %7847 = vmatpush1.msra.mxu0 %v7846
          %7848 = vmatprep.subr.mxu0 0.0
          %v7849 = vand.u32 %v5781, 4294901760
          %v7850 = vsub.f32 %v5781, %v7849
          %7851 = vmatpush1.msra.mxu0 %v7850
          %7852 = vmatprep.subr.mxu0 0.0
          %v7853 = vand.u32 %v5782, 4294901760
          %v7854 = vsub.f32 %v5782, %v7853
          %7855 = vmatpush1.msra.mxu0 %v7854
          %7856 = vmatprep.subr.mxu0 0.0
          %v7857 = vand.u32 %v5783, 4294901760
          %v7858 = vsub.f32 %v5783, %v7857
          %7859 = vmatpush1.msra.mxu0 %v7858
          %7860 = vmatprep.subr.mxu0 0.0
          %v7861 = vand.u32 %v5784, 4294901760
          %v7862 = vsub.f32 %v5784, %v7861
          %7863 = vmatpush1.msra.mxu0 %v7862
          %7864 = vmatprep.subr.mxu0 0.0
          %v7865 = vand.u32 %v5785, 4294901760
          %v7866 = vsub.f32 %v5785, %v7865
          %7867 = vmatpush1.msra.mxu0 %v7866
          %7868 = vmatprep.subr.mxu0 0.0
          %v7869 = vand.u32 %v5786, 4294901760
          %v7870 = vsub.f32 %v5786, %v7869
          %7871 = vmatpush1.msra.mxu0 %v7870
          %7872 = vmatprep.subr.mxu0 0.0
          %v7873 = vand.u32 %v5787, 4294901760
          %v7874 = vsub.f32 %v5787, %v7873
          %7875 = vmatpush1.msra.mxu0 %v7874
          %7876 = vmatprep.subr.mxu0 0.0
          %v7877 = vand.u32 %v5788, 4294901760
          %v7878 = vsub.f32 %v5788, %v7877
          %7879 = vmatpush1.msra.mxu0 %v7878
          %7880 = vmatprep.subr.mxu0 0.0
          %v7881 = vand.u32 %v5789, 4294901760
          %v7882 = vsub.f32 %v5789, %v7881
          %7883 = vmatpush1.msra.mxu0 %v7882
          %7884 = vmatprep.subr.mxu0 0.0
          %v7885 = vand.u32 %v5790, 4294901760
          %v7886 = vsub.f32 %v5790, %v7885
          %7887 = vmatpush1.msra.mxu0 %v7886
          %7888 = vmatprep.subr.mxu0 0.0
          %v7889 = vand.u32 %v5791, 4294901760
          %v7890 = vsub.f32 %v5791, %v7889
          %7891 = vmatpush1.msra.mxu0 %v7890
          %7892 = vmatprep.subr.mxu0 0.0
          %v7893 = vand.u32 %v5792, 4294901760
          %v7894 = vsub.f32 %v5792, %v7893
          %7895 = vmatpush1.msra.mxu0 %v7894
          %7896 = vmatprep.subr.mxu0 0.0
          %v7897 = vand.u32 %v5793, 4294901760
          %v7898 = vsub.f32 %v5793, %v7897
          %7899 = vmatpush1.msra.mxu0 %v7898
          %7900 = vmatprep.subr.mxu0 0.0
          %7901 = vmatpush1.msra.mxu0 0.0
          %7902 = vmatprep.subr.mxu0 0.0
          %7903 = vmatpush1.msra.mxu0 0.0
          %7904 = vmatprep.subr.mxu0 0.0
          %7905 = vmatpush1.msra.mxu0 0.0
          %7906 = vmatprep.subr.mxu0 0.0
          %7907 = vmatpush1.msra.mxu0 0.0
          %7908 = vmatprep.subr.mxu0 0.0
          %7909 = vmatpush1.msra.mxu0 0.0
          %7910 = vmatprep.subr.mxu0 0.0
          %7911 = vmatpush1.msra.mxu0 0.0
          %7912 = vmatprep.subr.mxu0 0.0
          %7913 = vmatpush1.msra.mxu0 0.0
          %7914 = vmatprep.subr.mxu0 0.0
          %7915 = vmatpush1.msra.mxu0 0.0
          %7916 = vmatprep.subr.mxu0 0.0
          %7917 = vmatpush1.msra.mxu0 0.0
          %7918 = vmatprep.subr.mxu0 0.0
          %7919 = vmatpush1.msra.mxu0 0.0
          %7920 = vmatprep.subr.mxu0 0.0
          %7921 = vmatpush1.msra.mxu0 0.0
          %7922 = vmatprep.subr.mxu0 0.0
          %7923 = vmatpush1.msra.mxu0 0.0
          %7924 = vmatprep.subr.mxu0 0.0
          %7925 = vmatpush1.msra.mxu0 0.0
          %7926 = vmatprep.subr.mxu0 0.0
          %7927 = vmatpush1.msra.mxu0 0.0
          %7928 = vmatprep.subr.mxu0 0.0
          %7929 = vmatpush1.msra.mxu0 0.0
          %7930 = vmatprep.subr.mxu0 0.0
          %7931 = vmatpush1.msra.mxu0 0.0
          %7932 = vmatprep.mubr.f32.mxu0 0.0
          %v7933 = vand.u32 %v7589, 4294901760
          %v7934 = vsub.f32 %v7589, %v7933
          %7935 = vmatmul.mubr.f32.gmra.mrb[0].mxu0 %v7934
          %v7936 = vpop.f32.mrb[0].mxu0
          %v7937 = vadd.f32 %v7833, %v7936
          %v7938 = vpop.f32.mrb[0].mxu0
          %7939 = vdwg.mxu0
          %7940 = vmatprep.subr.mxu0 0.0
          %v7941 = vand.u32 %v5778, 4294901760
          %7942 = vmatpush1.msra.mxu0 %v7941
          %7943 = vmatprep.subr.mxu0 0.0
          %v7944 = vand.u32 %v5779, 4294901760
          %7945 = vmatpush1.msra.mxu0 %v7944
          %7946 = vmatprep.subr.mxu0 0.0
          %v7947 = vand.u32 %v5780, 4294901760
          %7948 = vmatpush1.msra.mxu0 %v7947
          %7949 = vmatprep.subr.mxu0 0.0
          %v7950 = vand.u32 %v5781, 4294901760
          %7951 = vmatpush1.msra.mxu0 %v7950
          %7952 = vmatprep.subr.mxu0 0.0
          %v7953 = vand.u32 %v5782, 4294901760
          %7954 = vmatpush1.msra.mxu0 %v7953
          %7955 = vmatprep.subr.mxu0 0.0
          %v7956 = vand.u32 %v5783, 4294901760
          %7957 = vmatpush1.msra.mxu0 %v7956
          %7958 = vmatprep.subr.mxu0 0.0
          %v7959 = vand.u32 %v5784, 4294901760
          %7960 = vmatpush1.msra.mxu0 %v7959
          %7961 = vmatprep.subr.mxu0 0.0
          %v7962 = vand.u32 %v5785, 4294901760
          %7963 = vmatpush1.msra.mxu0 %v7962
          %7964 = vmatprep.subr.mxu0 0.0
          %v7965 = vand.u32 %v5786, 4294901760
          %7966 = vmatpush1.msra.mxu0 %v7965
          %7967 = vmatprep.subr.mxu0 0.0
          %v7968 = vand.u32 %v5787, 4294901760
          %7969 = vmatpush1.msra.mxu0 %v7968
          %7970 = vmatprep.subr.mxu0 0.0
          %v7971 = vand.u32 %v5788, 4294901760
          %7972 = vmatpush1.msra.mxu0 %v7971
          %7973 = vmatprep.subr.mxu0 0.0
          %v7974 = vand.u32 %v5789, 4294901760
          %7975 = vmatpush1.msra.mxu0 %v7974
          %7976 = vmatprep.subr.mxu0 0.0
          %v7977 = vand.u32 %v5790, 4294901760
          %7978 = vmatpush1.msra.mxu0 %v7977
          %7979 = vmatprep.subr.mxu0 0.0
          %v7980 = vand.u32 %v5791, 4294901760
          %7981 = vmatpush1.msra.mxu0 %v7980
          %7982 = vmatprep.subr.mxu0 0.0
          %v7983 = vand.u32 %v5792, 4294901760
          %7984 = vmatpush1.msra.mxu0 %v7983
          %7985 = vmatprep.subr.mxu0 0.0
          %v7986 = vand.u32 %v5793, 4294901760
          %7987 = vmatpush1.msra.mxu0 %v7986
          %7988 = vmatprep.subr.mxu0 0.0
          %7989 = vmatpush1.msra.mxu0 0.0
          %7990 = vmatprep.subr.mxu0 0.0
          %7991 = vmatpush1.msra.mxu0 0.0
          %7992 = vmatprep.subr.mxu0 0.0
          %7993 = vmatpush1.msra.mxu0 0.0
          %7994 = vmatprep.subr.mxu0 0.0
          %7995 = vmatpush1.msra.mxu0 0.0
          %7996 = vmatprep.subr.mxu0 0.0
          %7997 = vmatpush1.msra.mxu0 0.0
          %7998 = vmatprep.subr.mxu0 0.0
          %7999 = vmatpush1.msra.mxu0 0.0
          %8000 = vmatprep.subr.mxu0 0.0
          %8001 = vmatpush1.msra.mxu0 0.0
          %8002 = vmatprep.subr.mxu0 0.0
          %8003 = vmatpush1.msra.mxu0 0.0
          %8004 = vmatprep.subr.mxu0 0.0
          %8005 = vmatpush1.msra.mxu0 0.0
          %8006 = vmatprep.subr.mxu0 0.0
          %8007 = vmatpush1.msra.mxu0 0.0
          %8008 = vmatprep.subr.mxu0 0.0
          %8009 = vmatpush1.msra.mxu0 0.0
          %8010 = vmatprep.subr.mxu0 0.0
          %8011 = vmatpush1.msra.mxu0 0.0
          %8012 = vmatprep.subr.mxu0 0.0
          %8013 = vmatpush1.msra.mxu0 0.0
          %8014 = vmatprep.subr.mxu0 0.0
          %8015 = vmatpush1.msra.mxu0 0.0
          %8016 = vmatprep.subr.mxu0 0.0
          %8017 = vmatpush1.msra.mxu0 0.0
          %8018 = vmatprep.subr.mxu0 0.0
          %8019 = vmatpush1.msra.mxu0 0.0
          %8020 = vmatprep.mubr.f32.mxu0 0.0
          %v8021 = vand.u32 %v7589, 4294901760
          %v8022 = vsub.f32 %v7589, %v8021
          %v8023 = vand.u32 %v8022, 4294901760
          %8024 = vmatmul.mubr.f32.gmra.mrb[0].mxu0 %v8023
          %v8025 = vpop.f32.mrb[0].mxu0
          %v8026 = vadd.f32 %v7937, %v8025
          %v8027 = vpop.f32.mrb[0].mxu0
          %8028 = vdwg.mxu0
          %8029 = vmatprep.subr.mxu0 0.0
          %v8030 = vand.u32 %v5778, 4294901760
          %v8031 = vsub.f32 %v5778, %v8030
          %v8032 = vand.u32 %v8031, 4294901760
          %8033 = vmatpush1.msra.mxu0 %v8032
          %8034 = vmatprep.subr.mxu0 0.0
          %v8035 = vand.u32 %v5779, 4294901760
          %v8036 = vsub.f32 %v5779, %v8035
          %v8037 = vand.u32 %v8036, 4294901760
          %8038 = vmatpush1.msra.mxu0 %v8037
          %8039 = vmatprep.subr.mxu0 0.0
          %v8040 = vand.u32 %v5780, 4294901760
          %v8041 = vsub.f32 %v5780, %v8040
          %v8042 = vand.u32 %v8041, 4294901760
          %8043 = vmatpush1.msra.mxu0 %v8042
          %8044 = vmatprep.subr.mxu0 0.0
          %v8045 = vand.u32 %v5781, 4294901760
          %v8046 = vsub.f32 %v5781, %v8045
          %v8047 = vand.u32 %v8046, 4294901760
          %8048 = vmatpush1.msra.mxu0 %v8047
          %8049 = vmatprep.subr.mxu0 0.0
          %v8050 = vand.u32 %v5782, 4294901760
          %v8051 = vsub.f32 %v5782, %v8050
          %v8052 = vand.u32 %v8051, 4294901760
          %8053 = vmatpush1.msra.mxu0 %v8052
          %8054 = vmatprep.subr.mxu0 0.0
          %v8055 = vand.u32 %v5783, 4294901760
          %v8056 = vsub.f32 %v5783, %v8055
          %v8057 = vand.u32 %v8056, 4294901760
          %8058 = vmatpush1.msra.mxu0 %v8057
          %8059 = vmatprep.subr.mxu0 0.0
          %v8060 = vand.u32 %v5784, 4294901760
          %v8061 = vsub.f32 %v5784, %v8060
          %v8062 = vand.u32 %v8061, 4294901760
          %8063 = vmatpush1.msra.mxu0 %v8062
          %8064 = vmatprep.subr.mxu0 0.0
          %v8065 = vand.u32 %v5785, 4294901760
          %v8066 = vsub.f32 %v5785, %v8065
          %v8067 = vand.u32 %v8066, 4294901760
          %8068 = vmatpush1.msra.mxu0 %v8067
          %8069 = vmatprep.subr.mxu0 0.0
          %v8070 = vand.u32 %v5786, 4294901760
          %v8071 = vsub.f32 %v5786, %v8070
          %v8072 = vand.u32 %v8071, 4294901760
          %8073 = vmatpush1.msra.mxu0 %v8072
          %8074 = vmatprep.subr.mxu0 0.0
          %v8075 = vand.u32 %v5787, 4294901760
          %v8076 = vsub.f32 %v5787, %v8075
          %v8077 = vand.u32 %v8076, 4294901760
          %8078 = vmatpush1.msra.mxu0 %v8077
          %8079 = vmatprep.subr.mxu0 0.0
          %v8080 = vand.u32 %v5788, 4294901760
          %v8081 = vsub.f32 %v5788, %v8080
          %v8082 = vand.u32 %v8081, 4294901760
          %8083 = vmatpush1.msra.mxu0 %v8082
          %8084 = vmatprep.subr.mxu0 0.0
          %v8085 = vand.u32 %v5789, 4294901760
          %v8086 = vsub.f32 %v5789, %v8085
          %v8087 = vand.u32 %v8086, 4294901760
          %8088 = vmatpush1.msra.mxu0 %v8087
          %8089 = vmatprep.subr.mxu0 0.0
          %v8090 = vand.u32 %v5790, 4294901760
          %v8091 = vsub.f32 %v5790, %v8090
          %v8092 = vand.u32 %v8091, 4294901760
          %8093 = vmatpush1.msra.mxu0 %v8092
          %8094 = vmatprep.subr.mxu0 0.0
          %v8095 = vand.u32 %v5791, 4294901760
          %v8096 = vsub.f32 %v5791, %v8095
          %v8097 = vand.u32 %v8096, 4294901760
          %8098 = vmatpush1.msra.mxu0 %v8097
          %8099 = vmatprep.subr.mxu0 0.0
          %v8100 = vand.u32 %v5792, 4294901760
          %v8101 = vsub.f32 %v5792, %v8100
          %v8102 = vand.u32 %v8101, 4294901760
          %8103 = vmatpush1.msra.mxu0 %v8102
          %8104 = vmatprep.subr.mxu0 0.0
          %v8105 = vand.u32 %v5793, 4294901760
          %v8106 = vsub.f32 %v5793, %v8105
          %v8107 = vand.u32 %v8106, 4294901760
          %8108 = vmatpush1.msra.mxu0 %v8107
          %8109 = vmatprep.subr.mxu0 0.0
          %8110 = vmatpush1.msra.mxu0 0.0
          %8111 = vmatprep.subr.mxu0 0.0
          %8112 = vmatpush1.msra.mxu0 0.0
          %8113 = vmatprep.subr.mxu0 0.0
          %8114 = vmatpush1.msra.mxu0 0.0
          %8115 = vmatprep.subr.mxu0 0.0
          %8116 = vmatpush1.msra.mxu0 0.0
          %8117 = vmatprep.subr.mxu0 0.0
          %8118 = vmatpush1.msra.mxu0 0.0
          %8119 = vmatprep.subr.mxu0 0.0
          %8120 = vmatpush1.msra.mxu0 0.0
          %8121 = vmatprep.subr.mxu0 0.0
          %8122 = vmatpush1.msra.mxu0 0.0
          %8123 = vmatprep.subr.mxu0 0.0
          %8124 = vmatpush1.msra.mxu0 0.0
          %8125 = vmatprep.subr.mxu0 0.0
          %8126 = vmatpush1.msra.mxu0 0.0
          %8127 = vmatprep.subr.mxu0 0.0
          %8128 = vmatpush1.msra.mxu0 0.0
          %8129 = vmatprep.subr.mxu0 0.0
          %8130 = vmatpush1.msra.mxu0 0.0
          %8131 = vmatprep.subr.mxu0 0.0
          %8132 = vmatpush1.msra.mxu0 0.0
          %8133 = vmatprep.subr.mxu0 0.0
          %8134 = vmatpush1.msra.mxu0 0.0
          %8135 = vmatprep.subr.mxu0 0.0
          %8136 = vmatpush1.msra.mxu0 0.0
          %8137 = vmatprep.subr.mxu0 0.0
          %8138 = vmatpush1.msra.mxu0 0.0
          %8139 = vmatprep.subr.mxu0 0.0
          %8140 = vmatpush1.msra.mxu0 0.0
          %8141 = vmatprep.mubr.f32.mxu0 0.0
          %v8142 = vand.u32 %v7589, 4294901760
          %8143 = vmatmul.mubr.f32.gmra.mrb[0].mxu0 %v8142
          %v8144 = vpop.f32.mrb[0].mxu0
          %v8145 = vadd.f32 %v8026, %v8144
          %v8146 = vpop.f32.mrb[0].mxu0
          %8147 = vdwg.mxu0
          %8148 = vmatprep.subr.mxu0 0.0
          %v8149 = vand.u32 %v5778, 4294901760
          %8150 = vmatpush1.msra.mxu0 %v8149
          %8151 = vmatprep.subr.mxu0 0.0
          %v8152 = vand.u32 %v5779, 4294901760
          %8153 = vmatpush1.msra.mxu0 %v8152
          %8154 = vmatprep.subr.mxu0 0.0
          %v8155 = vand.u32 %v5780, 4294901760
          %8156 = vmatpush1.msra.mxu0 %v8155
          %8157 = vmatprep.subr.mxu0 0.0
          %v8158 = vand.u32 %v5781, 4294901760
          %8159 = vmatpush1.msra.mxu0 %v8158
          %8160 = vmatprep.subr.mxu0 0.0
          %v8161 = vand.u32 %v5782, 4294901760
          %8162 = vmatpush1.msra.mxu0 %v8161
          %8163 = vmatprep.subr.mxu0 0.0
          %v8164 = vand.u32 %v5783, 4294901760
          %8165 = vmatpush1.msra.mxu0 %v8164
          %8166 = vmatprep.subr.mxu0 0.0
          %v8167 = vand.u32 %v5784, 4294901760
          %8168 = vmatpush1.msra.mxu0 %v8167
          %8169 = vmatprep.subr.mxu0 0.0
          %v8170 = vand.u32 %v5785, 4294901760
          %8171 = vmatpush1.msra.mxu0 %v8170
          %8172 = vmatprep.subr.mxu0 0.0
          %v8173 = vand.u32 %v5786, 4294901760
          %8174 = vmatpush1.msra.mxu0 %v8173
          %8175 = vmatprep.subr.mxu0 0.0
          %v8176 = vand.u32 %v5787, 4294901760
          %8177 = vmatpush1.msra.mxu0 %v8176
          %8178 = vmatprep.subr.mxu0 0.0
          %v8179 = vand.u32 %v5788, 4294901760
          %8180 = vmatpush1.msra.mxu0 %v8179
          %8181 = vmatprep.subr.mxu0 0.0
          %v8182 = vand.u32 %v5789, 4294901760
          %8183 = vmatpush1.msra.mxu0 %v8182
          %8184 = vmatprep.subr.mxu0 0.0
          %v8185 = vand.u32 %v5790, 4294901760
          %8186 = vmatpush1.msra.mxu0 %v8185
          %8187 = vmatprep.subr.mxu0 0.0
          %v8188 = vand.u32 %v5791, 4294901760
          %8189 = vmatpush1.msra.mxu0 %v8188
          %8190 = vmatprep.subr.mxu0 0.0
          %v8191 = vand.u32 %v5792, 4294901760
          %8192 = vmatpush1.msra.mxu0 %v8191
          %8193 = vmatprep.subr.mxu0 0.0
          %v8194 = vand.u32 %v5793, 4294901760
          %8195 = vmatpush1.msra.mxu0 %v8194
          %8196 = vmatprep.subr.mxu0 0.0
          %8197 = vmatpush1.msra.mxu0 0.0
          %8198 = vmatprep.subr.mxu0 0.0
          %8199 = vmatpush1.msra.mxu0 0.0
          %8200 = vmatprep.subr.mxu0 0.0
          %8201 = vmatpush1.msra.mxu0 0.0
          %8202 = vmatprep.subr.mxu0 0.0
          %8203 = vmatpush1.msra.mxu0 0.0
          %8204 = vmatprep.subr.mxu0 0.0
          %8205 = vmatpush1.msra.mxu0 0.0
          %8206 = vmatprep.subr.mxu0 0.0
          %8207 = vmatpush1.msra.mxu0 0.0
          %8208 = vmatprep.subr.mxu0 0.0
          %8209 = vmatpush1.msra.mxu0 0.0
          %8210 = vmatprep.subr.mxu0 0.0
          %8211 = vmatpush1.msra.mxu0 0.0
          %8212 = vmatprep.subr.mxu0 0.0
          %8213 = vmatpush1.msra.mxu0 0.0
          %8214 = vmatprep.subr.mxu0 0.0
          %8215 = vmatpush1.msra.mxu0 0.0
          %8216 = vmatprep.subr.mxu0 0.0
          %8217 = vmatpush1.msra.mxu0 0.0
          %8218 = vmatprep.subr.mxu0 0.0
          %8219 = vmatpush1.msra.mxu0 0.0
          %8220 = vmatprep.subr.mxu0 0.0
          %8221 = vmatpush1.msra.mxu0 0.0
          %8222 = vmatprep.subr.mxu0 0.0
          %8223 = vmatpush1.msra.mxu0 0.0
          %8224 = vmatprep.subr.mxu0 0.0
          %8225 = vmatpush1.msra.mxu0 0.0
          %8226 = vmatprep.subr.mxu0 0.0
          %8227 = vmatpush1.msra.mxu0 0.0
          %8228 = vmatprep.mubr.f32.mxu0 0.0
          %v8229 = vand.u32 %v7589, 4294901760
          %8230 = vmatmul.mubr.f32.gmra.mrb[0].mxu0 %v8229
          %v8231 = vpop.f32.mrb[0].mxu0
          %v8232 = vadd.f32 %v8145, %v8231
          %v8233 = vpop.f32.mrb[0].mxu0
          %8234 = vdwg.mxu0
          %v8235 = vrot.slane %v8232, 4
          %v8236 = vadd.f32 %v8232, %v8235
          %v8237 = vrot.slane %v8236, 2
          %v8238 = vadd.f32 %v8236, %v8237
          %v8239 = vrot.slane %v8238, 1
          %v8240 = vadd.f32 %v8238, %v8239
          %v8241 = vmul.f32 %v8240, %v7565
          %v8242 = vsub.f32 %v8232, %v8241
          %v8243 = vmul.f32 %v8242, %v8242
          %v8244 = vrot.slane %v8243, 4
          %v8245 = vadd.f32 %v8243, %v8244
          %v8246 = vrot.slane %v8245, 2
          %v8247 = vadd.f32 %v8245, %v8246
          %v8248 = vrot.slane %v8247, 1
          %v8249 = vadd.f32 %v8247, %v8248
          %v8250 = vmul.f32 %v8249, %v7565
          %v8251 = vadd.f32 %v8250, 1e-05
          %v8252 = vrsqrt.pop %v8251
          %v8253 = vmul.f32 %v8242, %v8252
          %v8254 = vlaneseq
          %v8255 = vshrl.u32 %v8254, 7
          %v8256 = vsub.s32 4, %v8255
          %v8257 = vrot.slane %v5826, %v8256
          %8258 = vmatprep.subr.mxu0 0.0
          %v8259 = vand.u32 %v5794, 4294901760
          %8260 = vmatpush1.msra.mxu0 %v8259
          %8261 = vmatprep.subr.mxu0 0.0
          %v8262 = vand.u32 %v5795, 4294901760
          %8263 = vmatpush1.msra.mxu0 %v8262
          %8264 = vmatprep.subr.mxu0 0.0
          %v8265 = vand.u32 %v5796, 4294901760
          %8266 = vmatpush1.msra.mxu0 %v8265
          %8267 = vmatprep.subr.mxu0 0.0
          %v8268 = vand.u32 %v5797, 4294901760
          %8269 = vmatpush1.msra.mxu0 %v8268
          %8270 = vmatprep.subr.mxu0 0.0
          %v8271 = vand.u32 %v5798, 4294901760
          %8272 = vmatpush1.msra.mxu0 %v8271
          %8273 = vmatprep.subr.mxu0 0.0
          %v8274 = vand.u32 %v5799, 4294901760
          %8275 = vmatpush1.msra.mxu0 %v8274
          %8276 = vmatprep.subr.mxu0 0.0
          %v8277 = vand.u32 %v5800, 4294901760
          %8278 = vmatpush1.msra.mxu0 %v8277
          %8279 = vmatprep.subr.mxu0 0.0
          %v8280 = vand.u32 %v5801, 4294901760
          %8281 = vmatpush1.msra.mxu0 %v8280
          %8282 = vmatprep.subr.mxu0 0.0
          %v8283 = vand.u32 %v5802, 4294901760
          %8284 = vmatpush1.msra.mxu0 %v8283
          %8285 = vmatprep.subr.mxu0 0.0
          %v8286 = vand.u32 %v5803, 4294901760
          %8287 = vmatpush1.msra.mxu0 %v8286
          %8288 = vmatprep.subr.mxu0 0.0
          %v8289 = vand.u32 %v5804, 4294901760
          %8290 = vmatpush1.msra.mxu0 %v8289
          %8291 = vmatprep.subr.mxu0 0.0
          %v8292 = vand.u32 %v5805, 4294901760
          %8293 = vmatpush1.msra.mxu0 %v8292
          %8294 = vmatprep.subr.mxu0 0.0
          %v8295 = vand.u32 %v5806, 4294901760
          %8296 = vmatpush1.msra.mxu0 %v8295
          %8297 = vmatprep.subr.mxu0 0.0
          %v8298 = vand.u32 %v5807, 4294901760
          %8299 = vmatpush1.msra.mxu0 %v8298
          %8300 = vmatprep.subr.mxu0 0.0
          %v8301 = vand.u32 %v5808, 4294901760
          %8302 = vmatpush1.msra.mxu0 %v8301
          %8303 = vmatprep.subr.mxu0 0.0
          %v8304 = vand.u32 %v5809, 4294901760
          %8305 = vmatpush1.msra.mxu0 %v8304
          %8306 = vmatprep.subr.mxu0 0.0
          %8307 = vmatpush1.msra.mxu0 0.0
          %8308 = vmatprep.subr.mxu0 0.0
          %8309 = vmatpush1.msra.mxu0 0.0
          %8310 = vmatprep.subr.mxu0 0.0
          %8311 = vmatpush1.msra.mxu0 0.0
          %8312 = vmatprep.subr.mxu0 0.0
          %8313 = vmatpush1.msra.mxu0 0.0
          %8314 = vmatprep.subr.mxu0 0.0
          %8315 = vmatpush1.msra.mxu0 0.0
          %8316 = vmatprep.subr.mxu0 0.0
          %8317 = vmatpush1.msra.mxu0 0.0
          %8318 = vmatprep.subr.mxu0 0.0
          %8319 = vmatpush1.msra.mxu0 0.0
          %8320 = vmatprep.subr.mxu0 0.0
          %8321 = vmatpush1.msra.mxu0 0.0
          %8322 = vmatprep.subr.mxu0 0.0
          %8323 = vmatpush1.msra.mxu0 0.0
          %8324 = vmatprep.subr.mxu0 0.0
          %8325 = vmatpush1.msra.mxu0 0.0
          %8326 = vmatprep.subr.mxu0 0.0
          %8327 = vmatpush1.msra.mxu0 0.0
          %8328 = vmatprep.subr.mxu0 0.0
          %8329 = vmatpush1.msra.mxu0 0.0
          %8330 = vmatprep.subr.mxu0 0.0
          %8331 = vmatpush1.msra.mxu0 0.0
          %8332 = vmatprep.subr.mxu0 0.0
          %8333 = vmatpush1.msra.mxu0 0.0
          %8334 = vmatprep.subr.mxu0 0.0
          %8335 = vmatpush1.msra.mxu0 0.0
          %8336 = vmatprep.subr.mxu0 0.0
          %8337 = vmatpush1.msra.mxu0 0.0
          %8338 = vmatprep.mubr.f32.mxu0 0.0
          %v8339 = vand.u32 %v8253, 4294901760
          %v8340 = vsub.f32 %v8253, %v8339
          %v8341 = vand.u32 %v8340, 4294901760
          %v8342 = vsub.f32 %v8340, %v8341
          %v8343 = vand.u32 %v8342, 4294901760
          %8344 = vmatmul.mubr.f32.gmra.mrb[0].mxu0 %v8343
          %v8345 = vpop.f32.mrb[0].mxu0
          %v8346 = vadd.f32 %v8257, %v8345
          %v8347 = vpop.f32.mrb[0].mxu0
          %8348 = vdwg.mxu0
          %8349 = vmatprep.subr.mxu0 0.0
          %v8350 = vand.u32 %v5794, 4294901760
          %v8351 = vsub.f32 %v5794, %v8350
          %v8352 = vand.u32 %v8351, 4294901760
          %v8353 = vsub.f32 %v8351, %v8352
          %v8354 = vand.u32 %v8353, 4294901760
          %8355 = vmatpush1.msra.mxu0 %v8354
          %8356 = vmatprep.subr.mxu0 0.0
          %v8357 = vand.u32 %v5795, 4294901760
          %v8358 = vsub.f32 %v5795, %v8357
          %v8359 = vand.u32 %v8358, 4294901760
          %v8360 = vsub.f32 %v8358, %v8359
          %v8361 = vand.u32 %v8360, 4294901760
          %8362 = vmatpush1.msra.mxu0 %v8361
          %8363 = vmatprep.subr.mxu0 0.0
          %v8364 = vand.u32 %v5796, 4294901760
          %v8365 = vsub.f32 %v5796, %v8364
          %v8366 = vand.u32 %v8365, 4294901760
          %v8367 = vsub.f32 %v8365, %v8366
          %v8368 = vand.u32 %v8367, 4294901760
          %8369 = vmatpush1.msra.mxu0 %v8368
          %8370 = vmatprep.subr.mxu0 0.0
          %v8371 = vand.u32 %v5797, 4294901760
          %v8372 = vsub.f32 %v5797, %v8371
          %v8373 = vand.u32 %v8372, 4294901760
          %v8374 = vsub.f32 %v8372, %v8373
          %v8375 = vand.u32 %v8374, 4294901760
          %8376 = vmatpush1.msra.mxu0 %v8375
          %8377 = vmatprep.subr.mxu0 0.0
          %v8378 = vand.u32 %v5798, 4294901760
          %v8379 = vsub.f32 %v5798, %v8378
          %v8380 = vand.u32 %v8379, 4294901760
          %v8381 = vsub.f32 %v8379, %v8380
          %v8382 = vand.u32 %v8381, 4294901760
          %8383 = vmatpush1.msra.mxu0 %v8382
          %8384 = vmatprep.subr.mxu0 0.0
          %v8385 = vand.u32 %v5799, 4294901760
          %v8386 = vsub.f32 %v5799, %v8385
          %v8387 = vand.u32 %v8386, 4294901760
          %v8388 = vsub.f32 %v8386, %v8387
          %v8389 = vand.u32 %v8388, 4294901760
          %8390 = vmatpush1.msra.mxu0 %v8389
          %8391 = vmatprep.subr.mxu0 0.0
          %v8392 = vand.u32 %v5800, 4294901760
          %v8393 = vsub.f32 %v5800, %v8392
          %v8394 = vand.u32 %v8393, 4294901760
          %v8395 = vsub.f32 %v8393, %v8394
          %v8396 = vand.u32 %v8395, 4294901760
          %8397 = vmatpush1.msra.mxu0 %v8396
          %8398 = vmatprep.subr.mxu0 0.0
          %v8399 = vand.u32 %v5801, 4294901760
          %v8400 = vsub.f32 %v5801, %v8399
          %v8401 = vand.u32 %v8400, 4294901760
          %v8402 = vsub.f32 %v8400, %v8401
          %v8403 = vand.u32 %v8402, 4294901760
          %8404 = vmatpush1.msra.mxu0 %v8403
          %8405 = vmatprep.subr.mxu0 0.0
          %v8406 = vand.u32 %v5802, 4294901760
          %v8407 = vsub.f32 %v5802, %v8406
          %v8408 = vand.u32 %v8407, 4294901760
          %v8409 = vsub.f32 %v8407, %v8408
          %v8410 = vand.u32 %v8409, 4294901760
          %8411 = vmatpush1.msra.mxu0 %v8410
          %8412 = vmatprep.subr.mxu0 0.0
          %v8413 = vand.u32 %v5803, 4294901760
          %v8414 = vsub.f32 %v5803, %v8413
          %v8415 = vand.u32 %v8414, 4294901760
          %v8416 = vsub.f32 %v8414, %v8415
          %v8417 = vand.u32 %v8416, 4294901760
          %8418 = vmatpush1.msra.mxu0 %v8417
          %8419 = vmatprep.subr.mxu0 0.0
          %v8420 = vand.u32 %v5804, 4294901760
          %v8421 = vsub.f32 %v5804, %v8420
          %v8422 = vand.u32 %v8421, 4294901760
          %v8423 = vsub.f32 %v8421, %v8422
          %v8424 = vand.u32 %v8423, 4294901760
          %8425 = vmatpush1.msra.mxu0 %v8424
          %8426 = vmatprep.subr.mxu0 0.0
          %v8427 = vand.u32 %v5805, 4294901760
          %v8428 = vsub.f32 %v5805, %v8427
          %v8429 = vand.u32 %v8428, 4294901760
          %v8430 = vsub.f32 %v8428, %v8429
          %v8431 = vand.u32 %v8430, 4294901760
          %8432 = vmatpush1.msra.mxu0 %v8431
          %8433 = vmatprep.subr.mxu0 0.0
          %v8434 = vand.u32 %v5806, 4294901760
          %v8435 = vsub.f32 %v5806, %v8434
          %v8436 = vand.u32 %v8435, 4294901760
          %v8437 = vsub.f32 %v8435, %v8436
          %v8438 = vand.u32 %v8437, 4294901760
          %8439 = vmatpush1.msra.mxu0 %v8438
          %8440 = vmatprep.subr.mxu0 0.0
          %v8441 = vand.u32 %v5807, 4294901760
          %v8442 = vsub.f32 %v5807, %v8441
          %v8443 = vand.u32 %v8442, 4294901760
          %v8444 = vsub.f32 %v8442, %v8443
          %v8445 = vand.u32 %v8444, 4294901760
          %8446 = vmatpush1.msra.mxu0 %v8445
          %8447 = vmatprep.subr.mxu0 0.0
          %v8448 = vand.u32 %v5808, 4294901760
          %v8449 = vsub.f32 %v5808, %v8448
          %v8450 = vand.u32 %v8449, 4294901760
          %v8451 = vsub.f32 %v8449, %v8450
          %v8452 = vand.u32 %v8451, 4294901760
          %8453 = vmatpush1.msra.mxu0 %v8452
          %8454 = vmatprep.subr.mxu0 0.0
          %v8455 = vand.u32 %v5809, 4294901760
          %v8456 = vsub.f32 %v5809, %v8455
          %v8457 = vand.u32 %v8456, 4294901760
          %v8458 = vsub.f32 %v8456, %v8457
          %v8459 = vand.u32 %v8458, 4294901760
          %8460 = vmatpush1.msra.mxu0 %v8459
          %8461 = vmatprep.subr.mxu0 0.0
          %8462 = vmatpush1.msra.mxu0 0.0
          %8463 = vmatprep.subr.mxu0 0.0
          %8464 = vmatpush1.msra.mxu0 0.0
          %8465 = vmatprep.subr.mxu0 0.0
          %8466 = vmatpush1.msra.mxu0 0.0
          %8467 = vmatprep.subr.mxu0 0.0
          %8468 = vmatpush1.msra.mxu0 0.0
          %8469 = vmatprep.subr.mxu0 0.0
          %8470 = vmatpush1.msra.mxu0 0.0
          %8471 = vmatprep.subr.mxu0 0.0
          %8472 = vmatpush1.msra.mxu0 0.0
          %8473 = vmatprep.subr.mxu0 0.0
          %8474 = vmatpush1.msra.mxu0 0.0
          %8475 = vmatprep.subr.mxu0 0.0
          %8476 = vmatpush1.msra.mxu0 0.0
          %8477 = vmatprep.subr.mxu0 0.0
          %8478 = vmatpush1.msra.mxu0 0.0
          %8479 = vmatprep.subr.mxu0 0.0
          %8480 = vmatpush1.msra.mxu0 0.0
          %8481 = vmatprep.subr.mxu0 0.0
          %8482 = vmatpush1.msra.mxu0 0.0
          %8483 = vmatprep.subr.mxu0 0.0
          %8484 = vmatpush1.msra.mxu0 0.0
          %8485 = vmatprep.subr.mxu0 0.0
          %8486 = vmatpush1.msra.mxu0 0.0
          %8487 = vmatprep.subr.mxu0 0.0
          %8488 = vmatpush1.msra.mxu0 0.0
          %8489 = vmatprep.subr.mxu0 0.0
          %8490 = vmatpush1.msra.mxu0 0.0
          %8491 = vmatprep.subr.mxu0 0.0
          %8492 = vmatpush1.msra.mxu0 0.0
          %8493 = vmatprep.mubr.f32.mxu0 0.0
          %v8494 = vand.u32 %v8253, 4294901760
          %8495 = vmatmul.mubr.f32.gmra.mrb[0].mxu0 %v8494
          %v8496 = vpop.f32.mrb[0].mxu0
          %v8497 = vadd.f32 %v8346, %v8496
          %v8498 = vpop.f32.mrb[0].mxu0
          %8499 = vdwg.mxu0
          %8500 = vmatprep.subr.mxu0 0.0
          %v8501 = vand.u32 %v5794, 4294901760
          %v8502 = vsub.f32 %v5794, %v8501
          %8503 = vmatpush1.msra.mxu0 %v8502
          %8504 = vmatprep.subr.mxu0 0.0
          %v8505 = vand.u32 %v5795, 4294901760
          %v8506 = vsub.f32 %v5795, %v8505
          %8507 = vmatpush1.msra.mxu0 %v8506
          %8508 = vmatprep.subr.mxu0 0.0
          %v8509 = vand.u32 %v5796, 4294901760
          %v8510 = vsub.f32 %v5796, %v8509
          %8511 = vmatpush1.msra.mxu0 %v8510
          %8512 = vmatprep.subr.mxu0 0.0
          %v8513 = vand.u32 %v5797, 4294901760
          %v8514 = vsub.f32 %v5797, %v8513
          %8515 = vmatpush1.msra.mxu0 %v8514
          %8516 = vmatprep.subr.mxu0 0.0
          %v8517 = vand.u32 %v5798, 4294901760
          %v8518 = vsub.f32 %v5798, %v8517
          %8519 = vmatpush1.msra.mxu0 %v8518
          %8520 = vmatprep.subr.mxu0 0.0
          %v8521 = vand.u32 %v5799, 4294901760
          %v8522 = vsub.f32 %v5799, %v8521
          %8523 = vmatpush1.msra.mxu0 %v8522
          %8524 = vmatprep.subr.mxu0 0.0
          %v8525 = vand.u32 %v5800, 4294901760
          %v8526 = vsub.f32 %v5800, %v8525
          %8527 = vmatpush1.msra.mxu0 %v8526
          %8528 = vmatprep.subr.mxu0 0.0
          %v8529 = vand.u32 %v5801, 4294901760
          %v8530 = vsub.f32 %v5801, %v8529
          %8531 = vmatpush1.msra.mxu0 %v8530
          %8532 = vmatprep.subr.mxu0 0.0
          %v8533 = vand.u32 %v5802, 4294901760
          %v8534 = vsub.f32 %v5802, %v8533
          %8535 = vmatpush1.msra.mxu0 %v8534
          %8536 = vmatprep.subr.mxu0 0.0
          %v8537 = vand.u32 %v5803, 4294901760
          %v8538 = vsub.f32 %v5803, %v8537
          %8539 = vmatpush1.msra.mxu0 %v8538
          %8540 = vmatprep.subr.mxu0 0.0
          %v8541 = vand.u32 %v5804, 4294901760
          %v8542 = vsub.f32 %v5804, %v8541
          %8543 = vmatpush1.msra.mxu0 %v8542
          %8544 = vmatprep.subr.mxu0 0.0
          %v8545 = vand.u32 %v5805, 4294901760
          %v8546 = vsub.f32 %v5805, %v8545
          %8547 = vmatpush1.msra.mxu0 %v8546
          %8548 = vmatprep.subr.mxu0 0.0
          %v8549 = vand.u32 %v5806, 4294901760
          %v8550 = vsub.f32 %v5806, %v8549
          %8551 = vmatpush1.msra.mxu0 %v8550
          %8552 = vmatprep.subr.mxu0 0.0
          %v8553 = vand.u32 %v5807, 4294901760
          %v8554 = vsub.f32 %v5807, %v8553
          %8555 = vmatpush1.msra.mxu0 %v8554
          %8556 = vmatprep.subr.mxu0 0.0
          %v8557 = vand.u32 %v5808, 4294901760
          %v8558 = vsub.f32 %v5808, %v8557
          %8559 = vmatpush1.msra.mxu0 %v8558
          %8560 = vmatprep.subr.mxu0 0.0
          %v8561 = vand.u32 %v5809, 4294901760
          %v8562 = vsub.f32 %v5809, %v8561
          %8563 = vmatpush1.msra.mxu0 %v8562
          %8564 = vmatprep.subr.mxu0 0.0
          %8565 = vmatpush1.msra.mxu0 0.0
          %8566 = vmatprep.subr.mxu0 0.0
          %8567 = vmatpush1.msra.mxu0 0.0
          %8568 = vmatprep.subr.mxu0 0.0
          %8569 = vmatpush1.msra.mxu0 0.0
          %8570 = vmatprep.subr.mxu0 0.0
          %8571 = vmatpush1.msra.mxu0 0.0
          %8572 = vmatprep.subr.mxu0 0.0
          %8573 = vmatpush1.msra.mxu0 0.0
          %8574 = vmatprep.subr.mxu0 0.0
          %8575 = vmatpush1.msra.mxu0 0.0
          %8576 = vmatprep.subr.mxu0 0.0
          %8577 = vmatpush1.msra.mxu0 0.0
          %8578 = vmatprep.subr.mxu0 0.0
          %8579 = vmatpush1.msra.mxu0 0.0
          %8580 = vmatprep.subr.mxu0 0.0
          %8581 = vmatpush1.msra.mxu0 0.0
          %8582 = vmatprep.subr.mxu0 0.0
          %8583 = vmatpush1.msra.mxu0 0.0
          %8584 = vmatprep.subr.mxu0 0.0
          %8585 = vmatpush1.msra.mxu0 0.0
          %8586 = vmatprep.subr.mxu0 0.0
          %8587 = vmatpush1.msra.mxu0 0.0
          %8588 = vmatprep.subr.mxu0 0.0
          %8589 = vmatpush1.msra.mxu0 0.0
          %8590 = vmatprep.subr.mxu0 0.0
          %8591 = vmatpush1.msra.mxu0 0.0
          %8592 = vmatprep.subr.mxu0 0.0
          %8593 = vmatpush1.msra.mxu0 0.0
          %8594 = vmatprep.subr.mxu0 0.0
          %8595 = vmatpush1.msra.mxu0 0.0
          %8596 = vmatprep.mubr.f32.mxu0 0.0
          %v8597 = vand.u32 %v8253, 4294901760
          %v8598 = vsub.f32 %v8253, %v8597
          %8599 = vmatmul.mubr.f32.gmra.mrb[0].mxu0 %v8598
          %v8600 = vpop.f32.mrb[0].mxu0
          %v8601 = vadd.f32 %v8497, %v8600
          %v8602 = vpop.f32.mrb[0].mxu0
          %8603 = vdwg.mxu0
          %8604 = vmatprep.subr.mxu0 0.0
          %v8605 = vand.u32 %v5794, 4294901760
          %8606 = vmatpush1.msra.mxu0 %v8605
          %8607 = vmatprep.subr.mxu0 0.0
          %v8608 = vand.u32 %v5795, 4294901760
          %8609 = vmatpush1.msra.mxu0 %v8608
          %8610 = vmatprep.subr.mxu0 0.0
          %v8611 = vand.u32 %v5796, 4294901760
          %8612 = vmatpush1.msra.mxu0 %v8611
          %8613 = vmatprep.subr.mxu0 0.0
          %v8614 = vand.u32 %v5797, 4294901760
          %8615 = vmatpush1.msra.mxu0 %v8614
          %8616 = vmatprep.subr.mxu0 0.0
          %v8617 = vand.u32 %v5798, 4294901760
          %8618 = vmatpush1.msra.mxu0 %v8617
          %8619 = vmatprep.subr.mxu0 0.0
          %v8620 = vand.u32 %v5799, 4294901760
          %8621 = vmatpush1.msra.mxu0 %v8620
          %8622 = vmatprep.subr.mxu0 0.0
          %v8623 = vand.u32 %v5800, 4294901760
          %8624 = vmatpush1.msra.mxu0 %v8623
          %8625 = vmatprep.subr.mxu0 0.0
          %v8626 = vand.u32 %v5801, 4294901760
          %8627 = vmatpush1.msra.mxu0 %v8626
          %8628 = vmatprep.subr.mxu0 0.0
          %v8629 = vand.u32 %v5802, 4294901760
          %8630 = vmatpush1.msra.mxu0 %v8629
          %8631 = vmatprep.subr.mxu0 0.0
          %v8632 = vand.u32 %v5803, 4294901760
          %8633 = vmatpush1.msra.mxu0 %v8632
          %8634 = vmatprep.subr.mxu0 0.0
          %v8635 = vand.u32 %v5804, 4294901760
          %8636 = vmatpush1.msra.mxu0 %v8635
          %8637 = vmatprep.subr.mxu0 0.0
          %v8638 = vand.u32 %v5805, 4294901760
          %8639 = vmatpush1.msra.mxu0 %v8638
          %8640 = vmatprep.subr.mxu0 0.0
          %v8641 = vand.u32 %v5806, 4294901760
          %8642 = vmatpush1.msra.mxu0 %v8641
          %8643 = vmatprep.subr.mxu0 0.0
          %v8644 = vand.u32 %v5807, 4294901760
          %8645 = vmatpush1.msra.mxu0 %v8644
          %8646 = vmatprep.subr.mxu0 0.0
          %v8647 = vand.u32 %v5808, 4294901760
          %8648 = vmatpush1.msra.mxu0 %v8647
          %8649 = vmatprep.subr.mxu0 0.0
          %v8650 = vand.u32 %v5809, 4294901760
          %8651 = vmatpush1.msra.mxu0 %v8650
          %8652 = vmatprep.subr.mxu0 0.0
          %8653 = vmatpush1.msra.mxu0 0.0
          %8654 = vmatprep.subr.mxu0 0.0
          %8655 = vmatpush1.msra.mxu0 0.0
          %8656 = vmatprep.subr.mxu0 0.0
          %8657 = vmatpush1.msra.mxu0 0.0
          %8658 = vmatprep.subr.mxu0 0.0
          %8659 = vmatpush1.msra.mxu0 0.0
          %8660 = vmatprep.subr.mxu0 0.0
          %8661 = vmatpush1.msra.mxu0 0.0
          %8662 = vmatprep.subr.mxu0 0.0
          %8663 = vmatpush1.msra.mxu0 0.0
          %8664 = vmatprep.subr.mxu0 0.0
          %8665 = vmatpush1.msra.mxu0 0.0
          %8666 = vmatprep.subr.mxu0 0.0
          %8667 = vmatpush1.msra.mxu0 0.0
          %8668 = vmatprep.subr.mxu0 0.0
          %8669 = vmatpush1.msra.mxu0 0.0
          %8670 = vmatprep.subr.mxu0 0.0
          %8671 = vmatpush1.msra.mxu0 0.0
          %8672 = vmatprep.subr.mxu0 0.0
          %8673 = vmatpush1.msra.mxu0 0.0
          %8674 = vmatprep.subr.mxu0 0.0
          %8675 = vmatpush1.msra.mxu0 0.0
          %8676 = vmatprep.subr.mxu0 0.0
          %8677 = vmatpush1.msra.mxu0 0.0
          %8678 = vmatprep.subr.mxu0 0.0
          %8679 = vmatpush1.msra.mxu0 0.0
          %8680 = vmatprep.subr.mxu0 0.0
          %8681 = vmatpush1.msra.mxu0 0.0
          %8682 = vmatprep.subr.mxu0 0.0
          %8683 = vmatpush1.msra.mxu0 0.0
          %8684 = vmatprep.mubr.f32.mxu0 0.0
          %v8685 = vand.u32 %v8253, 4294901760
          %v8686 = vsub.f32 %v8253, %v8685
          %v8687 = vand.u32 %v8686, 4294901760
          %8688 = vmatmul.mubr.f32.gmra.mrb[0].mxu0 %v8687
          %v8689 = vpop.f32.mrb[0].mxu0
          %v8690 = vadd.f32 %v8601, %v8689
          %v8691 = vpop.f32.mrb[0].mxu0
          %8692 = vdwg.mxu0
          %8693 = vmatprep.subr.mxu0 0.0
          %v8694 = vand.u32 %v5794, 4294901760
          %v8695 = vsub.f32 %v5794, %v8694
          %v8696 = vand.u32 %v8695, 4294901760
          %8697 = vmatpush1.msra.mxu0 %v8696
          %8698 = vmatprep.subr.mxu0 0.0
          %v8699 = vand.u32 %v5795, 4294901760
          %v8700 = vsub.f32 %v5795, %v8699
          %v8701 = vand.u32 %v8700, 4294901760
          %8702 = vmatpush1.msra.mxu0 %v8701
          %8703 = vmatprep.subr.mxu0 0.0
          %v8704 = vand.u32 %v5796, 4294901760
          %v8705 = vsub.f32 %v5796, %v8704
          %v8706 = vand.u32 %v8705, 4294901760
          %8707 = vmatpush1.msra.mxu0 %v8706
          %8708 = vmatprep.subr.mxu0 0.0
          %v8709 = vand.u32 %v5797, 4294901760
          %v8710 = vsub.f32 %v5797, %v8709
          %v8711 = vand.u32 %v8710, 4294901760
          %8712 = vmatpush1.msra.mxu0 %v8711
          %8713 = vmatprep.subr.mxu0 0.0
          %v8714 = vand.u32 %v5798, 4294901760
          %v8715 = vsub.f32 %v5798, %v8714
          %v8716 = vand.u32 %v8715, 4294901760
          %8717 = vmatpush1.msra.mxu0 %v8716
          %8718 = vmatprep.subr.mxu0 0.0
          %v8719 = vand.u32 %v5799, 4294901760
          %v8720 = vsub.f32 %v5799, %v8719
          %v8721 = vand.u32 %v8720, 4294901760
          %8722 = vmatpush1.msra.mxu0 %v8721
          %8723 = vmatprep.subr.mxu0 0.0
          %v8724 = vand.u32 %v5800, 4294901760
          %v8725 = vsub.f32 %v5800, %v8724
          %v8726 = vand.u32 %v8725, 4294901760
          %8727 = vmatpush1.msra.mxu0 %v8726
          %8728 = vmatprep.subr.mxu0 0.0
          %v8729 = vand.u32 %v5801, 4294901760
          %v8730 = vsub.f32 %v5801, %v8729
          %v8731 = vand.u32 %v8730, 4294901760
          %8732 = vmatpush1.msra.mxu0 %v8731
          %8733 = vmatprep.subr.mxu0 0.0
          %v8734 = vand.u32 %v5802, 4294901760
          %v8735 = vsub.f32 %v5802, %v8734
          %v8736 = vand.u32 %v8735, 4294901760
          %8737 = vmatpush1.msra.mxu0 %v8736
          %8738 = vmatprep.subr.mxu0 0.0
          %v8739 = vand.u32 %v5803, 4294901760
          %v8740 = vsub.f32 %v5803, %v8739
          %v8741 = vand.u32 %v8740, 4294901760
          %8742 = vmatpush1.msra.mxu0 %v8741
          %8743 = vmatprep.subr.mxu0 0.0
          %v8744 = vand.u32 %v5804, 4294901760
          %v8745 = vsub.f32 %v5804, %v8744
          %v8746 = vand.u32 %v8745, 4294901760
          %8747 = vmatpush1.msra.mxu0 %v8746
          %8748 = vmatprep.subr.mxu0 0.0
          %v8749 = vand.u32 %v5805, 4294901760
          %v8750 = vsub.f32 %v5805, %v8749
          %v8751 = vand.u32 %v8750, 4294901760
          %8752 = vmatpush1.msra.mxu0 %v8751
          %8753 = vmatprep.subr.mxu0 0.0
          %v8754 = vand.u32 %v5806, 4294901760
          %v8755 = vsub.f32 %v5806, %v8754
          %v8756 = vand.u32 %v8755, 4294901760
          %8757 = vmatpush1.msra.mxu0 %v8756
          %8758 = vmatprep.subr.mxu0 0.0
          %v8759 = vand.u32 %v5807, 4294901760
          %v8760 = vsub.f32 %v5807, %v8759
          %v8761 = vand.u32 %v8760, 4294901760
          %8762 = vmatpush1.msra.mxu0 %v8761
          %8763 = vmatprep.subr.mxu0 0.0
          %v8764 = vand.u32 %v5808, 4294901760
          %v8765 = vsub.f32 %v5808, %v8764
          %v8766 = vand.u32 %v8765, 4294901760
          %8767 = vmatpush1.msra.mxu0 %v8766
          %8768 = vmatprep.subr.mxu0 0.0
          %v8769 = vand.u32 %v5809, 4294901760
          %v8770 = vsub.f32 %v5809, %v8769
          %v8771 = vand.u32 %v8770, 4294901760
          %8772 = vmatpush1.msra.mxu0 %v8771
          %8773 = vmatprep.subr.mxu0 0.0
          %8774 = vmatpush1.msra.mxu0 0.0
          %8775 = vmatprep.subr.mxu0 0.0
          %8776 = vmatpush1.msra.mxu0 0.0
          %8777 = vmatprep.subr.mxu0 0.0
          %8778 = vmatpush1.msra.mxu0 0.0
          %8779 = vmatprep.subr.mxu0 0.0
          %8780 = vmatpush1.msra.mxu0 0.0
          %8781 = vmatprep.subr.mxu0 0.0
          %8782 = vmatpush1.msra.mxu0 0.0
          %8783 = vmatprep.subr.mxu0 0.0
          %8784 = vmatpush1.msra.mxu0 0.0
          %8785 = vmatprep.subr.mxu0 0.0
          %8786 = vmatpush1.msra.mxu0 0.0
          %8787 = vmatprep.subr.mxu0 0.0
          %8788 = vmatpush1.msra.mxu0 0.0
          %8789 = vmatprep.subr.mxu0 0.0
          %8790 = vmatpush1.msra.mxu0 0.0
          %8791 = vmatprep.subr.mxu0 0.0
          %8792 = vmatpush1.msra.mxu0 0.0
          %8793 = vmatprep.subr.mxu0 0.0
          %8794 = vmatpush1.msra.mxu0 0.0
          %8795 = vmatprep.subr.mxu0 0.0
          %8796 = vmatpush1.msra.mxu0 0.0
          %8797 = vmatprep.subr.mxu0 0.0
          %8798 = vmatpush1.msra.mxu0 0.0
          %8799 = vmatprep.subr.mxu0 0.0
          %8800 = vmatpush1.msra.mxu0 0.0
          %8801 = vmatprep.subr.mxu0 0.0
          %8802 = vmatpush1.msra.mxu0 0.0
          %8803 = vmatprep.subr.mxu0 0.0
          %8804 = vmatpush1.msra.mxu0 0.0
          %8805 = vmatprep.mubr.f32.mxu0 0.0
          %v8806 = vand.u32 %v8253, 4294901760
          %8807 = vmatmul.mubr.f32.gmra.mrb[0].mxu0 %v8806
          %v8808 = vpop.f32.mrb[0].mxu0
          %v8809 = vadd.f32 %v8690, %v8808
          %v8810 = vpop.f32.mrb[0].mxu0
          %8811 = vdwg.mxu0
          %8812 = vmatprep.subr.mxu0 0.0
          %v8813 = vand.u32 %v5794, 4294901760
          %8814 = vmatpush1.msra.mxu0 %v8813
          %8815 = vmatprep.subr.mxu0 0.0
          %v8816 = vand.u32 %v5795, 4294901760
          %8817 = vmatpush1.msra.mxu0 %v8816
          %8818 = vmatprep.subr.mxu0 0.0
          %v8819 = vand.u32 %v5796, 4294901760
          %8820 = vmatpush1.msra.mxu0 %v8819
          %8821 = vmatprep.subr.mxu0 0.0
          %v8822 = vand.u32 %v5797, 4294901760
          %8823 = vmatpush1.msra.mxu0 %v8822
          %8824 = vmatprep.subr.mxu0 0.0
          %v8825 = vand.u32 %v5798, 4294901760
          %8826 = vmatpush1.msra.mxu0 %v8825
          %8827 = vmatprep.subr.mxu0 0.0
          %v8828 = vand.u32 %v5799, 4294901760
          %8829 = vmatpush1.msra.mxu0 %v8828
          %8830 = vmatprep.subr.mxu0 0.0
          %v8831 = vand.u32 %v5800, 4294901760
          %8832 = vmatpush1.msra.mxu0 %v8831
          %8833 = vmatprep.subr.mxu0 0.0
          %v8834 = vand.u32 %v5801, 4294901760
          %8835 = vmatpush1.msra.mxu0 %v8834
          %8836 = vmatprep.subr.mxu0 0.0
          %v8837 = vand.u32 %v5802, 4294901760
          %8838 = vmatpush1.msra.mxu0 %v8837
          %8839 = vmatprep.subr.mxu0 0.0
          %v8840 = vand.u32 %v5803, 4294901760
          %8841 = vmatpush1.msra.mxu0 %v8840
          %8842 = vmatprep.subr.mxu0 0.0
          %v8843 = vand.u32 %v5804, 4294901760
          %8844 = vmatpush1.msra.mxu0 %v8843
          %8845 = vmatprep.subr.mxu0 0.0
          %v8846 = vand.u32 %v5805, 4294901760
          %8847 = vmatpush1.msra.mxu0 %v8846
          %8848 = vmatprep.subr.mxu0 0.0
          %v8849 = vand.u32 %v5806, 4294901760
          %8850 = vmatpush1.msra.mxu0 %v8849
          %8851 = vmatprep.subr.mxu0 0.0
          %v8852 = vand.u32 %v5807, 4294901760
          %8853 = vmatpush1.msra.mxu0 %v8852
          %8854 = vmatprep.subr.mxu0 0.0
          %v8855 = vand.u32 %v5808, 4294901760
          %8856 = vmatpush1.msra.mxu0 %v8855
          %8857 = vmatprep.subr.mxu0 0.0
          %v8858 = vand.u32 %v5809, 4294901760
          %8859 = vmatpush1.msra.mxu0 %v8858
          %8860 = vmatprep.subr.mxu0 0.0
          %8861 = vmatpush1.msra.mxu0 0.0
          %8862 = vmatprep.subr.mxu0 0.0
          %8863 = vmatpush1.msra.mxu0 0.0
          %8864 = vmatprep.subr.mxu0 0.0
          %8865 = vmatpush1.msra.mxu0 0.0
          %8866 = vmatprep.subr.mxu0 0.0
          %8867 = vmatpush1.msra.mxu0 0.0
          %8868 = vmatprep.subr.mxu0 0.0
          %8869 = vmatpush1.msra.mxu0 0.0
          %8870 = vmatprep.subr.mxu0 0.0
          %8871 = vmatpush1.msra.mxu0 0.0
          %8872 = vmatprep.subr.mxu0 0.0
          %8873 = vmatpush1.msra.mxu0 0.0
          %8874 = vmatprep.subr.mxu0 0.0
          %8875 = vmatpush1.msra.mxu0 0.0
          %8876 = vmatprep.subr.mxu0 0.0
          %8877 = vmatpush1.msra.mxu0 0.0
          %8878 = vmatprep.subr.mxu0 0.0
          %8879 = vmatpush1.msra.mxu0 0.0
          %8880 = vmatprep.subr.mxu0 0.0
          %8881 = vmatpush1.msra.mxu0 0.0
          %8882 = vmatprep.subr.mxu0 0.0
          %8883 = vmatpush1.msra.mxu0 0.0
          %8884 = vmatprep.subr.mxu0 0.0
          %8885 = vmatpush1.msra.mxu0 0.0
          %8886 = vmatprep.subr.mxu0 0.0
          %8887 = vmatpush1.msra.mxu0 0.0
          %8888 = vmatprep.subr.mxu0 0.0
          %8889 = vmatpush1.msra.mxu0 0.0
          %8890 = vmatprep.subr.mxu0 0.0
          %8891 = vmatpush1.msra.mxu0 0.0
          %8892 = vmatprep.mubr.f32.mxu0 0.0
          %v8893 = vand.u32 %v8253, 4294901760
          %8894 = vmatmul.mubr.f32.gmra.mrb[0].mxu0 %v8893
          %v8895 = vpop.f32.mrb[0].mxu0
          %v8896 = vadd.f32 %v8809, %v8895
          %v8897 = vpop.f32.mrb[0].mxu0
          %8898 = vdwg.mxu0
          %v8899 = vrot.slane %v8896, 4
          %v8900 = vadd.f32 %v8896, %v8899
          %v8901 = vrot.slane %v8900, 2
          %v8902 = vadd.f32 %v8900, %v8901
          %v8903 = vrot.slane %v8902, 1
          %v8904 = vadd.f32 %v8902, %v8903
          %v8905 = vmul.f32 %v8904, %v7565
          %v8906 = vsub.f32 %v8896, %v8905
          %v8907 = vmul.f32 %v8906, %v8906
          %v8908 = vrot.slane %v8907, 4
          %v8909 = vadd.f32 %v8907, %v8908
          %v8910 = vrot.slane %v8909, 2
          %v8911 = vadd.f32 %v8909, %v8910
          %v8912 = vrot.slane %v8911, 1
          %v8913 = vadd.f32 %v8911, %v8912
          %v8914 = vmul.f32 %v8913, %v7565
          %v8915 = vadd.f32 %v8914, 1e-05
          %v8916 = vrsqrt.pop %v8915
          %v8917 = vmul.f32 %v8906, %v8916
          %v8918 = vlaneseq
          %v8919 = vshrl.u32 %v8918, 7
          %v8920 = vsub.s32 5, %v8919
          %v8921 = vrot.slane %v5826, %v8920
          %v8922 = vmul.f32 %v8917, %v8921
          %v8923 = vlaneseq
          %v8924 = vshrl.u32 %v8923, 7
          %v8925 = vsub.s32 6, %v8924
          %v8926 = vrot.slane %v5826, %v8925
          %v8927 = vadd.f32 %v8922, %v8926
          %v8928 = vmax.f32 %v8927, 0.0
          %v8929 = vlaneseq
          %v8930 = vshrl.u32 %v8929, 7
          %v8931 = vsub.s32 7, %v8930
          %v8932 = vrot.slane %v5826, %v8931
          %8933 = vmatprep.subr.mxu0 0.0
          %v8934 = vand.u32 %v5810, 4294901760
          %8935 = vmatpush1.msra.mxu0 %v8934
          %8936 = vmatprep.subr.mxu0 0.0
          %v8937 = vand.u32 %v5811, 4294901760
          %8938 = vmatpush1.msra.mxu0 %v8937
          %8939 = vmatprep.subr.mxu0 0.0
          %v8940 = vand.u32 %v5812, 4294901760
          %8941 = vmatpush1.msra.mxu0 %v8940
          %8942 = vmatprep.subr.mxu0 0.0
          %v8943 = vand.u32 %v5813, 4294901760
          %8944 = vmatpush1.msra.mxu0 %v8943
          %8945 = vmatprep.subr.mxu0 0.0
          %v8946 = vand.u32 %v5814, 4294901760
          %8947 = vmatpush1.msra.mxu0 %v8946
          %8948 = vmatprep.subr.mxu0 0.0
          %v8949 = vand.u32 %v5815, 4294901760
          %8950 = vmatpush1.msra.mxu0 %v8949
          %8951 = vmatprep.subr.mxu0 0.0
          %v8952 = vand.u32 %v5816, 4294901760
          %8953 = vmatpush1.msra.mxu0 %v8952
          %8954 = vmatprep.subr.mxu0 0.0
          %v8955 = vand.u32 %v5817, 4294901760
          %8956 = vmatpush1.msra.mxu0 %v8955
          %8957 = vmatprep.subr.mxu0 0.0
          %v8958 = vand.u32 %v5818, 4294901760
          %8959 = vmatpush1.msra.mxu0 %v8958
          %8960 = vmatprep.subr.mxu0 0.0
          %v8961 = vand.u32 %v5819, 4294901760
          %8962 = vmatpush1.msra.mxu0 %v8961
          %8963 = vmatprep.subr.mxu0 0.0
          %v8964 = vand.u32 %v5820, 4294901760
          %8965 = vmatpush1.msra.mxu0 %v8964
          %8966 = vmatprep.subr.mxu0 0.0
          %v8967 = vand.u32 %v5821, 4294901760
          %8968 = vmatpush1.msra.mxu0 %v8967
          %8969 = vmatprep.subr.mxu0 0.0
          %v8970 = vand.u32 %v5822, 4294901760
          %8971 = vmatpush1.msra.mxu0 %v8970
          %8972 = vmatprep.subr.mxu0 0.0
          %v8973 = vand.u32 %v5823, 4294901760
          %8974 = vmatpush1.msra.mxu0 %v8973
          %8975 = vmatprep.subr.mxu0 0.0
          %v8976 = vand.u32 %v5824, 4294901760
          %8977 = vmatpush1.msra.mxu0 %v8976
          %8978 = vmatprep.subr.mxu0 0.0
          %v8979 = vand.u32 %v5825, 4294901760
          %8980 = vmatpush1.msra.mxu0 %v8979
          %8981 = vmatprep.subr.mxu0 0.0
          %8982 = vmatpush1.msra.mxu0 0.0
          %8983 = vmatprep.subr.mxu0 0.0
          %8984 = vmatpush1.msra.mxu0 0.0
          %8985 = vmatprep.subr.mxu0 0.0
          %8986 = vmatpush1.msra.mxu0 0.0
          %8987 = vmatprep.subr.mxu0 0.0
          %8988 = vmatpush1.msra.mxu0 0.0
          %8989 = vmatprep.subr.mxu0 0.0
          %8990 = vmatpush1.msra.mxu0 0.0
          %8991 = vmatprep.subr.mxu0 0.0
          %8992 = vmatpush1.msra.mxu0 0.0
          %8993 = vmatprep.subr.mxu0 0.0
          %8994 = vmatpush1.msra.mxu0 0.0
          %8995 = vmatprep.subr.mxu0 0.0
          %8996 = vmatpush1.msra.mxu0 0.0
          %8997 = vmatprep.subr.mxu0 0.0
          %8998 = vmatpush1.msra.mxu0 0.0
          %8999 = vmatprep.subr.mxu0 0.0
          %9000 = vmatpush1.msra.mxu0 0.0
          %9001 = vmatprep.subr.mxu0 0.0
          %9002 = vmatpush1.msra.mxu0 0.0
          %9003 = vmatprep.subr.mxu0 0.0
          %9004 = vmatpush1.msra.mxu0 0.0
          %9005 = vmatprep.subr.mxu0 0.0
          %9006 = vmatpush1.msra.mxu0 0.0
          %9007 = vmatprep.subr.mxu0 0.0
          %9008 = vmatpush1.msra.mxu0 0.0
          %9009 = vmatprep.subr.mxu0 0.0
          %9010 = vmatpush1.msra.mxu0 0.0
          %9011 = vmatprep.subr.mxu0 0.0
          %9012 = vmatpush1.msra.mxu0 0.0
          %9013 = vmatprep.mubr.f32.mxu0 0.0
          %v9014 = vand.u32 %v8928, 4294901760
          %v9015 = vsub.f32 %v8928, %v9014
          %v9016 = vand.u32 %v9015, 4294901760
          %v9017 = vsub.f32 %v9015, %v9016
          %v9018 = vand.u32 %v9017, 4294901760
          %9019 = vmatmul.mubr.f32.gmra.mrb[0].mxu0 %v9018
          %v9020 = vpop.f32.mrb[0].mxu0
          %v9021 = vadd.f32 %v8932, %v9020
          %v9022 = vpop.f32.mrb[0].mxu0
          %9023 = vdwg.mxu0
          %9024 = vmatprep.subr.mxu0 0.0
          %v9025 = vand.u32 %v5810, 4294901760
          %v9026 = vsub.f32 %v5810, %v9025
          %v9027 = vand.u32 %v9026, 4294901760
          %v9028 = vsub.f32 %v9026, %v9027
          %v9029 = vand.u32 %v9028, 4294901760
          %9030 = vmatpush1.msra.mxu0 %v9029
          %9031 = vmatprep.subr.mxu0 0.0
          %v9032 = vand.u32 %v5811, 4294901760
          %v9033 = vsub.f32 %v5811, %v9032
          %v9034 = vand.u32 %v9033, 4294901760
          %v9035 = vsub.f32 %v9033, %v9034
          %v9036 = vand.u32 %v9035, 4294901760
          %9037 = vmatpush1.msra.mxu0 %v9036
          %9038 = vmatprep.subr.mxu0 0.0
          %v9039 = vand.u32 %v5812, 4294901760
          %v9040 = vsub.f32 %v5812, %v9039
          %v9041 = vand.u32 %v9040, 4294901760
          %v9042 = vsub.f32 %v9040, %v9041
          %v9043 = vand.u32 %v9042, 4294901760
          %9044 = vmatpush1.msra.mxu0 %v9043
          %9045 = vmatprep.subr.mxu0 0.0
          %v9046 = vand.u32 %v5813, 4294901760
          %v9047 = vsub.f32 %v5813, %v9046
          %v9048 = vand.u32 %v9047, 4294901760
          %v9049 = vsub.f32 %v9047, %v9048
          %v9050 = vand.u32 %v9049, 4294901760
          %9051 = vmatpush1.msra.mxu0 %v9050
          %9052 = vmatprep.subr.mxu0 0.0
          %v9053 = vand.u32 %v5814, 4294901760
          %v9054 = vsub.f32 %v5814, %v9053
          %v9055 = vand.u32 %v9054, 4294901760
          %v9056 = vsub.f32 %v9054, %v9055
          %v9057 = vand.u32 %v9056, 4294901760
          %9058 = vmatpush1.msra.mxu0 %v9057
          %9059 = vmatprep.subr.mxu0 0.0
          %v9060 = vand.u32 %v5815, 4294901760
          %v9061 = vsub.f32 %v5815, %v9060
          %v9062 = vand.u32 %v9061, 4294901760
          %v9063 = vsub.f32 %v9061, %v9062
          %v9064 = vand.u32 %v9063, 4294901760
          %9065 = vmatpush1.msra.mxu0 %v9064
          %9066 = vmatprep.subr.mxu0 0.0
          %v9067 = vand.u32 %v5816, 4294901760
          %v9068 = vsub.f32 %v5816, %v9067
          %v9069 = vand.u32 %v9068, 4294901760
          %v9070 = vsub.f32 %v9068, %v9069
          %v9071 = vand.u32 %v9070, 4294901760
          %9072 = vmatpush1.msra.mxu0 %v9071
          %9073 = vmatprep.subr.mxu0 0.0
          %v9074 = vand.u32 %v5817, 4294901760
          %v9075 = vsub.f32 %v5817, %v9074
          %v9076 = vand.u32 %v9075, 4294901760
          %v9077 = vsub.f32 %v9075, %v9076
          %v9078 = vand.u32 %v9077, 4294901760
          %9079 = vmatpush1.msra.mxu0 %v9078
          %9080 = vmatprep.subr.mxu0 0.0
          %v9081 = vand.u32 %v5818, 4294901760
          %v9082 = vsub.f32 %v5818, %v9081
          %v9083 = vand.u32 %v9082, 4294901760
          %v9084 = vsub.f32 %v9082, %v9083
          %v9085 = vand.u32 %v9084, 4294901760
          %9086 = vmatpush1.msra.mxu0 %v9085
          %9087 = vmatprep.subr.mxu0 0.0
          %v9088 = vand.u32 %v5819, 4294901760
          %v9089 = vsub.f32 %v5819, %v9088
          %v9090 = vand.u32 %v9089, 4294901760
          %v9091 = vsub.f32 %v9089, %v9090
          %v9092 = vand.u32 %v9091, 4294901760
          %9093 = vmatpush1.msra.mxu0 %v9092
          %9094 = vmatprep.subr.mxu0 0.0
          %v9095 = vand.u32 %v5820, 4294901760
          %v9096 = vsub.f32 %v5820, %v9095
          %v9097 = vand.u32 %v9096, 4294901760
          %v9098 = vsub.f32 %v9096, %v9097
          %v9099 = vand.u32 %v9098, 4294901760
          %9100 = vmatpush1.msra.mxu0 %v9099
          %9101 = vmatprep.subr.mxu0 0.0
          %v9102 = vand.u32 %v5821, 4294901760
          %v9103 = vsub.f32 %v5821, %v9102
          %v9104 = vand.u32 %v9103, 4294901760
          %v9105 = vsub.f32 %v9103, %v9104
          %v9106 = vand.u32 %v9105, 4294901760
          %9107 = vmatpush1.msra.mxu0 %v9106
          %9108 = vmatprep.subr.mxu0 0.0
          %v9109 = vand.u32 %v5822, 4294901760
          %v9110 = vsub.f32 %v5822, %v9109
          %v9111 = vand.u32 %v9110, 4294901760
          %v9112 = vsub.f32 %v9110, %v9111
          %v9113 = vand.u32 %v9112, 4294901760
          %9114 = vmatpush1.msra.mxu0 %v9113
          %9115 = vmatprep.subr.mxu0 0.0
          %v9116 = vand.u32 %v5823, 4294901760
          %v9117 = vsub.f32 %v5823, %v9116
          %v9118 = vand.u32 %v9117, 4294901760
          %v9119 = vsub.f32 %v9117, %v9118
          %v9120 = vand.u32 %v9119, 4294901760
          %9121 = vmatpush1.msra.mxu0 %v9120
          %9122 = vmatprep.subr.mxu0 0.0
          %v9123 = vand.u32 %v5824, 4294901760
          %v9124 = vsub.f32 %v5824, %v9123
          %v9125 = vand.u32 %v9124, 4294901760
          %v9126 = vsub.f32 %v9124, %v9125
          %v9127 = vand.u32 %v9126, 4294901760
          %9128 = vmatpush1.msra.mxu0 %v9127
          %9129 = vmatprep.subr.mxu0 0.0
          %v9130 = vand.u32 %v5825, 4294901760
          %v9131 = vsub.f32 %v5825, %v9130
          %v9132 = vand.u32 %v9131, 4294901760
          %v9133 = vsub.f32 %v9131, %v9132
          %v9134 = vand.u32 %v9133, 4294901760
          %9135 = vmatpush1.msra.mxu0 %v9134
          %9136 = vmatprep.subr.mxu0 0.0
          %9137 = vmatpush1.msra.mxu0 0.0
          %9138 = vmatprep.subr.mxu0 0.0
          %9139 = vmatpush1.msra.mxu0 0.0
          %9140 = vmatprep.subr.mxu0 0.0
          %9141 = vmatpush1.msra.mxu0 0.0
          %9142 = vmatprep.subr.mxu0 0.0
          %9143 = vmatpush1.msra.mxu0 0.0
          %9144 = vmatprep.subr.mxu0 0.0
          %9145 = vmatpush1.msra.mxu0 0.0
          %9146 = vmatprep.subr.mxu0 0.0
          %9147 = vmatpush1.msra.mxu0 0.0
          %9148 = vmatprep.subr.mxu0 0.0
          %9149 = vmatpush1.msra.mxu0 0.0
          %9150 = vmatprep.subr.mxu0 0.0
          %9151 = vmatpush1.msra.mxu0 0.0
          %9152 = vmatprep.subr.mxu0 0.0
          %9153 = vmatpush1.msra.mxu0 0.0
          %9154 = vmatprep.subr.mxu0 0.0
          %9155 = vmatpush1.msra.mxu0 0.0
          %9156 = vmatprep.subr.mxu0 0.0
          %9157 = vmatpush1.msra.mxu0 0.0
          %9158 = vmatprep.subr.mxu0 0.0
          %9159 = vmatpush1.msra.mxu0 0.0
          %9160 = vmatprep.subr.mxu0 0.0
          %9161 = vmatpush1.msra.mxu0 0.0
          %9162 = vmatprep.subr.mxu0 0.0
          %9163 = vmatpush1.msra.mxu0 0.0
          %9164 = vmatprep.subr.mxu0 0.0
          %9165 = vmatpush1.msra.mxu0 0.0
          %9166 = vmatprep.subr.mxu0 0.0
          %9167 = vmatpush1.msra.mxu0 0.0
          %9168 = vmatprep.mubr.f32.mxu0 0.0
          %v9169 = vand.u32 %v8928, 4294901760
          %9170 = vmatmul.mubr.f32.gmra.mrb[0].mxu0 %v9169
          %v9171 = vpop.f32.mrb[0].mxu0
          %v9172 = vadd.f32 %v9021, %v9171
          %v9173 = vpop.f32.mrb[0].mxu0
          %9174 = vdwg.mxu0
          %9175 = vmatprep.subr.mxu0 0.0
          %v9176 = vand.u32 %v5810, 4294901760
          %v9177 = vsub.f32 %v5810, %v9176
          %9178 = vmatpush1.msra.mxu0 %v9177
          %9179 = vmatprep.subr.mxu0 0.0
          %v9180 = vand.u32 %v5811, 4294901760
          %v9181 = vsub.f32 %v5811, %v9180
          %9182 = vmatpush1.msra.mxu0 %v9181
          %9183 = vmatprep.subr.mxu0 0.0
          %v9184 = vand.u32 %v5812, 4294901760
          %v9185 = vsub.f32 %v5812, %v9184
          %9186 = vmatpush1.msra.mxu0 %v9185
          %9187 = vmatprep.subr.mxu0 0.0
          %v9188 = vand.u32 %v5813, 4294901760
          %v9189 = vsub.f32 %v5813, %v9188
          %9190 = vmatpush1.msra.mxu0 %v9189
          %9191 = vmatprep.subr.mxu0 0.0
          %v9192 = vand.u32 %v5814, 4294901760
          %v9193 = vsub.f32 %v5814, %v9192
          %9194 = vmatpush1.msra.mxu0 %v9193
          %9195 = vmatprep.subr.mxu0 0.0
          %v9196 = vand.u32 %v5815, 4294901760
          %v9197 = vsub.f32 %v5815, %v9196
          %9198 = vmatpush1.msra.mxu0 %v9197
          %9199 = vmatprep.subr.mxu0 0.0
          %v9200 = vand.u32 %v5816, 4294901760
          %v9201 = vsub.f32 %v5816, %v9200
          %9202 = vmatpush1.msra.mxu0 %v9201
          %9203 = vmatprep.subr.mxu0 0.0
          %v9204 = vand.u32 %v5817, 4294901760
          %v9205 = vsub.f32 %v5817, %v9204
          %9206 = vmatpush1.msra.mxu0 %v9205
          %9207 = vmatprep.subr.mxu0 0.0
          %v9208 = vand.u32 %v5818, 4294901760
          %v9209 = vsub.f32 %v5818, %v9208
          %9210 = vmatpush1.msra.mxu0 %v9209
          %9211 = vmatprep.subr.mxu0 0.0
          %v9212 = vand.u32 %v5819, 4294901760
          %v9213 = vsub.f32 %v5819, %v9212
          %9214 = vmatpush1.msra.mxu0 %v9213
          %9215 = vmatprep.subr.mxu0 0.0
          %v9216 = vand.u32 %v5820, 4294901760
          %v9217 = vsub.f32 %v5820, %v9216
          %9218 = vmatpush1.msra.mxu0 %v9217
          %9219 = vmatprep.subr.mxu0 0.0
          %v9220 = vand.u32 %v5821, 4294901760
          %v9221 = vsub.f32 %v5821, %v9220
          %9222 = vmatpush1.msra.mxu0 %v9221
          %9223 = vmatprep.subr.mxu0 0.0
          %v9224 = vand.u32 %v5822, 4294901760
          %v9225 = vsub.f32 %v5822, %v9224
          %9226 = vmatpush1.msra.mxu0 %v9225
          %9227 = vmatprep.subr.mxu0 0.0
          %v9228 = vand.u32 %v5823, 4294901760
          %v9229 = vsub.f32 %v5823, %v9228
          %9230 = vmatpush1.msra.mxu0 %v9229
          %9231 = vmatprep.subr.mxu0 0.0
          %v9232 = vand.u32 %v5824, 4294901760
          %v9233 = vsub.f32 %v5824, %v9232
          %9234 = vmatpush1.msra.mxu0 %v9233
          %9235 = vmatprep.subr.mxu0 0.0
          %v9236 = vand.u32 %v5825, 4294901760
          %v9237 = vsub.f32 %v5825, %v9236
          %9238 = vmatpush1.msra.mxu0 %v9237
          %9239 = vmatprep.subr.mxu0 0.0
          %9240 = vmatpush1.msra.mxu0 0.0
          %9241 = vmatprep.subr.mxu0 0.0
          %9242 = vmatpush1.msra.mxu0 0.0
          %9243 = vmatprep.subr.mxu0 0.0
          %9244 = vmatpush1.msra.mxu0 0.0
          %9245 = vmatprep.subr.mxu0 0.0
          %9246 = vmatpush1.msra.mxu0 0.0
          %9247 = vmatprep.subr.mxu0 0.0
          %9248 = vmatpush1.msra.mxu0 0.0
          %9249 = vmatprep.subr.mxu0 0.0
          %9250 = vmatpush1.msra.mxu0 0.0
          %9251 = vmatprep.subr.mxu0 0.0
          %9252 = vmatpush1.msra.mxu0 0.0
          %9253 = vmatprep.subr.mxu0 0.0
          %9254 = vmatpush1.msra.mxu0 0.0
          %9255 = vmatprep.subr.mxu0 0.0
          %9256 = vmatpush1.msra.mxu0 0.0
          %9257 = vmatprep.subr.mxu0 0.0
          %9258 = vmatpush1.msra.mxu0 0.0
          %9259 = vmatprep.subr.mxu0 0.0
          %9260 = vmatpush1.msra.mxu0 0.0
          %9261 = vmatprep.subr.mxu0 0.0
          %9262 = vmatpush1.msra.mxu0 0.0
          %9263 = vmatprep.subr.mxu0 0.0
          %9264 = vmatpush1.msra.mxu0 0.0
          %9265 = vmatprep.subr.mxu0 0.0
          %9266 = vmatpush1.msra.mxu0 0.0
          %9267 = vmatprep.subr.mxu0 0.0
          %9268 = vmatpush1.msra.mxu0 0.0
          %9269 = vmatprep.subr.mxu0 0.0
          %9270 = vmatpush1.msra.mxu0 0.0
          %9271 = vmatprep.mubr.f32.mxu0 0.0
          %v9272 = vand.u32 %v8928, 4294901760
          %v9273 = vsub.f32 %v8928, %v9272
          %9274 = vmatmul.mubr.f32.gmra.mrb[0].mxu0 %v9273
          %v9275 = vpop.f32.mrb[0].mxu0
          %v9276 = vadd.f32 %v9172, %v9275
          %v9277 = vpop.f32.mrb[0].mxu0
          %9278 = vdwg.mxu0
          %9279 = vmatprep.subr.mxu0 0.0
          %v9280 = vand.u32 %v5810, 4294901760
          %9281 = vmatpush1.msra.mxu0 %v9280
          %9282 = vmatprep.subr.mxu0 0.0
          %v9283 = vand.u32 %v5811, 4294901760
          %9284 = vmatpush1.msra.mxu0 %v9283
          %9285 = vmatprep.subr.mxu0 0.0
          %v9286 = vand.u32 %v5812, 4294901760
          %9287 = vmatpush1.msra.mxu0 %v9286
          %9288 = vmatprep.subr.mxu0 0.0
          %v9289 = vand.u32 %v5813, 4294901760
          %9290 = vmatpush1.msra.mxu0 %v9289
          %9291 = vmatprep.subr.mxu0 0.0
          %v9292 = vand.u32 %v5814, 4294901760
          %9293 = vmatpush1.msra.mxu0 %v9292
          %9294 = vmatprep.subr.mxu0 0.0
          %v9295 = vand.u32 %v5815, 4294901760
          %9296 = vmatpush1.msra.mxu0 %v9295
          %9297 = vmatprep.subr.mxu0 0.0
          %v9298 = vand.u32 %v5816, 4294901760
          %9299 = vmatpush1.msra.mxu0 %v9298
          %9300 = vmatprep.subr.mxu0 0.0
          %v9301 = vand.u32 %v5817, 4294901760
          %9302 = vmatpush1.msra.mxu0 %v9301
          %9303 = vmatprep.subr.mxu0 0.0
          %v9304 = vand.u32 %v5818, 4294901760
          %9305 = vmatpush1.msra.mxu0 %v9304
          %9306 = vmatprep.subr.mxu0 0.0
          %v9307 = vand.u32 %v5819, 4294901760
          %9308 = vmatpush1.msra.mxu0 %v9307
          %9309 = vmatprep.subr.mxu0 0.0
          %v9310 = vand.u32 %v5820, 4294901760
          %9311 = vmatpush1.msra.mxu0 %v9310
          %9312 = vmatprep.subr.mxu0 0.0
          %v9313 = vand.u32 %v5821, 4294901760
          %9314 = vmatpush1.msra.mxu0 %v9313
          %9315 = vmatprep.subr.mxu0 0.0
          %v9316 = vand.u32 %v5822, 4294901760
          %9317 = vmatpush1.msra.mxu0 %v9316
          %9318 = vmatprep.subr.mxu0 0.0
          %v9319 = vand.u32 %v5823, 4294901760
          %9320 = vmatpush1.msra.mxu0 %v9319
          %9321 = vmatprep.subr.mxu0 0.0
          %v9322 = vand.u32 %v5824, 4294901760
          %9323 = vmatpush1.msra.mxu0 %v9322
          %9324 = vmatprep.subr.mxu0 0.0
          %v9325 = vand.u32 %v5825, 4294901760
          %9326 = vmatpush1.msra.mxu0 %v9325
          %9327 = vmatprep.subr.mxu0 0.0
          %9328 = vmatpush1.msra.mxu0 0.0
          %9329 = vmatprep.subr.mxu0 0.0
          %9330 = vmatpush1.msra.mxu0 0.0
          %9331 = vmatprep.subr.mxu0 0.0
          %9332 = vmatpush1.msra.mxu0 0.0
          %9333 = vmatprep.subr.mxu0 0.0
          %9334 = vmatpush1.msra.mxu0 0.0
          %9335 = vmatprep.subr.mxu0 0.0
          %9336 = vmatpush1.msra.mxu0 0.0
          %9337 = vmatprep.subr.mxu0 0.0
          %9338 = vmatpush1.msra.mxu0 0.0
          %9339 = vmatprep.subr.mxu0 0.0
          %9340 = vmatpush1.msra.mxu0 0.0
          %9341 = vmatprep.subr.mxu0 0.0
          %9342 = vmatpush1.msra.mxu0 0.0
          %9343 = vmatprep.subr.mxu0 0.0
          %9344 = vmatpush1.msra.mxu0 0.0
          %9345 = vmatprep.subr.mxu0 0.0
          %9346 = vmatpush1.msra.mxu0 0.0
          %9347 = vmatprep.subr.mxu0 0.0
          %9348 = vmatpush1.msra.mxu0 0.0
          %9349 = vmatprep.subr.mxu0 0.0
          %9350 = vmatpush1.msra.mxu0 0.0
          %9351 = vmatprep.subr.mxu0 0.0
          %9352 = vmatpush1.msra.mxu0 0.0
          %9353 = vmatprep.subr.mxu0 0.0
          %9354 = vmatpush1.msra.mxu0 0.0
          %9355 = vmatprep.subr.mxu0 0.0
          %9356 = vmatpush1.msra.mxu0 0.0
          %9357 = vmatprep.subr.mxu0 0.0
          %9358 = vmatpush1.msra.mxu0 0.0
          %9359 = vmatprep.mubr.f32.mxu0 0.0
          %v9360 = vand.u32 %v8928, 4294901760
          %v9361 = vsub.f32 %v8928, %v9360
          %v9362 = vand.u32 %v9361, 4294901760
          %9363 = vmatmul.mubr.f32.gmra.mrb[0].mxu0 %v9362
          %v9364 = vpop.f32.mrb[0].mxu0
          %v9365 = vadd.f32 %v9276, %v9364
          %v9366 = vpop.f32.mrb[0].mxu0
          %9367 = vdwg.mxu0
          %9368 = vmatprep.subr.mxu0 0.0
          %v9369 = vand.u32 %v5810, 4294901760
          %v9370 = vsub.f32 %v5810, %v9369
          %v9371 = vand.u32 %v9370, 4294901760
          %9372 = vmatpush1.msra.mxu0 %v9371
          %9373 = vmatprep.subr.mxu0 0.0
          %v9374 = vand.u32 %v5811, 4294901760
          %v9375 = vsub.f32 %v5811, %v9374
          %v9376 = vand.u32 %v9375, 4294901760
          %9377 = vmatpush1.msra.mxu0 %v9376
          %9378 = vmatprep.subr.mxu0 0.0
          %v9379 = vand.u32 %v5812, 4294901760
          %v9380 = vsub.f32 %v5812, %v9379
          %v9381 = vand.u32 %v9380, 4294901760
          %9382 = vmatpush1.msra.mxu0 %v9381
          %9383 = vmatprep.subr.mxu0 0.0
          %v9384 = vand.u32 %v5813, 4294901760
          %v9385 = vsub.f32 %v5813, %v9384
          %v9386 = vand.u32 %v9385, 4294901760
          %9387 = vmatpush1.msra.mxu0 %v9386
          %9388 = vmatprep.subr.mxu0 0.0
          %v9389 = vand.u32 %v5814, 4294901760
          %v9390 = vsub.f32 %v5814, %v9389
          %v9391 = vand.u32 %v9390, 4294901760
          %9392 = vmatpush1.msra.mxu0 %v9391
          %9393 = vmatprep.subr.mxu0 0.0
          %v9394 = vand.u32 %v5815, 4294901760
          %v9395 = vsub.f32 %v5815, %v9394
          %v9396 = vand.u32 %v9395, 4294901760
          %9397 = vmatpush1.msra.mxu0 %v9396
          %9398 = vmatprep.subr.mxu0 0.0
          %v9399 = vand.u32 %v5816, 4294901760
          %v9400 = vsub.f32 %v5816, %v9399
          %v9401 = vand.u32 %v9400, 4294901760
          %9402 = vmatpush1.msra.mxu0 %v9401
          %9403 = vmatprep.subr.mxu0 0.0
          %v9404 = vand.u32 %v5817, 4294901760
          %v9405 = vsub.f32 %v5817, %v9404
          %v9406 = vand.u32 %v9405, 4294901760
          %9407 = vmatpush1.msra.mxu0 %v9406
          %9408 = vmatprep.subr.mxu0 0.0
          %v9409 = vand.u32 %v5818, 4294901760
          %v9410 = vsub.f32 %v5818, %v9409
          %v9411 = vand.u32 %v9410, 4294901760
          %9412 = vmatpush1.msra.mxu0 %v9411
          %9413 = vmatprep.subr.mxu0 0.0
          %v9414 = vand.u32 %v5819, 4294901760
          %v9415 = vsub.f32 %v5819, %v9414
          %v9416 = vand.u32 %v9415, 4294901760
          %9417 = vmatpush1.msra.mxu0 %v9416
          %9418 = vmatprep.subr.mxu0 0.0
          %v9419 = vand.u32 %v5820, 4294901760
          %v9420 = vsub.f32 %v5820, %v9419
          %v9421 = vand.u32 %v9420, 4294901760
          %9422 = vmatpush1.msra.mxu0 %v9421
          %9423 = vmatprep.subr.mxu0 0.0
          %v9424 = vand.u32 %v5821, 4294901760
          %v9425 = vsub.f32 %v5821, %v9424
          %v9426 = vand.u32 %v9425, 4294901760
          %9427 = vmatpush1.msra.mxu0 %v9426
          %9428 = vmatprep.subr.mxu0 0.0
          %v9429 = vand.u32 %v5822, 4294901760
          %v9430 = vsub.f32 %v5822, %v9429
          %v9431 = vand.u32 %v9430, 4294901760
          %9432 = vmatpush1.msra.mxu0 %v9431
          %9433 = vmatprep.subr.mxu0 0.0
          %v9434 = vand.u32 %v5823, 4294901760
          %v9435 = vsub.f32 %v5823, %v9434
          %v9436 = vand.u32 %v9435, 4294901760
          %9437 = vmatpush1.msra.mxu0 %v9436
          %9438 = vmatprep.subr.mxu0 0.0
          %v9439 = vand.u32 %v5824, 4294901760
          %v9440 = vsub.f32 %v5824, %v9439
          %v9441 = vand.u32 %v9440, 4294901760
          %9442 = vmatpush1.msra.mxu0 %v9441
          %9443 = vmatprep.subr.mxu0 0.0
          %v9444 = vand.u32 %v5825, 4294901760
          %v9445 = vsub.f32 %v5825, %v9444
          %v9446 = vand.u32 %v9445, 4294901760
          %9447 = vmatpush1.msra.mxu0 %v9446
          %9448 = vmatprep.subr.mxu0 0.0
          %9449 = vmatpush1.msra.mxu0 0.0
          %9450 = vmatprep.subr.mxu0 0.0
          %9451 = vmatpush1.msra.mxu0 0.0
          %9452 = vmatprep.subr.mxu0 0.0
          %9453 = vmatpush1.msra.mxu0 0.0
          %9454 = vmatprep.subr.mxu0 0.0
          %9455 = vmatpush1.msra.mxu0 0.0
          %9456 = vmatprep.subr.mxu0 0.0
          %9457 = vmatpush1.msra.mxu0 0.0
          %9458 = vmatprep.subr.mxu0 0.0
          %9459 = vmatpush1.msra.mxu0 0.0
          %9460 = vmatprep.subr.mxu0 0.0
          %9461 = vmatpush1.msra.mxu0 0.0
          %9462 = vmatprep.subr.mxu0 0.0
          %9463 = vmatpush1.msra.mxu0 0.0
          %9464 = vmatprep.subr.mxu0 0.0
          %9465 = vmatpush1.msra.mxu0 0.0
          %9466 = vmatprep.subr.mxu0 0.0
          %9467 = vmatpush1.msra.mxu0 0.0
          %9468 = vmatprep.subr.mxu0 0.0
          %9469 = vmatpush1.msra.mxu0 0.0
          %9470 = vmatprep.subr.mxu0 0.0
          %9471 = vmatpush1.msra.mxu0 0.0
          %9472 = vmatprep.subr.mxu0 0.0
          %9473 = vmatpush1.msra.mxu0 0.0
          %9474 = vmatprep.subr.mxu0 0.0
          %9475 = vmatpush1.msra.mxu0 0.0
          %9476 = vmatprep.subr.mxu0 0.0
          %9477 = vmatpush1.msra.mxu0 0.0
          %9478 = vmatprep.subr.mxu0 0.0
          %9479 = vmatpush1.msra.mxu0 0.0
          %9480 = vmatprep.mubr.f32.mxu0 0.0
          %v9481 = vand.u32 %v8928, 4294901760
          %9482 = vmatmul.mubr.f32.gmra.mrb[0].mxu0 %v9481
          %v9483 = vpop.f32.mrb[0].mxu0
          %v9484 = vadd.f32 %v9365, %v9483
          %v9485 = vpop.f32.mrb[0].mxu0
          %9486 = vdwg.mxu0
          %9487 = vmatprep.subr.mxu0 0.0
          %v9488 = vand.u32 %v5810, 4294901760
          %9489 = vmatpush1.msra.mxu0 %v9488
          %9490 = vmatprep.subr.mxu0 0.0
          %v9491 = vand.u32 %v5811, 4294901760
          %9492 = vmatpush1.msra.mxu0 %v9491
          %9493 = vmatprep.subr.mxu0 0.0
          %v9494 = vand.u32 %v5812, 4294901760
          %9495 = vmatpush1.msra.mxu0 %v9494
          %9496 = vmatprep.subr.mxu0 0.0
          %v9497 = vand.u32 %v5813, 4294901760
          %9498 = vmatpush1.msra.mxu0 %v9497
          %9499 = vmatprep.subr.mxu0 0.0
          %v9500 = vand.u32 %v5814, 4294901760
          %9501 = vmatpush1.msra.mxu0 %v9500
          %9502 = vmatprep.subr.mxu0 0.0
          %v9503 = vand.u32 %v5815, 4294901760
          %9504 = vmatpush1.msra.mxu0 %v9503
          %9505 = vmatprep.subr.mxu0 0.0
          %v9506 = vand.u32 %v5816, 4294901760
          %9507 = vmatpush1.msra.mxu0 %v9506
          %9508 = vmatprep.subr.mxu0 0.0
          %v9509 = vand.u32 %v5817, 4294901760
          %9510 = vmatpush1.msra.mxu0 %v9509
          %9511 = vmatprep.subr.mxu0 0.0
          %v9512 = vand.u32 %v5818, 4294901760
          %9513 = vmatpush1.msra.mxu0 %v9512
          %9514 = vmatprep.subr.mxu0 0.0
          %v9515 = vand.u32 %v5819, 4294901760
          %9516 = vmatpush1.msra.mxu0 %v9515
          %9517 = vmatprep.subr.mxu0 0.0
          %v9518 = vand.u32 %v5820, 4294901760
          %9519 = vmatpush1.msra.mxu0 %v9518
          %9520 = vmatprep.subr.mxu0 0.0
          %v9521 = vand.u32 %v5821, 4294901760
          %9522 = vmatpush1.msra.mxu0 %v9521
          %9523 = vmatprep.subr.mxu0 0.0
          %v9524 = vand.u32 %v5822, 4294901760
          %9525 = vmatpush1.msra.mxu0 %v9524
          %9526 = vmatprep.subr.mxu0 0.0
          %v9527 = vand.u32 %v5823, 4294901760
          %9528 = vmatpush1.msra.mxu0 %v9527
          %9529 = vmatprep.subr.mxu0 0.0
          %v9530 = vand.u32 %v5824, 4294901760
          %9531 = vmatpush1.msra.mxu0 %v9530
          %9532 = vmatprep.subr.mxu0 0.0
          %v9533 = vand.u32 %v5825, 4294901760
          %9534 = vmatpush1.msra.mxu0 %v9533
          %9535 = vmatprep.subr.mxu0 0.0
          %9536 = vmatpush1.msra.mxu0 0.0
          %9537 = vmatprep.subr.mxu0 0.0
          %9538 = vmatpush1.msra.mxu0 0.0
          %9539 = vmatprep.subr.mxu0 0.0
          %9540 = vmatpush1.msra.mxu0 0.0
          %9541 = vmatprep.subr.mxu0 0.0
          %9542 = vmatpush1.msra.mxu0 0.0
          %9543 = vmatprep.subr.mxu0 0.0
          %9544 = vmatpush1.msra.mxu0 0.0
          %9545 = vmatprep.subr.mxu0 0.0
          %9546 = vmatpush1.msra.mxu0 0.0
          %9547 = vmatprep.subr.mxu0 0.0
          %9548 = vmatpush1.msra.mxu0 0.0
          %9549 = vmatprep.subr.mxu0 0.0
          %9550 = vmatpush1.msra.mxu0 0.0
          %9551 = vmatprep.subr.mxu0 0.0
          %9552 = vmatpush1.msra.mxu0 0.0
          %9553 = vmatprep.subr.mxu0 0.0
          %9554 = vmatpush1.msra.mxu0 0.0
          %9555 = vmatprep.subr.mxu0 0.0
          %9556 = vmatpush1.msra.mxu0 0.0
          %9557 = vmatprep.subr.mxu0 0.0
          %9558 = vmatpush1.msra.mxu0 0.0
          %9559 = vmatprep.subr.mxu0 0.0
          %9560 = vmatpush1.msra.mxu0 0.0
          %9561 = vmatprep.subr.mxu0 0.0
          %9562 = vmatpush1.msra.mxu0 0.0
          %9563 = vmatprep.subr.mxu0 0.0
          %9564 = vmatpush1.msra.mxu0 0.0
          %9565 = vmatprep.subr.mxu0 0.0
          %9566 = vmatpush1.msra.mxu0 0.0
          %9567 = vmatprep.mubr.f32.mxu0 0.0
          %v9568 = vand.u32 %v8928, 4294901760
          %9569 = vmatmul.mubr.f32.gmra.mrb[0].mxu0 %v9568
          %v9570 = vpop.f32.mrb[0].mxu0
          %v9571 = vadd.f32 %v9484, %v9570
          %v9572 = vpop.f32.mrb[0].mxu0
          %9573 = vdwg.mxu0
          %9574 = vst [vmem:[#allocation11] sm:$0xff] %v8253
          %9575 = vst [vmem:[#allocation11 + $0x8] sm:$0xff] %v9571
        $region60: #{tpu_custom_call.1} parent=35 // pred_fallthru
          _
        // Predicated region
        $region61: #{tpu_custom_call.1} parent=35 // pred_check
          %p9576 = pneg %p130
        $region62: #{tpu_custom_call.1} parent=35 // pred_check_branch
          %9578 = sbr.rel (%p9576) target = $region64
        $region63: #{tpu_custom_call.1} parent=35 // pred_region
          %s9580 = ssub.s32 256, 256
          %9581 = vsyncadd [#allocation5], %s9580
          %s9583 = sshll.u32 [#allocation11], 4
          %s9584 = int_to_ptr.vmem [resolvable:$true] %s9583
          %9586 = dma.vmem_to_hbm [thread:$0]  %s9584, 256, %s4, [#allocation5]
        $region64: #{tpu_custom_call.1} parent=35 // pred_fallthru
          _
        // Predicated region
        $region65: #{tpu_custom_call.1} parent=35 // pred_check
          %p9587 = pneg %p130
        $region66: #{tpu_custom_call.1} parent=35 // pred_check_branch
          %9589 = sbr.rel (%p9587) target = $region68
        $region67: #{tpu_custom_call.1} parent=35 // pred_region
          %9590 = dma.done [#allocation5], 256
        $region68: #{tpu_custom_call.1} parent=35 // pred_fallthru
          _
      $region36: #{tpu_custom_call.1} parent=5 // pred_fallthru
        _
      %p9591 = scmp.le.s32.totalorder 2, %s18
      // Predicated region
      $region69: #{tpu_custom_call.1} parent=5 // pred_check
        %p9592 = pneg %p9591
      $region70: #{tpu_custom_call.1} parent=5 // pred_check_branch
        %9594 = sbr.rel (%p9592) target = $region72
      $region71: #{tpu_custom_call.1} parent=5 // pred_region
        %s9595 = ssub.s32 %s18, 2
      $region72: #{tpu_custom_call.1} parent=5 // pred_fallthru
        _
    $region6: #{tpu_custom_call.1} parent=1 // loop_footer
      %s22 = sadd.s32 1, %s18
    $region7: #{tpu_custom_call.1} parent=1 // loop_footer_branch
      %17 = sbr.rel target = $region3
    $region8: #{tpu_custom_call.1} parent=1 // loop_exit
      _
    %9596 = vsyncpa [#allocation4], 1
    %s9597 = scalar_lea.sflag [#allocation4], 1
    %9598 = vsyncpa %s9597, 1
    %9599 = vsyncpa [#allocation7], 1
    %s9600 = scalar_lea.sflag [#allocation7], 1
    %9601 = vsyncpa %s9600, 1
    %9602 = vsyncpa [#allocation10], 1
    %9603 = vsyncpa [#allocation5], 1
    %s9604 = scalar_lea.sflag [#allocation5], 1
    %9605 = vsyncpa %s9604, 1

</llo_original>
